<compile_context>
chip_gen: v7x
topology: tpu7x:2x2x1
jax: 0.10.0
libtpu: 0.0.40
codegen_flags: <defaults>
</compile_context>

<pallas_src>
import jax
import jax.numpy as jnp
from jax import lax
from jax.experimental import pallas as pl
from jax.experimental.pallas import tpu as pltpu

# ------------------------- model hyper-parameters -------------------------
LATENT_SIZE = 8   # latent_size
NGF = 8           # ngf
NC = 2            # nc
KSIZE = 4
BN_EPS = 1e-5
LRELU_SLOPE = 0.2

# Static layer structure (Cin -> Cout) and static output_padding per layer.
CHANNELS = (LATENT_SIZE, NGF * 8, NGF * 4, NGF * 2, NGF, NC)
OUT_PADS = (0, 1, 0, 0, 0)
NUM_LAYERS = len(CHANNELS) - 1


def _seq_lengths(l0):
    """Per-layer sequence lengths: L_out = 2 * L_in + output_padding."""
    lens = [l0]
    for op in OUT_PADS:
        lens.append(2 * lens[-1] + op)
    return tuple(lens)


# ------------------------------ fused kernel -------------------------------
def _make_generator_kernel(n_batch, lens):
    """Single fused kernel body for the whole 5-layer generator.

    Activations are kept per batch element in a (C, L) layout (channels on
    sublanes, length on lanes).  ConvTranspose1d(k=4, s=2, p=1, op) is
        y[co, j] = sum_t sum_i [j == 2*i - 1 + t] * (w_t^T @ x)[co, i]
    i.e.  y = sum_t (w_t^T @ x) @ S_t   with S_t built from 2-D iota.
    """

    def make_sels(l_in, l_out):
        ii = lax.broadcasted_iota(jnp.int32, (l_in, l_out), 0)   # input pos i
        jj = lax.broadcasted_iota(jnp.int32, (l_in, l_out), 1)   # output pos j
        base = 2 * ii - 1                                        # stride 2, pad 1
        return [jnp.where(jj == base + t, 1.0, 0.0) for t in range(KSIZE)]

    def convt(x2d, w_ref, sels):
        # x2d: (Cin, L_in);  w_ref: (K, Cout, Cin);  sels[t]: (L_in, L_out)
        acc = None
        for t in range(KSIZE):
            z = jnp.dot(w_ref[t], x2d, preferred_element_type=jnp.float32)
            y = jnp.dot(z, sels[t], preferred_element_type=jnp.float32)
            acc = y if acc is None else acc + y
        return acc                                              # (Cout, L_out)

    def kernel(x_ref,
               w1, g1, b1, w2, g2, b2, w3, g3, b3, w4, g4, b4, w5,
               o_ref):
        ws = (w1, w2, w3, w4, w5)
        gs = (g1, g2, g3, g4)
        bs = (b1, b2, b3, b4)

        # per-batch activations in (C, L) layout
        acts = [x_ref[n] for n in range(n_batch)]

        for layer in range(NUM_LAYERS):
            l_in, l_out = lens[layer], lens[layer + 1]
            sels = make_sels(l_in, l_out)                 # shared across batch
            ys = [convt(acts[n], ws[layer], sels) for n in range(n_batch)]

            if layer < NUM_LAYERS - 1:
                # BatchNorm1d training-mode batch stats (biased variance),
                # one-pass E[x^2] - mean^2 in fp32, fused with LeakyReLU(0.2).
                inv_cnt = 1.0 / float(n_batch * l_out)
                s = ys[0].sum(axis=1, keepdims=True)
                ss = (ys[0] * ys[0]).sum(axis=1, keepdims=True)
                for n in range(1, n_batch):
                    s = s + ys[n].sum(axis=1, keepdims=True)
                    ss = ss + (ys[n] * ys[n]).sum(axis=1, keepdims=True)
                mean = s * inv_cnt                              # (Cout, 1)
                var = jnp.maximum(ss * inv_cnt - mean * mean, 0.0)
                scale = gs[layer][...] * lax.rsqrt(var + BN_EPS)  # (Cout, 1)
                shift = bs[layer][...] - mean * scale             # (Cout, 1)
                acts = []
                for n in range(n_batch):
                    yb = ys[n] * scale + shift
                    acts.append(jnp.where(yb >= 0.0, yb, LRELU_SLOPE * yb))
            else:
                # final layer: Tanh, lane-dense store (length on lanes)
                for n in range(n_batch):
                    o_ref[n] = jnp.tanh(ys[n])

    return kernel


# ------------------------------ full forward --------------------------------
@jax.jit
def generator_forward(x_ncl, params):
    """x_ncl: (N, latent_size, L) as in PyTorch NCL. Returns (N, nc, L_out)."""
    n, c_in, l0 = x_ncl.shape
    assert c_in == LATENT_SIZE, c_in
    lens = _seq_lengths(l0)

    operands = [x_ncl.astype(jnp.float32)]
    in_specs = [pl.BlockSpec((n, LATENT_SIZE, l0), lambda i: (0, 0, 0))]
    for layer in range(NUM_LAYERS):
        cout = CHANNELS[layer + 1]
        # PyTorch ConvTranspose1d weight (Cin, Cout, K) -> (K, Cout, Cin)
        w = jnp.transpose(params[layer]["w"], (2, 1, 0)).astype(jnp.float32)
        operands.append(w)
        in_specs.append(pl.BlockSpec(w.shape, lambda i: (0, 0, 0)))
        if layer < NUM_LAYERS - 1:
            g = params[layer]["gamma"].reshape(cout, 1).astype(jnp.float32)
            b = params[layer]["beta"].reshape(cout, 1).astype(jnp.float32)
            operands.extend([g, b])
            in_specs.extend([pl.BlockSpec((cout, 1), lambda i: (0, 0)),
                             pl.BlockSpec((cout, 1), lambda i: (0, 0))])

    # TODO(synk): for large N on v7x, add a parallel batch grid axis with a
    # cross-block BN-stats reduction to use the second TensorCore.
    return pl.pallas_call(
        _make_generator_kernel(n, lens),
        out_shape=jax.ShapeDtypeStruct((n, NC, lens[-1]), jnp.float32),
        grid=(1,),
        in_specs=in_specs,
        out_specs=pl.BlockSpec((n, NC, lens[-1]), lambda i: (0, 0, 0)),
        compiler_params=pltpu.CompilerParams(
            dimension_semantics=("arbitrary",)),
    )(*operands)


# ------------------------------ parameter init ------------------------------
def init_generator_params(key):
    """Deterministic synthetic weights (DCGAN-style init). Weight shapes follow
    nn.ConvTranspose1d(Cin, Cout, 4, ...): (Cin, Cout, 4)."""
    params = []
    for layer in range(NUM_LAYERS):
        cin, cout = CHANNELS[layer], CHANNELS[layer + 1]
        kw, kg = jax.random.split(jax.random.fold_in(key, layer))
        p = {"w": 0.02 * jax.random.normal(kw, (cin, cout, KSIZE), jnp.float32)}
        if layer < NUM_LAYERS - 1:
            p["gamma"] = 1.0 + 0.02 * jax.random.normal(kg, (cout,), jnp.float32)
            p["beta"] = jnp.zeros((cout,), jnp.float32)
        params.append(p)
    return params


# ------------------------- pure-XLA reference (check) ------------------------
@jax.jit
def _reference_forward(x_ncl, params):
    """Pure-XLA reference of the PyTorch Generator forward (fp32)."""
    def convt1d(x, w_pt, op):
        # ConvTranspose1d(k=4, s=2, p=1, output_padding=op) ==
        #   dilate lhs by 2, pad (2, 2+op), correlate with the flipped kernel.
        w = jnp.transpose(jnp.flip(w_pt, axis=2), (1, 0, 2))   # (Cout, Cin, K)
        return lax.conv_general_dilated(
            x, w, window_strides=(1,), padding=[(2, 2 + op)],
            lhs_dilation=(2,), rhs_dilation=(1,),
            dimension_numbers=("NCH", "OIH", "NCH"),
            precision=lax.Precision.HIGHEST)

    h = x_ncl.astype(jnp.float32)
    for layer in range(NUM_LAYERS - 1):
        h = convt1d(h, params[layer]["w"], OUT_PADS[layer])
        mean = h.mean(axis=(0, 2), keepdims=True)
        var = ((h - mean) ** 2).mean(axis=(0, 2), keepdims=True)
        h = (h - mean) * lax.rsqrt(var + BN_EPS)
        h = (h * params[layer]["gamma"].reshape(1, -1, 1)
             + params[layer]["beta"].reshape(1, -1, 1))
        h = jnp.where(h >= 0, h, LRELU_SLOPE * h)
    h = convt1d(h, params[NUM_LAYERS - 1]["w"], OUT_PADS[-1])
    return jnp.tanh(h)


# ----------------------------------- main ------------------------------------
if __name__ == "__main__":
    key = jax.random.PRNGKey(0)
    k_in, k_par = jax.random.split(key)

    N, L = 2, 8
    x = jax.random.normal(k_in, (N, LATENT_SIZE, L), jnp.float32)
    params = init_generator_params(k_par)

    out = jax.block_until_ready(generator_forward(x, params))

    # expected length chain: 8 -> 16 -> 33 -> 66 -> 132 -> 264
    expected_len = 32 * L + 8
    assert out.shape == (N, NC, expected_len), out.shape
    assert bool(jnp.all(jnp.isfinite(out))), "non-finite output"
    assert bool(jnp.all(jnp.abs(out) <= 1.0)), "tanh range violated"

    ref = jax.block_until_ready(_reference_forward(x, params))
    max_err = float(jnp.max(jnp.abs(out - ref)))
    assert max_err < 5e-2, f"mismatch vs XLA reference: {max_err}"

    print("KERNEL_OK")
</pallas_src>

<mosaic_0001>
module attributes {stable_mosaic.version = 11 : i64} {
  func.func @kernel(%arg0: i32, %arg1: memref<2x8x8xf32, #tpu.memory_space<vmem>>, %arg2: memref<4x64x8xf32, #tpu.memory_space<vmem>>, %arg3: memref<64x1xf32, #tpu.memory_space<vmem>>, %arg4: memref<64x1xf32, #tpu.memory_space<vmem>>, %arg5: memref<4x32x64xf32, #tpu.memory_space<vmem>>, %arg6: memref<32x1xf32, #tpu.memory_space<vmem>>, %arg7: memref<32x1xf32, #tpu.memory_space<vmem>>, %arg8: memref<4x16x32xf32, #tpu.memory_space<vmem>>, %arg9: memref<16x1xf32, #tpu.memory_space<vmem>>, %arg10: memref<16x1xf32, #tpu.memory_space<vmem>>, %arg11: memref<4x8x16xf32, #tpu.memory_space<vmem>>, %arg12: memref<8x1xf32, #tpu.memory_space<vmem>>, %arg13: memref<8x1xf32, #tpu.memory_space<vmem>>, %arg14: memref<4x2x8xf32, #tpu.memory_space<vmem>>, %arg15: memref<2x2x264xf32, #tpu.memory_space<vmem>>) attributes {dimension_semantics = [#tpu.dimension_semantics<arbitrary>], iteration_bounds = array<i64: 1>, scalar_prefetch = 0 : i64, scratch_operands = 0 : i64, tpu.core_type = #tpu.core_type<tc>, window_params = [{pipeline_mode = #tpu.pipeline_mode<synchronous>, transform_indices = @transform_0, window_bounds = array<i64: 2, 8, 8>}, {pipeline_mode = #tpu.pipeline_mode<synchronous>, transform_indices = @transform_1, window_bounds = array<i64: 4, 64, 8>}, {pipeline_mode = #tpu.pipeline_mode<synchronous>, transform_indices = @transform_2, window_bounds = array<i64: 64, 1>}, {pipeline_mode = #tpu.pipeline_mode<synchronous>, transform_indices = @transform_3, window_bounds = array<i64: 64, 1>}, {pipeline_mode = #tpu.pipeline_mode<synchronous>, transform_indices = @transform_4, window_bounds = array<i64: 4, 32, 64>}, {pipeline_mode = #tpu.pipeline_mode<synchronous>, transform_indices = @transform_5, window_bounds = array<i64: 32, 1>}, {pipeline_mode = #tpu.pipeline_mode<synchronous>, transform_indices = @transform_6, window_bounds = array<i64: 32, 1>}, {pipeline_mode = #tpu.pipeline_mode<synchronous>, transform_indices = @transform_7, window_bounds = array<i64: 4, 16, 32>}, {pipeline_mode = #tpu.pipeline_mode<synchronous>, transform_indices = @transform_8, window_bounds = array<i64: 16, 1>}, {pipeline_mode = #tpu.pipeline_mode<synchronous>, transform_indices = @transform_9, window_bounds = array<i64: 16, 1>}, {pipeline_mode = #tpu.pipeline_mode<synchronous>, transform_indices = @transform_10, window_bounds = array<i64: 4, 8, 16>}, {pipeline_mode = #tpu.pipeline_mode<synchronous>, transform_indices = @transform_11, window_bounds = array<i64: 8, 1>}, {pipeline_mode = #tpu.pipeline_mode<synchronous>, transform_indices = @transform_12, window_bounds = array<i64: 8, 1>}, {pipeline_mode = #tpu.pipeline_mode<synchronous>, transform_indices = @transform_13, window_bounds = array<i64: 4, 2, 8>}, {pipeline_mode = #tpu.pipeline_mode<synchronous>, transform_indices = @transform_14, window_bounds = array<i64: 2, 2, 264>}]} {
    %c0 = arith.constant 0 : index
    %c0_0 = arith.constant 0 : index
    %c0_1 = arith.constant 0 : index
    %0 = vector.load %arg1[%c0, %c0_0, %c0_1] : memref<2x8x8xf32, #tpu.memory_space<vmem>>, vector<1x8x8xf32>
    %1 = vector.shape_cast %0 : vector<1x8x8xf32> to vector<8x8xf32>
    %c1 = arith.constant 1 : index
    %c0_2 = arith.constant 0 : index
    %c0_3 = arith.constant 0 : index
    %2 = vector.load %arg1[%c1, %c0_2, %c0_3] : memref<2x8x8xf32, #tpu.memory_space<vmem>>, vector<1x8x8xf32>
    %3 = vector.shape_cast %2 : vector<1x8x8xf32> to vector<8x8xf32>
    %4 = tpu.iota {dimensions = array<i32: 0>} : vector<8x16xi32>
    %5 = tpu.iota {dimensions = array<i32: 1>} : vector<8x16xi32>
    %c2_i32 = arith.constant 2 : i32
    %6 = vector.broadcast %c2_i32 : i32 to vector<8x16xi32>
    %7 = arith.muli %6, %4 : vector<8x16xi32>
    %c1_i32 = arith.constant 1 : i32
    %8 = vector.broadcast %c1_i32 : i32 to vector<8x16xi32>
    %9 = arith.subi %7, %8 : vector<8x16xi32>
    %c0_i32 = arith.constant 0 : i32
    %10 = vector.broadcast %c0_i32 : i32 to vector<8x16xi32>
    %11 = arith.addi %9, %10 : vector<8x16xi32>
    %12 = arith.cmpi eq, %5, %11 : vector<8x16xi32>
    %cst = arith.constant 1.000000e+00 : f32
    %cst_4 = arith.constant 0.000000e+00 : f32
    %13 = vector.broadcast %cst : f32 to vector<8x16xf32>
    %14 = vector.broadcast %cst_4 : f32 to vector<8x16xf32>
    %15 = arith.select %12, %13, %14 : vector<8x16xi1>, vector<8x16xf32>
    %c1_i32_5 = arith.constant 1 : i32
    %16 = vector.broadcast %c1_i32_5 : i32 to vector<8x16xi32>
    %17 = arith.addi %9, %16 : vector<8x16xi32>
    %18 = arith.cmpi eq, %5, %17 : vector<8x16xi32>
    %cst_6 = arith.constant 1.000000e+00 : f32
    %cst_7 = arith.constant 0.000000e+00 : f32
    %19 = vector.broadcast %cst_6 : f32 to vector<8x16xf32>
    %20 = vector.broadcast %cst_7 : f32 to vector<8x16xf32>
    %21 = arith.select %18, %19, %20 : vector<8x16xi1>, vector<8x16xf32>
    %c2_i32_8 = arith.constant 2 : i32
    %22 = vector.broadcast %c2_i32_8 : i32 to vector<8x16xi32>
    %23 = arith.addi %9, %22 : vector<8x16xi32>
    %24 = arith.cmpi eq, %5, %23 : vector<8x16xi32>
    %cst_9 = arith.constant 1.000000e+00 : f32
    %cst_10 = arith.constant 0.000000e+00 : f32
    %25 = vector.broadcast %cst_9 : f32 to vector<8x16xf32>
    %26 = vector.broadcast %cst_10 : f32 to vector<8x16xf32>
    %27 = arith.select %24, %25, %26 : vector<8x16xi1>, vector<8x16xf32>
    %c3_i32 = arith.constant 3 : i32
    %28 = vector.broadcast %c3_i32 : i32 to vector<8x16xi32>
    %29 = arith.addi %9, %28 : vector<8x16xi32>
    %30 = arith.cmpi eq, %5, %29 : vector<8x16xi32>
    %cst_11 = arith.constant 1.000000e+00 : f32
    %cst_12 = arith.constant 0.000000e+00 : f32
    %31 = vector.broadcast %cst_11 : f32 to vector<8x16xf32>
    %32 = vector.broadcast %cst_12 : f32 to vector<8x16xf32>
    %33 = arith.select %30, %31, %32 : vector<8x16xi1>, vector<8x16xf32>
    %c0_13 = arith.constant 0 : index
    %c0_14 = arith.constant 0 : index
    %c0_15 = arith.constant 0 : index
    %34 = vector.load %arg2[%c0_13, %c0_14, %c0_15] : memref<4x64x8xf32, #tpu.memory_space<vmem>>, vector<1x64x8xf32>
    %35 = vector.shape_cast %34 : vector<1x64x8xf32> to vector<64x8xf32>
    %cst_16 = arith.constant dense<0.000000e+00> : vector<64x8xf32>
    %36 = tpu.matmul %35, %1, %cst_16 {dimension_numbers = #tpu.dot_dimension_numbers<[1], [0], [0], [1], [0, 0, 1, 1], [], []>} : vector<64x8xf32>, vector<8x8xf32>, vector<64x8xf32> -> vector<64x8xf32>
    %cst_17 = arith.constant dense<0.000000e+00> : vector<64x16xf32>
    %37 = tpu.matmul %36, %15, %cst_17 {dimension_numbers = #tpu.dot_dimension_numbers<[1], [0], [0], [1], [0, 0, 1, 1], [], []>} : vector<64x8xf32>, vector<8x16xf32>, vector<64x16xf32> -> vector<64x16xf32>
    %c1_18 = arith.constant 1 : index
    %c0_19 = arith.constant 0 : index
    %c0_20 = arith.constant 0 : index
    %38 = vector.load %arg2[%c1_18, %c0_19, %c0_20] : memref<4x64x8xf32, #tpu.memory_space<vmem>>, vector<1x64x8xf32>
    %39 = vector.shape_cast %38 : vector<1x64x8xf32> to vector<64x8xf32>
    %cst_21 = arith.constant dense<0.000000e+00> : vector<64x8xf32>
    %40 = tpu.matmul %39, %1, %cst_21 {dimension_numbers = #tpu.dot_dimension_numbers<[1], [0], [0], [1], [0, 0, 1, 1], [], []>} : vector<64x8xf32>, vector<8x8xf32>, vector<64x8xf32> -> vector<64x8xf32>
    %cst_22 = arith.constant dense<0.000000e+00> : vector<64x16xf32>
    %41 = tpu.matmul %40, %21, %cst_22 {dimension_numbers = #tpu.dot_dimension_numbers<[1], [0], [0], [1], [0, 0, 1, 1], [], []>} : vector<64x8xf32>, vector<8x16xf32>, vector<64x16xf32> -> vector<64x16xf32>
    %42 = arith.addf %37, %41 : vector<64x16xf32>
    %c2 = arith.constant 2 : index
    %c0_23 = arith.constant 0 : index
    %c0_24 = arith.constant 0 : index
    %43 = vector.load %arg2[%c2, %c0_23, %c0_24] : memref<4x64x8xf32, #tpu.memory_space<vmem>>, vector<1x64x8xf32>
    %44 = vector.shape_cast %43 : vector<1x64x8xf32> to vector<64x8xf32>
    %cst_25 = arith.constant dense<0.000000e+00> : vector<64x8xf32>
    %45 = tpu.matmul %44, %1, %cst_25 {dimension_numbers = #tpu.dot_dimension_numbers<[1], [0], [0], [1], [0, 0, 1, 1], [], []>} : vector<64x8xf32>, vector<8x8xf32>, vector<64x8xf32> -> vector<64x8xf32>
    %cst_26 = arith.constant dense<0.000000e+00> : vector<64x16xf32>
    %46 = tpu.matmul %45, %27, %cst_26 {dimension_numbers = #tpu.dot_dimension_numbers<[1], [0], [0], [1], [0, 0, 1, 1], [], []>} : vector<64x8xf32>, vector<8x16xf32>, vector<64x16xf32> -> vector<64x16xf32>
    %47 = arith.addf %42, %46 : vector<64x16xf32>
    %c3 = arith.constant 3 : index
    %c0_27 = arith.constant 0 : index
    %c0_28 = arith.constant 0 : index
    %48 = vector.load %arg2[%c3, %c0_27, %c0_28] : memref<4x64x8xf32, #tpu.memory_space<vmem>>, vector<1x64x8xf32>
    %49 = vector.shape_cast %48 : vector<1x64x8xf32> to vector<64x8xf32>
    %cst_29 = arith.constant dense<0.000000e+00> : vector<64x8xf32>
    %50 = tpu.matmul %49, %1, %cst_29 {dimension_numbers = #tpu.dot_dimension_numbers<[1], [0], [0], [1], [0, 0, 1, 1], [], []>} : vector<64x8xf32>, vector<8x8xf32>, vector<64x8xf32> -> vector<64x8xf32>
    %cst_30 = arith.constant dense<0.000000e+00> : vector<64x16xf32>
    %51 = tpu.matmul %50, %33, %cst_30 {dimension_numbers = #tpu.dot_dimension_numbers<[1], [0], [0], [1], [0, 0, 1, 1], [], []>} : vector<64x8xf32>, vector<8x16xf32>, vector<64x16xf32> -> vector<64x16xf32>
    %52 = arith.addf %47, %51 : vector<64x16xf32>
    %c0_31 = arith.constant 0 : index
    %c0_32 = arith.constant 0 : index
    %c0_33 = arith.constant 0 : index
    %53 = vector.load %arg2[%c0_31, %c0_32, %c0_33] : memref<4x64x8xf32, #tpu.memory_space<vmem>>, vector<1x64x8xf32>
    %54 = vector.shape_cast %53 : vector<1x64x8xf32> to vector<64x8xf32>
    %cst_34 = arith.constant dense<0.000000e+00> : vector<64x8xf32>
    %55 = tpu.matmul %54, %3, %cst_34 {dimension_numbers = #tpu.dot_dimension_numbers<[1], [0], [0], [1], [0, 0, 1, 1], [], []>} : vector<64x8xf32>, vector<8x8xf32>, vector<64x8xf32> -> vector<64x8xf32>
    %cst_35 = arith.constant dense<0.000000e+00> : vector<64x16xf32>
    %56 = tpu.matmul %55, %15, %cst_35 {dimension_numbers = #tpu.dot_dimension_numbers<[1], [0], [0], [1], [0, 0, 1, 1], [], []>} : vector<64x8xf32>, vector<8x16xf32>, vector<64x16xf32> -> vector<64x16xf32>
    %c1_36 = arith.constant 1 : index
    %c0_37 = arith.constant 0 : index
    %c0_38 = arith.constant 0 : index
    %57 = vector.load %arg2[%c1_36, %c0_37, %c0_38] : memref<4x64x8xf32, #tpu.memory_space<vmem>>, vector<1x64x8xf32>
    %58 = vector.shape_cast %57 : vector<1x64x8xf32> to vector<64x8xf32>
    %cst_39 = arith.constant dense<0.000000e+00> : vector<64x8xf32>
    %59 = tpu.matmul %58, %3, %cst_39 {dimension_numbers = #tpu.dot_dimension_numbers<[1], [0], [0], [1], [0, 0, 1, 1], [], []>} : vector<64x8xf32>, vector<8x8xf32>, vector<64x8xf32> -> vector<64x8xf32>
    %cst_40 = arith.constant dense<0.000000e+00> : vector<64x16xf32>
    %60 = tpu.matmul %59, %21, %cst_40 {dimension_numbers = #tpu.dot_dimension_numbers<[1], [0], [0], [1], [0, 0, 1, 1], [], []>} : vector<64x8xf32>, vector<8x16xf32>, vector<64x16xf32> -> vector<64x16xf32>
    %61 = arith.addf %56, %60 : vector<64x16xf32>
    %c2_41 = arith.constant 2 : index
    %c0_42 = arith.constant 0 : index
    %c0_43 = arith.constant 0 : index
    %62 = vector.load %arg2[%c2_41, %c0_42, %c0_43] : memref<4x64x8xf32, #tpu.memory_space<vmem>>, vector<1x64x8xf32>
    %63 = vector.shape_cast %62 : vector<1x64x8xf32> to vector<64x8xf32>
    %cst_44 = arith.constant dense<0.000000e+00> : vector<64x8xf32>
    %64 = tpu.matmul %63, %3, %cst_44 {dimension_numbers = #tpu.dot_dimension_numbers<[1], [0], [0], [1], [0, 0, 1, 1], [], []>} : vector<64x8xf32>, vector<8x8xf32>, vector<64x8xf32> -> vector<64x8xf32>
    %cst_45 = arith.constant dense<0.000000e+00> : vector<64x16xf32>
    %65 = tpu.matmul %64, %27, %cst_45 {dimension_numbers = #tpu.dot_dimension_numbers<[1], [0], [0], [1], [0, 0, 1, 1], [], []>} : vector<64x8xf32>, vector<8x16xf32>, vector<64x16xf32> -> vector<64x16xf32>
    %66 = arith.addf %61, %65 : vector<64x16xf32>
    %c3_46 = arith.constant 3 : index
    %c0_47 = arith.constant 0 : index
    %c0_48 = arith.constant 0 : index
    %67 = vector.load %arg2[%c3_46, %c0_47, %c0_48] : memref<4x64x8xf32, #tpu.memory_space<vmem>>, vector<1x64x8xf32>
    %68 = vector.shape_cast %67 : vector<1x64x8xf32> to vector<64x8xf32>
    %cst_49 = arith.constant dense<0.000000e+00> : vector<64x8xf32>
    %69 = tpu.matmul %68, %3, %cst_49 {dimension_numbers = #tpu.dot_dimension_numbers<[1], [0], [0], [1], [0, 0, 1, 1], [], []>} : vector<64x8xf32>, vector<8x8xf32>, vector<64x8xf32> -> vector<64x8xf32>
    %cst_50 = arith.constant dense<0.000000e+00> : vector<64x16xf32>
    %70 = tpu.matmul %69, %33, %cst_50 {dimension_numbers = #tpu.dot_dimension_numbers<[1], [0], [0], [1], [0, 0, 1, 1], [], []>} : vector<64x8xf32>, vector<8x16xf32>, vector<64x16xf32> -> vector<64x16xf32>
    %71 = arith.addf %66, %70 : vector<64x16xf32>
    %cst_51 = arith.constant dense<0.000000e+00> : vector<64xf32>
    %72 = vector.multi_reduction <add>, %52, %cst_51 [1] : vector<64x16xf32> to vector<64xf32>
    %73 = vector.shape_cast %72 : vector<64xf32> to vector<64x1xf32>
    %74 = arith.mulf %52, %52 : vector<64x16xf32>
    %cst_52 = arith.constant dense<0.000000e+00> : vector<64xf32>
    %75 = vector.multi_reduction <add>, %74, %cst_52 [1] : vector<64x16xf32> to vector<64xf32>
    %76 = vector.shape_cast %75 : vector<64xf32> to vector<64x1xf32>
    %cst_53 = arith.constant dense<0.000000e+00> : vector<64xf32>
    %77 = vector.multi_reduction <add>, %71, %cst_53 [1] : vector<64x16xf32> to vector<64xf32>
    %78 = vector.shape_cast %77 : vector<64xf32> to vector<64x1xf32>
    %79 = arith.addf %73, %78 : vector<64x1xf32>
    %80 = arith.mulf %71, %71 : vector<64x16xf32>
    %cst_54 = arith.constant dense<0.000000e+00> : vector<64xf32>
    %81 = vector.multi_reduction <add>, %80, %cst_54 [1] : vector<64x16xf32> to vector<64xf32>
    %82 = vector.shape_cast %81 : vector<64xf32> to vector<64x1xf32>
    %83 = arith.addf %76, %82 : vector<64x1xf32>
    %cst_55 = arith.constant 3.125000e-02 : f32
    %84 = vector.broadcast %cst_55 : f32 to vector<64x1xf32>
    %85 = arith.mulf %79, %84 : vector<64x1xf32>
    %cst_56 = arith.constant 3.125000e-02 : f32
    %86 = vector.broadcast %cst_56 : f32 to vector<64x1xf32>
    %87 = arith.mulf %83, %86 : vector<64x1xf32>
    %88 = arith.mulf %85, %85 : vector<64x1xf32>
    %89 = arith.subf %87, %88 : vector<64x1xf32>
    %cst_57 = arith.constant 0.000000e+00 : f32
    %90 = vector.broadcast %cst_57 : f32 to vector<64x1xf32>
    %91 = arith.maximumf %89, %90 : vector<64x1xf32>
    %c0_58 = arith.constant 0 : index
    %c0_59 = arith.constant 0 : index
    %92 = vector.load %arg3[%c0_58, %c0_59] : memref<64x1xf32, #tpu.memory_space<vmem>>, vector<64x1xf32>
    %cst_60 = arith.constant 9.99999974E-6 : f32
    %93 = vector.broadcast %cst_60 : f32 to vector<64x1xf32>
    %94 = arith.addf %91, %93 : vector<64x1xf32>
    %95 = math.rsqrt %94 : vector<64x1xf32>
    %96 = arith.mulf %92, %95 : vector<64x1xf32>
    %c0_61 = arith.constant 0 : index
    %c0_62 = arith.constant 0 : index
    %97 = vector.load %arg4[%c0_61, %c0_62] : memref<64x1xf32, #tpu.memory_space<vmem>>, vector<64x1xf32>
    %98 = arith.mulf %85, %96 : vector<64x1xf32>
    %99 = arith.subf %97, %98 : vector<64x1xf32>
    %100 = vector.broadcast %96 : vector<64x1xf32> to vector<64x16xf32>
    %101 = arith.mulf %52, %100 : vector<64x16xf32>
    %102 = vector.broadcast %99 : vector<64x1xf32> to vector<64x16xf32>
    %103 = arith.addf %101, %102 : vector<64x16xf32>
    %cst_63 = arith.constant 0.000000e+00 : f32
    %104 = vector.broadcast %cst_63 : f32 to vector<64x16xf32>
    %105 = arith.cmpf oge, %103, %104 : vector<64x16xf32>
    %cst_64 = arith.constant 2.000000e-01 : f32
    %106 = vector.broadcast %cst_64 : f32 to vector<64x16xf32>
    %107 = arith.mulf %106, %103 : vector<64x16xf32>
    %108 = arith.select %105, %103, %107 : vector<64x16xi1>, vector<64x16xf32>
    %109 = vector.broadcast %96 : vector<64x1xf32> to vector<64x16xf32>
    %110 = arith.mulf %71, %109 : vector<64x16xf32>
    %111 = vector.broadcast %99 : vector<64x1xf32> to vector<64x16xf32>
    %112 = arith.addf %110, %111 : vector<64x16xf32>
    %cst_65 = arith.constant 0.000000e+00 : f32
    %113 = vector.broadcast %cst_65 : f32 to vector<64x16xf32>
    %114 = arith.cmpf oge, %112, %113 : vector<64x16xf32>
    %cst_66 = arith.constant 2.000000e-01 : f32
    %115 = vector.broadcast %cst_66 : f32 to vector<64x16xf32>
    %116 = arith.mulf %115, %112 : vector<64x16xf32>
    %117 = arith.select %114, %112, %116 : vector<64x16xi1>, vector<64x16xf32>
    %118 = tpu.iota {dimensions = array<i32: 0>} : vector<16x33xi32>
    %119 = tpu.iota {dimensions = array<i32: 1>} : vector<16x33xi32>
    %c2_i32_67 = arith.constant 2 : i32
    %120 = vector.broadcast %c2_i32_67 : i32 to vector<16x33xi32>
    %121 = arith.muli %120, %118 : vector<16x33xi32>
    %c1_i32_68 = arith.constant 1 : i32
    %122 = vector.broadcast %c1_i32_68 : i32 to vector<16x33xi32>
    %123 = arith.subi %121, %122 : vector<16x33xi32>
    %c0_i32_69 = arith.constant 0 : i32
    %124 = vector.broadcast %c0_i32_69 : i32 to vector<16x33xi32>
    %125 = arith.addi %123, %124 : vector<16x33xi32>
    %126 = arith.cmpi eq, %119, %125 : vector<16x33xi32>
    %cst_70 = arith.constant 1.000000e+00 : f32
    %cst_71 = arith.constant 0.000000e+00 : f32
    %127 = vector.broadcast %cst_70 : f32 to vector<16x33xf32>
    %128 = vector.broadcast %cst_71 : f32 to vector<16x33xf32>
    %129 = arith.select %126, %127, %128 : vector<16x33xi1>, vector<16x33xf32>
    %c1_i32_72 = arith.constant 1 : i32
    %130 = vector.broadcast %c1_i32_72 : i32 to vector<16x33xi32>
    %131 = arith.addi %123, %130 : vector<16x33xi32>
    %132 = arith.cmpi eq, %119, %131 : vector<16x33xi32>
    %cst_73 = arith.constant 1.000000e+00 : f32
    %cst_74 = arith.constant 0.000000e+00 : f32
    %133 = vector.broadcast %cst_73 : f32 to vector<16x33xf32>
    %134 = vector.broadcast %cst_74 : f32 to vector<16x33xf32>
    %135 = arith.select %132, %133, %134 : vector<16x33xi1>, vector<16x33xf32>
    %c2_i32_75 = arith.constant 2 : i32
    %136 = vector.broadcast %c2_i32_75 : i32 to vector<16x33xi32>
    %137 = arith.addi %123, %136 : vector<16x33xi32>
    %138 = arith.cmpi eq, %119, %137 : vector<16x33xi32>
    %cst_76 = arith.constant 1.000000e+00 : f32
    %cst_77 = arith.constant 0.000000e+00 : f32
    %139 = vector.broadcast %cst_76 : f32 to vector<16x33xf32>
    %140 = vector.broadcast %cst_77 : f32 to vector<16x33xf32>
    %141 = arith.select %138, %139, %140 : vector<16x33xi1>, vector<16x33xf32>
    %c3_i32_78 = arith.constant 3 : i32
    %142 = vector.broadcast %c3_i32_78 : i32 to vector<16x33xi32>
    %143 = arith.addi %123, %142 : vector<16x33xi32>
    %144 = arith.cmpi eq, %119, %143 : vector<16x33xi32>
    %cst_79 = arith.constant 1.000000e+00 : f32
    %cst_80 = arith.constant 0.000000e+00 : f32
    %145 = vector.broadcast %cst_79 : f32 to vector<16x33xf32>
    %146 = vector.broadcast %cst_80 : f32 to vector<16x33xf32>
    %147 = arith.select %144, %145, %146 : vector<16x33xi1>, vector<16x33xf32>
    %c0_81 = arith.constant 0 : index
    %c0_82 = arith.constant 0 : index
    %c0_83 = arith.constant 0 : index
    %148 = vector.load %arg5[%c0_81, %c0_82, %c0_83] : memref<4x32x64xf32, #tpu.memory_space<vmem>>, vector<1x32x64xf32>
    %149 = vector.shape_cast %148 : vector<1x32x64xf32> to vector<32x64xf32>
    %cst_84 = arith.constant dense<0.000000e+00> : vector<32x16xf32>
    %150 = tpu.matmul %149, %108, %cst_84 {dimension_numbers = #tpu.dot_dimension_numbers<[1], [0], [0], [1], [0, 0, 1, 1], [], []>} : vector<32x64xf32>, vector<64x16xf32>, vector<32x16xf32> -> vector<32x16xf32>
    %cst_85 = arith.constant dense<0.000000e+00> : vector<32x33xf32>
    %151 = tpu.matmul %150, %129, %cst_85 {dimension_numbers = #tpu.dot_dimension_numbers<[1], [0], [0], [1], [0, 0, 1, 1], [], []>} : vector<32x16xf32>, vector<16x33xf32>, vector<32x33xf32> -> vector<32x33xf32>
    %c1_86 = arith.constant 1 : index
    %c0_87 = arith.constant 0 : index
    %c0_88 = arith.constant 0 : index
    %152 = vector.load %arg5[%c1_86, %c0_87, %c0_88] : memref<4x32x64xf32, #tpu.memory_space<vmem>>, vector<1x32x64xf32>
    %153 = vector.shape_cast %152 : vector<1x32x64xf32> to vector<32x64xf32>
    %cst_89 = arith.constant dense<0.000000e+00> : vector<32x16xf32>
    %154 = tpu.matmul %153, %108, %cst_89 {dimension_numbers = #tpu.dot_dimension_numbers<[1], [0], [0], [1], [0, 0, 1, 1], [], []>} : vector<32x64xf32>, vector<64x16xf32>, vector<32x16xf32> -> vector<32x16xf32>
    %cst_90 = arith.constant dense<0.000000e+00> : vector<32x33xf32>
    %155 = tpu.matmul %154, %135, %cst_90 {dimension_numbers = #tpu.dot_dimension_numbers<[1], [0], [0], [1], [0, 0, 1, 1], [], []>} : vector<32x16xf32>, vector<16x33xf32>, vector<32x33xf32> -> vector<32x33xf32>
    %156 = arith.addf %151, %155 : vector<32x33xf32>
    %c2_91 = arith.constant 2 : index
    %c0_92 = arith.constant 0 : index
    %c0_93 = arith.constant 0 : index
    %157 = vector.load %arg5[%c2_91, %c0_92, %c0_93] : memref<4x32x64xf32, #tpu.memory_space<vmem>>, vector<1x32x64xf32>
    %158 = vector.shape_cast %157 : vector<1x32x64xf32> to vector<32x64xf32>
    %cst_94 = arith.constant dense<0.000000e+00> : vector<32x16xf32>
    %159 = tpu.matmul %158, %108, %cst_94 {dimension_numbers = #tpu.dot_dimension_numbers<[1], [0], [0], [1], [0, 0, 1, 1], [], []>} : vector<32x64xf32>, vector<64x16xf32>, vector<32x16xf32> -> vector<32x16xf32>
    %cst_95 = arith.constant dense<0.000000e+00> : vector<32x33xf32>
    %160 = tpu.matmul %159, %141, %cst_95 {dimension_numbers = #tpu.dot_dimension_numbers<[1], [0], [0], [1], [0, 0, 1, 1], [], []>} : vector<32x16xf32>, vector<16x33xf32>, vector<32x33xf32> -> vector<32x33xf32>
    %161 = arith.addf %156, %160 : vector<32x33xf32>
    %c3_96 = arith.constant 3 : index
    %c0_97 = arith.constant 0 : index
    %c0_98 = arith.constant 0 : index
    %162 = vector.load %arg5[%c3_96, %c0_97, %c0_98] : memref<4x32x64xf32, #tpu.memory_space<vmem>>, vector<1x32x64xf32>
    %163 = vector.shape_cast %162 : vector<1x32x64xf32> to vector<32x64xf32>
    %cst_99 = arith.constant dense<0.000000e+00> : vector<32x16xf32>
    %164 = tpu.matmul %163, %108, %cst_99 {dimension_numbers = #tpu.dot_dimension_numbers<[1], [0], [0], [1], [0, 0, 1, 1], [], []>} : vector<32x64xf32>, vector<64x16xf32>, vector<32x16xf32> -> vector<32x16xf32>
    %cst_100 = arith.constant dense<0.000000e+00> : vector<32x33xf32>
    %165 = tpu.matmul %164, %147, %cst_100 {dimension_numbers = #tpu.dot_dimension_numbers<[1], [0], [0], [1], [0, 0, 1, 1], [], []>} : vector<32x16xf32>, vector<16x33xf32>, vector<32x33xf32> -> vector<32x33xf32>
    %166 = arith.addf %161, %165 : vector<32x33xf32>
    %c0_101 = arith.constant 0 : index
    %c0_102 = arith.constant 0 : index
    %c0_103 = arith.constant 0 : index
    %167 = vector.load %arg5[%c0_101, %c0_102, %c0_103] : memref<4x32x64xf32, #tpu.memory_space<vmem>>, vector<1x32x64xf32>
    %168 = vector.shape_cast %167 : vector<1x32x64xf32> to vector<32x64xf32>
    %cst_104 = arith.constant dense<0.000000e+00> : vector<32x16xf32>
    %169 = tpu.matmul %168, %117, %cst_104 {dimension_numbers = #tpu.dot_dimension_numbers<[1], [0], [0], [1], [0, 0, 1, 1], [], []>} : vector<32x64xf32>, vector<64x16xf32>, vector<32x16xf32> -> vector<32x16xf32>
    %cst_105 = arith.constant dense<0.000000e+00> : vector<32x33xf32>
    %170 = tpu.matmul %169, %129, %cst_105 {dimension_numbers = #tpu.dot_dimension_numbers<[1], [0], [0], [1], [0, 0, 1, 1], [], []>} : vector<32x16xf32>, vector<16x33xf32>, vector<32x33xf32> -> vector<32x33xf32>
    %c1_106 = arith.constant 1 : index
    %c0_107 = arith.constant 0 : index
    %c0_108 = arith.constant 0 : index
    %171 = vector.load %arg5[%c1_106, %c0_107, %c0_108] : memref<4x32x64xf32, #tpu.memory_space<vmem>>, vector<1x32x64xf32>
    %172 = vector.shape_cast %171 : vector<1x32x64xf32> to vector<32x64xf32>
    %cst_109 = arith.constant dense<0.000000e+00> : vector<32x16xf32>
    %173 = tpu.matmul %172, %117, %cst_109 {dimension_numbers = #tpu.dot_dimension_numbers<[1], [0], [0], [1], [0, 0, 1, 1], [], []>} : vector<32x64xf32>, vector<64x16xf32>, vector<32x16xf32> -> vector<32x16xf32>
    %cst_110 = arith.constant dense<0.000000e+00> : vector<32x33xf32>
    %174 = tpu.matmul %173, %135, %cst_110 {dimension_numbers = #tpu.dot_dimension_numbers<[1], [0], [0], [1], [0, 0, 1, 1], [], []>} : vector<32x16xf32>, vector<16x33xf32>, vector<32x33xf32> -> vector<32x33xf32>
    %175 = arith.addf %170, %174 : vector<32x33xf32>
    %c2_111 = arith.constant 2 : index
    %c0_112 = arith.constant 0 : index
    %c0_113 = arith.constant 0 : index
    %176 = vector.load %arg5[%c2_111, %c0_112, %c0_113] : memref<4x32x64xf32, #tpu.memory_space<vmem>>, vector<1x32x64xf32>
    %177 = vector.shape_cast %176 : vector<1x32x64xf32> to vector<32x64xf32>
    %cst_114 = arith.constant dense<0.000000e+00> : vector<32x16xf32>
    %178 = tpu.matmul %177, %117, %cst_114 {dimension_numbers = #tpu.dot_dimension_numbers<[1], [0], [0], [1], [0, 0, 1, 1], [], []>} : vector<32x64xf32>, vector<64x16xf32>, vector<32x16xf32> -> vector<32x16xf32>
    %cst_115 = arith.constant dense<0.000000e+00> : vector<32x33xf32>
    %179 = tpu.matmul %178, %141, %cst_115 {dimension_numbers = #tpu.dot_dimension_numbers<[1], [0], [0], [1], [0, 0, 1, 1], [], []>} : vector<32x16xf32>, vector<16x33xf32>, vector<32x33xf32> -> vector<32x33xf32>
    %180 = arith.addf %175, %179 : vector<32x33xf32>
    %c3_116 = arith.constant 3 : index
    %c0_117 = arith.constant 0 : index
    %c0_118 = arith.constant 0 : index
    %181 = vector.load %arg5[%c3_116, %c0_117, %c0_118] : memref<4x32x64xf32, #tpu.memory_space<vmem>>, vector<1x32x64xf32>
    %182 = vector.shape_cast %181 : vector<1x32x64xf32> to vector<32x64xf32>
    %cst_119 = arith.constant dense<0.000000e+00> : vector<32x16xf32>
    %183 = tpu.matmul %182, %117, %cst_119 {dimension_numbers = #tpu.dot_dimension_numbers<[1], [0], [0], [1], [0, 0, 1, 1], [], []>} : vector<32x64xf32>, vector<64x16xf32>, vector<32x16xf32> -> vector<32x16xf32>
    %cst_120 = arith.constant dense<0.000000e+00> : vector<32x33xf32>
    %184 = tpu.matmul %183, %147, %cst_120 {dimension_numbers = #tpu.dot_dimension_numbers<[1], [0], [0], [1], [0, 0, 1, 1], [], []>} : vector<32x16xf32>, vector<16x33xf32>, vector<32x33xf32> -> vector<32x33xf32>
    %185 = arith.addf %180, %184 : vector<32x33xf32>
    %cst_121 = arith.constant dense<0.000000e+00> : vector<32xf32>
    %186 = vector.multi_reduction <add>, %166, %cst_121 [1] : vector<32x33xf32> to vector<32xf32>
    %187 = vector.shape_cast %186 : vector<32xf32> to vector<32x1xf32>
    %188 = arith.mulf %166, %166 : vector<32x33xf32>
    %cst_122 = arith.constant dense<0.000000e+00> : vector<32xf32>
    %189 = vector.multi_reduction <add>, %188, %cst_122 [1] : vector<32x33xf32> to vector<32xf32>
    %190 = vector.shape_cast %189 : vector<32xf32> to vector<32x1xf32>
    %cst_123 = arith.constant dense<0.000000e+00> : vector<32xf32>
    %191 = vector.multi_reduction <add>, %185, %cst_123 [1] : vector<32x33xf32> to vector<32xf32>
    %192 = vector.shape_cast %191 : vector<32xf32> to vector<32x1xf32>
    %193 = arith.addf %187, %192 : vector<32x1xf32>
    %194 = arith.mulf %185, %185 : vector<32x33xf32>
    %cst_124 = arith.constant dense<0.000000e+00> : vector<32xf32>
    %195 = vector.multi_reduction <add>, %194, %cst_124 [1] : vector<32x33xf32> to vector<32xf32>
    %196 = vector.shape_cast %195 : vector<32xf32> to vector<32x1xf32>
    %197 = arith.addf %190, %196 : vector<32x1xf32>
    %cst_125 = arith.constant 0.0151515156 : f32
    %198 = vector.broadcast %cst_125 : f32 to vector<32x1xf32>
    %199 = arith.mulf %193, %198 : vector<32x1xf32>
    %cst_126 = arith.constant 0.0151515156 : f32
    %200 = vector.broadcast %cst_126 : f32 to vector<32x1xf32>
    %201 = arith.mulf %197, %200 : vector<32x1xf32>
    %202 = arith.mulf %199, %199 : vector<32x1xf32>
    %203 = arith.subf %201, %202 : vector<32x1xf32>
    %cst_127 = arith.constant 0.000000e+00 : f32
    %204 = vector.broadcast %cst_127 : f32 to vector<32x1xf32>
    %205 = arith.maximumf %203, %204 : vector<32x1xf32>
    %c0_128 = arith.constant 0 : index
    %c0_129 = arith.constant 0 : index
    %206 = vector.load %arg6[%c0_128, %c0_129] : memref<32x1xf32, #tpu.memory_space<vmem>>, vector<32x1xf32>
    %cst_130 = arith.constant 9.99999974E-6 : f32
    %207 = vector.broadcast %cst_130 : f32 to vector<32x1xf32>
    %208 = arith.addf %205, %207 : vector<32x1xf32>
    %209 = math.rsqrt %208 : vector<32x1xf32>
    %210 = arith.mulf %206, %209 : vector<32x1xf32>
    %c0_131 = arith.constant 0 : index
    %c0_132 = arith.constant 0 : index
    %211 = vector.load %arg7[%c0_131, %c0_132] : memref<32x1xf32, #tpu.memory_space<vmem>>, vector<32x1xf32>
    %212 = arith.mulf %199, %210 : vector<32x1xf32>
    %213 = arith.subf %211, %212 : vector<32x1xf32>
    %214 = vector.broadcast %210 : vector<32x1xf32> to vector<32x33xf32>
    %215 = arith.mulf %166, %214 : vector<32x33xf32>
    %216 = vector.broadcast %213 : vector<32x1xf32> to vector<32x33xf32>
    %217 = arith.addf %215, %216 : vector<32x33xf32>
    %cst_133 = arith.constant 0.000000e+00 : f32
    %218 = vector.broadcast %cst_133 : f32 to vector<32x33xf32>
    %219 = arith.cmpf oge, %217, %218 : vector<32x33xf32>
    %cst_134 = arith.constant 2.000000e-01 : f32
    %220 = vector.broadcast %cst_134 : f32 to vector<32x33xf32>
    %221 = arith.mulf %220, %217 : vector<32x33xf32>
    %222 = arith.select %219, %217, %221 : vector<32x33xi1>, vector<32x33xf32>
    %223 = vector.broadcast %210 : vector<32x1xf32> to vector<32x33xf32>
    %224 = arith.mulf %185, %223 : vector<32x33xf32>
    %225 = vector.broadcast %213 : vector<32x1xf32> to vector<32x33xf32>
    %226 = arith.addf %224, %225 : vector<32x33xf32>
    %cst_135 = arith.constant 0.000000e+00 : f32
    %227 = vector.broadcast %cst_135 : f32 to vector<32x33xf32>
    %228 = arith.cmpf oge, %226, %227 : vector<32x33xf32>
    %cst_136 = arith.constant 2.000000e-01 : f32
    %229 = vector.broadcast %cst_136 : f32 to vector<32x33xf32>
    %230 = arith.mulf %229, %226 : vector<32x33xf32>
    %231 = arith.select %228, %226, %230 : vector<32x33xi1>, vector<32x33xf32>
    %232 = tpu.iota {dimensions = array<i32: 0>} : vector<33x66xi32>
    %233 = tpu.iota {dimensions = array<i32: 1>} : vector<33x66xi32>
    %c2_i32_137 = arith.constant 2 : i32
    %234 = vector.broadcast %c2_i32_137 : i32 to vector<33x66xi32>
    %235 = arith.muli %234, %232 : vector<33x66xi32>
    %c1_i32_138 = arith.constant 1 : i32
    %236 = vector.broadcast %c1_i32_138 : i32 to vector<33x66xi32>
    %237 = arith.subi %235, %236 : vector<33x66xi32>
    %c0_i32_139 = arith.constant 0 : i32
    %238 = vector.broadcast %c0_i32_139 : i32 to vector<33x66xi32>
    %239 = arith.addi %237, %238 : vector<33x66xi32>
    %240 = arith.cmpi eq, %233, %239 : vector<33x66xi32>
    %cst_140 = arith.constant 1.000000e+00 : f32
    %cst_141 = arith.constant 0.000000e+00 : f32
    %241 = vector.broadcast %cst_140 : f32 to vector<33x66xf32>
    %242 = vector.broadcast %cst_141 : f32 to vector<33x66xf32>
    %243 = arith.select %240, %241, %242 : vector<33x66xi1>, vector<33x66xf32>
    %c1_i32_142 = arith.constant 1 : i32
    %244 = vector.broadcast %c1_i32_142 : i32 to vector<33x66xi32>
    %245 = arith.addi %237, %244 : vector<33x66xi32>
    %246 = arith.cmpi eq, %233, %245 : vector<33x66xi32>
    %cst_143 = arith.constant 1.000000e+00 : f32
    %cst_144 = arith.constant 0.000000e+00 : f32
    %247 = vector.broadcast %cst_143 : f32 to vector<33x66xf32>
    %248 = vector.broadcast %cst_144 : f32 to vector<33x66xf32>
    %249 = arith.select %246, %247, %248 : vector<33x66xi1>, vector<33x66xf32>
    %c2_i32_145 = arith.constant 2 : i32
    %250 = vector.broadcast %c2_i32_145 : i32 to vector<33x66xi32>
    %251 = arith.addi %237, %250 : vector<33x66xi32>
    %252 = arith.cmpi eq, %233, %251 : vector<33x66xi32>
    %cst_146 = arith.constant 1.000000e+00 : f32
    %cst_147 = arith.constant 0.000000e+00 : f32
    %253 = vector.broadcast %cst_146 : f32 to vector<33x66xf32>
    %254 = vector.broadcast %cst_147 : f32 to vector<33x66xf32>
    %255 = arith.select %252, %253, %254 : vector<33x66xi1>, vector<33x66xf32>
    %c3_i32_148 = arith.constant 3 : i32
    %256 = vector.broadcast %c3_i32_148 : i32 to vector<33x66xi32>
    %257 = arith.addi %237, %256 : vector<33x66xi32>
    %258 = arith.cmpi eq, %233, %257 : vector<33x66xi32>
    %cst_149 = arith.constant 1.000000e+00 : f32
    %cst_150 = arith.constant 0.000000e+00 : f32
    %259 = vector.broadcast %cst_149 : f32 to vector<33x66xf32>
    %260 = vector.broadcast %cst_150 : f32 to vector<33x66xf32>
    %261 = arith.select %258, %259, %260 : vector<33x66xi1>, vector<33x66xf32>
    %c0_151 = arith.constant 0 : index
    %c0_152 = arith.constant 0 : index
    %c0_153 = arith.constant 0 : index
    %262 = vector.load %arg8[%c0_151, %c0_152, %c0_153] : memref<4x16x32xf32, #tpu.memory_space<vmem>>, vector<1x16x32xf32>
    %263 = vector.shape_cast %262 : vector<1x16x32xf32> to vector<16x32xf32>
    %cst_154 = arith.constant dense<0.000000e+00> : vector<16x33xf32>
    %264 = tpu.matmul %263, %222, %cst_154 {dimension_numbers = #tpu.dot_dimension_numbers<[1], [0], [0], [1], [0, 0, 1, 1], [], []>} : vector<16x32xf32>, vector<32x33xf32>, vector<16x33xf32> -> vector<16x33xf32>
    %cst_155 = arith.constant dense<0.000000e+00> : vector<16x66xf32>
    %265 = tpu.matmul %264, %243, %cst_155 {dimension_numbers = #tpu.dot_dimension_numbers<[1], [0], [0], [1], [0, 0, 1, 1], [], []>} : vector<16x33xf32>, vector<33x66xf32>, vector<16x66xf32> -> vector<16x66xf32>
    %c1_156 = arith.constant 1 : index
    %c0_157 = arith.constant 0 : index
    %c0_158 = arith.constant 0 : index
    %266 = vector.load %arg8[%c1_156, %c0_157, %c0_158] : memref<4x16x32xf32, #tpu.memory_space<vmem>>, vector<1x16x32xf32>
    %267 = vector.shape_cast %266 : vector<1x16x32xf32> to vector<16x32xf32>
    %cst_159 = arith.constant dense<0.000000e+00> : vector<16x33xf32>
    %268 = tpu.matmul %267, %222, %cst_159 {dimension_numbers = #tpu.dot_dimension_numbers<[1], [0], [0], [1], [0, 0, 1, 1], [], []>} : vector<16x32xf32>, vector<32x33xf32>, vector<16x33xf32> -> vector<16x33xf32>
    %cst_160 = arith.constant dense<0.000000e+00> : vector<16x66xf32>
    %269 = tpu.matmul %268, %249, %cst_160 {dimension_numbers = #tpu.dot_dimension_numbers<[1], [0], [0], [1], [0, 0, 1, 1], [], []>} : vector<16x33xf32>, vector<33x66xf32>, vector<16x66xf32> -> vector<16x66xf32>
    %270 = arith.addf %265, %269 : vector<16x66xf32>
    %c2_161 = arith.constant 2 : index
    %c0_162 = arith.constant 0 : index
    %c0_163 = arith.constant 0 : index
    %271 = vector.load %arg8[%c2_161, %c0_162, %c0_163] : memref<4x16x32xf32, #tpu.memory_space<vmem>>, vector<1x16x32xf32>
    %272 = vector.shape_cast %271 : vector<1x16x32xf32> to vector<16x32xf32>
    %cst_164 = arith.constant dense<0.000000e+00> : vector<16x33xf32>
    %273 = tpu.matmul %272, %222, %cst_164 {dimension_numbers = #tpu.dot_dimension_numbers<[1], [0], [0], [1], [0, 0, 1, 1], [], []>} : vector<16x32xf32>, vector<32x33xf32>, vector<16x33xf32> -> vector<16x33xf32>
    %cst_165 = arith.constant dense<0.000000e+00> : vector<16x66xf32>
    %274 = tpu.matmul %273, %255, %cst_165 {dimension_numbers = #tpu.dot_dimension_numbers<[1], [0], [0], [1], [0, 0, 1, 1], [], []>} : vector<16x33xf32>, vector<33x66xf32>, vector<16x66xf32> -> vector<16x66xf32>
    %275 = arith.addf %270, %274 : vector<16x66xf32>
    %c3_166 = arith.constant 3 : index
    %c0_167 = arith.constant 0 : index
    %c0_168 = arith.constant 0 : index
    %276 = vector.load %arg8[%c3_166, %c0_167, %c0_168] : memref<4x16x32xf32, #tpu.memory_space<vmem>>, vector<1x16x32xf32>
    %277 = vector.shape_cast %276 : vector<1x16x32xf32> to vector<16x32xf32>
    %cst_169 = arith.constant dense<0.000000e+00> : vector<16x33xf32>
    %278 = tpu.matmul %277, %222, %cst_169 {dimension_numbers = #tpu.dot_dimension_numbers<[1], [0], [0], [1], [0, 0, 1, 1], [], []>} : vector<16x32xf32>, vector<32x33xf32>, vector<16x33xf32> -> vector<16x33xf32>
    %cst_170 = arith.constant dense<0.000000e+00> : vector<16x66xf32>
    %279 = tpu.matmul %278, %261, %cst_170 {dimension_numbers = #tpu.dot_dimension_numbers<[1], [0], [0], [1], [0, 0, 1, 1], [], []>} : vector<16x33xf32>, vector<33x66xf32>, vector<16x66xf32> -> vector<16x66xf32>
    %280 = arith.addf %275, %279 : vector<16x66xf32>
    %c0_171 = arith.constant 0 : index
    %c0_172 = arith.constant 0 : index
    %c0_173 = arith.constant 0 : index
    %281 = vector.load %arg8[%c0_171, %c0_172, %c0_173] : memref<4x16x32xf32, #tpu.memory_space<vmem>>, vector<1x16x32xf32>
    %282 = vector.shape_cast %281 : vector<1x16x32xf32> to vector<16x32xf32>
    %cst_174 = arith.constant dense<0.000000e+00> : vector<16x33xf32>
    %283 = tpu.matmul %282, %231, %cst_174 {dimension_numbers = #tpu.dot_dimension_numbers<[1], [0], [0], [1], [0, 0, 1, 1], [], []>} : vector<16x32xf32>, vector<32x33xf32>, vector<16x33xf32> -> vector<16x33xf32>
    %cst_175 = arith.constant dense<0.000000e+00> : vector<16x66xf32>
    %284 = tpu.matmul %283, %243, %cst_175 {dimension_numbers = #tpu.dot_dimension_numbers<[1], [0], [0], [1], [0, 0, 1, 1], [], []>} : vector<16x33xf32>, vector<33x66xf32>, vector<16x66xf32> -> vector<16x66xf32>
    %c1_176 = arith.constant 1 : index
    %c0_177 = arith.constant 0 : index
    %c0_178 = arith.constant 0 : index
    %285 = vector.load %arg8[%c1_176, %c0_177, %c0_178] : memref<4x16x32xf32, #tpu.memory_space<vmem>>, vector<1x16x32xf32>
    %286 = vector.shape_cast %285 : vector<1x16x32xf32> to vector<16x32xf32>
    %cst_179 = arith.constant dense<0.000000e+00> : vector<16x33xf32>
    %287 = tpu.matmul %286, %231, %cst_179 {dimension_numbers = #tpu.dot_dimension_numbers<[1], [0], [0], [1], [0, 0, 1, 1], [], []>} : vector<16x32xf32>, vector<32x33xf32>, vector<16x33xf32> -> vector<16x33xf32>
    %cst_180 = arith.constant dense<0.000000e+00> : vector<16x66xf32>
    %288 = tpu.matmul %287, %249, %cst_180 {dimension_numbers = #tpu.dot_dimension_numbers<[1], [0], [0], [1], [0, 0, 1, 1], [], []>} : vector<16x33xf32>, vector<33x66xf32>, vector<16x66xf32> -> vector<16x66xf32>
    %289 = arith.addf %284, %288 : vector<16x66xf32>
    %c2_181 = arith.constant 2 : index
    %c0_182 = arith.constant 0 : index
    %c0_183 = arith.constant 0 : index
    %290 = vector.load %arg8[%c2_181, %c0_182, %c0_183] : memref<4x16x32xf32, #tpu.memory_space<vmem>>, vector<1x16x32xf32>
    %291 = vector.shape_cast %290 : vector<1x16x32xf32> to vector<16x32xf32>
    %cst_184 = arith.constant dense<0.000000e+00> : vector<16x33xf32>
    %292 = tpu.matmul %291, %231, %cst_184 {dimension_numbers = #tpu.dot_dimension_numbers<[1], [0], [0], [1], [0, 0, 1, 1], [], []>} : vector<16x32xf32>, vector<32x33xf32>, vector<16x33xf32> -> vector<16x33xf32>
    %cst_185 = arith.constant dense<0.000000e+00> : vector<16x66xf32>
    %293 = tpu.matmul %292, %255, %cst_185 {dimension_numbers = #tpu.dot_dimension_numbers<[1], [0], [0], [1], [0, 0, 1, 1], [], []>} : vector<16x33xf32>, vector<33x66xf32>, vector<16x66xf32> -> vector<16x66xf32>
    %294 = arith.addf %289, %293 : vector<16x66xf32>
    %c3_186 = arith.constant 3 : index
    %c0_187 = arith.constant 0 : index
    %c0_188 = arith.constant 0 : index
    %295 = vector.load %arg8[%c3_186, %c0_187, %c0_188] : memref<4x16x32xf32, #tpu.memory_space<vmem>>, vector<1x16x32xf32>
    %296 = vector.shape_cast %295 : vector<1x16x32xf32> to vector<16x32xf32>
    %cst_189 = arith.constant dense<0.000000e+00> : vector<16x33xf32>
    %297 = tpu.matmul %296, %231, %cst_189 {dimension_numbers = #tpu.dot_dimension_numbers<[1], [0], [0], [1], [0, 0, 1, 1], [], []>} : vector<16x32xf32>, vector<32x33xf32>, vector<16x33xf32> -> vector<16x33xf32>
    %cst_190 = arith.constant dense<0.000000e+00> : vector<16x66xf32>
    %298 = tpu.matmul %297, %261, %cst_190 {dimension_numbers = #tpu.dot_dimension_numbers<[1], [0], [0], [1], [0, 0, 1, 1], [], []>} : vector<16x33xf32>, vector<33x66xf32>, vector<16x66xf32> -> vector<16x66xf32>
    %299 = arith.addf %294, %298 : vector<16x66xf32>
    %cst_191 = arith.constant dense<0.000000e+00> : vector<16xf32>
    %300 = vector.multi_reduction <add>, %280, %cst_191 [1] : vector<16x66xf32> to vector<16xf32>
    %301 = vector.shape_cast %300 : vector<16xf32> to vector<16x1xf32>
    %302 = arith.mulf %280, %280 : vector<16x66xf32>
    %cst_192 = arith.constant dense<0.000000e+00> : vector<16xf32>
    %303 = vector.multi_reduction <add>, %302, %cst_192 [1] : vector<16x66xf32> to vector<16xf32>
    %304 = vector.shape_cast %303 : vector<16xf32> to vector<16x1xf32>
    %cst_193 = arith.constant dense<0.000000e+00> : vector<16xf32>
    %305 = vector.multi_reduction <add>, %299, %cst_193 [1] : vector<16x66xf32> to vector<16xf32>
    %306 = vector.shape_cast %305 : vector<16xf32> to vector<16x1xf32>
    %307 = arith.addf %301, %306 : vector<16x1xf32>
    %308 = arith.mulf %299, %299 : vector<16x66xf32>
    %cst_194 = arith.constant dense<0.000000e+00> : vector<16xf32>
    %309 = vector.multi_reduction <add>, %308, %cst_194 [1] : vector<16x66xf32> to vector<16xf32>
    %310 = vector.shape_cast %309 : vector<16xf32> to vector<16x1xf32>
    %311 = arith.addf %304, %310 : vector<16x1xf32>
    %cst_195 = arith.constant 0.0075757578 : f32
    %312 = vector.broadcast %cst_195 : f32 to vector<16x1xf32>
    %313 = arith.mulf %307, %312 : vector<16x1xf32>
    %cst_196 = arith.constant 0.0075757578 : f32
    %314 = vector.broadcast %cst_196 : f32 to vector<16x1xf32>
    %315 = arith.mulf %311, %314 : vector<16x1xf32>
    %316 = arith.mulf %313, %313 : vector<16x1xf32>
    %317 = arith.subf %315, %316 : vector<16x1xf32>
    %cst_197 = arith.constant 0.000000e+00 : f32
    %318 = vector.broadcast %cst_197 : f32 to vector<16x1xf32>
    %319 = arith.maximumf %317, %318 : vector<16x1xf32>
    %c0_198 = arith.constant 0 : index
    %c0_199 = arith.constant 0 : index
    %320 = vector.load %arg9[%c0_198, %c0_199] : memref<16x1xf32, #tpu.memory_space<vmem>>, vector<16x1xf32>
    %cst_200 = arith.constant 9.99999974E-6 : f32
    %321 = vector.broadcast %cst_200 : f32 to vector<16x1xf32>
    %322 = arith.addf %319, %321 : vector<16x1xf32>
    %323 = math.rsqrt %322 : vector<16x1xf32>
    %324 = arith.mulf %320, %323 : vector<16x1xf32>
    %c0_201 = arith.constant 0 : index
    %c0_202 = arith.constant 0 : index
    %325 = vector.load %arg10[%c0_201, %c0_202] : memref<16x1xf32, #tpu.memory_space<vmem>>, vector<16x1xf32>
    %326 = arith.mulf %313, %324 : vector<16x1xf32>
    %327 = arith.subf %325, %326 : vector<16x1xf32>
    %328 = vector.broadcast %324 : vector<16x1xf32> to vector<16x66xf32>
    %329 = arith.mulf %280, %328 : vector<16x66xf32>
    %330 = vector.broadcast %327 : vector<16x1xf32> to vector<16x66xf32>
    %331 = arith.addf %329, %330 : vector<16x66xf32>
    %cst_203 = arith.constant 0.000000e+00 : f32
    %332 = vector.broadcast %cst_203 : f32 to vector<16x66xf32>
    %333 = arith.cmpf oge, %331, %332 : vector<16x66xf32>
    %cst_204 = arith.constant 2.000000e-01 : f32
    %334 = vector.broadcast %cst_204 : f32 to vector<16x66xf32>
    %335 = arith.mulf %334, %331 : vector<16x66xf32>
    %336 = arith.select %333, %331, %335 : vector<16x66xi1>, vector<16x66xf32>
    %337 = vector.broadcast %324 : vector<16x1xf32> to vector<16x66xf32>
    %338 = arith.mulf %299, %337 : vector<16x66xf32>
    %339 = vector.broadcast %327 : vector<16x1xf32> to vector<16x66xf32>
    %340 = arith.addf %338, %339 : vector<16x66xf32>
    %cst_205 = arith.constant 0.000000e+00 : f32
    %341 = vector.broadcast %cst_205 : f32 to vector<16x66xf32>
    %342 = arith.cmpf oge, %340, %341 : vector<16x66xf32>
    %cst_206 = arith.constant 2.000000e-01 : f32
    %343 = vector.broadcast %cst_206 : f32 to vector<16x66xf32>
    %344 = arith.mulf %343, %340 : vector<16x66xf32>
    %345 = arith.select %342, %340, %344 : vector<16x66xi1>, vector<16x66xf32>
    %346 = tpu.iota {dimensions = array<i32: 0>} : vector<66x132xi32>
    %347 = tpu.iota {dimensions = array<i32: 1>} : vector<66x132xi32>
    %c2_i32_207 = arith.constant 2 : i32
    %348 = vector.broadcast %c2_i32_207 : i32 to vector<66x132xi32>
    %349 = arith.muli %348, %346 : vector<66x132xi32>
    %c1_i32_208 = arith.constant 1 : i32
    %350 = vector.broadcast %c1_i32_208 : i32 to vector<66x132xi32>
    %351 = arith.subi %349, %350 : vector<66x132xi32>
    %c0_i32_209 = arith.constant 0 : i32
    %352 = vector.broadcast %c0_i32_209 : i32 to vector<66x132xi32>
    %353 = arith.addi %351, %352 : vector<66x132xi32>
    %354 = arith.cmpi eq, %347, %353 : vector<66x132xi32>
    %cst_210 = arith.constant 1.000000e+00 : f32
    %cst_211 = arith.constant 0.000000e+00 : f32
    %355 = vector.broadcast %cst_210 : f32 to vector<66x132xf32>
    %356 = vector.broadcast %cst_211 : f32 to vector<66x132xf32>
    %357 = arith.select %354, %355, %356 : vector<66x132xi1>, vector<66x132xf32>
    %c1_i32_212 = arith.constant 1 : i32
    %358 = vector.broadcast %c1_i32_212 : i32 to vector<66x132xi32>
    %359 = arith.addi %351, %358 : vector<66x132xi32>
    %360 = arith.cmpi eq, %347, %359 : vector<66x132xi32>
    %cst_213 = arith.constant 1.000000e+00 : f32
    %cst_214 = arith.constant 0.000000e+00 : f32
    %361 = vector.broadcast %cst_213 : f32 to vector<66x132xf32>
    %362 = vector.broadcast %cst_214 : f32 to vector<66x132xf32>
    %363 = arith.select %360, %361, %362 : vector<66x132xi1>, vector<66x132xf32>
    %c2_i32_215 = arith.constant 2 : i32
    %364 = vector.broadcast %c2_i32_215 : i32 to vector<66x132xi32>
    %365 = arith.addi %351, %364 : vector<66x132xi32>
    %366 = arith.cmpi eq, %347, %365 : vector<66x132xi32>
    %cst_216 = arith.constant 1.000000e+00 : f32
    %cst_217 = arith.constant 0.000000e+00 : f32
    %367 = vector.broadcast %cst_216 : f32 to vector<66x132xf32>
    %368 = vector.broadcast %cst_217 : f32 to vector<66x132xf32>
    %369 = arith.select %366, %367, %368 : vector<66x132xi1>, vector<66x132xf32>
    %c3_i32_218 = arith.constant 3 : i32
    %370 = vector.broadcast %c3_i32_218 : i32 to vector<66x132xi32>
    %371 = arith.addi %351, %370 : vector<66x132xi32>
    %372 = arith.cmpi eq, %347, %371 : vector<66x132xi32>
    %cst_219 = arith.constant 1.000000e+00 : f32
    %cst_220 = arith.constant 0.000000e+00 : f32
    %373 = vector.broadcast %cst_219 : f32 to vector<66x132xf32>
    %374 = vector.broadcast %cst_220 : f32 to vector<66x132xf32>
    %375 = arith.select %372, %373, %374 : vector<66x132xi1>, vector<66x132xf32>
    %c0_221 = arith.constant 0 : index
    %c0_222 = arith.constant 0 : index
    %c0_223 = arith.constant 0 : index
    %376 = vector.load %arg11[%c0_221, %c0_222, %c0_223] : memref<4x8x16xf32, #tpu.memory_space<vmem>>, vector<1x8x16xf32>
    %377 = vector.shape_cast %376 : vector<1x8x16xf32> to vector<8x16xf32>
    %cst_224 = arith.constant dense<0.000000e+00> : vector<8x66xf32>
    %378 = tpu.matmul %377, %336, %cst_224 {dimension_numbers = #tpu.dot_dimension_numbers<[1], [0], [0], [1], [0, 0, 1, 1], [], []>} : vector<8x16xf32>, vector<16x66xf32>, vector<8x66xf32> -> vector<8x66xf32>
    %cst_225 = arith.constant dense<0.000000e+00> : vector<8x132xf32>
    %379 = tpu.matmul %378, %357, %cst_225 {dimension_numbers = #tpu.dot_dimension_numbers<[1], [0], [0], [1], [0, 0, 1, 1], [], []>} : vector<8x66xf32>, vector<66x132xf32>, vector<8x132xf32> -> vector<8x132xf32>
    %c1_226 = arith.constant 1 : index
    %c0_227 = arith.constant 0 : index
    %c0_228 = arith.constant 0 : index
    %380 = vector.load %arg11[%c1_226, %c0_227, %c0_228] : memref<4x8x16xf32, #tpu.memory_space<vmem>>, vector<1x8x16xf32>
    %381 = vector.shape_cast %380 : vector<1x8x16xf32> to vector<8x16xf32>
    %cst_229 = arith.constant dense<0.000000e+00> : vector<8x66xf32>
    %382 = tpu.matmul %381, %336, %cst_229 {dimension_numbers = #tpu.dot_dimension_numbers<[1], [0], [0], [1], [0, 0, 1, 1], [], []>} : vector<8x16xf32>, vector<16x66xf32>, vector<8x66xf32> -> vector<8x66xf32>
    %cst_230 = arith.constant dense<0.000000e+00> : vector<8x132xf32>
    %383 = tpu.matmul %382, %363, %cst_230 {dimension_numbers = #tpu.dot_dimension_numbers<[1], [0], [0], [1], [0, 0, 1, 1], [], []>} : vector<8x66xf32>, vector<66x132xf32>, vector<8x132xf32> -> vector<8x132xf32>
    %384 = arith.addf %379, %383 : vector<8x132xf32>
    %c2_231 = arith.constant 2 : index
    %c0_232 = arith.constant 0 : index
    %c0_233 = arith.constant 0 : index
    %385 = vector.load %arg11[%c2_231, %c0_232, %c0_233] : memref<4x8x16xf32, #tpu.memory_space<vmem>>, vector<1x8x16xf32>
    %386 = vector.shape_cast %385 : vector<1x8x16xf32> to vector<8x16xf32>
    %cst_234 = arith.constant dense<0.000000e+00> : vector<8x66xf32>
    %387 = tpu.matmul %386, %336, %cst_234 {dimension_numbers = #tpu.dot_dimension_numbers<[1], [0], [0], [1], [0, 0, 1, 1], [], []>} : vector<8x16xf32>, vector<16x66xf32>, vector<8x66xf32> -> vector<8x66xf32>
    %cst_235 = arith.constant dense<0.000000e+00> : vector<8x132xf32>
    %388 = tpu.matmul %387, %369, %cst_235 {dimension_numbers = #tpu.dot_dimension_numbers<[1], [0], [0], [1], [0, 0, 1, 1], [], []>} : vector<8x66xf32>, vector<66x132xf32>, vector<8x132xf32> -> vector<8x132xf32>
    %389 = arith.addf %384, %388 : vector<8x132xf32>
    %c3_236 = arith.constant 3 : index
    %c0_237 = arith.constant 0 : index
    %c0_238 = arith.constant 0 : index
    %390 = vector.load %arg11[%c3_236, %c0_237, %c0_238] : memref<4x8x16xf32, #tpu.memory_space<vmem>>, vector<1x8x16xf32>
    %391 = vector.shape_cast %390 : vector<1x8x16xf32> to vector<8x16xf32>
    %cst_239 = arith.constant dense<0.000000e+00> : vector<8x66xf32>
    %392 = tpu.matmul %391, %336, %cst_239 {dimension_numbers = #tpu.dot_dimension_numbers<[1], [0], [0], [1], [0, 0, 1, 1], [], []>} : vector<8x16xf32>, vector<16x66xf32>, vector<8x66xf32> -> vector<8x66xf32>
    %cst_240 = arith.constant dense<0.000000e+00> : vector<8x132xf32>
    %393 = tpu.matmul %392, %375, %cst_240 {dimension_numbers = #tpu.dot_dimension_numbers<[1], [0], [0], [1], [0, 0, 1, 1], [], []>} : vector<8x66xf32>, vector<66x132xf32>, vector<8x132xf32> -> vector<8x132xf32>
    %394 = arith.addf %389, %393 : vector<8x132xf32>
    %c0_241 = arith.constant 0 : index
    %c0_242 = arith.constant 0 : index
    %c0_243 = arith.constant 0 : index
    %395 = vector.load %arg11[%c0_241, %c0_242, %c0_243] : memref<4x8x16xf32, #tpu.memory_space<vmem>>, vector<1x8x16xf32>
    %396 = vector.shape_cast %395 : vector<1x8x16xf32> to vector<8x16xf32>
    %cst_244 = arith.constant dense<0.000000e+00> : vector<8x66xf32>
    %397 = tpu.matmul %396, %345, %cst_244 {dimension_numbers = #tpu.dot_dimension_numbers<[1], [0], [0], [1], [0, 0, 1, 1], [], []>} : vector<8x16xf32>, vector<16x66xf32>, vector<8x66xf32> -> vector<8x66xf32>
    %cst_245 = arith.constant dense<0.000000e+00> : vector<8x132xf32>
    %398 = tpu.matmul %397, %357, %cst_245 {dimension_numbers = #tpu.dot_dimension_numbers<[1], [0], [0], [1], [0, 0, 1, 1], [], []>} : vector<8x66xf32>, vector<66x132xf32>, vector<8x132xf32> -> vector<8x132xf32>
    %c1_246 = arith.constant 1 : index
    %c0_247 = arith.constant 0 : index
    %c0_248 = arith.constant 0 : index
    %399 = vector.load %arg11[%c1_246, %c0_247, %c0_248] : memref<4x8x16xf32, #tpu.memory_space<vmem>>, vector<1x8x16xf32>
    %400 = vector.shape_cast %399 : vector<1x8x16xf32> to vector<8x16xf32>
    %cst_249 = arith.constant dense<0.000000e+00> : vector<8x66xf32>
    %401 = tpu.matmul %400, %345, %cst_249 {dimension_numbers = #tpu.dot_dimension_numbers<[1], [0], [0], [1], [0, 0, 1, 1], [], []>} : vector<8x16xf32>, vector<16x66xf32>, vector<8x66xf32> -> vector<8x66xf32>
    %cst_250 = arith.constant dense<0.000000e+00> : vector<8x132xf32>
    %402 = tpu.matmul %401, %363, %cst_250 {dimension_numbers = #tpu.dot_dimension_numbers<[1], [0], [0], [1], [0, 0, 1, 1], [], []>} : vector<8x66xf32>, vector<66x132xf32>, vector<8x132xf32> -> vector<8x132xf32>
    %403 = arith.addf %398, %402 : vector<8x132xf32>
    %c2_251 = arith.constant 2 : index
    %c0_252 = arith.constant 0 : index
    %c0_253 = arith.constant 0 : index
    %404 = vector.load %arg11[%c2_251, %c0_252, %c0_253] : memref<4x8x16xf32, #tpu.memory_space<vmem>>, vector<1x8x16xf32>
    %405 = vector.shape_cast %404 : vector<1x8x16xf32> to vector<8x16xf32>
    %cst_254 = arith.constant dense<0.000000e+00> : vector<8x66xf32>
    %406 = tpu.matmul %405, %345, %cst_254 {dimension_numbers = #tpu.dot_dimension_numbers<[1], [0], [0], [1], [0, 0, 1, 1], [], []>} : vector<8x16xf32>, vector<16x66xf32>, vector<8x66xf32> -> vector<8x66xf32>
    %cst_255 = arith.constant dense<0.000000e+00> : vector<8x132xf32>
    %407 = tpu.matmul %406, %369, %cst_255 {dimension_numbers = #tpu.dot_dimension_numbers<[1], [0], [0], [1], [0, 0, 1, 1], [], []>} : vector<8x66xf32>, vector<66x132xf32>, vector<8x132xf32> -> vector<8x132xf32>
    %408 = arith.addf %403, %407 : vector<8x132xf32>
    %c3_256 = arith.constant 3 : index
    %c0_257 = arith.constant 0 : index
    %c0_258 = arith.constant 0 : index
    %409 = vector.load %arg11[%c3_256, %c0_257, %c0_258] : memref<4x8x16xf32, #tpu.memory_space<vmem>>, vector<1x8x16xf32>
    %410 = vector.shape_cast %409 : vector<1x8x16xf32> to vector<8x16xf32>
    %cst_259 = arith.constant dense<0.000000e+00> : vector<8x66xf32>
    %411 = tpu.matmul %410, %345, %cst_259 {dimension_numbers = #tpu.dot_dimension_numbers<[1], [0], [0], [1], [0, 0, 1, 1], [], []>} : vector<8x16xf32>, vector<16x66xf32>, vector<8x66xf32> -> vector<8x66xf32>
    %cst_260 = arith.constant dense<0.000000e+00> : vector<8x132xf32>
    %412 = tpu.matmul %411, %375, %cst_260 {dimension_numbers = #tpu.dot_dimension_numbers<[1], [0], [0], [1], [0, 0, 1, 1], [], []>} : vector<8x66xf32>, vector<66x132xf32>, vector<8x132xf32> -> vector<8x132xf32>
    %413 = arith.addf %408, %412 : vector<8x132xf32>
    %cst_261 = arith.constant dense<0.000000e+00> : vector<8xf32>
    %414 = vector.multi_reduction <add>, %394, %cst_261 [1] : vector<8x132xf32> to vector<8xf32>
    %415 = vector.shape_cast %414 : vector<8xf32> to vector<8x1xf32>
    %416 = arith.mulf %394, %394 : vector<8x132xf32>
    %cst_262 = arith.constant dense<0.000000e+00> : vector<8xf32>
    %417 = vector.multi_reduction <add>, %416, %cst_262 [1] : vector<8x132xf32> to vector<8xf32>
    %418 = vector.shape_cast %417 : vector<8xf32> to vector<8x1xf32>
    %cst_263 = arith.constant dense<0.000000e+00> : vector<8xf32>
    %419 = vector.multi_reduction <add>, %413, %cst_263 [1] : vector<8x132xf32> to vector<8xf32>
    %420 = vector.shape_cast %419 : vector<8xf32> to vector<8x1xf32>
    %421 = arith.addf %415, %420 : vector<8x1xf32>
    %422 = arith.mulf %413, %413 : vector<8x132xf32>
    %cst_264 = arith.constant dense<0.000000e+00> : vector<8xf32>
    %423 = vector.multi_reduction <add>, %422, %cst_264 [1] : vector<8x132xf32> to vector<8xf32>
    %424 = vector.shape_cast %423 : vector<8xf32> to vector<8x1xf32>
    %425 = arith.addf %418, %424 : vector<8x1xf32>
    %cst_265 = arith.constant 0.0037878789 : f32
    %426 = vector.broadcast %cst_265 : f32 to vector<8x1xf32>
    %427 = arith.mulf %421, %426 : vector<8x1xf32>
    %cst_266 = arith.constant 0.0037878789 : f32
    %428 = vector.broadcast %cst_266 : f32 to vector<8x1xf32>
    %429 = arith.mulf %425, %428 : vector<8x1xf32>
    %430 = arith.mulf %427, %427 : vector<8x1xf32>
    %431 = arith.subf %429, %430 : vector<8x1xf32>
    %cst_267 = arith.constant 0.000000e+00 : f32
    %432 = vector.broadcast %cst_267 : f32 to vector<8x1xf32>
    %433 = arith.maximumf %431, %432 : vector<8x1xf32>
    %c0_268 = arith.constant 0 : index
    %c0_269 = arith.constant 0 : index
    %434 = vector.load %arg12[%c0_268, %c0_269] : memref<8x1xf32, #tpu.memory_space<vmem>>, vector<8x1xf32>
    %cst_270 = arith.constant 9.99999974E-6 : f32
    %435 = vector.broadcast %cst_270 : f32 to vector<8x1xf32>
    %436 = arith.addf %433, %435 : vector<8x1xf32>
    %437 = math.rsqrt %436 : vector<8x1xf32>
    %438 = arith.mulf %434, %437 : vector<8x1xf32>
    %c0_271 = arith.constant 0 : index
    %c0_272 = arith.constant 0 : index
    %439 = vector.load %arg13[%c0_271, %c0_272] : memref<8x1xf32, #tpu.memory_space<vmem>>, vector<8x1xf32>
    %440 = arith.mulf %427, %438 : vector<8x1xf32>
    %441 = arith.subf %439, %440 : vector<8x1xf32>
    %442 = vector.broadcast %438 : vector<8x1xf32> to vector<8x132xf32>
    %443 = arith.mulf %394, %442 : vector<8x132xf32>
    %444 = vector.broadcast %441 : vector<8x1xf32> to vector<8x132xf32>
    %445 = arith.addf %443, %444 : vector<8x132xf32>
    %cst_273 = arith.constant 0.000000e+00 : f32
    %446 = vector.broadcast %cst_273 : f32 to vector<8x132xf32>
    %447 = arith.cmpf oge, %445, %446 : vector<8x132xf32>
    %cst_274 = arith.constant 2.000000e-01 : f32
    %448 = vector.broadcast %cst_274 : f32 to vector<8x132xf32>
    %449 = arith.mulf %448, %445 : vector<8x132xf32>
    %450 = arith.select %447, %445, %449 : vector<8x132xi1>, vector<8x132xf32>
    %451 = vector.broadcast %438 : vector<8x1xf32> to vector<8x132xf32>
    %452 = arith.mulf %413, %451 : vector<8x132xf32>
    %453 = vector.broadcast %441 : vector<8x1xf32> to vector<8x132xf32>
    %454 = arith.addf %452, %453 : vector<8x132xf32>
    %cst_275 = arith.constant 0.000000e+00 : f32
    %455 = vector.broadcast %cst_275 : f32 to vector<8x132xf32>
    %456 = arith.cmpf oge, %454, %455 : vector<8x132xf32>
    %cst_276 = arith.constant 2.000000e-01 : f32
    %457 = vector.broadcast %cst_276 : f32 to vector<8x132xf32>
    %458 = arith.mulf %457, %454 : vector<8x132xf32>
    %459 = arith.select %456, %454, %458 : vector<8x132xi1>, vector<8x132xf32>
    %460 = tpu.iota {dimensions = array<i32: 0>} : vector<132x264xi32>
    %461 = tpu.iota {dimensions = array<i32: 1>} : vector<132x264xi32>
    %c2_i32_277 = arith.constant 2 : i32
    %462 = vector.broadcast %c2_i32_277 : i32 to vector<132x264xi32>
    %463 = arith.muli %462, %460 : vector<132x264xi32>
    %c1_i32_278 = arith.constant 1 : i32
    %464 = vector.broadcast %c1_i32_278 : i32 to vector<132x264xi32>
    %465 = arith.subi %463, %464 : vector<132x264xi32>
    %c0_i32_279 = arith.constant 0 : i32
    %466 = vector.broadcast %c0_i32_279 : i32 to vector<132x264xi32>
    %467 = arith.addi %465, %466 : vector<132x264xi32>
    %468 = arith.cmpi eq, %461, %467 : vector<132x264xi32>
    %cst_280 = arith.constant 1.000000e+00 : f32
    %cst_281 = arith.constant 0.000000e+00 : f32
    %469 = vector.broadcast %cst_280 : f32 to vector<132x264xf32>
    %470 = vector.broadcast %cst_281 : f32 to vector<132x264xf32>
    %471 = arith.select %468, %469, %470 : vector<132x264xi1>, vector<132x264xf32>
    %c1_i32_282 = arith.constant 1 : i32
    %472 = vector.broadcast %c1_i32_282 : i32 to vector<132x264xi32>
    %473 = arith.addi %465, %472 : vector<132x264xi32>
    %474 = arith.cmpi eq, %461, %473 : vector<132x264xi32>
    %cst_283 = arith.constant 1.000000e+00 : f32
    %cst_284 = arith.constant 0.000000e+00 : f32
    %475 = vector.broadcast %cst_283 : f32 to vector<132x264xf32>
    %476 = vector.broadcast %cst_284 : f32 to vector<132x264xf32>
    %477 = arith.select %474, %475, %476 : vector<132x264xi1>, vector<132x264xf32>
    %c2_i32_285 = arith.constant 2 : i32
    %478 = vector.broadcast %c2_i32_285 : i32 to vector<132x264xi32>
    %479 = arith.addi %465, %478 : vector<132x264xi32>
    %480 = arith.cmpi eq, %461, %479 : vector<132x264xi32>
    %cst_286 = arith.constant 1.000000e+00 : f32
    %cst_287 = arith.constant 0.000000e+00 : f32
    %481 = vector.broadcast %cst_286 : f32 to vector<132x264xf32>
    %482 = vector.broadcast %cst_287 : f32 to vector<132x264xf32>
    %483 = arith.select %480, %481, %482 : vector<132x264xi1>, vector<132x264xf32>
    %c3_i32_288 = arith.constant 3 : i32
    %484 = vector.broadcast %c3_i32_288 : i32 to vector<132x264xi32>
    %485 = arith.addi %465, %484 : vector<132x264xi32>
    %486 = arith.cmpi eq, %461, %485 : vector<132x264xi32>
    %cst_289 = arith.constant 1.000000e+00 : f32
    %cst_290 = arith.constant 0.000000e+00 : f32
    %487 = vector.broadcast %cst_289 : f32 to vector<132x264xf32>
    %488 = vector.broadcast %cst_290 : f32 to vector<132x264xf32>
    %489 = arith.select %486, %487, %488 : vector<132x264xi1>, vector<132x264xf32>
    %c0_291 = arith.constant 0 : index
    %c0_292 = arith.constant 0 : index
    %c0_293 = arith.constant 0 : index
    %490 = vector.load %arg14[%c0_291, %c0_292, %c0_293] : memref<4x2x8xf32, #tpu.memory_space<vmem>>, vector<1x2x8xf32>
    %491 = vector.shape_cast %490 : vector<1x2x8xf32> to vector<2x8xf32>
    %cst_294 = arith.constant dense<0.000000e+00> : vector<2x132xf32>
    %492 = tpu.matmul %491, %450, %cst_294 {dimension_numbers = #tpu.dot_dimension_numbers<[1], [0], [0], [1], [0, 0, 1, 1], [], []>} : vector<2x8xf32>, vector<8x132xf32>, vector<2x132xf32> -> vector<2x132xf32>
    %cst_295 = arith.constant dense<0.000000e+00> : vector<2x264xf32>
    %493 = tpu.matmul %492, %471, %cst_295 {dimension_numbers = #tpu.dot_dimension_numbers<[1], [0], [0], [1], [0, 0, 1, 1], [], []>} : vector<2x132xf32>, vector<132x264xf32>, vector<2x264xf32> -> vector<2x264xf32>
    %c1_296 = arith.constant 1 : index
    %c0_297 = arith.constant 0 : index
    %c0_298 = arith.constant 0 : index
    %494 = vector.load %arg14[%c1_296, %c0_297, %c0_298] : memref<4x2x8xf32, #tpu.memory_space<vmem>>, vector<1x2x8xf32>
    %495 = vector.shape_cast %494 : vector<1x2x8xf32> to vector<2x8xf32>
    %cst_299 = arith.constant dense<0.000000e+00> : vector<2x132xf32>
    %496 = tpu.matmul %495, %450, %cst_299 {dimension_numbers = #tpu.dot_dimension_numbers<[1], [0], [0], [1], [0, 0, 1, 1], [], []>} : vector<2x8xf32>, vector<8x132xf32>, vector<2x132xf32> -> vector<2x132xf32>
    %cst_300 = arith.constant dense<0.000000e+00> : vector<2x264xf32>
    %497 = tpu.matmul %496, %477, %cst_300 {dimension_numbers = #tpu.dot_dimension_numbers<[1], [0], [0], [1], [0, 0, 1, 1], [], []>} : vector<2x132xf32>, vector<132x264xf32>, vector<2x264xf32> -> vector<2x264xf32>
    %498 = arith.addf %493, %497 : vector<2x264xf32>
    %c2_301 = arith.constant 2 : index
    %c0_302 = arith.constant 0 : index
    %c0_303 = arith.constant 0 : index
    %499 = vector.load %arg14[%c2_301, %c0_302, %c0_303] : memref<4x2x8xf32, #tpu.memory_space<vmem>>, vector<1x2x8xf32>
    %500 = vector.shape_cast %499 : vector<1x2x8xf32> to vector<2x8xf32>
    %cst_304 = arith.constant dense<0.000000e+00> : vector<2x132xf32>
    %501 = tpu.matmul %500, %450, %cst_304 {dimension_numbers = #tpu.dot_dimension_numbers<[1], [0], [0], [1], [0, 0, 1, 1], [], []>} : vector<2x8xf32>, vector<8x132xf32>, vector<2x132xf32> -> vector<2x132xf32>
    %cst_305 = arith.constant dense<0.000000e+00> : vector<2x264xf32>
    %502 = tpu.matmul %501, %483, %cst_305 {dimension_numbers = #tpu.dot_dimension_numbers<[1], [0], [0], [1], [0, 0, 1, 1], [], []>} : vector<2x132xf32>, vector<132x264xf32>, vector<2x264xf32> -> vector<2x264xf32>
    %503 = arith.addf %498, %502 : vector<2x264xf32>
    %c3_306 = arith.constant 3 : index
    %c0_307 = arith.constant 0 : index
    %c0_308 = arith.constant 0 : index
    %504 = vector.load %arg14[%c3_306, %c0_307, %c0_308] : memref<4x2x8xf32, #tpu.memory_space<vmem>>, vector<1x2x8xf32>
    %505 = vector.shape_cast %504 : vector<1x2x8xf32> to vector<2x8xf32>
    %cst_309 = arith.constant dense<0.000000e+00> : vector<2x132xf32>
    %506 = tpu.matmul %505, %450, %cst_309 {dimension_numbers = #tpu.dot_dimension_numbers<[1], [0], [0], [1], [0, 0, 1, 1], [], []>} : vector<2x8xf32>, vector<8x132xf32>, vector<2x132xf32> -> vector<2x132xf32>
    %cst_310 = arith.constant dense<0.000000e+00> : vector<2x264xf32>
    %507 = tpu.matmul %506, %489, %cst_310 {dimension_numbers = #tpu.dot_dimension_numbers<[1], [0], [0], [1], [0, 0, 1, 1], [], []>} : vector<2x132xf32>, vector<132x264xf32>, vector<2x264xf32> -> vector<2x264xf32>
    %508 = arith.addf %503, %507 : vector<2x264xf32>
    %c0_311 = arith.constant 0 : index
    %c0_312 = arith.constant 0 : index
    %c0_313 = arith.constant 0 : index
    %509 = vector.load %arg14[%c0_311, %c0_312, %c0_313] : memref<4x2x8xf32, #tpu.memory_space<vmem>>, vector<1x2x8xf32>
    %510 = vector.shape_cast %509 : vector<1x2x8xf32> to vector<2x8xf32>
    %cst_314 = arith.constant dense<0.000000e+00> : vector<2x132xf32>
    %511 = tpu.matmul %510, %459, %cst_314 {dimension_numbers = #tpu.dot_dimension_numbers<[1], [0], [0], [1], [0, 0, 1, 1], [], []>} : vector<2x8xf32>, vector<8x132xf32>, vector<2x132xf32> -> vector<2x132xf32>
    %cst_315 = arith.constant dense<0.000000e+00> : vector<2x264xf32>
    %512 = tpu.matmul %511, %471, %cst_315 {dimension_numbers = #tpu.dot_dimension_numbers<[1], [0], [0], [1], [0, 0, 1, 1], [], []>} : vector<2x132xf32>, vector<132x264xf32>, vector<2x264xf32> -> vector<2x264xf32>
    %c1_316 = arith.constant 1 : index
    %c0_317 = arith.constant 0 : index
    %c0_318 = arith.constant 0 : index
    %513 = vector.load %arg14[%c1_316, %c0_317, %c0_318] : memref<4x2x8xf32, #tpu.memory_space<vmem>>, vector<1x2x8xf32>
    %514 = vector.shape_cast %513 : vector<1x2x8xf32> to vector<2x8xf32>
    %cst_319 = arith.constant dense<0.000000e+00> : vector<2x132xf32>
    %515 = tpu.matmul %514, %459, %cst_319 {dimension_numbers = #tpu.dot_dimension_numbers<[1], [0], [0], [1], [0, 0, 1, 1], [], []>} : vector<2x8xf32>, vector<8x132xf32>, vector<2x132xf32> -> vector<2x132xf32>
    %cst_320 = arith.constant dense<0.000000e+00> : vector<2x264xf32>
    %516 = tpu.matmul %515, %477, %cst_320 {dimension_numbers = #tpu.dot_dimension_numbers<[1], [0], [0], [1], [0, 0, 1, 1], [], []>} : vector<2x132xf32>, vector<132x264xf32>, vector<2x264xf32> -> vector<2x264xf32>
    %517 = arith.addf %512, %516 : vector<2x264xf32>
    %c2_321 = arith.constant 2 : index
    %c0_322 = arith.constant 0 : index
    %c0_323 = arith.constant 0 : index
    %518 = vector.load %arg14[%c2_321, %c0_322, %c0_323] : memref<4x2x8xf32, #tpu.memory_space<vmem>>, vector<1x2x8xf32>
    %519 = vector.shape_cast %518 : vector<1x2x8xf32> to vector<2x8xf32>
    %cst_324 = arith.constant dense<0.000000e+00> : vector<2x132xf32>
    %520 = tpu.matmul %519, %459, %cst_324 {dimension_numbers = #tpu.dot_dimension_numbers<[1], [0], [0], [1], [0, 0, 1, 1], [], []>} : vector<2x8xf32>, vector<8x132xf32>, vector<2x132xf32> -> vector<2x132xf32>
    %cst_325 = arith.constant dense<0.000000e+00> : vector<2x264xf32>
    %521 = tpu.matmul %520, %483, %cst_325 {dimension_numbers = #tpu.dot_dimension_numbers<[1], [0], [0], [1], [0, 0, 1, 1], [], []>} : vector<2x132xf32>, vector<132x264xf32>, vector<2x264xf32> -> vector<2x264xf32>
    %522 = arith.addf %517, %521 : vector<2x264xf32>
    %c3_326 = arith.constant 3 : index
    %c0_327 = arith.constant 0 : index
    %c0_328 = arith.constant 0 : index
    %523 = vector.load %arg14[%c3_326, %c0_327, %c0_328] : memref<4x2x8xf32, #tpu.memory_space<vmem>>, vector<1x2x8xf32>
    %524 = vector.shape_cast %523 : vector<1x2x8xf32> to vector<2x8xf32>
    %cst_329 = arith.constant dense<0.000000e+00> : vector<2x132xf32>
    %525 = tpu.matmul %524, %459, %cst_329 {dimension_numbers = #tpu.dot_dimension_numbers<[1], [0], [0], [1], [0, 0, 1, 1], [], []>} : vector<2x8xf32>, vector<8x132xf32>, vector<2x132xf32> -> vector<2x132xf32>
    %cst_330 = arith.constant dense<0.000000e+00> : vector<2x264xf32>
    %526 = tpu.matmul %525, %489, %cst_330 {dimension_numbers = #tpu.dot_dimension_numbers<[1], [0], [0], [1], [0, 0, 1, 1], [], []>} : vector<2x132xf32>, vector<132x264xf32>, vector<2x264xf32> -> vector<2x264xf32>
    %527 = arith.addf %522, %526 : vector<2x264xf32>
    %528 = math.tanh %508 : vector<2x264xf32>
    %c0_331 = arith.constant 0 : index
    %c0_332 = arith.constant 0 : index
    %c0_333 = arith.constant 0 : index
    %529 = vector.load %arg15[%c0_331, %c0_332, %c0_333] : memref<2x2x264xf32, #tpu.memory_space<vmem>>, vector<1x2x264xf32>
    %530 = vector.shape_cast %529 : vector<1x2x264xf32> to vector<2x264xf32>
    %531 = vector.shape_cast %528 : vector<2x264xf32> to vector<1x2x264xf32>
    tpu.vector_store %arg15[%c0_331, %c0_332, %c0_333], %531 {strides = array<i32>} : memref<2x2x264xf32, #tpu.memory_space<vmem>>, vector<1x2x264xf32>,
    %532 = math.tanh %527 : vector<2x264xf32>
    %c1_334 = arith.constant 1 : index
    %c0_335 = arith.constant 0 : index
    %c0_336 = arith.constant 0 : index
    %533 = vector.load %arg15[%c1_334, %c0_335, %c0_336] : memref<2x2x264xf32, #tpu.memory_space<vmem>>, vector<1x2x264xf32>
    %534 = vector.shape_cast %533 : vector<1x2x264xf32> to vector<2x264xf32>
    %535 = vector.shape_cast %532 : vector<2x264xf32> to vector<1x2x264xf32>
    tpu.vector_store %arg15[%c1_334, %c0_335, %c0_336], %535 {strides = array<i32>} : memref<2x2x264xf32, #tpu.memory_space<vmem>>, vector<1x2x264xf32>,
    return
  }
  func.func @transform_0(%arg0: i32) -> (i32, i32, i32) {
    %c0_i32 = arith.constant 0 : i32
    %c0_i32_0 = arith.constant 0 : i32
    %c0_i32_1 = arith.constant 0 : i32
    %c0_i32_2 = arith.constant 0 : i32
    return %c0_i32, %c0_i32_0, %c0_i32_1 : i32, i32, i32
  }
  func.func @transform_1(%arg0: i32) -> (i32, i32, i32) {
    %c0_i32 = arith.constant 0 : i32
    %c0_i32_0 = arith.constant 0 : i32
    %c0_i32_1 = arith.constant 0 : i32
    %c0_i32_2 = arith.constant 0 : i32
    return %c0_i32, %c0_i32_0, %c0_i32_1 : i32, i32, i32
  }
  func.func @transform_2(%arg0: i32) -> (i32, i32) {
    %c0_i32 = arith.constant 0 : i32
    %c0_i32_0 = arith.constant 0 : i32
    %c0_i32_1 = arith.constant 0 : i32
    return %c0_i32, %c0_i32_0 : i32, i32
  }
  func.func @transform_3(%arg0: i32) -> (i32, i32) {
    %c0_i32 = arith.constant 0 : i32
    %c0_i32_0 = arith.constant 0 : i32
    %c0_i32_1 = arith.constant 0 : i32
    return %c0_i32, %c0_i32_0 : i32, i32
  }
  func.func @transform_4(%arg0: i32) -> (i32, i32, i32) {
    %c0_i32 = arith.constant 0 : i32
    %c0_i32_0 = arith.constant 0 : i32
    %c0_i32_1 = arith.constant 0 : i32
    %c0_i32_2 = arith.constant 0 : i32
    return %c0_i32, %c0_i32_0, %c0_i32_1 : i32, i32, i32
  }
  func.func @transform_5(%arg0: i32) -> (i32, i32) {
    %c0_i32 = arith.constant 0 : i32
    %c0_i32_0 = arith.constant 0 : i32
    %c0_i32_1 = arith.constant 0 : i32
    return %c0_i32, %c0_i32_0 : i32, i32
  }
  func.func @transform_6(%arg0: i32) -> (i32, i32) {
    %c0_i32 = arith.constant 0 : i32
    %c0_i32_0 = arith.constant 0 : i32
    %c0_i32_1 = arith.constant 0 : i32
    return %c0_i32, %c0_i32_0 : i32, i32
  }
  func.func @transform_7(%arg0: i32) -> (i32, i32, i32) {
    %c0_i32 = arith.constant 0 : i32
    %c0_i32_0 = arith.constant 0 : i32
    %c0_i32_1 = arith.constant 0 : i32
    %c0_i32_2 = arith.constant 0 : i32
    return %c0_i32, %c0_i32_0, %c0_i32_1 : i32, i32, i32
  }
  func.func @transform_8(%arg0: i32) -> (i32, i32) {
    %c0_i32 = arith.constant 0 : i32
    %c0_i32_0 = arith.constant 0 : i32
    %c0_i32_1 = arith.constant 0 : i32
    return %c0_i32, %c0_i32_0 : i32, i32
  }
  func.func @transform_9(%arg0: i32) -> (i32, i32) {
    %c0_i32 = arith.constant 0 : i32
    %c0_i32_0 = arith.constant 0 : i32
    %c0_i32_1 = arith.constant 0 : i32
    return %c0_i32, %c0_i32_0 : i32, i32
  }
  func.func @transform_10(%arg0: i32) -> (i32, i32, i32) {
    %c0_i32 = arith.constant 0 : i32
    %c0_i32_0 = arith.constant 0 : i32
    %c0_i32_1 = arith.constant 0 : i32
    %c0_i32_2 = arith.constant 0 : i32
    return %c0_i32, %c0_i32_0, %c0_i32_1 : i32, i32, i32
  }
  func.func @transform_11(%arg0: i32) -> (i32, i32) {
    %c0_i32 = arith.constant 0 : i32
    %c0_i32_0 = arith.constant 0 : i32
    %c0_i32_1 = arith.constant 0 : i32
    return %c0_i32, %c0_i32_0 : i32, i32
  }
  func.func @transform_12(%arg0: i32) -> (i32, i32) {
    %c0_i32 = arith.constant 0 : i32
    %c0_i32_0 = arith.constant 0 : i32
    %c0_i32_1 = arith.constant 0 : i32
    return %c0_i32, %c0_i32_0 : i32, i32
  }
  func.func @transform_13(%arg0: i32) -> (i32, i32, i32) {
    %c0_i32 = arith.constant 0 : i32
    %c0_i32_0 = arith.constant 0 : i32
    %c0_i32_1 = arith.constant 0 : i32
    %c0_i32_2 = arith.constant 0 : i32
    return %c0_i32, %c0_i32_0, %c0_i32_1 : i32, i32, i32
  }
  func.func @transform_14(%arg0: i32) -> (i32, i32, i32) {
    %c0_i32 = arith.constant 0 : i32
    %c0_i32_0 = arith.constant 0 : i32
    %c0_i32_1 = arith.constant 0 : i32
    %c0_i32_2 = arith.constant 0 : i32
    return %c0_i32, %c0_i32_0, %c0_i32_1 : i32, i32, i32
  }
}

</mosaic_0001>

<llo_original>
// kernel: generator_forward.1
$region0: #{generator_forward.1}
  #allocation0 [shape = 'u32[]', space=smem, size = 0x4, offset = 0x4, fixed_abs, tag = 'smem constant byte address 0x4 - core index']
  #allocation1 [shape = 'u32[144,128]{1,0:T(1,128)}', space=vmem, size = 0x12000, scoped, tag = 'internal scratch']
  %s0 = inlined_call_operand.vmem [shape: f32[2,8,8], index: 0, kind: input, shape index: {}]
  %s1 = inlined_call_operand.vmem [shape: f32[4,64,8], index: 1, kind: input, shape index: {}]
  %s2 = inlined_call_operand.vmem [shape: f32[64,1], index: 2, kind: input, shape index: {}]
  %s3 = inlined_call_operand.vmem [shape: f32[64,1], index: 3, kind: input, shape index: {}]
  %s4 = inlined_call_operand.vmem [shape: f32[4,32,64], index: 4, kind: input, shape index: {}]
  %s5 = inlined_call_operand.vmem [shape: f32[32,1], index: 5, kind: input, shape index: {}]
  %s6 = inlined_call_operand.vmem [shape: f32[32,1], index: 6, kind: input, shape index: {}]
  %s7 = inlined_call_operand.vmem [shape: f32[4,16,32], index: 7, kind: input, shape index: {}]
  %s8 = inlined_call_operand.vmem [shape: f32[16,1], index: 8, kind: input, shape index: {}]
  %s9 = inlined_call_operand.vmem [shape: f32[16,1], index: 9, kind: input, shape index: {}]
  %s10 = inlined_call_operand.vmem [shape: f32[4,8,16], index: 10, kind: input, shape index: {}]
  %s11 = inlined_call_operand.vmem [shape: f32[8,1], index: 11, kind: input, shape index: {}]
  %s12 = inlined_call_operand.vmem [shape: f32[8,1], index: 12, kind: input, shape index: {}]
  %s13 = inlined_call_operand.vmem [shape: f32[4,2,8], index: 13, kind: input, shape index: {}]
  %s14 = inlined_call_operand.hbm [shape: f32[2,2,264], index: 14, kind: output, shape index: {}]
  %s15 = sld [smem:[#allocation0]]
  $region66: #{generator_forward.1} parent=0
    _
  %s17 = ssub.s32 1, %s15
  %s18 = scalar_select 0, %s17, %s15
  $region1: #{generator_forward.1} parent=0
    #allocation2 [shape = 'u8[6144]{0}', space=vmem, size = 0x1800, scoped, tag = 'output window, operand 0, single buffered']
    #allocation3 [shape = 's32[1]{0}', space=sflag, size = 0x4, scoped, tag = 'scoped memory for generator_forward.1']
    %19 = vsyncpa [#allocation3], 0
    // Predicated region
    $region2: #{generator_forward.1} parent=1 // pred_check
      _
    $region3: #{generator_forward.1} parent=1 // pred_check_branch
      %21 = sbr.rel (0) target = $region5
    $region4: #{generator_forward.1} parent=1 // pred_region
      _
    $region5: #{generator_forward.1} parent=1 // pred_fallthru
      _
    // Predicated region
    $region6: #{generator_forward.1} parent=1 // pred_check
      _
    $region7: #{generator_forward.1} parent=1 // pred_check_branch
      %23 = sbr.rel (0) target = $region9
    $region8: #{generator_forward.1} parent=1 // pred_region
      _
    $region9: #{generator_forward.1} parent=1 // pred_fallthru
      _
    // Predicated region
    $region10: #{generator_forward.1} parent=1 // pred_check
      _
    $region11: #{generator_forward.1} parent=1 // pred_check_branch
      %25 = sbr.rel (0) target = $region13
    $region12: #{generator_forward.1} parent=1 // pred_region
      _
    $region13: #{generator_forward.1} parent=1 // pred_fallthru
      _
    // Predicated region
    $region14: #{generator_forward.1} parent=1 // pred_check
      _
    $region15: #{generator_forward.1} parent=1 // pred_check_branch
      %27 = sbr.rel (0) target = $region17
    $region16: #{generator_forward.1} parent=1 // pred_region
      _
    $region17: #{generator_forward.1} parent=1 // pred_fallthru
      _
    // Predicated region
    $region18: #{generator_forward.1} parent=1 // pred_check
      _
    $region19: #{generator_forward.1} parent=1 // pred_check_branch
      %29 = sbr.rel (0) target = $region21
    $region20: #{generator_forward.1} parent=1 // pred_region
      _
    $region21: #{generator_forward.1} parent=1 // pred_fallthru
      _
    // Predicated region
    $region22: #{generator_forward.1} parent=1 // pred_check
      _
    $region23: #{generator_forward.1} parent=1 // pred_check_branch
      %31 = sbr.rel (0) target = $region25
    $region24: #{generator_forward.1} parent=1 // pred_region
      _
    $region25: #{generator_forward.1} parent=1 // pred_fallthru
      _
    // Predicated region
    $region26: #{generator_forward.1} parent=1 // pred_check
      _
    $region27: #{generator_forward.1} parent=1 // pred_check_branch
      %33 = sbr.rel (0) target = $region29
    $region28: #{generator_forward.1} parent=1 // pred_region
      _
    $region29: #{generator_forward.1} parent=1 // pred_fallthru
      _
    // Predicated region
    $region30: #{generator_forward.1} parent=1 // pred_check
      _
    $region31: #{generator_forward.1} parent=1 // pred_check_branch
      %35 = sbr.rel (0) target = $region33
    $region32: #{generator_forward.1} parent=1 // pred_region
      _
    $region33: #{generator_forward.1} parent=1 // pred_fallthru
      _
    // Predicated region
    $region34: #{generator_forward.1} parent=1 // pred_check
      _
    $region35: #{generator_forward.1} parent=1 // pred_check_branch
      %37 = sbr.rel (0) target = $region37
    $region36: #{generator_forward.1} parent=1 // pred_region
      _
    $region37: #{generator_forward.1} parent=1 // pred_fallthru
      _
    // Predicated region
    $region38: #{generator_forward.1} parent=1 // pred_check
      _
    $region39: #{generator_forward.1} parent=1 // pred_check_branch
      %39 = sbr.rel (0) target = $region41
    $region40: #{generator_forward.1} parent=1 // pred_region
      _
    $region41: #{generator_forward.1} parent=1 // pred_fallthru
      _
    // Predicated region
    $region42: #{generator_forward.1} parent=1 // pred_check
      _
    $region43: #{generator_forward.1} parent=1 // pred_check_branch
      %41 = sbr.rel (0) target = $region45
    $region44: #{generator_forward.1} parent=1 // pred_region
      _
    $region45: #{generator_forward.1} parent=1 // pred_fallthru
      _
    // Predicated region
    $region46: #{generator_forward.1} parent=1 // pred_check
      _
    $region47: #{generator_forward.1} parent=1 // pred_check_branch
      %43 = sbr.rel (0) target = $region49
    $region48: #{generator_forward.1} parent=1 // pred_region
      _
    $region49: #{generator_forward.1} parent=1 // pred_fallthru
      _
    // Predicated region
    $region50: #{generator_forward.1} parent=1 // pred_check
      _
    $region51: #{generator_forward.1} parent=1 // pred_check_branch
      %45 = sbr.rel (0) target = $region53
    $region52: #{generator_forward.1} parent=1 // pred_region
      _
    $region53: #{generator_forward.1} parent=1 // pred_fallthru
      _
    // Predicated region
    $region54: #{generator_forward.1} parent=1 // pred_check
      _
    $region55: #{generator_forward.1} parent=1 // pred_check_branch
      %47 = sbr.rel (0) target = $region57
    $region56: #{generator_forward.1} parent=1 // pred_region
      _
    $region57: #{generator_forward.1} parent=1 // pred_fallthru
      _
    %v48 = vld [vmem:[%s0] sm:$0xff]
    %s49 = scalar_lea.vmem %s0, 8
    %v50 = vld [vmem:[%s49] sm:$0xff]
    %v51 = vlaneseq
    %v52 = vshrl.u32 %v51, 7
    %v53 = vlaneseq
    %v54 = vand.u32 %v53, 127
    %v55 = vmul.u32 %v52, 2
    %v56 = vsub.s32 %v55, 1
    %vm57 = vcmp.eq.s32.totalorder %v54, %v56
    %v58 = vsel %vm57, 1.0, 0.0
    %vm59 = vcmp.eq.s32.totalorder %v54, %v55
    %v60 = vsel %vm59, 1.0, 0.0
    %v61 = vadd.s32 %v56, 2
    %vm62 = vcmp.eq.s32.totalorder %v54, %v61
    %v63 = vsel %vm62, 1.0, 0.0
    %v64 = vadd.s32 %v56, 3
    %vm65 = vcmp.eq.s32.totalorder %v54, %v64
    %v66 = vsel %vm65, 1.0, 0.0
    %v67 = vld [vmem:[%s1] sm:$0xff]
    %v68 = vld [vmem:[%s1 + $0x8] sm:$0xff]
    %v69 = vld [vmem:[%s1 + $0x10] sm:$0xff]
    %v70 = vld [vmem:[%s1 + $0x18] sm:$0xff]
    %v71 = vld [vmem:[%s1 + $0x20] sm:$0xff]
    %v72 = vld [vmem:[%s1 + $0x28] sm:$0xff]
    %v73 = vld [vmem:[%s1 + $0x30] sm:$0xff]
    %v74 = vld [vmem:[%s1 + $0x38] sm:$0xff]
    %vm75 = vcmask 64512
    %v77 = vsel %vm75, %v67, 0
    %v80 = vsel %vm75, %v68, 0
    %v83 = vsel %vm75, %v69, 0
    %v86 = vsel %vm75, %v70, 0
    %v89 = vsel %vm75, %v71, 0
    %v92 = vsel %vm75, %v72, 0
    %v95 = vsel %vm75, %v73, 0
    %v98 = vsel %vm75, %v74, 0
    %100 = vmatprep.subr.mxu0 0.0
    %101 = vmatpush1.msra.mxu0 %v48
    %102 = vmatprep.subr.mxu0 0.0
    %103 = vmatpush1.msra.mxu0 0.0
    %104 = vmatprep.subr.mxu0 0.0
    %105 = vmatpush1.msra.mxu0 0.0
    %106 = vmatprep.subr.mxu0 0.0
    %107 = vmatpush1.msra.mxu0 0.0
    %108 = vmatprep.subr.mxu0 0.0
    %109 = vmatpush1.msra.mxu0 0.0
    %110 = vmatprep.subr.mxu0 0.0
    %111 = vmatpush1.msra.mxu0 0.0
    %112 = vmatprep.subr.mxu0 0.0
    %113 = vmatpush1.msra.mxu0 0.0
    %114 = vmatprep.subr.mxu0 0.0
    %115 = vmatpush1.msra.mxu0 0.0
    %116 = vmatprep.subr.mxu0 0.0
    %117 = vmatpush1.msra.mxu0 0.0
    %118 = vmatprep.subr.mxu0 0.0
    %119 = vmatpush1.msra.mxu0 0.0
    %120 = vmatprep.subr.mxu0 0.0
    %121 = vmatpush1.msra.mxu0 0.0
    %122 = vmatprep.subr.mxu0 0.0
    %123 = vmatpush1.msra.mxu0 0.0
    %124 = vmatprep.subr.mxu0 0.0
    %125 = vmatpush1.msra.mxu0 0.0
    %126 = vmatprep.subr.mxu0 0.0
    %127 = vmatpush1.msra.mxu0 0.0
    %128 = vmatprep.subr.mxu0 0.0
    %129 = vmatpush1.msra.mxu0 0.0
    %130 = vmatprep.subr.mxu0 0.0
    %131 = vmatpush1.msra.mxu0 0.0
    %132 = vmatprep.subr.mxu0 0.0
    %133 = vmatpush1.msra.mxu0 0.0
    %134 = vmatprep.subr.mxu0 0.0
    %135 = vmatpush1.msra.mxu0 0.0
    %136 = vmatprep.subr.mxu0 0.0
    %137 = vmatpush1.msra.mxu0 0.0
    %138 = vmatprep.subr.mxu0 0.0
    %139 = vmatpush1.msra.mxu0 0.0
    %140 = vmatprep.subr.mxu0 0.0
    %141 = vmatpush1.msra.mxu0 0.0
    %142 = vmatprep.subr.mxu0 0.0
    %143 = vmatpush1.msra.mxu0 0.0
    %144 = vmatprep.subr.mxu0 0.0
    %145 = vmatpush1.msra.mxu0 0.0
    %146 = vmatprep.subr.mxu0 0.0
    %147 = vmatpush1.msra.mxu0 0.0
    %148 = vmatprep.subr.mxu0 0.0
    %149 = vmatpush1.msra.mxu0 0.0
    %150 = vmatprep.subr.mxu0 0.0
    %151 = vmatpush1.msra.mxu0 0.0
    %152 = vmatprep.subr.mxu0 0.0
    %153 = vmatpush1.msra.mxu0 0.0
    %154 = vmatprep.subr.mxu0 0.0
    %155 = vmatpush1.msra.mxu0 0.0
    %156 = vmatprep.subr.mxu0 0.0
    %157 = vmatpush1.msra.mxu0 0.0
    %158 = vmatprep.subr.mxu0 0.0
    %159 = vmatpush1.msra.mxu0 0.0
    %160 = vmatprep.subr.mxu0 0.0
    %161 = vmatpush1.msra.mxu0 0.0
    %162 = vmatprep.subr.mxu0 0.0
    %163 = vmatpush1.msra.mxu0 0.0
    %164 = vmatprep.mubr.f32.mxu0 0.0
    %165 = vmatmul.mubr.f32.gmra.mrb[0].mxu0 %v77
    %v166 = vpop.f32.mrb[0].mxu0
    %v167 = vadd.f32 0.0, %v166
    %v168 = vpop.f32.mrb[0].mxu0
    %169 = vmatprep.mubr.f32.mxu0 0.0
    %170 = vmatmul.mubr.f32.gmra.mrb[0].mxu0 %v80
    %v171 = vpop.f32.mrb[0].mxu0
    %v172 = vadd.f32 0.0, %v171
    %v173 = vpop.f32.mrb[0].mxu0
    %174 = vmatprep.mubr.f32.mxu0 0.0
    %175 = vmatmul.mubr.f32.gmra.mrb[0].mxu0 %v83
    %v176 = vpop.f32.mrb[0].mxu0
    %v177 = vadd.f32 0.0, %v176
    %v178 = vpop.f32.mrb[0].mxu0
    %179 = vmatprep.mubr.f32.mxu0 0.0
    %180 = vmatmul.mubr.f32.gmra.mrb[0].mxu0 %v86
    %v181 = vpop.f32.mrb[0].mxu0
    %v182 = vadd.f32 0.0, %v181
    %v183 = vpop.f32.mrb[0].mxu0
    %184 = vmatprep.mubr.f32.mxu0 0.0
    %185 = vmatmul.mubr.f32.gmra.mrb[0].mxu0 %v89
    %v186 = vpop.f32.mrb[0].mxu0
    %v187 = vadd.f32 0.0, %v186
    %v188 = vpop.f32.mrb[0].mxu0
    %189 = vmatprep.mubr.f32.mxu0 0.0
    %190 = vmatmul.mubr.f32.gmra.mrb[0].mxu0 %v92
    %v191 = vpop.f32.mrb[0].mxu0
    %v192 = vadd.f32 0.0, %v191
    %v193 = vpop.f32.mrb[0].mxu0
    %194 = vmatprep.mubr.f32.mxu0 0.0
    %195 = vmatmul.mubr.f32.gmra.mrb[0].mxu0 %v95
    %v196 = vpop.f32.mrb[0].mxu0
    %v197 = vadd.f32 0.0, %v196
    %v198 = vpop.f32.mrb[0].mxu0
    %199 = vmatprep.mubr.f32.mxu0 0.0
    %200 = vmatmul.mubr.f32.gmra.mrb[0].mxu0 %v98
    %v201 = vpop.f32.mrb[0].mxu0
    %v202 = vadd.f32 0.0, %v201
    %v203 = vpop.f32.mrb[0].mxu0
    %204 = vdwg.mxu0
    %s205 = scalar_lea.vmem %s1, 64
    %v206 = vld [vmem:[%s205] sm:$0xff]
    %v207 = vld [vmem:[%s205 + $0x8] sm:$0xff]
    %v208 = vld [vmem:[%s205 + $0x10] sm:$0xff]
    %v209 = vld [vmem:[%s205 + $0x18] sm:$0xff]
    %v210 = vld [vmem:[%s205 + $0x20] sm:$0xff]
    %v211 = vld [vmem:[%s205 + $0x28] sm:$0xff]
    %v212 = vld [vmem:[%s205 + $0x30] sm:$0xff]
    %v213 = vld [vmem:[%s205 + $0x38] sm:$0xff]
    %v215 = vsel %vm75, %v206, 0
    %v218 = vsel %vm75, %v207, 0
    %v221 = vsel %vm75, %v208, 0
    %v224 = vsel %vm75, %v209, 0
    %v227 = vsel %vm75, %v210, 0
    %v230 = vsel %vm75, %v211, 0
    %v233 = vsel %vm75, %v212, 0
    %v236 = vsel %vm75, %v213, 0
    %238 = vmatprep.subr.mxu0 0.0
    %239 = vmatpush1.msra.mxu0 %v48
    %240 = vmatprep.subr.mxu0 0.0
    %241 = vmatpush1.msra.mxu0 0.0
    %242 = vmatprep.subr.mxu0 0.0
    %243 = vmatpush1.msra.mxu0 0.0
    %244 = vmatprep.subr.mxu0 0.0
    %245 = vmatpush1.msra.mxu0 0.0
    %246 = vmatprep.subr.mxu0 0.0
    %247 = vmatpush1.msra.mxu0 0.0
    %248 = vmatprep.subr.mxu0 0.0
    %249 = vmatpush1.msra.mxu0 0.0
    %250 = vmatprep.subr.mxu0 0.0
    %251 = vmatpush1.msra.mxu0 0.0
    %252 = vmatprep.subr.mxu0 0.0
    %253 = vmatpush1.msra.mxu0 0.0
    %254 = vmatprep.subr.mxu0 0.0
    %255 = vmatpush1.msra.mxu0 0.0
    %256 = vmatprep.subr.mxu0 0.0
    %257 = vmatpush1.msra.mxu0 0.0
    %258 = vmatprep.subr.mxu0 0.0
    %259 = vmatpush1.msra.mxu0 0.0
    %260 = vmatprep.subr.mxu0 0.0
    %261 = vmatpush1.msra.mxu0 0.0
    %262 = vmatprep.subr.mxu0 0.0
    %263 = vmatpush1.msra.mxu0 0.0
    %264 = vmatprep.subr.mxu0 0.0
    %265 = vmatpush1.msra.mxu0 0.0
    %266 = vmatprep.subr.mxu0 0.0
    %267 = vmatpush1.msra.mxu0 0.0
    %268 = vmatprep.subr.mxu0 0.0
    %269 = vmatpush1.msra.mxu0 0.0
    %270 = vmatprep.subr.mxu0 0.0
    %271 = vmatpush1.msra.mxu0 0.0
    %272 = vmatprep.subr.mxu0 0.0
    %273 = vmatpush1.msra.mxu0 0.0
    %274 = vmatprep.subr.mxu0 0.0
    %275 = vmatpush1.msra.mxu0 0.0
    %276 = vmatprep.subr.mxu0 0.0
    %277 = vmatpush1.msra.mxu0 0.0
    %278 = vmatprep.subr.mxu0 0.0
    %279 = vmatpush1.msra.mxu0 0.0
    %280 = vmatprep.subr.mxu0 0.0
    %281 = vmatpush1.msra.mxu0 0.0
    %282 = vmatprep.subr.mxu0 0.0
    %283 = vmatpush1.msra.mxu0 0.0
    %284 = vmatprep.subr.mxu0 0.0
    %285 = vmatpush1.msra.mxu0 0.0
    %286 = vmatprep.subr.mxu0 0.0
    %287 = vmatpush1.msra.mxu0 0.0
    %288 = vmatprep.subr.mxu0 0.0
    %289 = vmatpush1.msra.mxu0 0.0
    %290 = vmatprep.subr.mxu0 0.0
    %291 = vmatpush1.msra.mxu0 0.0
    %292 = vmatprep.subr.mxu0 0.0
    %293 = vmatpush1.msra.mxu0 0.0
    %294 = vmatprep.subr.mxu0 0.0
    %295 = vmatpush1.msra.mxu0 0.0
    %296 = vmatprep.subr.mxu0 0.0
    %297 = vmatpush1.msra.mxu0 0.0
    %298 = vmatprep.subr.mxu0 0.0
    %299 = vmatpush1.msra.mxu0 0.0
    %300 = vmatprep.subr.mxu0 0.0
    %301 = vmatpush1.msra.mxu0 0.0
    %302 = vmatprep.mubr.f32.mxu0 0.0
    %303 = vmatmul.mubr.f32.gmra.mrb[0].mxu0 %v215
    %v304 = vpop.f32.mrb[0].mxu0
    %v305 = vadd.f32 0.0, %v304
    %v306 = vpop.f32.mrb[0].mxu0
    %307 = vmatprep.mubr.f32.mxu0 0.0
    %308 = vmatmul.mubr.f32.gmra.mrb[0].mxu0 %v218
    %v309 = vpop.f32.mrb[0].mxu0
    %v310 = vadd.f32 0.0, %v309
    %v311 = vpop.f32.mrb[0].mxu0
    %312 = vmatprep.mubr.f32.mxu0 0.0
    %313 = vmatmul.mubr.f32.gmra.mrb[0].mxu0 %v221
    %v314 = vpop.f32.mrb[0].mxu0
    %v315 = vadd.f32 0.0, %v314
    %v316 = vpop.f32.mrb[0].mxu0
    %317 = vmatprep.mubr.f32.mxu0 0.0
    %318 = vmatmul.mubr.f32.gmra.mrb[0].mxu0 %v224
    %v319 = vpop.f32.mrb[0].mxu0
    %v320 = vadd.f32 0.0, %v319
    %v321 = vpop.f32.mrb[0].mxu0
    %322 = vmatprep.mubr.f32.mxu0 0.0
    %323 = vmatmul.mubr.f32.gmra.mrb[0].mxu0 %v227
    %v324 = vpop.f32.mrb[0].mxu0
    %v325 = vadd.f32 0.0, %v324
    %v326 = vpop.f32.mrb[0].mxu0
    %327 = vmatprep.mubr.f32.mxu0 0.0
    %328 = vmatmul.mubr.f32.gmra.mrb[0].mxu0 %v230
    %v329 = vpop.f32.mrb[0].mxu0
    %v330 = vadd.f32 0.0, %v329
    %v331 = vpop.f32.mrb[0].mxu0
    %332 = vmatprep.mubr.f32.mxu0 0.0
    %333 = vmatmul.mubr.f32.gmra.mrb[0].mxu0 %v233
    %v334 = vpop.f32.mrb[0].mxu0
    %v335 = vadd.f32 0.0, %v334
    %v336 = vpop.f32.mrb[0].mxu0
    %337 = vmatprep.mubr.f32.mxu0 0.0
    %338 = vmatmul.mubr.f32.gmra.mrb[0].mxu0 %v236
    %v339 = vpop.f32.mrb[0].mxu0
    %v340 = vadd.f32 0.0, %v339
    %v341 = vpop.f32.mrb[0].mxu0
    %342 = vdwg.mxu0
    %v344 = vsel %vm75, %v305, 0
    %v347 = vsel %vm75, %v310, 0
    %v350 = vsel %vm75, %v315, 0
    %v353 = vsel %vm75, %v320, 0
    %v356 = vsel %vm75, %v325, 0
    %v359 = vsel %vm75, %v330, 0
    %v362 = vsel %vm75, %v335, 0
    %v365 = vsel %vm75, %v340, 0
    %367 = vmatprep.subr.mxu0 0.0
    %368 = vmatpush1.msra.mxu0 %v60
    %369 = vmatprep.subr.mxu0 0.0
    %370 = vmatpush1.msra.mxu0 0.0
    %371 = vmatprep.subr.mxu0 0.0
    %372 = vmatpush1.msra.mxu0 0.0
    %373 = vmatprep.subr.mxu0 0.0
    %374 = vmatpush1.msra.mxu0 0.0
    %375 = vmatprep.subr.mxu0 0.0
    %376 = vmatpush1.msra.mxu0 0.0
    %377 = vmatprep.subr.mxu0 0.0
    %378 = vmatpush1.msra.mxu0 0.0
    %379 = vmatprep.subr.mxu0 0.0
    %380 = vmatpush1.msra.mxu0 0.0
    %381 = vmatprep.subr.mxu0 0.0
    %382 = vmatpush1.msra.mxu0 0.0
    %383 = vmatprep.subr.mxu0 0.0
    %384 = vmatpush1.msra.mxu0 0.0
    %385 = vmatprep.subr.mxu0 0.0
    %386 = vmatpush1.msra.mxu0 0.0
    %387 = vmatprep.subr.mxu0 0.0
    %388 = vmatpush1.msra.mxu0 0.0
    %389 = vmatprep.subr.mxu0 0.0
    %390 = vmatpush1.msra.mxu0 0.0
    %391 = vmatprep.subr.mxu0 0.0
    %392 = vmatpush1.msra.mxu0 0.0
    %393 = vmatprep.subr.mxu0 0.0
    %394 = vmatpush1.msra.mxu0 0.0
    %395 = vmatprep.subr.mxu0 0.0
    %396 = vmatpush1.msra.mxu0 0.0
    %397 = vmatprep.subr.mxu0 0.0
    %398 = vmatpush1.msra.mxu0 0.0
    %399 = vmatprep.subr.mxu0 0.0
    %400 = vmatpush1.msra.mxu0 0.0
    %401 = vmatprep.subr.mxu0 0.0
    %402 = vmatpush1.msra.mxu0 0.0
    %403 = vmatprep.subr.mxu0 0.0
    %404 = vmatpush1.msra.mxu0 0.0
    %405 = vmatprep.subr.mxu0 0.0
    %406 = vmatpush1.msra.mxu0 0.0
    %407 = vmatprep.subr.mxu0 0.0
    %408 = vmatpush1.msra.mxu0 0.0
    %409 = vmatprep.subr.mxu0 0.0
    %410 = vmatpush1.msra.mxu0 0.0
    %411 = vmatprep.subr.mxu0 0.0
    %412 = vmatpush1.msra.mxu0 0.0
    %413 = vmatprep.subr.mxu0 0.0
    %414 = vmatpush1.msra.mxu0 0.0
    %415 = vmatprep.subr.mxu0 0.0
    %416 = vmatpush1.msra.mxu0 0.0
    %417 = vmatprep.subr.mxu0 0.0
    %418 = vmatpush1.msra.mxu0 0.0
    %419 = vmatprep.subr.mxu0 0.0
    %420 = vmatpush1.msra.mxu0 0.0
    %421 = vmatprep.subr.mxu0 0.0
    %422 = vmatpush1.msra.mxu0 0.0
    %423 = vmatprep.subr.mxu0 0.0
    %424 = vmatpush1.msra.mxu0 0.0
    %425 = vmatprep.subr.mxu0 0.0
    %426 = vmatpush1.msra.mxu0 0.0
    %427 = vmatprep.subr.mxu0 0.0
    %428 = vmatpush1.msra.mxu0 0.0
    %429 = vmatprep.subr.mxu0 0.0
    %430 = vmatpush1.msra.mxu0 0.0
    %431 = vmatprep.mubr.f32.mxu0 0.0
    %432 = vmatmul.mubr.f32.gmra.mrb[0].mxu0 %v344
    %v433 = vpop.f32.mrb[0].mxu0
    %v434 = vadd.f32 0.0, %v433
    %v435 = vpop.f32.mrb[0].mxu0
    %436 = vmatprep.mubr.f32.mxu0 0.0
    %437 = vmatmul.mubr.f32.gmra.mrb[0].mxu0 %v347
    %v438 = vpop.f32.mrb[0].mxu0
    %v439 = vadd.f32 0.0, %v438
    %v440 = vpop.f32.mrb[0].mxu0
    %441 = vmatprep.mubr.f32.mxu0 0.0
    %442 = vmatmul.mubr.f32.gmra.mrb[0].mxu0 %v350
    %v443 = vpop.f32.mrb[0].mxu0
    %v444 = vadd.f32 0.0, %v443
    %v445 = vpop.f32.mrb[0].mxu0
    %446 = vmatprep.mubr.f32.mxu0 0.0
    %447 = vmatmul.mubr.f32.gmra.mrb[0].mxu0 %v353
    %v448 = vpop.f32.mrb[0].mxu0
    %v449 = vadd.f32 0.0, %v448
    %v450 = vpop.f32.mrb[0].mxu0
    %451 = vmatprep.mubr.f32.mxu0 0.0
    %452 = vmatmul.mubr.f32.gmra.mrb[0].mxu0 %v356
    %v453 = vpop.f32.mrb[0].mxu0
    %v454 = vadd.f32 0.0, %v453
    %v455 = vpop.f32.mrb[0].mxu0
    %456 = vmatprep.mubr.f32.mxu0 0.0
    %457 = vmatmul.mubr.f32.gmra.mrb[0].mxu0 %v359
    %v458 = vpop.f32.mrb[0].mxu0
    %v459 = vadd.f32 0.0, %v458
    %v460 = vpop.f32.mrb[0].mxu0
    %461 = vmatprep.mubr.f32.mxu0 0.0
    %462 = vmatmul.mubr.f32.gmra.mrb[0].mxu0 %v362
    %v463 = vpop.f32.mrb[0].mxu0
    %v464 = vadd.f32 0.0, %v463
    %v465 = vpop.f32.mrb[0].mxu0
    %466 = vmatprep.mubr.f32.mxu0 0.0
    %467 = vmatmul.mubr.f32.gmra.mrb[0].mxu0 %v365
    %v468 = vpop.f32.mrb[0].mxu0
    %v469 = vadd.f32 0.0, %v468
    %v470 = vpop.f32.mrb[0].mxu0
    %471 = vdwg.mxu0
    %v473 = vsel %vm75, %v167, 0
    %v476 = vsel %vm75, %v172, 0
    %v479 = vsel %vm75, %v177, 0
    %v482 = vsel %vm75, %v182, 0
    %v485 = vsel %vm75, %v187, 0
    %v488 = vsel %vm75, %v192, 0
    %v491 = vsel %vm75, %v197, 0
    %v494 = vsel %vm75, %v202, 0
    %496 = vmatprep.subr.mxu0 0.0
    %497 = vmatpush1.msra.mxu0 %v58
    %498 = vmatprep.subr.mxu0 0.0
    %499 = vmatpush1.msra.mxu0 0.0
    %500 = vmatprep.subr.mxu0 0.0
    %501 = vmatpush1.msra.mxu0 0.0
    %502 = vmatprep.subr.mxu0 0.0
    %503 = vmatpush1.msra.mxu0 0.0
    %504 = vmatprep.subr.mxu0 0.0
    %505 = vmatpush1.msra.mxu0 0.0
    %506 = vmatprep.subr.mxu0 0.0
    %507 = vmatpush1.msra.mxu0 0.0
    %508 = vmatprep.subr.mxu0 0.0
    %509 = vmatpush1.msra.mxu0 0.0
    %510 = vmatprep.subr.mxu0 0.0
    %511 = vmatpush1.msra.mxu0 0.0
    %512 = vmatprep.subr.mxu0 0.0
    %513 = vmatpush1.msra.mxu0 0.0
    %514 = vmatprep.subr.mxu0 0.0
    %515 = vmatpush1.msra.mxu0 0.0
    %516 = vmatprep.subr.mxu0 0.0
    %517 = vmatpush1.msra.mxu0 0.0
    %518 = vmatprep.subr.mxu0 0.0
    %519 = vmatpush1.msra.mxu0 0.0
    %520 = vmatprep.subr.mxu0 0.0
    %521 = vmatpush1.msra.mxu0 0.0
    %522 = vmatprep.subr.mxu0 0.0
    %523 = vmatpush1.msra.mxu0 0.0
    %524 = vmatprep.subr.mxu0 0.0
    %525 = vmatpush1.msra.mxu0 0.0
    %526 = vmatprep.subr.mxu0 0.0
    %527 = vmatpush1.msra.mxu0 0.0
    %528 = vmatprep.subr.mxu0 0.0
    %529 = vmatpush1.msra.mxu0 0.0
    %530 = vmatprep.subr.mxu0 0.0
    %531 = vmatpush1.msra.mxu0 0.0
    %532 = vmatprep.subr.mxu0 0.0
    %533 = vmatpush1.msra.mxu0 0.0
    %534 = vmatprep.subr.mxu0 0.0
    %535 = vmatpush1.msra.mxu0 0.0
    %536 = vmatprep.subr.mxu0 0.0
    %537 = vmatpush1.msra.mxu0 0.0
    %538 = vmatprep.subr.mxu0 0.0
    %539 = vmatpush1.msra.mxu0 0.0
    %540 = vmatprep.subr.mxu0 0.0
    %541 = vmatpush1.msra.mxu0 0.0
    %542 = vmatprep.subr.mxu0 0.0
    %543 = vmatpush1.msra.mxu0 0.0
    %544 = vmatprep.subr.mxu0 0.0
    %545 = vmatpush1.msra.mxu0 0.0
    %546 = vmatprep.subr.mxu0 0.0
    %547 = vmatpush1.msra.mxu0 0.0
    %548 = vmatprep.subr.mxu0 0.0
    %549 = vmatpush1.msra.mxu0 0.0
    %550 = vmatprep.subr.mxu0 0.0
    %551 = vmatpush1.msra.mxu0 0.0
    %552 = vmatprep.subr.mxu0 0.0
    %553 = vmatpush1.msra.mxu0 0.0
    %554 = vmatprep.subr.mxu0 0.0
    %555 = vmatpush1.msra.mxu0 0.0
    %556 = vmatprep.subr.mxu0 0.0
    %557 = vmatpush1.msra.mxu0 0.0
    %558 = vmatprep.subr.mxu0 0.0
    %559 = vmatpush1.msra.mxu0 0.0
    %560 = vmatprep.mubr.f32.mxu0 0.0
    %561 = vmatmul.mubr.f32.gmra.mrb[0].mxu0 %v473
    %v562 = vpop.f32.mrb[0].mxu0
    %v563 = vadd.f32 %v434, %v562
    %v564 = vpop.f32.mrb[0].mxu0
    %565 = vmatprep.mubr.f32.mxu0 0.0
    %566 = vmatmul.mubr.f32.gmra.mrb[0].mxu0 %v476
    %v567 = vpop.f32.mrb[0].mxu0
    %v568 = vadd.f32 %v439, %v567
    %v569 = vpop.f32.mrb[0].mxu0
    %570 = vmatprep.mubr.f32.mxu0 0.0
    %571 = vmatmul.mubr.f32.gmra.mrb[0].mxu0 %v479
    %v572 = vpop.f32.mrb[0].mxu0
    %v573 = vadd.f32 %v444, %v572
    %v574 = vpop.f32.mrb[0].mxu0
    %575 = vmatprep.mubr.f32.mxu0 0.0
    %576 = vmatmul.mubr.f32.gmra.mrb[0].mxu0 %v482
    %v577 = vpop.f32.mrb[0].mxu0
    %v578 = vadd.f32 %v449, %v577
    %v579 = vpop.f32.mrb[0].mxu0
    %580 = vmatprep.mubr.f32.mxu0 0.0
    %581 = vmatmul.mubr.f32.gmra.mrb[0].mxu0 %v485
    %v582 = vpop.f32.mrb[0].mxu0
    %v583 = vadd.f32 %v454, %v582
    %v584 = vpop.f32.mrb[0].mxu0
    %585 = vmatprep.mubr.f32.mxu0 0.0
    %586 = vmatmul.mubr.f32.gmra.mrb[0].mxu0 %v488
    %v587 = vpop.f32.mrb[0].mxu0
    %v588 = vadd.f32 %v459, %v587
    %v589 = vpop.f32.mrb[0].mxu0
    %590 = vmatprep.mubr.f32.mxu0 0.0
    %591 = vmatmul.mubr.f32.gmra.mrb[0].mxu0 %v491
    %v592 = vpop.f32.mrb[0].mxu0
    %v593 = vadd.f32 %v464, %v592
    %v594 = vpop.f32.mrb[0].mxu0
    %595 = vmatprep.mubr.f32.mxu0 0.0
    %596 = vmatmul.mubr.f32.gmra.mrb[0].mxu0 %v494
    %v597 = vpop.f32.mrb[0].mxu0
    %v598 = vadd.f32 %v469, %v597
    %v599 = vpop.f32.mrb[0].mxu0
    %600 = vdwg.mxu0
    %s601 = scalar_lea.vmem %s1, 128
    %v602 = vld [vmem:[%s601] sm:$0xff]
    %v603 = vld [vmem:[%s601 + $0x8] sm:$0xff]
    %v604 = vld [vmem:[%s601 + $0x10] sm:$0xff]
    %v605 = vld [vmem:[%s601 + $0x18] sm:$0xff]
    %v606 = vld [vmem:[%s601 + $0x20] sm:$0xff]
    %v607 = vld [vmem:[%s601 + $0x28] sm:$0xff]
    %v608 = vld [vmem:[%s601 + $0x30] sm:$0xff]
    %v609 = vld [vmem:[%s601 + $0x38] sm:$0xff]
    %v611 = vsel %vm75, %v602, 0
    %v614 = vsel %vm75, %v603, 0
    %v617 = vsel %vm75, %v604, 0
    %v620 = vsel %vm75, %v605, 0
    %v623 = vsel %vm75, %v606, 0
    %v626 = vsel %vm75, %v607, 0
    %v629 = vsel %vm75, %v608, 0
    %v632 = vsel %vm75, %v609, 0
    %634 = vmatprep.subr.mxu0 0.0
    %635 = vmatpush1.msra.mxu0 %v48
    %636 = vmatprep.subr.mxu0 0.0
    %637 = vmatpush1.msra.mxu0 0.0
    %638 = vmatprep.subr.mxu0 0.0
    %639 = vmatpush1.msra.mxu0 0.0
    %640 = vmatprep.subr.mxu0 0.0
    %641 = vmatpush1.msra.mxu0 0.0
    %642 = vmatprep.subr.mxu0 0.0
    %643 = vmatpush1.msra.mxu0 0.0
    %644 = vmatprep.subr.mxu0 0.0
    %645 = vmatpush1.msra.mxu0 0.0
    %646 = vmatprep.subr.mxu0 0.0
    %647 = vmatpush1.msra.mxu0 0.0
    %648 = vmatprep.subr.mxu0 0.0
    %649 = vmatpush1.msra.mxu0 0.0
    %650 = vmatprep.subr.mxu0 0.0
    %651 = vmatpush1.msra.mxu0 0.0
    %652 = vmatprep.subr.mxu0 0.0
    %653 = vmatpush1.msra.mxu0 0.0
    %654 = vmatprep.subr.mxu0 0.0
    %655 = vmatpush1.msra.mxu0 0.0
    %656 = vmatprep.subr.mxu0 0.0
    %657 = vmatpush1.msra.mxu0 0.0
    %658 = vmatprep.subr.mxu0 0.0
    %659 = vmatpush1.msra.mxu0 0.0
    %660 = vmatprep.subr.mxu0 0.0
    %661 = vmatpush1.msra.mxu0 0.0
    %662 = vmatprep.subr.mxu0 0.0
    %663 = vmatpush1.msra.mxu0 0.0
    %664 = vmatprep.subr.mxu0 0.0
    %665 = vmatpush1.msra.mxu0 0.0
    %666 = vmatprep.subr.mxu0 0.0
    %667 = vmatpush1.msra.mxu0 0.0
    %668 = vmatprep.subr.mxu0 0.0
    %669 = vmatpush1.msra.mxu0 0.0
    %670 = vmatprep.subr.mxu0 0.0
    %671 = vmatpush1.msra.mxu0 0.0
    %672 = vmatprep.subr.mxu0 0.0
    %673 = vmatpush1.msra.mxu0 0.0
    %674 = vmatprep.subr.mxu0 0.0
    %675 = vmatpush1.msra.mxu0 0.0
    %676 = vmatprep.subr.mxu0 0.0
    %677 = vmatpush1.msra.mxu0 0.0
    %678 = vmatprep.subr.mxu0 0.0
    %679 = vmatpush1.msra.mxu0 0.0
    %680 = vmatprep.subr.mxu0 0.0
    %681 = vmatpush1.msra.mxu0 0.0
    %682 = vmatprep.subr.mxu0 0.0
    %683 = vmatpush1.msra.mxu0 0.0
    %684 = vmatprep.subr.mxu0 0.0
    %685 = vmatpush1.msra.mxu0 0.0
    %686 = vmatprep.subr.mxu0 0.0
    %687 = vmatpush1.msra.mxu0 0.0
    %688 = vmatprep.subr.mxu0 0.0
    %689 = vmatpush1.msra.mxu0 0.0
    %690 = vmatprep.subr.mxu0 0.0
    %691 = vmatpush1.msra.mxu0 0.0
    %692 = vmatprep.subr.mxu0 0.0
    %693 = vmatpush1.msra.mxu0 0.0
    %694 = vmatprep.subr.mxu0 0.0
    %695 = vmatpush1.msra.mxu0 0.0
    %696 = vmatprep.subr.mxu0 0.0
    %697 = vmatpush1.msra.mxu0 0.0
    %698 = vmatprep.mubr.f32.mxu0 0.0
    %699 = vmatmul.mubr.f32.gmra.mrb[0].mxu0 %v611
    %v700 = vpop.f32.mrb[0].mxu0
    %v701 = vadd.f32 0.0, %v700
    %v702 = vpop.f32.mrb[0].mxu0
    %703 = vmatprep.mubr.f32.mxu0 0.0
    %704 = vmatmul.mubr.f32.gmra.mrb[0].mxu0 %v614
    %v705 = vpop.f32.mrb[0].mxu0
    %v706 = vadd.f32 0.0, %v705
    %v707 = vpop.f32.mrb[0].mxu0
    %708 = vmatprep.mubr.f32.mxu0 0.0
    %709 = vmatmul.mubr.f32.gmra.mrb[0].mxu0 %v617
    %v710 = vpop.f32.mrb[0].mxu0
    %v711 = vadd.f32 0.0, %v710
    %v712 = vpop.f32.mrb[0].mxu0
    %713 = vmatprep.mubr.f32.mxu0 0.0
    %714 = vmatmul.mubr.f32.gmra.mrb[0].mxu0 %v620
    %v715 = vpop.f32.mrb[0].mxu0
    %v716 = vadd.f32 0.0, %v715
    %v717 = vpop.f32.mrb[0].mxu0
    %718 = vmatprep.mubr.f32.mxu0 0.0
    %719 = vmatmul.mubr.f32.gmra.mrb[0].mxu0 %v623
    %v720 = vpop.f32.mrb[0].mxu0
    %v721 = vadd.f32 0.0, %v720
    %v722 = vpop.f32.mrb[0].mxu0
    %723 = vmatprep.mubr.f32.mxu0 0.0
    %724 = vmatmul.mubr.f32.gmra.mrb[0].mxu0 %v626
    %v725 = vpop.f32.mrb[0].mxu0
    %v726 = vadd.f32 0.0, %v725
    %v727 = vpop.f32.mrb[0].mxu0
    %728 = vmatprep.mubr.f32.mxu0 0.0
    %729 = vmatmul.mubr.f32.gmra.mrb[0].mxu0 %v629
    %v730 = vpop.f32.mrb[0].mxu0
    %v731 = vadd.f32 0.0, %v730
    %v732 = vpop.f32.mrb[0].mxu0
    %733 = vmatprep.mubr.f32.mxu0 0.0
    %734 = vmatmul.mubr.f32.gmra.mrb[0].mxu0 %v632
    %v735 = vpop.f32.mrb[0].mxu0
    %v736 = vadd.f32 0.0, %v735
    %v737 = vpop.f32.mrb[0].mxu0
    %738 = vdwg.mxu0
    %v740 = vsel %vm75, %v701, 0
    %v743 = vsel %vm75, %v706, 0
    %v746 = vsel %vm75, %v711, 0
    %v749 = vsel %vm75, %v716, 0
    %v752 = vsel %vm75, %v721, 0
    %v755 = vsel %vm75, %v726, 0
    %v758 = vsel %vm75, %v731, 0
    %v761 = vsel %vm75, %v736, 0
    %763 = vmatprep.subr.mxu0 0.0
    %764 = vmatpush1.msra.mxu0 %v63
    %765 = vmatprep.subr.mxu0 0.0
    %766 = vmatpush1.msra.mxu0 0.0
    %767 = vmatprep.subr.mxu0 0.0
    %768 = vmatpush1.msra.mxu0 0.0
    %769 = vmatprep.subr.mxu0 0.0
    %770 = vmatpush1.msra.mxu0 0.0
    %771 = vmatprep.subr.mxu0 0.0
    %772 = vmatpush1.msra.mxu0 0.0
    %773 = vmatprep.subr.mxu0 0.0
    %774 = vmatpush1.msra.mxu0 0.0
    %775 = vmatprep.subr.mxu0 0.0
    %776 = vmatpush1.msra.mxu0 0.0
    %777 = vmatprep.subr.mxu0 0.0
    %778 = vmatpush1.msra.mxu0 0.0
    %779 = vmatprep.subr.mxu0 0.0
    %780 = vmatpush1.msra.mxu0 0.0
    %781 = vmatprep.subr.mxu0 0.0
    %782 = vmatpush1.msra.mxu0 0.0
    %783 = vmatprep.subr.mxu0 0.0
    %784 = vmatpush1.msra.mxu0 0.0
    %785 = vmatprep.subr.mxu0 0.0
    %786 = vmatpush1.msra.mxu0 0.0
    %787 = vmatprep.subr.mxu0 0.0
    %788 = vmatpush1.msra.mxu0 0.0
    %789 = vmatprep.subr.mxu0 0.0
    %790 = vmatpush1.msra.mxu0 0.0
    %791 = vmatprep.subr.mxu0 0.0
    %792 = vmatpush1.msra.mxu0 0.0
    %793 = vmatprep.subr.mxu0 0.0
    %794 = vmatpush1.msra.mxu0 0.0
    %795 = vmatprep.subr.mxu0 0.0
    %796 = vmatpush1.msra.mxu0 0.0
    %797 = vmatprep.subr.mxu0 0.0
    %798 = vmatpush1.msra.mxu0 0.0
    %799 = vmatprep.subr.mxu0 0.0
    %800 = vmatpush1.msra.mxu0 0.0
    %801 = vmatprep.subr.mxu0 0.0
    %802 = vmatpush1.msra.mxu0 0.0
    %803 = vmatprep.subr.mxu0 0.0
    %804 = vmatpush1.msra.mxu0 0.0
    %805 = vmatprep.subr.mxu0 0.0
    %806 = vmatpush1.msra.mxu0 0.0
    %807 = vmatprep.subr.mxu0 0.0
    %808 = vmatpush1.msra.mxu0 0.0
    %809 = vmatprep.subr.mxu0 0.0
    %810 = vmatpush1.msra.mxu0 0.0
    %811 = vmatprep.subr.mxu0 0.0
    %812 = vmatpush1.msra.mxu0 0.0
    %813 = vmatprep.subr.mxu0 0.0
    %814 = vmatpush1.msra.mxu0 0.0
    %815 = vmatprep.subr.mxu0 0.0
    %816 = vmatpush1.msra.mxu0 0.0
    %817 = vmatprep.subr.mxu0 0.0
    %818 = vmatpush1.msra.mxu0 0.0
    %819 = vmatprep.subr.mxu0 0.0
    %820 = vmatpush1.msra.mxu0 0.0
    %821 = vmatprep.subr.mxu0 0.0
    %822 = vmatpush1.msra.mxu0 0.0
    %823 = vmatprep.subr.mxu0 0.0
    %824 = vmatpush1.msra.mxu0 0.0
    %825 = vmatprep.subr.mxu0 0.0
    %826 = vmatpush1.msra.mxu0 0.0
    %827 = vmatprep.mubr.f32.mxu0 0.0
    %828 = vmatmul.mubr.f32.gmra.mrb[0].mxu0 %v740
    %v829 = vpop.f32.mrb[0].mxu0
    %v830 = vadd.f32 0.0, %v829
    %v831 = vpop.f32.mrb[0].mxu0
    %832 = vmatprep.mubr.f32.mxu0 0.0
    %833 = vmatmul.mubr.f32.gmra.mrb[0].mxu0 %v743
    %v834 = vpop.f32.mrb[0].mxu0
    %v835 = vadd.f32 0.0, %v834
    %v836 = vpop.f32.mrb[0].mxu0
    %837 = vmatprep.mubr.f32.mxu0 0.0
    %838 = vmatmul.mubr.f32.gmra.mrb[0].mxu0 %v746
    %v839 = vpop.f32.mrb[0].mxu0
    %v840 = vadd.f32 0.0, %v839
    %v841 = vpop.f32.mrb[0].mxu0
    %842 = vmatprep.mubr.f32.mxu0 0.0
    %843 = vmatmul.mubr.f32.gmra.mrb[0].mxu0 %v749
    %v844 = vpop.f32.mrb[0].mxu0
    %v845 = vadd.f32 0.0, %v844
    %v846 = vpop.f32.mrb[0].mxu0
    %847 = vmatprep.mubr.f32.mxu0 0.0
    %848 = vmatmul.mubr.f32.gmra.mrb[0].mxu0 %v752
    %v849 = vpop.f32.mrb[0].mxu0
    %v850 = vadd.f32 0.0, %v849
    %v851 = vpop.f32.mrb[0].mxu0
    %852 = vmatprep.mubr.f32.mxu0 0.0
    %853 = vmatmul.mubr.f32.gmra.mrb[0].mxu0 %v755
    %v854 = vpop.f32.mrb[0].mxu0
    %v855 = vadd.f32 0.0, %v854
    %v856 = vpop.f32.mrb[0].mxu0
    %857 = vmatprep.mubr.f32.mxu0 0.0
    %858 = vmatmul.mubr.f32.gmra.mrb[0].mxu0 %v758
    %v859 = vpop.f32.mrb[0].mxu0
    %v860 = vadd.f32 0.0, %v859
    %v861 = vpop.f32.mrb[0].mxu0
    %862 = vmatprep.mubr.f32.mxu0 0.0
    %863 = vmatmul.mubr.f32.gmra.mrb[0].mxu0 %v761
    %v864 = vpop.f32.mrb[0].mxu0
    %v865 = vadd.f32 0.0, %v864
    %v866 = vpop.f32.mrb[0].mxu0
    %867 = vdwg.mxu0
    %v868 = vadd.f32 %v563, %v830
    %v869 = vadd.f32 %v568, %v835
    %v870 = vadd.f32 %v573, %v840
    %v871 = vadd.f32 %v578, %v845
    %v872 = vadd.f32 %v583, %v850
    %v873 = vadd.f32 %v588, %v855
    %v874 = vadd.f32 %v593, %v860
    %v875 = vadd.f32 %v598, %v865
    %s876 = scalar_lea.vmem %s1, 192
    %v877 = vld [vmem:[%s876] sm:$0xff]
    %v878 = vld [vmem:[%s876 + $0x8] sm:$0xff]
    %v879 = vld [vmem:[%s876 + $0x10] sm:$0xff]
    %v880 = vld [vmem:[%s876 + $0x18] sm:$0xff]
    %v881 = vld [vmem:[%s876 + $0x20] sm:$0xff]
    %v882 = vld [vmem:[%s876 + $0x28] sm:$0xff]
    %v883 = vld [vmem:[%s876 + $0x30] sm:$0xff]
    %v884 = vld [vmem:[%s876 + $0x38] sm:$0xff]
    %v886 = vsel %vm75, %v877, 0
    %v889 = vsel %vm75, %v878, 0
    %v892 = vsel %vm75, %v879, 0
    %v895 = vsel %vm75, %v880, 0
    %v898 = vsel %vm75, %v881, 0
    %v901 = vsel %vm75, %v882, 0
    %v904 = vsel %vm75, %v883, 0
    %v907 = vsel %vm75, %v884, 0
    %909 = vmatprep.subr.mxu0 0.0
    %910 = vmatpush1.msra.mxu0 %v48
    %911 = vmatprep.subr.mxu0 0.0
    %912 = vmatpush1.msra.mxu0 0.0
    %913 = vmatprep.subr.mxu0 0.0
    %914 = vmatpush1.msra.mxu0 0.0
    %915 = vmatprep.subr.mxu0 0.0
    %916 = vmatpush1.msra.mxu0 0.0
    %917 = vmatprep.subr.mxu0 0.0
    %918 = vmatpush1.msra.mxu0 0.0
    %919 = vmatprep.subr.mxu0 0.0
    %920 = vmatpush1.msra.mxu0 0.0
    %921 = vmatprep.subr.mxu0 0.0
    %922 = vmatpush1.msra.mxu0 0.0
    %923 = vmatprep.subr.mxu0 0.0
    %924 = vmatpush1.msra.mxu0 0.0
    %925 = vmatprep.subr.mxu0 0.0
    %926 = vmatpush1.msra.mxu0 0.0
    %927 = vmatprep.subr.mxu0 0.0
    %928 = vmatpush1.msra.mxu0 0.0
    %929 = vmatprep.subr.mxu0 0.0
    %930 = vmatpush1.msra.mxu0 0.0
    %931 = vmatprep.subr.mxu0 0.0
    %932 = vmatpush1.msra.mxu0 0.0
    %933 = vmatprep.subr.mxu0 0.0
    %934 = vmatpush1.msra.mxu0 0.0
    %935 = vmatprep.subr.mxu0 0.0
    %936 = vmatpush1.msra.mxu0 0.0
    %937 = vmatprep.subr.mxu0 0.0
    %938 = vmatpush1.msra.mxu0 0.0
    %939 = vmatprep.subr.mxu0 0.0
    %940 = vmatpush1.msra.mxu0 0.0
    %941 = vmatprep.subr.mxu0 0.0
    %942 = vmatpush1.msra.mxu0 0.0
    %943 = vmatprep.subr.mxu0 0.0
    %944 = vmatpush1.msra.mxu0 0.0
    %945 = vmatprep.subr.mxu0 0.0
    %946 = vmatpush1.msra.mxu0 0.0
    %947 = vmatprep.subr.mxu0 0.0
    %948 = vmatpush1.msra.mxu0 0.0
    %949 = vmatprep.subr.mxu0 0.0
    %950 = vmatpush1.msra.mxu0 0.0
    %951 = vmatprep.subr.mxu0 0.0
    %952 = vmatpush1.msra.mxu0 0.0
    %953 = vmatprep.subr.mxu0 0.0
    %954 = vmatpush1.msra.mxu0 0.0
    %955 = vmatprep.subr.mxu0 0.0
    %956 = vmatpush1.msra.mxu0 0.0
    %957 = vmatprep.subr.mxu0 0.0
    %958 = vmatpush1.msra.mxu0 0.0
    %959 = vmatprep.subr.mxu0 0.0
    %960 = vmatpush1.msra.mxu0 0.0
    %961 = vmatprep.subr.mxu0 0.0
    %962 = vmatpush1.msra.mxu0 0.0
    %963 = vmatprep.subr.mxu0 0.0
    %964 = vmatpush1.msra.mxu0 0.0
    %965 = vmatprep.subr.mxu0 0.0
    %966 = vmatpush1.msra.mxu0 0.0
    %967 = vmatprep.subr.mxu0 0.0
    %968 = vmatpush1.msra.mxu0 0.0
    %969 = vmatprep.subr.mxu0 0.0
    %970 = vmatpush1.msra.mxu0 0.0
    %971 = vmatprep.subr.mxu0 0.0
    %972 = vmatpush1.msra.mxu0 0.0
    %973 = vmatprep.mubr.f32.mxu0 0.0
    %974 = vmatmul.mubr.f32.gmra.mrb[0].mxu0 %v886
    %v975 = vpop.f32.mrb[0].mxu0
    %v976 = vadd.f32 0.0, %v975
    %v977 = vpop.f32.mrb[0].mxu0
    %978 = vmatprep.mubr.f32.mxu0 0.0
    %979 = vmatmul.mubr.f32.gmra.mrb[0].mxu0 %v889
    %v980 = vpop.f32.mrb[0].mxu0
    %v981 = vadd.f32 0.0, %v980
    %v982 = vpop.f32.mrb[0].mxu0
    %983 = vmatprep.mubr.f32.mxu0 0.0
    %984 = vmatmul.mubr.f32.gmra.mrb[0].mxu0 %v892
    %v985 = vpop.f32.mrb[0].mxu0
    %v986 = vadd.f32 0.0, %v985
    %v987 = vpop.f32.mrb[0].mxu0
    %988 = vmatprep.mubr.f32.mxu0 0.0
    %989 = vmatmul.mubr.f32.gmra.mrb[0].mxu0 %v895
    %v990 = vpop.f32.mrb[0].mxu0
    %v991 = vadd.f32 0.0, %v990
    %v992 = vpop.f32.mrb[0].mxu0
    %993 = vmatprep.mubr.f32.mxu0 0.0
    %994 = vmatmul.mubr.f32.gmra.mrb[0].mxu0 %v898
    %v995 = vpop.f32.mrb[0].mxu0
    %v996 = vadd.f32 0.0, %v995
    %v997 = vpop.f32.mrb[0].mxu0
    %998 = vmatprep.mubr.f32.mxu0 0.0
    %999 = vmatmul.mubr.f32.gmra.mrb[0].mxu0 %v901
    %v1000 = vpop.f32.mrb[0].mxu0
    %v1001 = vadd.f32 0.0, %v1000
    %v1002 = vpop.f32.mrb[0].mxu0
    %1003 = vmatprep.mubr.f32.mxu0 0.0
    %1004 = vmatmul.mubr.f32.gmra.mrb[0].mxu0 %v904
    %v1005 = vpop.f32.mrb[0].mxu0
    %v1006 = vadd.f32 0.0, %v1005
    %v1007 = vpop.f32.mrb[0].mxu0
    %1008 = vmatprep.mubr.f32.mxu0 0.0
    %1009 = vmatmul.mubr.f32.gmra.mrb[0].mxu0 %v907
    %v1010 = vpop.f32.mrb[0].mxu0
    %v1011 = vadd.f32 0.0, %v1010
    %v1012 = vpop.f32.mrb[0].mxu0
    %1013 = vdwg.mxu0
    %v1015 = vsel %vm75, %v976, 0
    %v1018 = vsel %vm75, %v981, 0
    %v1021 = vsel %vm75, %v986, 0
    %v1024 = vsel %vm75, %v991, 0
    %v1027 = vsel %vm75, %v996, 0
    %v1030 = vsel %vm75, %v1001, 0
    %v1033 = vsel %vm75, %v1006, 0
    %v1036 = vsel %vm75, %v1011, 0
    %1038 = vmatprep.subr.mxu0 0.0
    %1039 = vmatpush1.msra.mxu0 %v66
    %1040 = vmatprep.subr.mxu0 0.0
    %1041 = vmatpush1.msra.mxu0 0.0
    %1042 = vmatprep.subr.mxu0 0.0
    %1043 = vmatpush1.msra.mxu0 0.0
    %1044 = vmatprep.subr.mxu0 0.0
    %1045 = vmatpush1.msra.mxu0 0.0
    %1046 = vmatprep.subr.mxu0 0.0
    %1047 = vmatpush1.msra.mxu0 0.0
    %1048 = vmatprep.subr.mxu0 0.0
    %1049 = vmatpush1.msra.mxu0 0.0
    %1050 = vmatprep.subr.mxu0 0.0
    %1051 = vmatpush1.msra.mxu0 0.0
    %1052 = vmatprep.subr.mxu0 0.0
    %1053 = vmatpush1.msra.mxu0 0.0
    %1054 = vmatprep.subr.mxu0 0.0
    %1055 = vmatpush1.msra.mxu0 0.0
    %1056 = vmatprep.subr.mxu0 0.0
    %1057 = vmatpush1.msra.mxu0 0.0
    %1058 = vmatprep.subr.mxu0 0.0
    %1059 = vmatpush1.msra.mxu0 0.0
    %1060 = vmatprep.subr.mxu0 0.0
    %1061 = vmatpush1.msra.mxu0 0.0
    %1062 = vmatprep.subr.mxu0 0.0
    %1063 = vmatpush1.msra.mxu0 0.0
    %1064 = vmatprep.subr.mxu0 0.0
    %1065 = vmatpush1.msra.mxu0 0.0
    %1066 = vmatprep.subr.mxu0 0.0
    %1067 = vmatpush1.msra.mxu0 0.0
    %1068 = vmatprep.subr.mxu0 0.0
    %1069 = vmatpush1.msra.mxu0 0.0
    %1070 = vmatprep.subr.mxu0 0.0
    %1071 = vmatpush1.msra.mxu0 0.0
    %1072 = vmatprep.subr.mxu0 0.0
    %1073 = vmatpush1.msra.mxu0 0.0
    %1074 = vmatprep.subr.mxu0 0.0
    %1075 = vmatpush1.msra.mxu0 0.0
    %1076 = vmatprep.subr.mxu0 0.0
    %1077 = vmatpush1.msra.mxu0 0.0
    %1078 = vmatprep.subr.mxu0 0.0
    %1079 = vmatpush1.msra.mxu0 0.0
    %1080 = vmatprep.subr.mxu0 0.0
    %1081 = vmatpush1.msra.mxu0 0.0
    %1082 = vmatprep.subr.mxu0 0.0
    %1083 = vmatpush1.msra.mxu0 0.0
    %1084 = vmatprep.subr.mxu0 0.0
    %1085 = vmatpush1.msra.mxu0 0.0
    %1086 = vmatprep.subr.mxu0 0.0
    %1087 = vmatpush1.msra.mxu0 0.0
    %1088 = vmatprep.subr.mxu0 0.0
    %1089 = vmatpush1.msra.mxu0 0.0
    %1090 = vmatprep.subr.mxu0 0.0
    %1091 = vmatpush1.msra.mxu0 0.0
    %1092 = vmatprep.subr.mxu0 0.0
    %1093 = vmatpush1.msra.mxu0 0.0
    %1094 = vmatprep.subr.mxu0 0.0
    %1095 = vmatpush1.msra.mxu0 0.0
    %1096 = vmatprep.subr.mxu0 0.0
    %1097 = vmatpush1.msra.mxu0 0.0
    %1098 = vmatprep.subr.mxu0 0.0
    %1099 = vmatpush1.msra.mxu0 0.0
    %1100 = vmatprep.subr.mxu0 0.0
    %1101 = vmatpush1.msra.mxu0 0.0
    %1102 = vmatprep.mubr.f32.mxu0 0.0
    %1103 = vmatmul.mubr.f32.gmra.mrb[0].mxu0 %v1015
    %v1104 = vpop.f32.mrb[0].mxu0
    %v1105 = vadd.f32 0.0, %v1104
    %v1106 = vpop.f32.mrb[0].mxu0
    %1107 = vmatprep.mubr.f32.mxu0 0.0
    %1108 = vmatmul.mubr.f32.gmra.mrb[0].mxu0 %v1018
    %v1109 = vpop.f32.mrb[0].mxu0
    %v1110 = vadd.f32 0.0, %v1109
    %v1111 = vpop.f32.mrb[0].mxu0
    %1112 = vmatprep.mubr.f32.mxu0 0.0
    %1113 = vmatmul.mubr.f32.gmra.mrb[0].mxu0 %v1021
    %v1114 = vpop.f32.mrb[0].mxu0
    %v1115 = vadd.f32 0.0, %v1114
    %v1116 = vpop.f32.mrb[0].mxu0
    %1117 = vmatprep.mubr.f32.mxu0 0.0
    %1118 = vmatmul.mubr.f32.gmra.mrb[0].mxu0 %v1024
    %v1119 = vpop.f32.mrb[0].mxu0
    %v1120 = vadd.f32 0.0, %v1119
    %v1121 = vpop.f32.mrb[0].mxu0
    %1122 = vmatprep.mubr.f32.mxu0 0.0
    %1123 = vmatmul.mubr.f32.gmra.mrb[0].mxu0 %v1027
    %v1124 = vpop.f32.mrb[0].mxu0
    %v1125 = vadd.f32 0.0, %v1124
    %v1126 = vpop.f32.mrb[0].mxu0
    %1127 = vmatprep.mubr.f32.mxu0 0.0
    %1128 = vmatmul.mubr.f32.gmra.mrb[0].mxu0 %v1030
    %v1129 = vpop.f32.mrb[0].mxu0
    %v1130 = vadd.f32 0.0, %v1129
    %v1131 = vpop.f32.mrb[0].mxu0
    %1132 = vmatprep.mubr.f32.mxu0 0.0
    %1133 = vmatmul.mubr.f32.gmra.mrb[0].mxu0 %v1033
    %v1134 = vpop.f32.mrb[0].mxu0
    %v1135 = vadd.f32 0.0, %v1134
    %v1136 = vpop.f32.mrb[0].mxu0
    %1137 = vmatprep.mubr.f32.mxu0 0.0
    %1138 = vmatmul.mubr.f32.gmra.mrb[0].mxu0 %v1036
    %v1139 = vpop.f32.mrb[0].mxu0
    %v1140 = vadd.f32 0.0, %v1139
    %v1141 = vpop.f32.mrb[0].mxu0
    %1142 = vdwg.mxu0
    %v1143 = vadd.f32 %v868, %v1105
    %v1144 = vadd.f32 %v869, %v1110
    %v1145 = vadd.f32 %v870, %v1115
    %v1146 = vadd.f32 %v871, %v1120
    %v1147 = vadd.f32 %v872, %v1125
    %v1148 = vadd.f32 %v873, %v1130
    %v1149 = vadd.f32 %v874, %v1135
    %v1150 = vadd.f32 %v875, %v1140
    %1151 = vmatprep.subr.mxu0 0.0
    %1152 = vmatpush1.msra.mxu0 %v50
    %1153 = vmatprep.subr.mxu0 0.0
    %1154 = vmatpush1.msra.mxu0 0.0
    %1155 = vmatprep.subr.mxu0 0.0
    %1156 = vmatpush1.msra.mxu0 0.0
    %1157 = vmatprep.subr.mxu0 0.0
    %1158 = vmatpush1.msra.mxu0 0.0
    %1159 = vmatprep.subr.mxu0 0.0
    %1160 = vmatpush1.msra.mxu0 0.0
    %1161 = vmatprep.subr.mxu0 0.0
    %1162 = vmatpush1.msra.mxu0 0.0
    %1163 = vmatprep.subr.mxu0 0.0
    %1164 = vmatpush1.msra.mxu0 0.0
    %1165 = vmatprep.subr.mxu0 0.0
    %1166 = vmatpush1.msra.mxu0 0.0
    %1167 = vmatprep.subr.mxu0 0.0
    %1168 = vmatpush1.msra.mxu0 0.0
    %1169 = vmatprep.subr.mxu0 0.0
    %1170 = vmatpush1.msra.mxu0 0.0
    %1171 = vmatprep.subr.mxu0 0.0
    %1172 = vmatpush1.msra.mxu0 0.0
    %1173 = vmatprep.subr.mxu0 0.0
    %1174 = vmatpush1.msra.mxu0 0.0
    %1175 = vmatprep.subr.mxu0 0.0
    %1176 = vmatpush1.msra.mxu0 0.0
    %1177 = vmatprep.subr.mxu0 0.0
    %1178 = vmatpush1.msra.mxu0 0.0
    %1179 = vmatprep.subr.mxu0 0.0
    %1180 = vmatpush1.msra.mxu0 0.0
    %1181 = vmatprep.subr.mxu0 0.0
    %1182 = vmatpush1.msra.mxu0 0.0
    %1183 = vmatprep.subr.mxu0 0.0
    %1184 = vmatpush1.msra.mxu0 0.0
    %1185 = vmatprep.subr.mxu0 0.0
    %1186 = vmatpush1.msra.mxu0 0.0
    %1187 = vmatprep.subr.mxu0 0.0
    %1188 = vmatpush1.msra.mxu0 0.0
    %1189 = vmatprep.subr.mxu0 0.0
    %1190 = vmatpush1.msra.mxu0 0.0
    %1191 = vmatprep.subr.mxu0 0.0
    %1192 = vmatpush1.msra.mxu0 0.0
    %1193 = vmatprep.subr.mxu0 0.0
    %1194 = vmatpush1.msra.mxu0 0.0
    %1195 = vmatprep.subr.mxu0 0.0
    %1196 = vmatpush1.msra.mxu0 0.0
    %1197 = vmatprep.subr.mxu0 0.0
    %1198 = vmatpush1.msra.mxu0 0.0
    %1199 = vmatprep.subr.mxu0 0.0
    %1200 = vmatpush1.msra.mxu0 0.0
    %1201 = vmatprep.subr.mxu0 0.0
    %1202 = vmatpush1.msra.mxu0 0.0
    %1203 = vmatprep.subr.mxu0 0.0
    %1204 = vmatpush1.msra.mxu0 0.0
    %1205 = vmatprep.subr.mxu0 0.0
    %1206 = vmatpush1.msra.mxu0 0.0
    %1207 = vmatprep.subr.mxu0 0.0
    %1208 = vmatpush1.msra.mxu0 0.0
    %1209 = vmatprep.subr.mxu0 0.0
    %1210 = vmatpush1.msra.mxu0 0.0
    %1211 = vmatprep.subr.mxu0 0.0
    %1212 = vmatpush1.msra.mxu0 0.0
    %1213 = vmatprep.subr.mxu0 0.0
    %1214 = vmatpush1.msra.mxu0 0.0
    %1215 = vmatprep.mubr.f32.mxu0 0.0
    %1216 = vmatmul.mubr.f32.gmra.mrb[0].mxu0 %v77
    %v1217 = vpop.f32.mrb[0].mxu0
    %v1218 = vadd.f32 0.0, %v1217
    %v1219 = vpop.f32.mrb[0].mxu0
    %1220 = vmatprep.mubr.f32.mxu0 0.0
    %1221 = vmatmul.mubr.f32.gmra.mrb[0].mxu0 %v80
    %v1222 = vpop.f32.mrb[0].mxu0
    %v1223 = vadd.f32 0.0, %v1222
    %v1224 = vpop.f32.mrb[0].mxu0
    %1225 = vmatprep.mubr.f32.mxu0 0.0
    %1226 = vmatmul.mubr.f32.gmra.mrb[0].mxu0 %v83
    %v1227 = vpop.f32.mrb[0].mxu0
    %v1228 = vadd.f32 0.0, %v1227
    %v1229 = vpop.f32.mrb[0].mxu0
    %1230 = vmatprep.mubr.f32.mxu0 0.0
    %1231 = vmatmul.mubr.f32.gmra.mrb[0].mxu0 %v86
    %v1232 = vpop.f32.mrb[0].mxu0
    %v1233 = vadd.f32 0.0, %v1232
    %v1234 = vpop.f32.mrb[0].mxu0
    %1235 = vmatprep.mubr.f32.mxu0 0.0
    %1236 = vmatmul.mubr.f32.gmra.mrb[0].mxu0 %v89
    %v1237 = vpop.f32.mrb[0].mxu0
    %v1238 = vadd.f32 0.0, %v1237
    %v1239 = vpop.f32.mrb[0].mxu0
    %1240 = vmatprep.mubr.f32.mxu0 0.0
    %1241 = vmatmul.mubr.f32.gmra.mrb[0].mxu0 %v92
    %v1242 = vpop.f32.mrb[0].mxu0
    %v1243 = vadd.f32 0.0, %v1242
    %v1244 = vpop.f32.mrb[0].mxu0
    %1245 = vmatprep.mubr.f32.mxu0 0.0
    %1246 = vmatmul.mubr.f32.gmra.mrb[0].mxu0 %v95
    %v1247 = vpop.f32.mrb[0].mxu0
    %v1248 = vadd.f32 0.0, %v1247
    %v1249 = vpop.f32.mrb[0].mxu0
    %1250 = vmatprep.mubr.f32.mxu0 0.0
    %1251 = vmatmul.mubr.f32.gmra.mrb[0].mxu0 %v98
    %v1252 = vpop.f32.mrb[0].mxu0
    %v1253 = vadd.f32 0.0, %v1252
    %v1254 = vpop.f32.mrb[0].mxu0
    %1255 = vdwg.mxu0
    %1256 = vmatprep.subr.mxu0 0.0
    %1257 = vmatpush1.msra.mxu0 %v50
    %1258 = vmatprep.subr.mxu0 0.0
    %1259 = vmatpush1.msra.mxu0 0.0
    %1260 = vmatprep.subr.mxu0 0.0
    %1261 = vmatpush1.msra.mxu0 0.0
    %1262 = vmatprep.subr.mxu0 0.0
    %1263 = vmatpush1.msra.mxu0 0.0
    %1264 = vmatprep.subr.mxu0 0.0
    %1265 = vmatpush1.msra.mxu0 0.0
    %1266 = vmatprep.subr.mxu0 0.0
    %1267 = vmatpush1.msra.mxu0 0.0
    %1268 = vmatprep.subr.mxu0 0.0
    %1269 = vmatpush1.msra.mxu0 0.0
    %1270 = vmatprep.subr.mxu0 0.0
    %1271 = vmatpush1.msra.mxu0 0.0
    %1272 = vmatprep.subr.mxu0 0.0
    %1273 = vmatpush1.msra.mxu0 0.0
    %1274 = vmatprep.subr.mxu0 0.0
    %1275 = vmatpush1.msra.mxu0 0.0
    %1276 = vmatprep.subr.mxu0 0.0
    %1277 = vmatpush1.msra.mxu0 0.0
    %1278 = vmatprep.subr.mxu0 0.0
    %1279 = vmatpush1.msra.mxu0 0.0
    %1280 = vmatprep.subr.mxu0 0.0
    %1281 = vmatpush1.msra.mxu0 0.0
    %1282 = vmatprep.subr.mxu0 0.0
    %1283 = vmatpush1.msra.mxu0 0.0
    %1284 = vmatprep.subr.mxu0 0.0
    %1285 = vmatpush1.msra.mxu0 0.0
    %1286 = vmatprep.subr.mxu0 0.0
    %1287 = vmatpush1.msra.mxu0 0.0
    %1288 = vmatprep.subr.mxu0 0.0
    %1289 = vmatpush1.msra.mxu0 0.0
    %1290 = vmatprep.subr.mxu0 0.0
    %1291 = vmatpush1.msra.mxu0 0.0
    %1292 = vmatprep.subr.mxu0 0.0
    %1293 = vmatpush1.msra.mxu0 0.0
    %1294 = vmatprep.subr.mxu0 0.0
    %1295 = vmatpush1.msra.mxu0 0.0
    %1296 = vmatprep.subr.mxu0 0.0
    %1297 = vmatpush1.msra.mxu0 0.0
    %1298 = vmatprep.subr.mxu0 0.0
    %1299 = vmatpush1.msra.mxu0 0.0
    %1300 = vmatprep.subr.mxu0 0.0
    %1301 = vmatpush1.msra.mxu0 0.0
    %1302 = vmatprep.subr.mxu0 0.0
    %1303 = vmatpush1.msra.mxu0 0.0
    %1304 = vmatprep.subr.mxu0 0.0
    %1305 = vmatpush1.msra.mxu0 0.0
    %1306 = vmatprep.subr.mxu0 0.0
    %1307 = vmatpush1.msra.mxu0 0.0
    %1308 = vmatprep.subr.mxu0 0.0
    %1309 = vmatpush1.msra.mxu0 0.0
    %1310 = vmatprep.subr.mxu0 0.0
    %1311 = vmatpush1.msra.mxu0 0.0
    %1312 = vmatprep.subr.mxu0 0.0
    %1313 = vmatpush1.msra.mxu0 0.0
    %1314 = vmatprep.subr.mxu0 0.0
    %1315 = vmatpush1.msra.mxu0 0.0
    %1316 = vmatprep.subr.mxu0 0.0
    %1317 = vmatpush1.msra.mxu0 0.0
    %1318 = vmatprep.subr.mxu0 0.0
    %1319 = vmatpush1.msra.mxu0 0.0
    %1320 = vmatprep.mubr.f32.mxu0 0.0
    %1321 = vmatmul.mubr.f32.gmra.mrb[0].mxu0 %v215
    %v1322 = vpop.f32.mrb[0].mxu0
    %v1323 = vadd.f32 0.0, %v1322
    %v1324 = vpop.f32.mrb[0].mxu0
    %1325 = vmatprep.mubr.f32.mxu0 0.0
    %1326 = vmatmul.mubr.f32.gmra.mrb[0].mxu0 %v218
    %v1327 = vpop.f32.mrb[0].mxu0
    %v1328 = vadd.f32 0.0, %v1327
    %v1329 = vpop.f32.mrb[0].mxu0
    %1330 = vmatprep.mubr.f32.mxu0 0.0
    %1331 = vmatmul.mubr.f32.gmra.mrb[0].mxu0 %v221
    %v1332 = vpop.f32.mrb[0].mxu0
    %v1333 = vadd.f32 0.0, %v1332
    %v1334 = vpop.f32.mrb[0].mxu0
    %1335 = vmatprep.mubr.f32.mxu0 0.0
    %1336 = vmatmul.mubr.f32.gmra.mrb[0].mxu0 %v224
    %v1337 = vpop.f32.mrb[0].mxu0
    %v1338 = vadd.f32 0.0, %v1337
    %v1339 = vpop.f32.mrb[0].mxu0
    %1340 = vmatprep.mubr.f32.mxu0 0.0
    %1341 = vmatmul.mubr.f32.gmra.mrb[0].mxu0 %v227
    %v1342 = vpop.f32.mrb[0].mxu0
    %v1343 = vadd.f32 0.0, %v1342
    %v1344 = vpop.f32.mrb[0].mxu0
    %1345 = vmatprep.mubr.f32.mxu0 0.0
    %1346 = vmatmul.mubr.f32.gmra.mrb[0].mxu0 %v230
    %v1347 = vpop.f32.mrb[0].mxu0
    %v1348 = vadd.f32 0.0, %v1347
    %v1349 = vpop.f32.mrb[0].mxu0
    %1350 = vmatprep.mubr.f32.mxu0 0.0
    %1351 = vmatmul.mubr.f32.gmra.mrb[0].mxu0 %v233
    %v1352 = vpop.f32.mrb[0].mxu0
    %v1353 = vadd.f32 0.0, %v1352
    %v1354 = vpop.f32.mrb[0].mxu0
    %1355 = vmatprep.mubr.f32.mxu0 0.0
    %1356 = vmatmul.mubr.f32.gmra.mrb[0].mxu0 %v236
    %v1357 = vpop.f32.mrb[0].mxu0
    %v1358 = vadd.f32 0.0, %v1357
    %v1359 = vpop.f32.mrb[0].mxu0
    %1360 = vdwg.mxu0
    %v1362 = vsel %vm75, %v1323, 0
    %v1365 = vsel %vm75, %v1328, 0
    %v1368 = vsel %vm75, %v1333, 0
    %v1371 = vsel %vm75, %v1338, 0
    %v1374 = vsel %vm75, %v1343, 0
    %v1377 = vsel %vm75, %v1348, 0
    %v1380 = vsel %vm75, %v1353, 0
    %v1383 = vsel %vm75, %v1358, 0
    %1385 = vmatprep.subr.mxu0 0.0
    %1386 = vmatpush1.msra.mxu0 %v60
    %1387 = vmatprep.subr.mxu0 0.0
    %1388 = vmatpush1.msra.mxu0 0.0
    %1389 = vmatprep.subr.mxu0 0.0
    %1390 = vmatpush1.msra.mxu0 0.0
    %1391 = vmatprep.subr.mxu0 0.0
    %1392 = vmatpush1.msra.mxu0 0.0
    %1393 = vmatprep.subr.mxu0 0.0
    %1394 = vmatpush1.msra.mxu0 0.0
    %1395 = vmatprep.subr.mxu0 0.0
    %1396 = vmatpush1.msra.mxu0 0.0
    %1397 = vmatprep.subr.mxu0 0.0
    %1398 = vmatpush1.msra.mxu0 0.0
    %1399 = vmatprep.subr.mxu0 0.0
    %1400 = vmatpush1.msra.mxu0 0.0
    %1401 = vmatprep.subr.mxu0 0.0
    %1402 = vmatpush1.msra.mxu0 0.0
    %1403 = vmatprep.subr.mxu0 0.0
    %1404 = vmatpush1.msra.mxu0 0.0
    %1405 = vmatprep.subr.mxu0 0.0
    %1406 = vmatpush1.msra.mxu0 0.0
    %1407 = vmatprep.subr.mxu0 0.0
    %1408 = vmatpush1.msra.mxu0 0.0
    %1409 = vmatprep.subr.mxu0 0.0
    %1410 = vmatpush1.msra.mxu0 0.0
    %1411 = vmatprep.subr.mxu0 0.0
    %1412 = vmatpush1.msra.mxu0 0.0
    %1413 = vmatprep.subr.mxu0 0.0
    %1414 = vmatpush1.msra.mxu0 0.0
    %1415 = vmatprep.subr.mxu0 0.0
    %1416 = vmatpush1.msra.mxu0 0.0
    %1417 = vmatprep.subr.mxu0 0.0
    %1418 = vmatpush1.msra.mxu0 0.0
    %1419 = vmatprep.subr.mxu0 0.0
    %1420 = vmatpush1.msra.mxu0 0.0
    %1421 = vmatprep.subr.mxu0 0.0
    %1422 = vmatpush1.msra.mxu0 0.0
    %1423 = vmatprep.subr.mxu0 0.0
    %1424 = vmatpush1.msra.mxu0 0.0
    %1425 = vmatprep.subr.mxu0 0.0
    %1426 = vmatpush1.msra.mxu0 0.0
    %1427 = vmatprep.subr.mxu0 0.0
    %1428 = vmatpush1.msra.mxu0 0.0
    %1429 = vmatprep.subr.mxu0 0.0
    %1430 = vmatpush1.msra.mxu0 0.0
    %1431 = vmatprep.subr.mxu0 0.0
    %1432 = vmatpush1.msra.mxu0 0.0
    %1433 = vmatprep.subr.mxu0 0.0
    %1434 = vmatpush1.msra.mxu0 0.0
    %1435 = vmatprep.subr.mxu0 0.0
    %1436 = vmatpush1.msra.mxu0 0.0
    %1437 = vmatprep.subr.mxu0 0.0
    %1438 = vmatpush1.msra.mxu0 0.0
    %1439 = vmatprep.subr.mxu0 0.0
    %1440 = vmatpush1.msra.mxu0 0.0
    %1441 = vmatprep.subr.mxu0 0.0
    %1442 = vmatpush1.msra.mxu0 0.0
    %1443 = vmatprep.subr.mxu0 0.0
    %1444 = vmatpush1.msra.mxu0 0.0
    %1445 = vmatprep.subr.mxu0 0.0
    %1446 = vmatpush1.msra.mxu0 0.0
    %1447 = vmatprep.subr.mxu0 0.0
    %1448 = vmatpush1.msra.mxu0 0.0
    %1449 = vmatprep.mubr.f32.mxu0 0.0
    %1450 = vmatmul.mubr.f32.gmra.mrb[0].mxu0 %v1362
    %v1451 = vpop.f32.mrb[0].mxu0
    %v1452 = vadd.f32 0.0, %v1451
    %v1453 = vpop.f32.mrb[0].mxu0
    %1454 = vmatprep.mubr.f32.mxu0 0.0
    %1455 = vmatmul.mubr.f32.gmra.mrb[0].mxu0 %v1365
    %v1456 = vpop.f32.mrb[0].mxu0
    %v1457 = vadd.f32 0.0, %v1456
    %v1458 = vpop.f32.mrb[0].mxu0
    %1459 = vmatprep.mubr.f32.mxu0 0.0
    %1460 = vmatmul.mubr.f32.gmra.mrb[0].mxu0 %v1368
    %v1461 = vpop.f32.mrb[0].mxu0
    %v1462 = vadd.f32 0.0, %v1461
    %v1463 = vpop.f32.mrb[0].mxu0
    %1464 = vmatprep.mubr.f32.mxu0 0.0
    %1465 = vmatmul.mubr.f32.gmra.mrb[0].mxu0 %v1371
    %v1466 = vpop.f32.mrb[0].mxu0
    %v1467 = vadd.f32 0.0, %v1466
    %v1468 = vpop.f32.mrb[0].mxu0
    %1469 = vmatprep.mubr.f32.mxu0 0.0
    %1470 = vmatmul.mubr.f32.gmra.mrb[0].mxu0 %v1374
    %v1471 = vpop.f32.mrb[0].mxu0
    %v1472 = vadd.f32 0.0, %v1471
    %v1473 = vpop.f32.mrb[0].mxu0
    %1474 = vmatprep.mubr.f32.mxu0 0.0
    %1475 = vmatmul.mubr.f32.gmra.mrb[0].mxu0 %v1377
    %v1476 = vpop.f32.mrb[0].mxu0
    %v1477 = vadd.f32 0.0, %v1476
    %v1478 = vpop.f32.mrb[0].mxu0
    %1479 = vmatprep.mubr.f32.mxu0 0.0
    %1480 = vmatmul.mubr.f32.gmra.mrb[0].mxu0 %v1380
    %v1481 = vpop.f32.mrb[0].mxu0
    %v1482 = vadd.f32 0.0, %v1481
    %v1483 = vpop.f32.mrb[0].mxu0
    %1484 = vmatprep.mubr.f32.mxu0 0.0
    %1485 = vmatmul.mubr.f32.gmra.mrb[0].mxu0 %v1383
    %v1486 = vpop.f32.mrb[0].mxu0
    %v1487 = vadd.f32 0.0, %v1486
    %v1488 = vpop.f32.mrb[0].mxu0
    %1489 = vdwg.mxu0
    %v1491 = vsel %vm75, %v1218, 0
    %v1494 = vsel %vm75, %v1223, 0
    %v1497 = vsel %vm75, %v1228, 0
    %v1500 = vsel %vm75, %v1233, 0
    %v1503 = vsel %vm75, %v1238, 0
    %v1506 = vsel %vm75, %v1243, 0
    %v1509 = vsel %vm75, %v1248, 0
    %v1512 = vsel %vm75, %v1253, 0
    %1514 = vmatprep.subr.mxu0 0.0
    %1515 = vmatpush1.msra.mxu0 %v58
    %1516 = vmatprep.subr.mxu0 0.0
    %1517 = vmatpush1.msra.mxu0 0.0
    %1518 = vmatprep.subr.mxu0 0.0
    %1519 = vmatpush1.msra.mxu0 0.0
    %1520 = vmatprep.subr.mxu0 0.0
    %1521 = vmatpush1.msra.mxu0 0.0
    %1522 = vmatprep.subr.mxu0 0.0
    %1523 = vmatpush1.msra.mxu0 0.0
    %1524 = vmatprep.subr.mxu0 0.0
    %1525 = vmatpush1.msra.mxu0 0.0
    %1526 = vmatprep.subr.mxu0 0.0
    %1527 = vmatpush1.msra.mxu0 0.0
    %1528 = vmatprep.subr.mxu0 0.0
    %1529 = vmatpush1.msra.mxu0 0.0
    %1530 = vmatprep.subr.mxu0 0.0
    %1531 = vmatpush1.msra.mxu0 0.0
    %1532 = vmatprep.subr.mxu0 0.0
    %1533 = vmatpush1.msra.mxu0 0.0
    %1534 = vmatprep.subr.mxu0 0.0
    %1535 = vmatpush1.msra.mxu0 0.0
    %1536 = vmatprep.subr.mxu0 0.0
    %1537 = vmatpush1.msra.mxu0 0.0
    %1538 = vmatprep.subr.mxu0 0.0
    %1539 = vmatpush1.msra.mxu0 0.0
    %1540 = vmatprep.subr.mxu0 0.0
    %1541 = vmatpush1.msra.mxu0 0.0
    %1542 = vmatprep.subr.mxu0 0.0
    %1543 = vmatpush1.msra.mxu0 0.0
    %1544 = vmatprep.subr.mxu0 0.0
    %1545 = vmatpush1.msra.mxu0 0.0
    %1546 = vmatprep.subr.mxu0 0.0
    %1547 = vmatpush1.msra.mxu0 0.0
    %1548 = vmatprep.subr.mxu0 0.0
    %1549 = vmatpush1.msra.mxu0 0.0
    %1550 = vmatprep.subr.mxu0 0.0
    %1551 = vmatpush1.msra.mxu0 0.0
    %1552 = vmatprep.subr.mxu0 0.0
    %1553 = vmatpush1.msra.mxu0 0.0
    %1554 = vmatprep.subr.mxu0 0.0
    %1555 = vmatpush1.msra.mxu0 0.0
    %1556 = vmatprep.subr.mxu0 0.0
    %1557 = vmatpush1.msra.mxu0 0.0
    %1558 = vmatprep.subr.mxu0 0.0
    %1559 = vmatpush1.msra.mxu0 0.0
    %1560 = vmatprep.subr.mxu0 0.0
    %1561 = vmatpush1.msra.mxu0 0.0
    %1562 = vmatprep.subr.mxu0 0.0
    %1563 = vmatpush1.msra.mxu0 0.0
    %1564 = vmatprep.subr.mxu0 0.0
    %1565 = vmatpush1.msra.mxu0 0.0
    %1566 = vmatprep.subr.mxu0 0.0
    %1567 = vmatpush1.msra.mxu0 0.0
    %1568 = vmatprep.subr.mxu0 0.0
    %1569 = vmatpush1.msra.mxu0 0.0
    %1570 = vmatprep.subr.mxu0 0.0
    %1571 = vmatpush1.msra.mxu0 0.0
    %1572 = vmatprep.subr.mxu0 0.0
    %1573 = vmatpush1.msra.mxu0 0.0
    %1574 = vmatprep.subr.mxu0 0.0
    %1575 = vmatpush1.msra.mxu0 0.0
    %1576 = vmatprep.subr.mxu0 0.0
    %1577 = vmatpush1.msra.mxu0 0.0
    %1578 = vmatprep.mubr.f32.mxu0 0.0
    %1579 = vmatmul.mubr.f32.gmra.mrb[0].mxu0 %v1491
    %v1580 = vpop.f32.mrb[0].mxu0
    %v1581 = vadd.f32 %v1452, %v1580
    %v1582 = vpop.f32.mrb[0].mxu0
    %1583 = vmatprep.mubr.f32.mxu0 0.0
    %1584 = vmatmul.mubr.f32.gmra.mrb[0].mxu0 %v1494
    %v1585 = vpop.f32.mrb[0].mxu0
    %v1586 = vadd.f32 %v1457, %v1585
    %v1587 = vpop.f32.mrb[0].mxu0
    %1588 = vmatprep.mubr.f32.mxu0 0.0
    %1589 = vmatmul.mubr.f32.gmra.mrb[0].mxu0 %v1497
    %v1590 = vpop.f32.mrb[0].mxu0
    %v1591 = vadd.f32 %v1462, %v1590
    %v1592 = vpop.f32.mrb[0].mxu0
    %1593 = vmatprep.mubr.f32.mxu0 0.0
    %1594 = vmatmul.mubr.f32.gmra.mrb[0].mxu0 %v1500
    %v1595 = vpop.f32.mrb[0].mxu0
    %v1596 = vadd.f32 %v1467, %v1595
    %v1597 = vpop.f32.mrb[0].mxu0
    %1598 = vmatprep.mubr.f32.mxu0 0.0
    %1599 = vmatmul.mubr.f32.gmra.mrb[0].mxu0 %v1503
    %v1600 = vpop.f32.mrb[0].mxu0
    %v1601 = vadd.f32 %v1472, %v1600
    %v1602 = vpop.f32.mrb[0].mxu0
    %1603 = vmatprep.mubr.f32.mxu0 0.0
    %1604 = vmatmul.mubr.f32.gmra.mrb[0].mxu0 %v1506
    %v1605 = vpop.f32.mrb[0].mxu0
    %v1606 = vadd.f32 %v1477, %v1605
    %v1607 = vpop.f32.mrb[0].mxu0
    %1608 = vmatprep.mubr.f32.mxu0 0.0
    %1609 = vmatmul.mubr.f32.gmra.mrb[0].mxu0 %v1509
    %v1610 = vpop.f32.mrb[0].mxu0
    %v1611 = vadd.f32 %v1482, %v1610
    %v1612 = vpop.f32.mrb[0].mxu0
    %1613 = vmatprep.mubr.f32.mxu0 0.0
    %1614 = vmatmul.mubr.f32.gmra.mrb[0].mxu0 %v1512
    %v1615 = vpop.f32.mrb[0].mxu0
    %v1616 = vadd.f32 %v1487, %v1615
    %v1617 = vpop.f32.mrb[0].mxu0
    %1618 = vdwg.mxu0
    %1619 = vmatprep.subr.mxu0 0.0
    %1620 = vmatpush1.msra.mxu0 %v50
    %1621 = vmatprep.subr.mxu0 0.0
    %1622 = vmatpush1.msra.mxu0 0.0
    %1623 = vmatprep.subr.mxu0 0.0
    %1624 = vmatpush1.msra.mxu0 0.0
    %1625 = vmatprep.subr.mxu0 0.0
    %1626 = vmatpush1.msra.mxu0 0.0
    %1627 = vmatprep.subr.mxu0 0.0
    %1628 = vmatpush1.msra.mxu0 0.0
    %1629 = vmatprep.subr.mxu0 0.0
    %1630 = vmatpush1.msra.mxu0 0.0
    %1631 = vmatprep.subr.mxu0 0.0
    %1632 = vmatpush1.msra.mxu0 0.0
    %1633 = vmatprep.subr.mxu0 0.0
    %1634 = vmatpush1.msra.mxu0 0.0
    %1635 = vmatprep.subr.mxu0 0.0
    %1636 = vmatpush1.msra.mxu0 0.0
    %1637 = vmatprep.subr.mxu0 0.0
    %1638 = vmatpush1.msra.mxu0 0.0
    %1639 = vmatprep.subr.mxu0 0.0
    %1640 = vmatpush1.msra.mxu0 0.0
    %1641 = vmatprep.subr.mxu0 0.0
    %1642 = vmatpush1.msra.mxu0 0.0
    %1643 = vmatprep.subr.mxu0 0.0
    %1644 = vmatpush1.msra.mxu0 0.0
    %1645 = vmatprep.subr.mxu0 0.0
    %1646 = vmatpush1.msra.mxu0 0.0
    %1647 = vmatprep.subr.mxu0 0.0
    %1648 = vmatpush1.msra.mxu0 0.0
    %1649 = vmatprep.subr.mxu0 0.0
    %1650 = vmatpush1.msra.mxu0 0.0
    %1651 = vmatprep.subr.mxu0 0.0
    %1652 = vmatpush1.msra.mxu0 0.0
    %1653 = vmatprep.subr.mxu0 0.0
    %1654 = vmatpush1.msra.mxu0 0.0
    %1655 = vmatprep.subr.mxu0 0.0
    %1656 = vmatpush1.msra.mxu0 0.0
    %1657 = vmatprep.subr.mxu0 0.0
    %1658 = vmatpush1.msra.mxu0 0.0
    %1659 = vmatprep.subr.mxu0 0.0
    %1660 = vmatpush1.msra.mxu0 0.0
    %1661 = vmatprep.subr.mxu0 0.0
    %1662 = vmatpush1.msra.mxu0 0.0
    %1663 = vmatprep.subr.mxu0 0.0
    %1664 = vmatpush1.msra.mxu0 0.0
    %1665 = vmatprep.subr.mxu0 0.0
    %1666 = vmatpush1.msra.mxu0 0.0
    %1667 = vmatprep.subr.mxu0 0.0
    %1668 = vmatpush1.msra.mxu0 0.0
    %1669 = vmatprep.subr.mxu0 0.0
    %1670 = vmatpush1.msra.mxu0 0.0
    %1671 = vmatprep.subr.mxu0 0.0
    %1672 = vmatpush1.msra.mxu0 0.0
    %1673 = vmatprep.subr.mxu0 0.0
    %1674 = vmatpush1.msra.mxu0 0.0
    %1675 = vmatprep.subr.mxu0 0.0
    %1676 = vmatpush1.msra.mxu0 0.0
    %1677 = vmatprep.subr.mxu0 0.0
    %1678 = vmatpush1.msra.mxu0 0.0
    %1679 = vmatprep.subr.mxu0 0.0
    %1680 = vmatpush1.msra.mxu0 0.0
    %1681 = vmatprep.subr.mxu0 0.0
    %1682 = vmatpush1.msra.mxu0 0.0
    %1683 = vmatprep.mubr.f32.mxu0 0.0
    %1684 = vmatmul.mubr.f32.gmra.mrb[0].mxu0 %v611
    %v1685 = vpop.f32.mrb[0].mxu0
    %v1686 = vadd.f32 0.0, %v1685
    %v1687 = vpop.f32.mrb[0].mxu0
    %1688 = vmatprep.mubr.f32.mxu0 0.0
    %1689 = vmatmul.mubr.f32.gmra.mrb[0].mxu0 %v614
    %v1690 = vpop.f32.mrb[0].mxu0
    %v1691 = vadd.f32 0.0, %v1690
    %v1692 = vpop.f32.mrb[0].mxu0
    %1693 = vmatprep.mubr.f32.mxu0 0.0
    %1694 = vmatmul.mubr.f32.gmra.mrb[0].mxu0 %v617
    %v1695 = vpop.f32.mrb[0].mxu0
    %v1696 = vadd.f32 0.0, %v1695
    %v1697 = vpop.f32.mrb[0].mxu0
    %1698 = vmatprep.mubr.f32.mxu0 0.0
    %1699 = vmatmul.mubr.f32.gmra.mrb[0].mxu0 %v620
    %v1700 = vpop.f32.mrb[0].mxu0
    %v1701 = vadd.f32 0.0, %v1700
    %v1702 = vpop.f32.mrb[0].mxu0
    %1703 = vmatprep.mubr.f32.mxu0 0.0
    %1704 = vmatmul.mubr.f32.gmra.mrb[0].mxu0 %v623
    %v1705 = vpop.f32.mrb[0].mxu0
    %v1706 = vadd.f32 0.0, %v1705
    %v1707 = vpop.f32.mrb[0].mxu0
    %1708 = vmatprep.mubr.f32.mxu0 0.0
    %1709 = vmatmul.mubr.f32.gmra.mrb[0].mxu0 %v626
    %v1710 = vpop.f32.mrb[0].mxu0
    %v1711 = vadd.f32 0.0, %v1710
    %v1712 = vpop.f32.mrb[0].mxu0
    %1713 = vmatprep.mubr.f32.mxu0 0.0
    %1714 = vmatmul.mubr.f32.gmra.mrb[0].mxu0 %v629
    %v1715 = vpop.f32.mrb[0].mxu0
    %v1716 = vadd.f32 0.0, %v1715
    %v1717 = vpop.f32.mrb[0].mxu0
    %1718 = vmatprep.mubr.f32.mxu0 0.0
    %1719 = vmatmul.mubr.f32.gmra.mrb[0].mxu0 %v632
    %v1720 = vpop.f32.mrb[0].mxu0
    %v1721 = vadd.f32 0.0, %v1720
    %v1722 = vpop.f32.mrb[0].mxu0
    %1723 = vdwg.mxu0
    %v1725 = vsel %vm75, %v1686, 0
    %v1728 = vsel %vm75, %v1691, 0
    %v1731 = vsel %vm75, %v1696, 0
    %v1734 = vsel %vm75, %v1701, 0
    %v1737 = vsel %vm75, %v1706, 0
    %v1740 = vsel %vm75, %v1711, 0
    %v1743 = vsel %vm75, %v1716, 0
    %v1746 = vsel %vm75, %v1721, 0
    %1748 = vmatprep.subr.mxu0 0.0
    %1749 = vmatpush1.msra.mxu0 %v63
    %1750 = vmatprep.subr.mxu0 0.0
    %1751 = vmatpush1.msra.mxu0 0.0
    %1752 = vmatprep.subr.mxu0 0.0
    %1753 = vmatpush1.msra.mxu0 0.0
    %1754 = vmatprep.subr.mxu0 0.0
    %1755 = vmatpush1.msra.mxu0 0.0
    %1756 = vmatprep.subr.mxu0 0.0
    %1757 = vmatpush1.msra.mxu0 0.0
    %1758 = vmatprep.subr.mxu0 0.0
    %1759 = vmatpush1.msra.mxu0 0.0
    %1760 = vmatprep.subr.mxu0 0.0
    %1761 = vmatpush1.msra.mxu0 0.0
    %1762 = vmatprep.subr.mxu0 0.0
    %1763 = vmatpush1.msra.mxu0 0.0
    %1764 = vmatprep.subr.mxu0 0.0
    %1765 = vmatpush1.msra.mxu0 0.0
    %1766 = vmatprep.subr.mxu0 0.0
    %1767 = vmatpush1.msra.mxu0 0.0
    %1768 = vmatprep.subr.mxu0 0.0
    %1769 = vmatpush1.msra.mxu0 0.0
    %1770 = vmatprep.subr.mxu0 0.0
    %1771 = vmatpush1.msra.mxu0 0.0
    %1772 = vmatprep.subr.mxu0 0.0
    %1773 = vmatpush1.msra.mxu0 0.0
    %1774 = vmatprep.subr.mxu0 0.0
    %1775 = vmatpush1.msra.mxu0 0.0
    %1776 = vmatprep.subr.mxu0 0.0
    %1777 = vmatpush1.msra.mxu0 0.0
    %1778 = vmatprep.subr.mxu0 0.0
    %1779 = vmatpush1.msra.mxu0 0.0
    %1780 = vmatprep.subr.mxu0 0.0
    %1781 = vmatpush1.msra.mxu0 0.0
    %1782 = vmatprep.subr.mxu0 0.0
    %1783 = vmatpush1.msra.mxu0 0.0
    %1784 = vmatprep.subr.mxu0 0.0
    %1785 = vmatpush1.msra.mxu0 0.0
    %1786 = vmatprep.subr.mxu0 0.0
    %1787 = vmatpush1.msra.mxu0 0.0
    %1788 = vmatprep.subr.mxu0 0.0
    %1789 = vmatpush1.msra.mxu0 0.0
    %1790 = vmatprep.subr.mxu0 0.0
    %1791 = vmatpush1.msra.mxu0 0.0
    %1792 = vmatprep.subr.mxu0 0.0
    %1793 = vmatpush1.msra.mxu0 0.0
    %1794 = vmatprep.subr.mxu0 0.0
    %1795 = vmatpush1.msra.mxu0 0.0
    %1796 = vmatprep.subr.mxu0 0.0
    %1797 = vmatpush1.msra.mxu0 0.0
    %1798 = vmatprep.subr.mxu0 0.0
    %1799 = vmatpush1.msra.mxu0 0.0
    %1800 = vmatprep.subr.mxu0 0.0
    %1801 = vmatpush1.msra.mxu0 0.0
    %1802 = vmatprep.subr.mxu0 0.0
    %1803 = vmatpush1.msra.mxu0 0.0
    %1804 = vmatprep.subr.mxu0 0.0
    %1805 = vmatpush1.msra.mxu0 0.0
    %1806 = vmatprep.subr.mxu0 0.0
    %1807 = vmatpush1.msra.mxu0 0.0
    %1808 = vmatprep.subr.mxu0 0.0
    %1809 = vmatpush1.msra.mxu0 0.0
    %1810 = vmatprep.subr.mxu0 0.0
    %1811 = vmatpush1.msra.mxu0 0.0
    %1812 = vmatprep.mubr.f32.mxu0 0.0
    %1813 = vmatmul.mubr.f32.gmra.mrb[0].mxu0 %v1725
    %v1814 = vpop.f32.mrb[0].mxu0
    %v1815 = vadd.f32 0.0, %v1814
    %v1816 = vpop.f32.mrb[0].mxu0
    %1817 = vmatprep.mubr.f32.mxu0 0.0
    %1818 = vmatmul.mubr.f32.gmra.mrb[0].mxu0 %v1728
    %v1819 = vpop.f32.mrb[0].mxu0
    %v1820 = vadd.f32 0.0, %v1819
    %v1821 = vpop.f32.mrb[0].mxu0
    %1822 = vmatprep.mubr.f32.mxu0 0.0
    %1823 = vmatmul.mubr.f32.gmra.mrb[0].mxu0 %v1731
    %v1824 = vpop.f32.mrb[0].mxu0
    %v1825 = vadd.f32 0.0, %v1824
    %v1826 = vpop.f32.mrb[0].mxu0
    %1827 = vmatprep.mubr.f32.mxu0 0.0
    %1828 = vmatmul.mubr.f32.gmra.mrb[0].mxu0 %v1734
    %v1829 = vpop.f32.mrb[0].mxu0
    %v1830 = vadd.f32 0.0, %v1829
    %v1831 = vpop.f32.mrb[0].mxu0
    %1832 = vmatprep.mubr.f32.mxu0 0.0
    %1833 = vmatmul.mubr.f32.gmra.mrb[0].mxu0 %v1737
    %v1834 = vpop.f32.mrb[0].mxu0
    %v1835 = vadd.f32 0.0, %v1834
    %v1836 = vpop.f32.mrb[0].mxu0
    %1837 = vmatprep.mubr.f32.mxu0 0.0
    %1838 = vmatmul.mubr.f32.gmra.mrb[0].mxu0 %v1740
    %v1839 = vpop.f32.mrb[0].mxu0
    %v1840 = vadd.f32 0.0, %v1839
    %v1841 = vpop.f32.mrb[0].mxu0
    %1842 = vmatprep.mubr.f32.mxu0 0.0
    %1843 = vmatmul.mubr.f32.gmra.mrb[0].mxu0 %v1743
    %v1844 = vpop.f32.mrb[0].mxu0
    %v1845 = vadd.f32 0.0, %v1844
    %v1846 = vpop.f32.mrb[0].mxu0
    %1847 = vmatprep.mubr.f32.mxu0 0.0
    %1848 = vmatmul.mubr.f32.gmra.mrb[0].mxu0 %v1746
    %v1849 = vpop.f32.mrb[0].mxu0
    %v1850 = vadd.f32 0.0, %v1849
    %v1851 = vpop.f32.mrb[0].mxu0
    %1852 = vdwg.mxu0
    %v1853 = vadd.f32 %v1581, %v1815
    %v1854 = vadd.f32 %v1586, %v1820
    %v1855 = vadd.f32 %v1591, %v1825
    %v1856 = vadd.f32 %v1596, %v1830
    %v1857 = vadd.f32 %v1601, %v1835
    %v1858 = vadd.f32 %v1606, %v1840
    %v1859 = vadd.f32 %v1611, %v1845
    %v1860 = vadd.f32 %v1616, %v1850
    %1861 = vmatprep.subr.mxu0 0.0
    %1862 = vmatpush1.msra.mxu0 %v50
    %1863 = vmatprep.subr.mxu0 0.0
    %1864 = vmatpush1.msra.mxu0 0.0
    %1865 = vmatprep.subr.mxu0 0.0
    %1866 = vmatpush1.msra.mxu0 0.0
    %1867 = vmatprep.subr.mxu0 0.0
    %1868 = vmatpush1.msra.mxu0 0.0
    %1869 = vmatprep.subr.mxu0 0.0
    %1870 = vmatpush1.msra.mxu0 0.0
    %1871 = vmatprep.subr.mxu0 0.0
    %1872 = vmatpush1.msra.mxu0 0.0
    %1873 = vmatprep.subr.mxu0 0.0
    %1874 = vmatpush1.msra.mxu0 0.0
    %1875 = vmatprep.subr.mxu0 0.0
    %1876 = vmatpush1.msra.mxu0 0.0
    %1877 = vmatprep.subr.mxu0 0.0
    %1878 = vmatpush1.msra.mxu0 0.0
    %1879 = vmatprep.subr.mxu0 0.0
    %1880 = vmatpush1.msra.mxu0 0.0
    %1881 = vmatprep.subr.mxu0 0.0
    %1882 = vmatpush1.msra.mxu0 0.0
    %1883 = vmatprep.subr.mxu0 0.0
    %1884 = vmatpush1.msra.mxu0 0.0
    %1885 = vmatprep.subr.mxu0 0.0
    %1886 = vmatpush1.msra.mxu0 0.0
    %1887 = vmatprep.subr.mxu0 0.0
    %1888 = vmatpush1.msra.mxu0 0.0
    %1889 = vmatprep.subr.mxu0 0.0
    %1890 = vmatpush1.msra.mxu0 0.0
    %1891 = vmatprep.subr.mxu0 0.0
    %1892 = vmatpush1.msra.mxu0 0.0
    %1893 = vmatprep.subr.mxu0 0.0
    %1894 = vmatpush1.msra.mxu0 0.0
    %1895 = vmatprep.subr.mxu0 0.0
    %1896 = vmatpush1.msra.mxu0 0.0
    %1897 = vmatprep.subr.mxu0 0.0
    %1898 = vmatpush1.msra.mxu0 0.0
    %1899 = vmatprep.subr.mxu0 0.0
    %1900 = vmatpush1.msra.mxu0 0.0
    %1901 = vmatprep.subr.mxu0 0.0
    %1902 = vmatpush1.msra.mxu0 0.0
    %1903 = vmatprep.subr.mxu0 0.0
    %1904 = vmatpush1.msra.mxu0 0.0
    %1905 = vmatprep.subr.mxu0 0.0
    %1906 = vmatpush1.msra.mxu0 0.0
    %1907 = vmatprep.subr.mxu0 0.0
    %1908 = vmatpush1.msra.mxu0 0.0
    %1909 = vmatprep.subr.mxu0 0.0
    %1910 = vmatpush1.msra.mxu0 0.0
    %1911 = vmatprep.subr.mxu0 0.0
    %1912 = vmatpush1.msra.mxu0 0.0
    %1913 = vmatprep.subr.mxu0 0.0
    %1914 = vmatpush1.msra.mxu0 0.0
    %1915 = vmatprep.subr.mxu0 0.0
    %1916 = vmatpush1.msra.mxu0 0.0
    %1917 = vmatprep.subr.mxu0 0.0
    %1918 = vmatpush1.msra.mxu0 0.0
    %1919 = vmatprep.subr.mxu0 0.0
    %1920 = vmatpush1.msra.mxu0 0.0
    %1921 = vmatprep.subr.mxu0 0.0
    %1922 = vmatpush1.msra.mxu0 0.0
    %1923 = vmatprep.subr.mxu0 0.0
    %1924 = vmatpush1.msra.mxu0 0.0
    %1925 = vmatprep.mubr.f32.mxu0 0.0
    %1926 = vmatmul.mubr.f32.gmra.mrb[0].mxu0 %v886
    %v1927 = vpop.f32.mrb[0].mxu0
    %v1928 = vadd.f32 0.0, %v1927
    %v1929 = vpop.f32.mrb[0].mxu0
    %1930 = vmatprep.mubr.f32.mxu0 0.0
    %1931 = vmatmul.mubr.f32.gmra.mrb[0].mxu0 %v889
    %v1932 = vpop.f32.mrb[0].mxu0
    %v1933 = vadd.f32 0.0, %v1932
    %v1934 = vpop.f32.mrb[0].mxu0
    %1935 = vmatprep.mubr.f32.mxu0 0.0
    %1936 = vmatmul.mubr.f32.gmra.mrb[0].mxu0 %v892
    %v1937 = vpop.f32.mrb[0].mxu0
    %v1938 = vadd.f32 0.0, %v1937
    %v1939 = vpop.f32.mrb[0].mxu0
    %1940 = vmatprep.mubr.f32.mxu0 0.0
    %1941 = vmatmul.mubr.f32.gmra.mrb[0].mxu0 %v895
    %v1942 = vpop.f32.mrb[0].mxu0
    %v1943 = vadd.f32 0.0, %v1942
    %v1944 = vpop.f32.mrb[0].mxu0
    %1945 = vmatprep.mubr.f32.mxu0 0.0
    %1946 = vmatmul.mubr.f32.gmra.mrb[0].mxu0 %v898
    %v1947 = vpop.f32.mrb[0].mxu0
    %v1948 = vadd.f32 0.0, %v1947
    %v1949 = vpop.f32.mrb[0].mxu0
    %1950 = vmatprep.mubr.f32.mxu0 0.0
    %1951 = vmatmul.mubr.f32.gmra.mrb[0].mxu0 %v901
    %v1952 = vpop.f32.mrb[0].mxu0
    %v1953 = vadd.f32 0.0, %v1952
    %v1954 = vpop.f32.mrb[0].mxu0
    %1955 = vmatprep.mubr.f32.mxu0 0.0
    %1956 = vmatmul.mubr.f32.gmra.mrb[0].mxu0 %v904
    %v1957 = vpop.f32.mrb[0].mxu0
    %v1958 = vadd.f32 0.0, %v1957
    %v1959 = vpop.f32.mrb[0].mxu0
    %1960 = vmatprep.mubr.f32.mxu0 0.0
    %1961 = vmatmul.mubr.f32.gmra.mrb[0].mxu0 %v907
    %v1962 = vpop.f32.mrb[0].mxu0
    %v1963 = vadd.f32 0.0, %v1962
    %v1964 = vpop.f32.mrb[0].mxu0
    %1965 = vdwg.mxu0
    %v1967 = vsel %vm75, %v1928, 0
    %v1970 = vsel %vm75, %v1933, 0
    %v1973 = vsel %vm75, %v1938, 0
    %v1976 = vsel %vm75, %v1943, 0
    %v1979 = vsel %vm75, %v1948, 0
    %v1982 = vsel %vm75, %v1953, 0
    %v1985 = vsel %vm75, %v1958, 0
    %v1988 = vsel %vm75, %v1963, 0
    %1990 = vmatprep.subr.mxu0 0.0
    %1991 = vmatpush1.msra.mxu0 %v66
    %1992 = vmatprep.subr.mxu0 0.0
    %1993 = vmatpush1.msra.mxu0 0.0
    %1994 = vmatprep.subr.mxu0 0.0
    %1995 = vmatpush1.msra.mxu0 0.0
    %1996 = vmatprep.subr.mxu0 0.0
    %1997 = vmatpush1.msra.mxu0 0.0
    %1998 = vmatprep.subr.mxu0 0.0
    %1999 = vmatpush1.msra.mxu0 0.0
    %2000 = vmatprep.subr.mxu0 0.0
    %2001 = vmatpush1.msra.mxu0 0.0
    %2002 = vmatprep.subr.mxu0 0.0
    %2003 = vmatpush1.msra.mxu0 0.0
    %2004 = vmatprep.subr.mxu0 0.0
    %2005 = vmatpush1.msra.mxu0 0.0
    %2006 = vmatprep.subr.mxu0 0.0
    %2007 = vmatpush1.msra.mxu0 0.0
    %2008 = vmatprep.subr.mxu0 0.0
    %2009 = vmatpush1.msra.mxu0 0.0
    %2010 = vmatprep.subr.mxu0 0.0
    %2011 = vmatpush1.msra.mxu0 0.0
    %2012 = vmatprep.subr.mxu0 0.0
    %2013 = vmatpush1.msra.mxu0 0.0
    %2014 = vmatprep.subr.mxu0 0.0
    %2015 = vmatpush1.msra.mxu0 0.0
    %2016 = vmatprep.subr.mxu0 0.0
    %2017 = vmatpush1.msra.mxu0 0.0
    %2018 = vmatprep.subr.mxu0 0.0
    %2019 = vmatpush1.msra.mxu0 0.0
    %2020 = vmatprep.subr.mxu0 0.0
    %2021 = vmatpush1.msra.mxu0 0.0
    %2022 = vmatprep.subr.mxu0 0.0
    %2023 = vmatpush1.msra.mxu0 0.0
    %2024 = vmatprep.subr.mxu0 0.0
    %2025 = vmatpush1.msra.mxu0 0.0
    %2026 = vmatprep.subr.mxu0 0.0
    %2027 = vmatpush1.msra.mxu0 0.0
    %2028 = vmatprep.subr.mxu0 0.0
    %2029 = vmatpush1.msra.mxu0 0.0
    %2030 = vmatprep.subr.mxu0 0.0
    %2031 = vmatpush1.msra.mxu0 0.0
    %2032 = vmatprep.subr.mxu0 0.0
    %2033 = vmatpush1.msra.mxu0 0.0
    %2034 = vmatprep.subr.mxu0 0.0
    %2035 = vmatpush1.msra.mxu0 0.0
    %2036 = vmatprep.subr.mxu0 0.0
    %2037 = vmatpush1.msra.mxu0 0.0
    %2038 = vmatprep.subr.mxu0 0.0
    %2039 = vmatpush1.msra.mxu0 0.0
    %2040 = vmatprep.subr.mxu0 0.0
    %2041 = vmatpush1.msra.mxu0 0.0
    %2042 = vmatprep.subr.mxu0 0.0
    %2043 = vmatpush1.msra.mxu0 0.0
    %2044 = vmatprep.subr.mxu0 0.0
    %2045 = vmatpush1.msra.mxu0 0.0
    %2046 = vmatprep.subr.mxu0 0.0
    %2047 = vmatpush1.msra.mxu0 0.0
    %2048 = vmatprep.subr.mxu0 0.0
    %2049 = vmatpush1.msra.mxu0 0.0
    %2050 = vmatprep.subr.mxu0 0.0
    %2051 = vmatpush1.msra.mxu0 0.0
    %2052 = vmatprep.subr.mxu0 0.0
    %2053 = vmatpush1.msra.mxu0 0.0
    %2054 = vmatprep.mubr.f32.mxu0 0.0
    %2055 = vmatmul.mubr.f32.gmra.mrb[0].mxu0 %v1967
    %v2056 = vpop.f32.mrb[0].mxu0
    %v2057 = vadd.f32 0.0, %v2056
    %v2058 = vpop.f32.mrb[0].mxu0
    %2059 = vmatprep.mubr.f32.mxu0 0.0
    %2060 = vmatmul.mubr.f32.gmra.mrb[0].mxu0 %v1970
    %v2061 = vpop.f32.mrb[0].mxu0
    %v2062 = vadd.f32 0.0, %v2061
    %v2063 = vpop.f32.mrb[0].mxu0
    %2064 = vmatprep.mubr.f32.mxu0 0.0
    %2065 = vmatmul.mubr.f32.gmra.mrb[0].mxu0 %v1973
    %v2066 = vpop.f32.mrb[0].mxu0
    %v2067 = vadd.f32 0.0, %v2066
    %v2068 = vpop.f32.mrb[0].mxu0
    %2069 = vmatprep.mubr.f32.mxu0 0.0
    %2070 = vmatmul.mubr.f32.gmra.mrb[0].mxu0 %v1976
    %v2071 = vpop.f32.mrb[0].mxu0
    %v2072 = vadd.f32 0.0, %v2071
    %v2073 = vpop.f32.mrb[0].mxu0
    %2074 = vmatprep.mubr.f32.mxu0 0.0
    %2075 = vmatmul.mubr.f32.gmra.mrb[0].mxu0 %v1979
    %v2076 = vpop.f32.mrb[0].mxu0
    %v2077 = vadd.f32 0.0, %v2076
    %v2078 = vpop.f32.mrb[0].mxu0
    %2079 = vmatprep.mubr.f32.mxu0 0.0
    %2080 = vmatmul.mubr.f32.gmra.mrb[0].mxu0 %v1982
    %v2081 = vpop.f32.mrb[0].mxu0
    %v2082 = vadd.f32 0.0, %v2081
    %v2083 = vpop.f32.mrb[0].mxu0
    %2084 = vmatprep.mubr.f32.mxu0 0.0
    %2085 = vmatmul.mubr.f32.gmra.mrb[0].mxu0 %v1985
    %v2086 = vpop.f32.mrb[0].mxu0
    %v2087 = vadd.f32 0.0, %v2086
    %v2088 = vpop.f32.mrb[0].mxu0
    %2089 = vmatprep.mubr.f32.mxu0 0.0
    %2090 = vmatmul.mubr.f32.gmra.mrb[0].mxu0 %v1988
    %v2091 = vpop.f32.mrb[0].mxu0
    %v2092 = vadd.f32 0.0, %v2091
    %v2093 = vpop.f32.mrb[0].mxu0
    %2094 = vdwg.mxu0
    %v2095 = vadd.f32 %v1853, %v2057
    %v2096 = vadd.f32 %v1854, %v2062
    %v2097 = vadd.f32 %v1855, %v2067
    %v2098 = vadd.f32 %v1856, %v2072
    %v2099 = vadd.f32 %v1857, %v2077
    %v2100 = vadd.f32 %v1858, %v2082
    %v2101 = vadd.f32 %v1859, %v2087
    %v2102 = vadd.f32 %v1860, %v2092
    %vm2103 = vcmask 130048
    %v2104 = vsel %vm2103, %v1143, 0.0
    %2105 = vadd.xlane.f32.xlu0 %v2104
    %v2106 = vpop.xlane.xlu0 %2105
    %v2107 = vsel %vm2103, %v1144, 0.0
    %2108 = vadd.xlane.f32.xlu0 %v2107
    %v2109 = vpop.xlane.xlu0 %2108
    %v2110 = vsel %vm2103, %v1145, 0.0
    %2111 = vadd.xlane.f32.xlu0 %v2110
    %v2112 = vpop.xlane.xlu0 %2111
    %v2113 = vsel %vm2103, %v1146, 0.0
    %2114 = vadd.xlane.f32.xlu0 %v2113
    %v2115 = vpop.xlane.xlu0 %2114
    %v2116 = vsel %vm2103, %v1147, 0.0
    %2117 = vadd.xlane.f32.xlu0 %v2116
    %v2118 = vpop.xlane.xlu0 %2117
    %v2119 = vsel %vm2103, %v1148, 0.0
    %2120 = vadd.xlane.f32.xlu0 %v2119
    %v2121 = vpop.xlane.xlu0 %2120
    %v2122 = vsel %vm2103, %v1149, 0.0
    %2123 = vadd.xlane.f32.xlu0 %v2122
    %v2124 = vpop.xlane.xlu0 %2123
    %v2125 = vsel %vm2103, %v1150, 0.0
    %2126 = vadd.xlane.f32.xlu0 %v2125
    %v2127 = vpop.xlane.xlu0 %2126
    %v2128 = vmul.f32 %v1143, %v1143
    %v2129 = vmul.f32 %v1144, %v1144
    %v2130 = vmul.f32 %v1145, %v1145
    %v2131 = vmul.f32 %v1146, %v1146
    %v2132 = vmul.f32 %v1147, %v1147
    %v2133 = vmul.f32 %v1148, %v1148
    %v2134 = vmul.f32 %v1149, %v1149
    %v2135 = vmul.f32 %v1150, %v1150
    %v2136 = vsel %vm2103, %v2128, 0.0
    %2137 = vadd.xlane.f32.xlu0 %v2136
    %v2138 = vpop.xlane.xlu0 %2137
    %v2139 = vsel %vm2103, %v2129, 0.0
    %2140 = vadd.xlane.f32.xlu0 %v2139
    %v2141 = vpop.xlane.xlu0 %2140
    %v2142 = vsel %vm2103, %v2130, 0.0
    %2143 = vadd.xlane.f32.xlu0 %v2142
    %v2144 = vpop.xlane.xlu0 %2143
    %v2145 = vsel %vm2103, %v2131, 0.0
    %2146 = vadd.xlane.f32.xlu0 %v2145
    %v2147 = vpop.xlane.xlu0 %2146
    %v2148 = vsel %vm2103, %v2132, 0.0
    %2149 = vadd.xlane.f32.xlu0 %v2148
    %v2150 = vpop.xlane.xlu0 %2149
    %v2151 = vsel %vm2103, %v2133, 0.0
    %2152 = vadd.xlane.f32.xlu0 %v2151
    %v2153 = vpop.xlane.xlu0 %2152
    %v2154 = vsel %vm2103, %v2134, 0.0
    %2155 = vadd.xlane.f32.xlu0 %v2154
    %v2156 = vpop.xlane.xlu0 %2155
    %v2157 = vsel %vm2103, %v2135, 0.0
    %2158 = vadd.xlane.f32.xlu0 %v2157
    %v2159 = vpop.xlane.xlu0 %2158
    %v2160 = vsel %vm2103, %v2095, 0.0
    %2161 = vadd.xlane.f32.xlu0 %v2160
    %v2162 = vpop.xlane.xlu0 %2161
    %v2163 = vsel %vm2103, %v2096, 0.0
    %2164 = vadd.xlane.f32.xlu0 %v2163
    %v2165 = vpop.xlane.xlu0 %2164
    %v2166 = vsel %vm2103, %v2097, 0.0
    %2167 = vadd.xlane.f32.xlu0 %v2166
    %v2168 = vpop.xlane.xlu0 %2167
    %v2169 = vsel %vm2103, %v2098, 0.0
    %2170 = vadd.xlane.f32.xlu0 %v2169
    %v2171 = vpop.xlane.xlu0 %2170
    %v2172 = vsel %vm2103, %v2099, 0.0
    %2173 = vadd.xlane.f32.xlu0 %v2172
    %v2174 = vpop.xlane.xlu0 %2173
    %v2175 = vsel %vm2103, %v2100, 0.0
    %2176 = vadd.xlane.f32.xlu0 %v2175
    %v2177 = vpop.xlane.xlu0 %2176
    %v2178 = vsel %vm2103, %v2101, 0.0
    %2179 = vadd.xlane.f32.xlu0 %v2178
    %v2180 = vpop.xlane.xlu0 %2179
    %v2181 = vsel %vm2103, %v2102, 0.0
    %2182 = vadd.xlane.f32.xlu0 %v2181
    %v2183 = vpop.xlane.xlu0 %2182
    %v2184 = vadd.f32 %v2106, %v2162
    %v2185 = vadd.f32 %v2109, %v2165
    %v2186 = vadd.f32 %v2112, %v2168
    %v2187 = vadd.f32 %v2115, %v2171
    %v2188 = vadd.f32 %v2118, %v2174
    %v2189 = vadd.f32 %v2121, %v2177
    %v2190 = vadd.f32 %v2124, %v2180
    %v2191 = vadd.f32 %v2127, %v2183
    %v2192 = vmul.f32 %v2095, %v2095
    %v2193 = vmul.f32 %v2096, %v2096
    %v2194 = vmul.f32 %v2097, %v2097
    %v2195 = vmul.f32 %v2098, %v2098
    %v2196 = vmul.f32 %v2099, %v2099
    %v2197 = vmul.f32 %v2100, %v2100
    %v2198 = vmul.f32 %v2101, %v2101
    %v2199 = vmul.f32 %v2102, %v2102
    %v2200 = vsel %vm2103, %v2192, 0.0
    %2201 = vadd.xlane.f32.xlu0 %v2200
    %v2202 = vpop.xlane.xlu0 %2201
    %v2203 = vsel %vm2103, %v2193, 0.0
    %2204 = vadd.xlane.f32.xlu0 %v2203
    %v2205 = vpop.xlane.xlu0 %2204
    %v2206 = vsel %vm2103, %v2194, 0.0
    %2207 = vadd.xlane.f32.xlu0 %v2206
    %v2208 = vpop.xlane.xlu0 %2207
    %v2209 = vsel %vm2103, %v2195, 0.0
    %2210 = vadd.xlane.f32.xlu0 %v2209
    %v2211 = vpop.xlane.xlu0 %2210
    %v2212 = vsel %vm2103, %v2196, 0.0
    %2213 = vadd.xlane.f32.xlu0 %v2212
    %v2214 = vpop.xlane.xlu0 %2213
    %v2215 = vsel %vm2103, %v2197, 0.0
    %2216 = vadd.xlane.f32.xlu0 %v2215
    %v2217 = vpop.xlane.xlu0 %2216
    %v2218 = vsel %vm2103, %v2198, 0.0
    %2219 = vadd.xlane.f32.xlu0 %v2218
    %v2220 = vpop.xlane.xlu0 %2219
    %v2221 = vsel %vm2103, %v2199, 0.0
    %2222 = vadd.xlane.f32.xlu0 %v2221
    %v2223 = vpop.xlane.xlu0 %2222
    %v2224 = vadd.f32 %v2138, %v2202
    %v2225 = vadd.f32 %v2141, %v2205
    %v2226 = vadd.f32 %v2144, %v2208
    %v2227 = vadd.f32 %v2147, %v2211
    %v2228 = vadd.f32 %v2150, %v2214
    %v2229 = vadd.f32 %v2153, %v2217
    %v2230 = vadd.f32 %v2156, %v2220
    %v2231 = vadd.f32 %v2159, %v2223
    %v2232 = vmul.f32 %v2184, 0.03125
    %v2233 = vmul.f32 %v2185, 0.03125
    %v2234 = vmul.f32 %v2186, 0.03125
    %v2235 = vmul.f32 %v2187, 0.03125
    %v2236 = vmul.f32 %v2188, 0.03125
    %v2237 = vmul.f32 %v2189, 0.03125
    %v2238 = vmul.f32 %v2190, 0.03125
    %v2239 = vmul.f32 %v2191, 0.03125
    %v2240 = vmul.f32 %v2224, 0.03125
    %v2241 = vmul.f32 %v2225, 0.03125
    %v2242 = vmul.f32 %v2226, 0.03125
    %v2243 = vmul.f32 %v2227, 0.03125
    %v2244 = vmul.f32 %v2228, 0.03125
    %v2245 = vmul.f32 %v2229, 0.03125
    %v2246 = vmul.f32 %v2230, 0.03125
    %v2247 = vmul.f32 %v2231, 0.03125
    %v2248 = vmul.f32 %v2232, %v2232
    %v2249 = vmul.f32 %v2233, %v2233
    %v2250 = vmul.f32 %v2234, %v2234
    %v2251 = vmul.f32 %v2235, %v2235
    %v2252 = vmul.f32 %v2236, %v2236
    %v2253 = vmul.f32 %v2237, %v2237
    %v2254 = vmul.f32 %v2238, %v2238
    %v2255 = vmul.f32 %v2239, %v2239
    %v2256 = vsub.f32 %v2240, %v2248
    %v2257 = vsub.f32 %v2241, %v2249
    %v2258 = vsub.f32 %v2242, %v2250
    %v2259 = vsub.f32 %v2243, %v2251
    %v2260 = vsub.f32 %v2244, %v2252
    %v2261 = vsub.f32 %v2245, %v2253
    %v2262 = vsub.f32 %v2246, %v2254
    %v2263 = vsub.f32 %v2247, %v2255
    %v2264 = vmax.f32 %v2256, 0.0
    %v2265 = vmax.f32 %v2257, 0.0
    %v2266 = vmax.f32 %v2258, 0.0
    %v2267 = vmax.f32 %v2259, 0.0
    %v2268 = vmax.f32 %v2260, 0.0
    %v2269 = vmax.f32 %v2261, 0.0
    %v2270 = vmax.f32 %v2262, 0.0
    %v2271 = vmax.f32 %v2263, 0.0
    %v2272 = vld [vmem:[%s2] sm:$0xff]
    %v2273 = vld [vmem:[%s2 + $0x8] sm:$0xff]
    %v2274 = vld [vmem:[%s2 + $0x10] sm:$0xff]
    %v2275 = vld [vmem:[%s2 + $0x18] sm:$0xff]
    %v2276 = vld [vmem:[%s2 + $0x20] sm:$0xff]
    %v2277 = vld [vmem:[%s2 + $0x28] sm:$0xff]
    %v2278 = vld [vmem:[%s2 + $0x30] sm:$0xff]
    %v2279 = vld [vmem:[%s2 + $0x38] sm:$0xff]
    %v2280 = vadd.f32 %v2264, 1e-05
    %v2281 = vadd.f32 %v2265, 1e-05
    %v2282 = vadd.f32 %v2266, 1e-05
    %v2283 = vadd.f32 %v2267, 1e-05
    %v2284 = vadd.f32 %v2268, 1e-05
    %v2285 = vadd.f32 %v2269, 1e-05
    %v2286 = vadd.f32 %v2270, 1e-05
    %v2287 = vadd.f32 %v2271, 1e-05
    %v2288 = vrsqrt.pop %v2280
    %v2289 = vrsqrt.pop %v2281
    %v2290 = vrsqrt.pop %v2282
    %v2291 = vrsqrt.pop %v2283
    %v2292 = vrsqrt.pop %v2284
    %v2293 = vrsqrt.pop %v2285
    %v2294 = vrsqrt.pop %v2286
    %v2295 = vrsqrt.pop %v2287
    %v2296 = vmul.f32 %v2272, %v2288
    %v2297 = vmul.f32 %v2273, %v2289
    %v2298 = vmul.f32 %v2274, %v2290
    %v2299 = vmul.f32 %v2275, %v2291
    %v2300 = vmul.f32 %v2276, %v2292
    %v2301 = vmul.f32 %v2277, %v2293
    %v2302 = vmul.f32 %v2278, %v2294
    %v2303 = vmul.f32 %v2279, %v2295
    %v2304 = vld [vmem:[%s3] sm:$0xff]
    %v2305 = vld [vmem:[%s3 + $0x8] sm:$0xff]
    %v2306 = vld [vmem:[%s3 + $0x10] sm:$0xff]
    %v2307 = vld [vmem:[%s3 + $0x18] sm:$0xff]
    %v2308 = vld [vmem:[%s3 + $0x20] sm:$0xff]
    %v2309 = vld [vmem:[%s3 + $0x28] sm:$0xff]
    %v2310 = vld [vmem:[%s3 + $0x30] sm:$0xff]
    %v2311 = vld [vmem:[%s3 + $0x38] sm:$0xff]
    %v2312 = vmul.f32 %v2232, %v2296
    %v2313 = vmul.f32 %v2233, %v2297
    %v2314 = vmul.f32 %v2234, %v2298
    %v2315 = vmul.f32 %v2235, %v2299
    %v2316 = vmul.f32 %v2236, %v2300
    %v2317 = vmul.f32 %v2237, %v2301
    %v2318 = vmul.f32 %v2238, %v2302
    %v2319 = vmul.f32 %v2239, %v2303
    %v2320 = vsub.f32 %v2304, %v2312
    %v2321 = vsub.f32 %v2305, %v2313
    %v2322 = vsub.f32 %v2306, %v2314
    %v2323 = vsub.f32 %v2307, %v2315
    %v2324 = vsub.f32 %v2308, %v2316
    %v2325 = vsub.f32 %v2309, %v2317
    %v2326 = vsub.f32 %v2310, %v2318
    %v2327 = vsub.f32 %v2311, %v2319
    %2329 = vset.pattern.permute.xlu0 0
    %2330 = vperm.xlu0 %2329, %v2296
    %v2331 = vpop.permute.xlu0 %2330
    %2334 = vset.pattern.permute.xlu0 0
    %2335 = vperm.xlu0 %2334, %v2297
    %v2336 = vpop.permute.xlu0 %2335
    %2339 = vset.pattern.permute.xlu0 0
    %2340 = vperm.xlu0 %2339, %v2298
    %v2341 = vpop.permute.xlu0 %2340
    %2344 = vset.pattern.permute.xlu0 0
    %2345 = vperm.xlu0 %2344, %v2299
    %v2346 = vpop.permute.xlu0 %2345
    %2349 = vset.pattern.permute.xlu0 0
    %2350 = vperm.xlu0 %2349, %v2300
    %v2351 = vpop.permute.xlu0 %2350
    %2354 = vset.pattern.permute.xlu0 0
    %2355 = vperm.xlu0 %2354, %v2301
    %v2356 = vpop.permute.xlu0 %2355
    %2359 = vset.pattern.permute.xlu0 0
    %2360 = vperm.xlu0 %2359, %v2302
    %v2361 = vpop.permute.xlu0 %2360
    %2364 = vset.pattern.permute.xlu0 0
    %2365 = vperm.xlu0 %2364, %v2303
    %v2366 = vpop.permute.xlu0 %2365
    %v2368 = vmul.f32 %v1143, %v2331
    %v2369 = vmul.f32 %v1144, %v2336
    %v2370 = vmul.f32 %v1145, %v2341
    %v2371 = vmul.f32 %v1146, %v2346
    %v2372 = vmul.f32 %v1147, %v2351
    %v2373 = vmul.f32 %v1148, %v2356
    %v2374 = vmul.f32 %v1149, %v2361
    %v2375 = vmul.f32 %v1150, %v2366
    %2377 = vset.pattern.permute.xlu0 0
    %2378 = vperm.xlu0 %2377, %v2320
    %v2379 = vpop.permute.xlu0 %2378
    %2382 = vset.pattern.permute.xlu0 0
    %2383 = vperm.xlu0 %2382, %v2321
    %v2384 = vpop.permute.xlu0 %2383
    %2387 = vset.pattern.permute.xlu0 0
    %2388 = vperm.xlu0 %2387, %v2322
    %v2389 = vpop.permute.xlu0 %2388
    %2392 = vset.pattern.permute.xlu0 0
    %2393 = vperm.xlu0 %2392, %v2323
    %v2394 = vpop.permute.xlu0 %2393
    %2397 = vset.pattern.permute.xlu0 0
    %2398 = vperm.xlu0 %2397, %v2324
    %v2399 = vpop.permute.xlu0 %2398
    %2402 = vset.pattern.permute.xlu0 0
    %2403 = vperm.xlu0 %2402, %v2325
    %v2404 = vpop.permute.xlu0 %2403
    %2407 = vset.pattern.permute.xlu0 0
    %2408 = vperm.xlu0 %2407, %v2326
    %v2409 = vpop.permute.xlu0 %2408
    %2412 = vset.pattern.permute.xlu0 0
    %2413 = vperm.xlu0 %2412, %v2327
    %v2414 = vpop.permute.xlu0 %2413
    %v2416 = vadd.f32 %v2368, %v2379
    %v2417 = vadd.f32 %v2369, %v2384
    %v2418 = vadd.f32 %v2370, %v2389
    %v2419 = vadd.f32 %v2371, %v2394
    %v2420 = vadd.f32 %v2372, %v2399
    %v2421 = vadd.f32 %v2373, %v2404
    %v2422 = vadd.f32 %v2374, %v2409
    %v2423 = vadd.f32 %v2375, %v2414
    %vm2424 = vcmp.ge.f32.partialorder %v2416, 0.0
    %vm2425 = vcmp.ge.f32.partialorder %v2417, 0.0
    %vm2426 = vcmp.ge.f32.partialorder %v2418, 0.0
    %vm2427 = vcmp.ge.f32.partialorder %v2419, 0.0
    %vm2428 = vcmp.ge.f32.partialorder %v2420, 0.0
    %vm2429 = vcmp.ge.f32.partialorder %v2421, 0.0
    %vm2430 = vcmp.ge.f32.partialorder %v2422, 0.0
    %vm2431 = vcmp.ge.f32.partialorder %v2423, 0.0
    %v2432 = vmul.f32 %v2416, 0.2
    %v2433 = vmul.f32 %v2417, 0.2
    %v2434 = vmul.f32 %v2418, 0.2
    %v2435 = vmul.f32 %v2419, 0.2
    %v2436 = vmul.f32 %v2420, 0.2
    %v2437 = vmul.f32 %v2421, 0.2
    %v2438 = vmul.f32 %v2422, 0.2
    %v2439 = vmul.f32 %v2423, 0.2
    %v2440 = vsel %vm2424, %v2416, %v2432
    %v2441 = vsel %vm2425, %v2417, %v2433
    %v2442 = vsel %vm2426, %v2418, %v2434
    %v2443 = vsel %vm2427, %v2419, %v2435
    %v2444 = vsel %vm2428, %v2420, %v2436
    %v2445 = vsel %vm2429, %v2421, %v2437
    %v2446 = vsel %vm2430, %v2422, %v2438
    %v2447 = vsel %vm2431, %v2423, %v2439
    %v2448 = vmul.f32 %v2095, %v2331
    %v2449 = vmul.f32 %v2096, %v2336
    %v2450 = vmul.f32 %v2097, %v2341
    %v2451 = vmul.f32 %v2098, %v2346
    %v2452 = vmul.f32 %v2099, %v2351
    %v2453 = vmul.f32 %v2100, %v2356
    %v2454 = vmul.f32 %v2101, %v2361
    %v2455 = vmul.f32 %v2102, %v2366
    %v2456 = vadd.f32 %v2448, %v2379
    %v2457 = vadd.f32 %v2449, %v2384
    %v2458 = vadd.f32 %v2450, %v2389
    %v2459 = vadd.f32 %v2451, %v2394
    %v2460 = vadd.f32 %v2452, %v2399
    %v2461 = vadd.f32 %v2453, %v2404
    %v2462 = vadd.f32 %v2454, %v2409
    %v2463 = vadd.f32 %v2455, %v2414
    %vm2464 = vcmp.ge.f32.partialorder %v2456, 0.0
    %vm2465 = vcmp.ge.f32.partialorder %v2457, 0.0
    %vm2466 = vcmp.ge.f32.partialorder %v2458, 0.0
    %vm2467 = vcmp.ge.f32.partialorder %v2459, 0.0
    %vm2468 = vcmp.ge.f32.partialorder %v2460, 0.0
    %vm2469 = vcmp.ge.f32.partialorder %v2461, 0.0
    %vm2470 = vcmp.ge.f32.partialorder %v2462, 0.0
    %vm2471 = vcmp.ge.f32.partialorder %v2463, 0.0
    %v2472 = vmul.f32 %v2456, 0.2
    %v2473 = vmul.f32 %v2457, 0.2
    %v2474 = vmul.f32 %v2458, 0.2
    %v2475 = vmul.f32 %v2459, 0.2
    %v2476 = vmul.f32 %v2460, 0.2
    %v2477 = vmul.f32 %v2461, 0.2
    %v2478 = vmul.f32 %v2462, 0.2
    %v2479 = vmul.f32 %v2463, 0.2
    %v2480 = vsel %vm2464, %v2456, %v2472
    %v2481 = vsel %vm2465, %v2457, %v2473
    %v2482 = vsel %vm2466, %v2458, %v2474
    %v2483 = vsel %vm2467, %v2459, %v2475
    %v2484 = vsel %vm2468, %v2460, %v2476
    %v2485 = vsel %vm2469, %v2461, %v2477
    %v2486 = vsel %vm2470, %v2462, %v2478
    %v2487 = vsel %vm2471, %v2463, %v2479
    %v2488 = vadd.s32 %v52, 8
    %v2489 = vmul.u32 %v2488, 2
    %v2490 = vsub.s32 %v2489, 1
    %vm2491 = vcmp.eq.s32.totalorder %v54, %v2490
    %v2492 = vsel %vm2491, 1.0, 0.0
    %vm2493 = vcmp.eq.s32.totalorder %v54, %v2489
    %v2494 = vsel %vm2493, 1.0, 0.0
    %v2495 = vadd.s32 %v2490, 2
    %vm2496 = vcmp.eq.s32.totalorder %v54, %v2495
    %v2497 = vsel %vm2496, 1.0, 0.0
    %v2498 = vadd.s32 %v2490, 3
    %vm2499 = vcmp.eq.s32.totalorder %v54, %v2498
    %v2500 = vsel %vm2499, 1.0, 0.0
    %v2501 = vld [vmem:[%s4] sm:$0xff]
    %v2502 = vld [vmem:[%s4 + $0x8] sm:$0xff]
    %v2503 = vld [vmem:[%s4 + $0x10] sm:$0xff]
    %v2504 = vld [vmem:[%s4 + $0x18] sm:$0xff]
    %vm2505 = vcmask 523264
    %v2507 = vsel %vm2505, %v2501, 0
    %v2510 = vsel %vm2505, %v2502, 0
    %v2513 = vsel %vm2505, %v2503, 0
    %v2516 = vsel %vm2505, %v2504, 0
    %2518 = vmatprep.subr.mxu0 0.0
    %2519 = vmatpush1.msra.mxu0 %v2440
    %2520 = vmatprep.subr.mxu0 0.0
    %2521 = vmatpush1.msra.mxu0 %v2441
    %2522 = vmatprep.subr.mxu0 0.0
    %2523 = vmatpush1.msra.mxu0 %v2442
    %2524 = vmatprep.subr.mxu0 0.0
    %2525 = vmatpush1.msra.mxu0 %v2443
    %2526 = vmatprep.subr.mxu0 0.0
    %2527 = vmatpush1.msra.mxu0 %v2444
    %2528 = vmatprep.subr.mxu0 0.0
    %2529 = vmatpush1.msra.mxu0 %v2445
    %2530 = vmatprep.subr.mxu0 0.0
    %2531 = vmatpush1.msra.mxu0 %v2446
    %2532 = vmatprep.subr.mxu0 0.0
    %2533 = vmatpush1.msra.mxu0 %v2447
    %2534 = vmatprep.subr.mxu0 0.0
    %2535 = vmatpush1.msra.mxu0 0.0
    %2536 = vmatprep.subr.mxu0 0.0
    %2537 = vmatpush1.msra.mxu0 0.0
    %2538 = vmatprep.subr.mxu0 0.0
    %2539 = vmatpush1.msra.mxu0 0.0
    %2540 = vmatprep.subr.mxu0 0.0
    %2541 = vmatpush1.msra.mxu0 0.0
    %2542 = vmatprep.subr.mxu0 0.0
    %2543 = vmatpush1.msra.mxu0 0.0
    %2544 = vmatprep.subr.mxu0 0.0
    %2545 = vmatpush1.msra.mxu0 0.0
    %2546 = vmatprep.subr.mxu0 0.0
    %2547 = vmatpush1.msra.mxu0 0.0
    %2548 = vmatprep.subr.mxu0 0.0
    %2549 = vmatpush1.msra.mxu0 0.0
    %2550 = vmatprep.subr.mxu0 0.0
    %2551 = vmatpush1.msra.mxu0 0.0
    %2552 = vmatprep.subr.mxu0 0.0
    %2553 = vmatpush1.msra.mxu0 0.0
    %2554 = vmatprep.subr.mxu0 0.0
    %2555 = vmatpush1.msra.mxu0 0.0
    %2556 = vmatprep.subr.mxu0 0.0
    %2557 = vmatpush1.msra.mxu0 0.0
    %2558 = vmatprep.subr.mxu0 0.0
    %2559 = vmatpush1.msra.mxu0 0.0
    %2560 = vmatprep.subr.mxu0 0.0
    %2561 = vmatpush1.msra.mxu0 0.0
    %2562 = vmatprep.subr.mxu0 0.0
    %2563 = vmatpush1.msra.mxu0 0.0
    %2564 = vmatprep.subr.mxu0 0.0
    %2565 = vmatpush1.msra.mxu0 0.0
    %2566 = vmatprep.subr.mxu0 0.0
    %2567 = vmatpush1.msra.mxu0 0.0
    %2568 = vmatprep.subr.mxu0 0.0
    %2569 = vmatpush1.msra.mxu0 0.0
    %2570 = vmatprep.subr.mxu0 0.0
    %2571 = vmatpush1.msra.mxu0 0.0
    %2572 = vmatprep.subr.mxu0 0.0
    %2573 = vmatpush1.msra.mxu0 0.0
    %2574 = vmatprep.subr.mxu0 0.0
    %2575 = vmatpush1.msra.mxu0 0.0
    %2576 = vmatprep.subr.mxu0 0.0
    %2577 = vmatpush1.msra.mxu0 0.0
    %2578 = vmatprep.subr.mxu0 0.0
    %2579 = vmatpush1.msra.mxu0 0.0
    %2580 = vmatprep.subr.mxu0 0.0
    %2581 = vmatpush1.msra.mxu0 0.0
    %2582 = vmatprep.mubr.f32.mxu0 0.0
    %2583 = vmatmul.mubr.f32.gmra.mrb[0].mxu0 %v2507
    %v2584 = vpop.f32.mrb[0].mxu0
    %v2585 = vadd.f32 0.0, %v2584
    %v2586 = vpop.f32.mrb[0].mxu0
    %2587 = vmatprep.mubr.f32.mxu0 0.0
    %2588 = vmatmul.mubr.f32.gmra.mrb[0].mxu0 %v2510
    %v2589 = vpop.f32.mrb[0].mxu0
    %v2590 = vadd.f32 0.0, %v2589
    %v2591 = vpop.f32.mrb[0].mxu0
    %2592 = vmatprep.mubr.f32.mxu0 0.0
    %2593 = vmatmul.mubr.f32.gmra.mrb[0].mxu0 %v2513
    %v2594 = vpop.f32.mrb[0].mxu0
    %v2595 = vadd.f32 0.0, %v2594
    %v2596 = vpop.f32.mrb[0].mxu0
    %2597 = vmatprep.mubr.f32.mxu0 0.0
    %2598 = vmatmul.mubr.f32.gmra.mrb[0].mxu0 %v2516
    %v2599 = vpop.f32.mrb[0].mxu0
    %v2600 = vadd.f32 0.0, %v2599
    %v2601 = vpop.f32.mrb[0].mxu0
    %2602 = vdwg.mxu0
    %s2603 = scalar_lea.vmem %s4, 32
    %v2604 = vld [vmem:[%s2603] sm:$0xff]
    %v2605 = vld [vmem:[%s2603 + $0x8] sm:$0xff]
    %v2606 = vld [vmem:[%s2603 + $0x10] sm:$0xff]
    %v2607 = vld [vmem:[%s2603 + $0x18] sm:$0xff]
    %v2609 = vsel %vm2505, %v2604, 0
    %v2612 = vsel %vm2505, %v2605, 0
    %v2615 = vsel %vm2505, %v2606, 0
    %v2618 = vsel %vm2505, %v2607, 0
    %2620 = vmatprep.subr.mxu0 0.0
    %2621 = vmatpush1.msra.mxu0 %v2440
    %2622 = vmatprep.subr.mxu0 0.0
    %2623 = vmatpush1.msra.mxu0 %v2441
    %2624 = vmatprep.subr.mxu0 0.0
    %2625 = vmatpush1.msra.mxu0 %v2442
    %2626 = vmatprep.subr.mxu0 0.0
    %2627 = vmatpush1.msra.mxu0 %v2443
    %2628 = vmatprep.subr.mxu0 0.0
    %2629 = vmatpush1.msra.mxu0 %v2444
    %2630 = vmatprep.subr.mxu0 0.0
    %2631 = vmatpush1.msra.mxu0 %v2445
    %2632 = vmatprep.subr.mxu0 0.0
    %2633 = vmatpush1.msra.mxu0 %v2446
    %2634 = vmatprep.subr.mxu0 0.0
    %2635 = vmatpush1.msra.mxu0 %v2447
    %2636 = vmatprep.subr.mxu0 0.0
    %2637 = vmatpush1.msra.mxu0 0.0
    %2638 = vmatprep.subr.mxu0 0.0
    %2639 = vmatpush1.msra.mxu0 0.0
    %2640 = vmatprep.subr.mxu0 0.0
    %2641 = vmatpush1.msra.mxu0 0.0
    %2642 = vmatprep.subr.mxu0 0.0
    %2643 = vmatpush1.msra.mxu0 0.0
    %2644 = vmatprep.subr.mxu0 0.0
    %2645 = vmatpush1.msra.mxu0 0.0
    %2646 = vmatprep.subr.mxu0 0.0
    %2647 = vmatpush1.msra.mxu0 0.0
    %2648 = vmatprep.subr.mxu0 0.0
    %2649 = vmatpush1.msra.mxu0 0.0
    %2650 = vmatprep.subr.mxu0 0.0
    %2651 = vmatpush1.msra.mxu0 0.0
    %2652 = vmatprep.subr.mxu0 0.0
    %2653 = vmatpush1.msra.mxu0 0.0
    %2654 = vmatprep.subr.mxu0 0.0
    %2655 = vmatpush1.msra.mxu0 0.0
    %2656 = vmatprep.subr.mxu0 0.0
    %2657 = vmatpush1.msra.mxu0 0.0
    %2658 = vmatprep.subr.mxu0 0.0
    %2659 = vmatpush1.msra.mxu0 0.0
    %2660 = vmatprep.subr.mxu0 0.0
    %2661 = vmatpush1.msra.mxu0 0.0
    %2662 = vmatprep.subr.mxu0 0.0
    %2663 = vmatpush1.msra.mxu0 0.0
    %2664 = vmatprep.subr.mxu0 0.0
    %2665 = vmatpush1.msra.mxu0 0.0
    %2666 = vmatprep.subr.mxu0 0.0
    %2667 = vmatpush1.msra.mxu0 0.0
    %2668 = vmatprep.subr.mxu0 0.0
    %2669 = vmatpush1.msra.mxu0 0.0
    %2670 = vmatprep.subr.mxu0 0.0
    %2671 = vmatpush1.msra.mxu0 0.0
    %2672 = vmatprep.subr.mxu0 0.0
    %2673 = vmatpush1.msra.mxu0 0.0
    %2674 = vmatprep.subr.mxu0 0.0
    %2675 = vmatpush1.msra.mxu0 0.0
    %2676 = vmatprep.subr.mxu0 0.0
    %2677 = vmatpush1.msra.mxu0 0.0
    %2678 = vmatprep.subr.mxu0 0.0
    %2679 = vmatpush1.msra.mxu0 0.0
    %2680 = vmatprep.subr.mxu0 0.0
    %2681 = vmatpush1.msra.mxu0 0.0
    %2682 = vmatprep.subr.mxu0 0.0
    %2683 = vmatpush1.msra.mxu0 0.0
    %2684 = vmatprep.mubr.f32.mxu0 0.0
    %2685 = vmatmul.mubr.f32.gmra.mrb[0].mxu0 %v2609
    %v2686 = vpop.f32.mrb[0].mxu0
    %v2687 = vadd.f32 0.0, %v2686
    %v2688 = vpop.f32.mrb[0].mxu0
    %2689 = vmatprep.mubr.f32.mxu0 0.0
    %2690 = vmatmul.mubr.f32.gmra.mrb[0].mxu0 %v2612
    %v2691 = vpop.f32.mrb[0].mxu0
    %v2692 = vadd.f32 0.0, %v2691
    %v2693 = vpop.f32.mrb[0].mxu0
    %2694 = vmatprep.mubr.f32.mxu0 0.0
    %2695 = vmatmul.mubr.f32.gmra.mrb[0].mxu0 %v2615
    %v2696 = vpop.f32.mrb[0].mxu0
    %v2697 = vadd.f32 0.0, %v2696
    %v2698 = vpop.f32.mrb[0].mxu0
    %2699 = vmatprep.mubr.f32.mxu0 0.0
    %2700 = vmatmul.mubr.f32.gmra.mrb[0].mxu0 %v2618
    %v2701 = vpop.f32.mrb[0].mxu0
    %v2702 = vadd.f32 0.0, %v2701
    %v2703 = vpop.f32.mrb[0].mxu0
    %2704 = vdwg.mxu0
    %v2706 = vsel %vm2103, %v2687, 0
    %v2709 = vsel %vm2103, %v2692, 0
    %v2712 = vsel %vm2103, %v2697, 0
    %v2715 = vsel %vm2103, %v2702, 0
    %2717 = vmatprep.subr.mxu0 0.0
    %2718 = vmatpush1.msra.mxu0 %v60
    %2719 = vmatprep.subr.mxu0 0.0
    %2720 = vmatpush1.msra.mxu0 %v2494
    %2721 = vmatprep.subr.mxu0 0.0
    %2722 = vmatpush1.msra.mxu0 0.0
    %2723 = vmatprep.subr.mxu0 0.0
    %2724 = vmatpush1.msra.mxu0 0.0
    %2725 = vmatprep.subr.mxu0 0.0
    %2726 = vmatpush1.msra.mxu0 0.0
    %2727 = vmatprep.subr.mxu0 0.0
    %2728 = vmatpush1.msra.mxu0 0.0
    %2729 = vmatprep.subr.mxu0 0.0
    %2730 = vmatpush1.msra.mxu0 0.0
    %2731 = vmatprep.subr.mxu0 0.0
    %2732 = vmatpush1.msra.mxu0 0.0
    %2733 = vmatprep.subr.mxu0 0.0
    %2734 = vmatpush1.msra.mxu0 0.0
    %2735 = vmatprep.subr.mxu0 0.0
    %2736 = vmatpush1.msra.mxu0 0.0
    %2737 = vmatprep.subr.mxu0 0.0
    %2738 = vmatpush1.msra.mxu0 0.0
    %2739 = vmatprep.subr.mxu0 0.0
    %2740 = vmatpush1.msra.mxu0 0.0
    %2741 = vmatprep.subr.mxu0 0.0
    %2742 = vmatpush1.msra.mxu0 0.0
    %2743 = vmatprep.subr.mxu0 0.0
    %2744 = vmatpush1.msra.mxu0 0.0
    %2745 = vmatprep.subr.mxu0 0.0
    %2746 = vmatpush1.msra.mxu0 0.0
    %2747 = vmatprep.subr.mxu0 0.0
    %2748 = vmatpush1.msra.mxu0 0.0
    %2749 = vmatprep.subr.mxu0 0.0
    %2750 = vmatpush1.msra.mxu0 0.0
    %2751 = vmatprep.subr.mxu0 0.0
    %2752 = vmatpush1.msra.mxu0 0.0
    %2753 = vmatprep.subr.mxu0 0.0
    %2754 = vmatpush1.msra.mxu0 0.0
    %2755 = vmatprep.subr.mxu0 0.0
    %2756 = vmatpush1.msra.mxu0 0.0
    %2757 = vmatprep.subr.mxu0 0.0
    %2758 = vmatpush1.msra.mxu0 0.0
    %2759 = vmatprep.subr.mxu0 0.0
    %2760 = vmatpush1.msra.mxu0 0.0
    %2761 = vmatprep.subr.mxu0 0.0
    %2762 = vmatpush1.msra.mxu0 0.0
    %2763 = vmatprep.subr.mxu0 0.0
    %2764 = vmatpush1.msra.mxu0 0.0
    %2765 = vmatprep.subr.mxu0 0.0
    %2766 = vmatpush1.msra.mxu0 0.0
    %2767 = vmatprep.subr.mxu0 0.0
    %2768 = vmatpush1.msra.mxu0 0.0
    %2769 = vmatprep.subr.mxu0 0.0
    %2770 = vmatpush1.msra.mxu0 0.0
    %2771 = vmatprep.subr.mxu0 0.0
    %2772 = vmatpush1.msra.mxu0 0.0
    %2773 = vmatprep.subr.mxu0 0.0
    %2774 = vmatpush1.msra.mxu0 0.0
    %2775 = vmatprep.subr.mxu0 0.0
    %2776 = vmatpush1.msra.mxu0 0.0
    %2777 = vmatprep.subr.mxu0 0.0
    %2778 = vmatpush1.msra.mxu0 0.0
    %2779 = vmatprep.subr.mxu0 0.0
    %2780 = vmatpush1.msra.mxu0 0.0
    %2781 = vmatprep.mubr.f32.mxu0 0.0
    %2782 = vmatmul.mubr.f32.gmra.mrb[0].mxu0 %v2706
    %v2783 = vpop.f32.mrb[0].mxu0
    %v2784 = vadd.f32 0.0, %v2783
    %v2785 = vpop.f32.mrb[0].mxu0
    %2786 = vmatprep.mubr.f32.mxu0 0.0
    %2787 = vmatmul.mubr.f32.gmra.mrb[0].mxu0 %v2709
    %v2788 = vpop.f32.mrb[0].mxu0
    %v2789 = vadd.f32 0.0, %v2788
    %v2790 = vpop.f32.mrb[0].mxu0
    %2791 = vmatprep.mubr.f32.mxu0 0.0
    %2792 = vmatmul.mubr.f32.gmra.mrb[0].mxu0 %v2712
    %v2793 = vpop.f32.mrb[0].mxu0
    %v2794 = vadd.f32 0.0, %v2793
    %v2795 = vpop.f32.mrb[0].mxu0
    %2796 = vmatprep.mubr.f32.mxu0 0.0
    %2797 = vmatmul.mubr.f32.gmra.mrb[0].mxu0 %v2715
    %v2798 = vpop.f32.mrb[0].mxu0
    %v2799 = vadd.f32 0.0, %v2798
    %v2800 = vpop.f32.mrb[0].mxu0
    %2801 = vdwg.mxu0
    %v2803 = vsel %vm2103, %v2585, 0
    %v2806 = vsel %vm2103, %v2590, 0
    %v2809 = vsel %vm2103, %v2595, 0
    %v2812 = vsel %vm2103, %v2600, 0
    %2814 = vmatprep.subr.mxu0 0.0
    %2815 = vmatpush1.msra.mxu0 %v58
    %2816 = vmatprep.subr.mxu0 0.0
    %2817 = vmatpush1.msra.mxu0 %v2492
    %2818 = vmatprep.subr.mxu0 0.0
    %2819 = vmatpush1.msra.mxu0 0.0
    %2820 = vmatprep.subr.mxu0 0.0
    %2821 = vmatpush1.msra.mxu0 0.0
    %2822 = vmatprep.subr.mxu0 0.0
    %2823 = vmatpush1.msra.mxu0 0.0
    %2824 = vmatprep.subr.mxu0 0.0
    %2825 = vmatpush1.msra.mxu0 0.0
    %2826 = vmatprep.subr.mxu0 0.0
    %2827 = vmatpush1.msra.mxu0 0.0
    %2828 = vmatprep.subr.mxu0 0.0
    %2829 = vmatpush1.msra.mxu0 0.0
    %2830 = vmatprep.subr.mxu0 0.0
    %2831 = vmatpush1.msra.mxu0 0.0
    %2832 = vmatprep.subr.mxu0 0.0
    %2833 = vmatpush1.msra.mxu0 0.0
    %2834 = vmatprep.subr.mxu0 0.0
    %2835 = vmatpush1.msra.mxu0 0.0
    %2836 = vmatprep.subr.mxu0 0.0
    %2837 = vmatpush1.msra.mxu0 0.0
    %2838 = vmatprep.subr.mxu0 0.0
    %2839 = vmatpush1.msra.mxu0 0.0
    %2840 = vmatprep.subr.mxu0 0.0
    %2841 = vmatpush1.msra.mxu0 0.0
    %2842 = vmatprep.subr.mxu0 0.0
    %2843 = vmatpush1.msra.mxu0 0.0
    %2844 = vmatprep.subr.mxu0 0.0
    %2845 = vmatpush1.msra.mxu0 0.0
    %2846 = vmatprep.subr.mxu0 0.0
    %2847 = vmatpush1.msra.mxu0 0.0
    %2848 = vmatprep.subr.mxu0 0.0
    %2849 = vmatpush1.msra.mxu0 0.0
    %2850 = vmatprep.subr.mxu0 0.0
    %2851 = vmatpush1.msra.mxu0 0.0
    %2852 = vmatprep.subr.mxu0 0.0
    %2853 = vmatpush1.msra.mxu0 0.0
    %2854 = vmatprep.subr.mxu0 0.0
    %2855 = vmatpush1.msra.mxu0 0.0
    %2856 = vmatprep.subr.mxu0 0.0
    %2857 = vmatpush1.msra.mxu0 0.0
    %2858 = vmatprep.subr.mxu0 0.0
    %2859 = vmatpush1.msra.mxu0 0.0
    %2860 = vmatprep.subr.mxu0 0.0
    %2861 = vmatpush1.msra.mxu0 0.0
    %2862 = vmatprep.subr.mxu0 0.0
    %2863 = vmatpush1.msra.mxu0 0.0
    %2864 = vmatprep.subr.mxu0 0.0
    %2865 = vmatpush1.msra.mxu0 0.0
    %2866 = vmatprep.subr.mxu0 0.0
    %2867 = vmatpush1.msra.mxu0 0.0
    %2868 = vmatprep.subr.mxu0 0.0
    %2869 = vmatpush1.msra.mxu0 0.0
    %2870 = vmatprep.subr.mxu0 0.0
    %2871 = vmatpush1.msra.mxu0 0.0
    %2872 = vmatprep.subr.mxu0 0.0
    %2873 = vmatpush1.msra.mxu0 0.0
    %2874 = vmatprep.subr.mxu0 0.0
    %2875 = vmatpush1.msra.mxu0 0.0
    %2876 = vmatprep.subr.mxu0 0.0
    %2877 = vmatpush1.msra.mxu0 0.0
    %2878 = vmatprep.mubr.f32.mxu0 0.0
    %2879 = vmatmul.mubr.f32.gmra.mrb[0].mxu0 %v2803
    %v2880 = vpop.f32.mrb[0].mxu0
    %v2881 = vadd.f32 %v2784, %v2880
    %v2882 = vpop.f32.mrb[0].mxu0
    %2883 = vmatprep.mubr.f32.mxu0 0.0
    %2884 = vmatmul.mubr.f32.gmra.mrb[0].mxu0 %v2806
    %v2885 = vpop.f32.mrb[0].mxu0
    %v2886 = vadd.f32 %v2789, %v2885
    %v2887 = vpop.f32.mrb[0].mxu0
    %2888 = vmatprep.mubr.f32.mxu0 0.0
    %2889 = vmatmul.mubr.f32.gmra.mrb[0].mxu0 %v2809
    %v2890 = vpop.f32.mrb[0].mxu0
    %v2891 = vadd.f32 %v2794, %v2890
    %v2892 = vpop.f32.mrb[0].mxu0
    %2893 = vmatprep.mubr.f32.mxu0 0.0
    %2894 = vmatmul.mubr.f32.gmra.mrb[0].mxu0 %v2812
    %v2895 = vpop.f32.mrb[0].mxu0
    %v2896 = vadd.f32 %v2799, %v2895
    %v2897 = vpop.f32.mrb[0].mxu0
    %2898 = vdwg.mxu0
    %s2899 = scalar_lea.vmem %s4, 64
    %v2900 = vld [vmem:[%s2899] sm:$0xff]
    %v2901 = vld [vmem:[%s2899 + $0x8] sm:$0xff]
    %v2902 = vld [vmem:[%s2899 + $0x10] sm:$0xff]
    %v2903 = vld [vmem:[%s2899 + $0x18] sm:$0xff]
    %v2905 = vsel %vm2505, %v2900, 0
    %v2908 = vsel %vm2505, %v2901, 0
    %v2911 = vsel %vm2505, %v2902, 0
    %v2914 = vsel %vm2505, %v2903, 0
    %2916 = vmatprep.subr.mxu0 0.0
    %2917 = vmatpush1.msra.mxu0 %v2440
    %2918 = vmatprep.subr.mxu0 0.0
    %2919 = vmatpush1.msra.mxu0 %v2441
    %2920 = vmatprep.subr.mxu0 0.0
    %2921 = vmatpush1.msra.mxu0 %v2442
    %2922 = vmatprep.subr.mxu0 0.0
    %2923 = vmatpush1.msra.mxu0 %v2443
    %2924 = vmatprep.subr.mxu0 0.0
    %2925 = vmatpush1.msra.mxu0 %v2444
    %2926 = vmatprep.subr.mxu0 0.0
    %2927 = vmatpush1.msra.mxu0 %v2445
    %2928 = vmatprep.subr.mxu0 0.0
    %2929 = vmatpush1.msra.mxu0 %v2446
    %2930 = vmatprep.subr.mxu0 0.0
    %2931 = vmatpush1.msra.mxu0 %v2447
    %2932 = vmatprep.subr.mxu0 0.0
    %2933 = vmatpush1.msra.mxu0 0.0
    %2934 = vmatprep.subr.mxu0 0.0
    %2935 = vmatpush1.msra.mxu0 0.0
    %2936 = vmatprep.subr.mxu0 0.0
    %2937 = vmatpush1.msra.mxu0 0.0
    %2938 = vmatprep.subr.mxu0 0.0
    %2939 = vmatpush1.msra.mxu0 0.0
    %2940 = vmatprep.subr.mxu0 0.0
    %2941 = vmatpush1.msra.mxu0 0.0
    %2942 = vmatprep.subr.mxu0 0.0
    %2943 = vmatpush1.msra.mxu0 0.0
    %2944 = vmatprep.subr.mxu0 0.0
    %2945 = vmatpush1.msra.mxu0 0.0
    %2946 = vmatprep.subr.mxu0 0.0
    %2947 = vmatpush1.msra.mxu0 0.0
    %2948 = vmatprep.subr.mxu0 0.0
    %2949 = vmatpush1.msra.mxu0 0.0
    %2950 = vmatprep.subr.mxu0 0.0
    %2951 = vmatpush1.msra.mxu0 0.0
    %2952 = vmatprep.subr.mxu0 0.0
    %2953 = vmatpush1.msra.mxu0 0.0
    %2954 = vmatprep.subr.mxu0 0.0
    %2955 = vmatpush1.msra.mxu0 0.0
    %2956 = vmatprep.subr.mxu0 0.0
    %2957 = vmatpush1.msra.mxu0 0.0
    %2958 = vmatprep.subr.mxu0 0.0
    %2959 = vmatpush1.msra.mxu0 0.0
    %2960 = vmatprep.subr.mxu0 0.0
    %2961 = vmatpush1.msra.mxu0 0.0
    %2962 = vmatprep.subr.mxu0 0.0
    %2963 = vmatpush1.msra.mxu0 0.0
    %2964 = vmatprep.subr.mxu0 0.0
    %2965 = vmatpush1.msra.mxu0 0.0
    %2966 = vmatprep.subr.mxu0 0.0
    %2967 = vmatpush1.msra.mxu0 0.0
    %2968 = vmatprep.subr.mxu0 0.0
    %2969 = vmatpush1.msra.mxu0 0.0
    %2970 = vmatprep.subr.mxu0 0.0
    %2971 = vmatpush1.msra.mxu0 0.0
    %2972 = vmatprep.subr.mxu0 0.0
    %2973 = vmatpush1.msra.mxu0 0.0
    %2974 = vmatprep.subr.mxu0 0.0
    %2975 = vmatpush1.msra.mxu0 0.0
    %2976 = vmatprep.subr.mxu0 0.0
    %2977 = vmatpush1.msra.mxu0 0.0
    %2978 = vmatprep.subr.mxu0 0.0
    %2979 = vmatpush1.msra.mxu0 0.0
    %2980 = vmatprep.mubr.f32.mxu0 0.0
    %2981 = vmatmul.mubr.f32.gmra.mrb[0].mxu0 %v2905
    %v2982 = vpop.f32.mrb[0].mxu0
    %v2983 = vadd.f32 0.0, %v2982
    %v2984 = vpop.f32.mrb[0].mxu0
    %2985 = vmatprep.mubr.f32.mxu0 0.0
    %2986 = vmatmul.mubr.f32.gmra.mrb[0].mxu0 %v2908
    %v2987 = vpop.f32.mrb[0].mxu0
    %v2988 = vadd.f32 0.0, %v2987
    %v2989 = vpop.f32.mrb[0].mxu0
    %2990 = vmatprep.mubr.f32.mxu0 0.0
    %2991 = vmatmul.mubr.f32.gmra.mrb[0].mxu0 %v2911
    %v2992 = vpop.f32.mrb[0].mxu0
    %v2993 = vadd.f32 0.0, %v2992
    %v2994 = vpop.f32.mrb[0].mxu0
    %2995 = vmatprep.mubr.f32.mxu0 0.0
    %2996 = vmatmul.mubr.f32.gmra.mrb[0].mxu0 %v2914
    %v2997 = vpop.f32.mrb[0].mxu0
    %v2998 = vadd.f32 0.0, %v2997
    %v2999 = vpop.f32.mrb[0].mxu0
    %3000 = vdwg.mxu0
    %v3002 = vsel %vm2103, %v2983, 0
    %v3005 = vsel %vm2103, %v2988, 0
    %v3008 = vsel %vm2103, %v2993, 0
    %v3011 = vsel %vm2103, %v2998, 0
    %3013 = vmatprep.subr.mxu0 0.0
    %3014 = vmatpush1.msra.mxu0 %v63
    %3015 = vmatprep.subr.mxu0 0.0
    %3016 = vmatpush1.msra.mxu0 %v2497
    %3017 = vmatprep.subr.mxu0 0.0
    %3018 = vmatpush1.msra.mxu0 0.0
    %3019 = vmatprep.subr.mxu0 0.0
    %3020 = vmatpush1.msra.mxu0 0.0
    %3021 = vmatprep.subr.mxu0 0.0
    %3022 = vmatpush1.msra.mxu0 0.0
    %3023 = vmatprep.subr.mxu0 0.0
    %3024 = vmatpush1.msra.mxu0 0.0
    %3025 = vmatprep.subr.mxu0 0.0
    %3026 = vmatpush1.msra.mxu0 0.0
    %3027 = vmatprep.subr.mxu0 0.0
    %3028 = vmatpush1.msra.mxu0 0.0
    %3029 = vmatprep.subr.mxu0 0.0
    %3030 = vmatpush1.msra.mxu0 0.0
    %3031 = vmatprep.subr.mxu0 0.0
    %3032 = vmatpush1.msra.mxu0 0.0
    %3033 = vmatprep.subr.mxu0 0.0
    %3034 = vmatpush1.msra.mxu0 0.0
    %3035 = vmatprep.subr.mxu0 0.0
    %3036 = vmatpush1.msra.mxu0 0.0
    %3037 = vmatprep.subr.mxu0 0.0
    %3038 = vmatpush1.msra.mxu0 0.0
    %3039 = vmatprep.subr.mxu0 0.0
    %3040 = vmatpush1.msra.mxu0 0.0
    %3041 = vmatprep.subr.mxu0 0.0
    %3042 = vmatpush1.msra.mxu0 0.0
    %3043 = vmatprep.subr.mxu0 0.0
    %3044 = vmatpush1.msra.mxu0 0.0
    %3045 = vmatprep.subr.mxu0 0.0
    %3046 = vmatpush1.msra.mxu0 0.0
    %3047 = vmatprep.subr.mxu0 0.0
    %3048 = vmatpush1.msra.mxu0 0.0
    %3049 = vmatprep.subr.mxu0 0.0
    %3050 = vmatpush1.msra.mxu0 0.0
    %3051 = vmatprep.subr.mxu0 0.0
    %3052 = vmatpush1.msra.mxu0 0.0
    %3053 = vmatprep.subr.mxu0 0.0
    %3054 = vmatpush1.msra.mxu0 0.0
    %3055 = vmatprep.subr.mxu0 0.0
    %3056 = vmatpush1.msra.mxu0 0.0
    %3057 = vmatprep.subr.mxu0 0.0
    %3058 = vmatpush1.msra.mxu0 0.0
    %3059 = vmatprep.subr.mxu0 0.0
    %3060 = vmatpush1.msra.mxu0 0.0
    %3061 = vmatprep.subr.mxu0 0.0
    %3062 = vmatpush1.msra.mxu0 0.0
    %3063 = vmatprep.subr.mxu0 0.0
    %3064 = vmatpush1.msra.mxu0 0.0
    %3065 = vmatprep.subr.mxu0 0.0
    %3066 = vmatpush1.msra.mxu0 0.0
    %3067 = vmatprep.subr.mxu0 0.0
    %3068 = vmatpush1.msra.mxu0 0.0
    %3069 = vmatprep.subr.mxu0 0.0
    %3070 = vmatpush1.msra.mxu0 0.0
    %3071 = vmatprep.subr.mxu0 0.0
    %3072 = vmatpush1.msra.mxu0 0.0
    %3073 = vmatprep.subr.mxu0 0.0
    %3074 = vmatpush1.msra.mxu0 0.0
    %3075 = vmatprep.subr.mxu0 0.0
    %3076 = vmatpush1.msra.mxu0 0.0
    %3077 = vmatprep.mubr.f32.mxu0 0.0
    %3078 = vmatmul.mubr.f32.gmra.mrb[0].mxu0 %v3002
    %v3079 = vpop.f32.mrb[0].mxu0
    %v3080 = vadd.f32 0.0, %v3079
    %v3081 = vpop.f32.mrb[0].mxu0
    %3082 = vmatprep.mubr.f32.mxu0 0.0
    %3083 = vmatmul.mubr.f32.gmra.mrb[0].mxu0 %v3005
    %v3084 = vpop.f32.mrb[0].mxu0
    %v3085 = vadd.f32 0.0, %v3084
    %v3086 = vpop.f32.mrb[0].mxu0
    %3087 = vmatprep.mubr.f32.mxu0 0.0
    %3088 = vmatmul.mubr.f32.gmra.mrb[0].mxu0 %v3008
    %v3089 = vpop.f32.mrb[0].mxu0
    %v3090 = vadd.f32 0.0, %v3089
    %v3091 = vpop.f32.mrb[0].mxu0
    %3092 = vmatprep.mubr.f32.mxu0 0.0
    %3093 = vmatmul.mubr.f32.gmra.mrb[0].mxu0 %v3011
    %v3094 = vpop.f32.mrb[0].mxu0
    %v3095 = vadd.f32 0.0, %v3094
    %v3096 = vpop.f32.mrb[0].mxu0
    %3097 = vdwg.mxu0
    %v3098 = vadd.f32 %v2881, %v3080
    %v3099 = vadd.f32 %v2886, %v3085
    %v3100 = vadd.f32 %v2891, %v3090
    %v3101 = vadd.f32 %v2896, %v3095
    %s3102 = scalar_lea.vmem %s4, 96
    %v3103 = vld [vmem:[%s3102] sm:$0xff]
    %v3104 = vld [vmem:[%s3102 + $0x8] sm:$0xff]
    %v3105 = vld [vmem:[%s3102 + $0x10] sm:$0xff]
    %v3106 = vld [vmem:[%s3102 + $0x18] sm:$0xff]
    %v3108 = vsel %vm2505, %v3103, 0
    %v3111 = vsel %vm2505, %v3104, 0
    %v3114 = vsel %vm2505, %v3105, 0
    %v3117 = vsel %vm2505, %v3106, 0
    %3119 = vmatprep.subr.mxu0 0.0
    %3120 = vmatpush1.msra.mxu0 %v2440
    %3121 = vmatprep.subr.mxu0 0.0
    %3122 = vmatpush1.msra.mxu0 %v2441
    %3123 = vmatprep.subr.mxu0 0.0
    %3124 = vmatpush1.msra.mxu0 %v2442
    %3125 = vmatprep.subr.mxu0 0.0
    %3126 = vmatpush1.msra.mxu0 %v2443
    %3127 = vmatprep.subr.mxu0 0.0
    %3128 = vmatpush1.msra.mxu0 %v2444
    %3129 = vmatprep.subr.mxu0 0.0
    %3130 = vmatpush1.msra.mxu0 %v2445
    %3131 = vmatprep.subr.mxu0 0.0
    %3132 = vmatpush1.msra.mxu0 %v2446
    %3133 = vmatprep.subr.mxu0 0.0
    %3134 = vmatpush1.msra.mxu0 %v2447
    %3135 = vmatprep.subr.mxu0 0.0
    %3136 = vmatpush1.msra.mxu0 0.0
    %3137 = vmatprep.subr.mxu0 0.0
    %3138 = vmatpush1.msra.mxu0 0.0
    %3139 = vmatprep.subr.mxu0 0.0
    %3140 = vmatpush1.msra.mxu0 0.0
    %3141 = vmatprep.subr.mxu0 0.0
    %3142 = vmatpush1.msra.mxu0 0.0
    %3143 = vmatprep.subr.mxu0 0.0
    %3144 = vmatpush1.msra.mxu0 0.0
    %3145 = vmatprep.subr.mxu0 0.0
    %3146 = vmatpush1.msra.mxu0 0.0
    %3147 = vmatprep.subr.mxu0 0.0
    %3148 = vmatpush1.msra.mxu0 0.0
    %3149 = vmatprep.subr.mxu0 0.0
    %3150 = vmatpush1.msra.mxu0 0.0
    %3151 = vmatprep.subr.mxu0 0.0
    %3152 = vmatpush1.msra.mxu0 0.0
    %3153 = vmatprep.subr.mxu0 0.0
    %3154 = vmatpush1.msra.mxu0 0.0
    %3155 = vmatprep.subr.mxu0 0.0
    %3156 = vmatpush1.msra.mxu0 0.0
    %3157 = vmatprep.subr.mxu0 0.0
    %3158 = vmatpush1.msra.mxu0 0.0
    %3159 = vmatprep.subr.mxu0 0.0
    %3160 = vmatpush1.msra.mxu0 0.0
    %3161 = vmatprep.subr.mxu0 0.0
    %3162 = vmatpush1.msra.mxu0 0.0
    %3163 = vmatprep.subr.mxu0 0.0
    %3164 = vmatpush1.msra.mxu0 0.0
    %3165 = vmatprep.subr.mxu0 0.0
    %3166 = vmatpush1.msra.mxu0 0.0
    %3167 = vmatprep.subr.mxu0 0.0
    %3168 = vmatpush1.msra.mxu0 0.0
    %3169 = vmatprep.subr.mxu0 0.0
    %3170 = vmatpush1.msra.mxu0 0.0
    %3171 = vmatprep.subr.mxu0 0.0
    %3172 = vmatpush1.msra.mxu0 0.0
    %3173 = vmatprep.subr.mxu0 0.0
    %3174 = vmatpush1.msra.mxu0 0.0
    %3175 = vmatprep.subr.mxu0 0.0
    %3176 = vmatpush1.msra.mxu0 0.0
    %3177 = vmatprep.subr.mxu0 0.0
    %3178 = vmatpush1.msra.mxu0 0.0
    %3179 = vmatprep.subr.mxu0 0.0
    %3180 = vmatpush1.msra.mxu0 0.0
    %3181 = vmatprep.subr.mxu0 0.0
    %3182 = vmatpush1.msra.mxu0 0.0
    %3183 = vmatprep.mubr.f32.mxu0 0.0
    %3184 = vmatmul.mubr.f32.gmra.mrb[0].mxu0 %v3108
    %v3185 = vpop.f32.mrb[0].mxu0
    %v3186 = vadd.f32 0.0, %v3185
    %v3187 = vpop.f32.mrb[0].mxu0
    %3188 = vmatprep.mubr.f32.mxu0 0.0
    %3189 = vmatmul.mubr.f32.gmra.mrb[0].mxu0 %v3111
    %v3190 = vpop.f32.mrb[0].mxu0
    %v3191 = vadd.f32 0.0, %v3190
    %v3192 = vpop.f32.mrb[0].mxu0
    %3193 = vmatprep.mubr.f32.mxu0 0.0
    %3194 = vmatmul.mubr.f32.gmra.mrb[0].mxu0 %v3114
    %v3195 = vpop.f32.mrb[0].mxu0
    %v3196 = vadd.f32 0.0, %v3195
    %v3197 = vpop.f32.mrb[0].mxu0
    %3198 = vmatprep.mubr.f32.mxu0 0.0
    %3199 = vmatmul.mubr.f32.gmra.mrb[0].mxu0 %v3117
    %v3200 = vpop.f32.mrb[0].mxu0
    %v3201 = vadd.f32 0.0, %v3200
    %v3202 = vpop.f32.mrb[0].mxu0
    %3203 = vdwg.mxu0
    %v3205 = vsel %vm2103, %v3186, 0
    %v3208 = vsel %vm2103, %v3191, 0
    %v3211 = vsel %vm2103, %v3196, 0
    %v3214 = vsel %vm2103, %v3201, 0
    %3216 = vmatprep.subr.mxu0 0.0
    %3217 = vmatpush1.msra.mxu0 %v66
    %3218 = vmatprep.subr.mxu0 0.0
    %3219 = vmatpush1.msra.mxu0 %v2500
    %3220 = vmatprep.subr.mxu0 0.0
    %3221 = vmatpush1.msra.mxu0 0.0
    %3222 = vmatprep.subr.mxu0 0.0
    %3223 = vmatpush1.msra.mxu0 0.0
    %3224 = vmatprep.subr.mxu0 0.0
    %3225 = vmatpush1.msra.mxu0 0.0
    %3226 = vmatprep.subr.mxu0 0.0
    %3227 = vmatpush1.msra.mxu0 0.0
    %3228 = vmatprep.subr.mxu0 0.0
    %3229 = vmatpush1.msra.mxu0 0.0
    %3230 = vmatprep.subr.mxu0 0.0
    %3231 = vmatpush1.msra.mxu0 0.0
    %3232 = vmatprep.subr.mxu0 0.0
    %3233 = vmatpush1.msra.mxu0 0.0
    %3234 = vmatprep.subr.mxu0 0.0
    %3235 = vmatpush1.msra.mxu0 0.0
    %3236 = vmatprep.subr.mxu0 0.0
    %3237 = vmatpush1.msra.mxu0 0.0
    %3238 = vmatprep.subr.mxu0 0.0
    %3239 = vmatpush1.msra.mxu0 0.0
    %3240 = vmatprep.subr.mxu0 0.0
    %3241 = vmatpush1.msra.mxu0 0.0
    %3242 = vmatprep.subr.mxu0 0.0
    %3243 = vmatpush1.msra.mxu0 0.0
    %3244 = vmatprep.subr.mxu0 0.0
    %3245 = vmatpush1.msra.mxu0 0.0
    %3246 = vmatprep.subr.mxu0 0.0
    %3247 = vmatpush1.msra.mxu0 0.0
    %3248 = vmatprep.subr.mxu0 0.0
    %3249 = vmatpush1.msra.mxu0 0.0
    %3250 = vmatprep.subr.mxu0 0.0
    %3251 = vmatpush1.msra.mxu0 0.0
    %3252 = vmatprep.subr.mxu0 0.0
    %3253 = vmatpush1.msra.mxu0 0.0
    %3254 = vmatprep.subr.mxu0 0.0
    %3255 = vmatpush1.msra.mxu0 0.0
    %3256 = vmatprep.subr.mxu0 0.0
    %3257 = vmatpush1.msra.mxu0 0.0
    %3258 = vmatprep.subr.mxu0 0.0
    %3259 = vmatpush1.msra.mxu0 0.0
    %3260 = vmatprep.subr.mxu0 0.0
    %3261 = vmatpush1.msra.mxu0 0.0
    %3262 = vmatprep.subr.mxu0 0.0
    %3263 = vmatpush1.msra.mxu0 0.0
    %3264 = vmatprep.subr.mxu0 0.0
    %3265 = vmatpush1.msra.mxu0 0.0
    %3266 = vmatprep.subr.mxu0 0.0
    %3267 = vmatpush1.msra.mxu0 0.0
    %3268 = vmatprep.subr.mxu0 0.0
    %3269 = vmatpush1.msra.mxu0 0.0
    %3270 = vmatprep.subr.mxu0 0.0
    %3271 = vmatpush1.msra.mxu0 0.0
    %3272 = vmatprep.subr.mxu0 0.0
    %3273 = vmatpush1.msra.mxu0 0.0
    %3274 = vmatprep.subr.mxu0 0.0
    %3275 = vmatpush1.msra.mxu0 0.0
    %3276 = vmatprep.subr.mxu0 0.0
    %3277 = vmatpush1.msra.mxu0 0.0
    %3278 = vmatprep.subr.mxu0 0.0
    %3279 = vmatpush1.msra.mxu0 0.0
    %3280 = vmatprep.mubr.f32.mxu0 0.0
    %3281 = vmatmul.mubr.f32.gmra.mrb[0].mxu0 %v3205
    %v3282 = vpop.f32.mrb[0].mxu0
    %v3283 = vadd.f32 0.0, %v3282
    %v3284 = vpop.f32.mrb[0].mxu0
    %3285 = vmatprep.mubr.f32.mxu0 0.0
    %3286 = vmatmul.mubr.f32.gmra.mrb[0].mxu0 %v3208
    %v3287 = vpop.f32.mrb[0].mxu0
    %v3288 = vadd.f32 0.0, %v3287
    %v3289 = vpop.f32.mrb[0].mxu0
    %3290 = vmatprep.mubr.f32.mxu0 0.0
    %3291 = vmatmul.mubr.f32.gmra.mrb[0].mxu0 %v3211
    %v3292 = vpop.f32.mrb[0].mxu0
    %v3293 = vadd.f32 0.0, %v3292
    %v3294 = vpop.f32.mrb[0].mxu0
    %3295 = vmatprep.mubr.f32.mxu0 0.0
    %3296 = vmatmul.mubr.f32.gmra.mrb[0].mxu0 %v3214
    %v3297 = vpop.f32.mrb[0].mxu0
    %v3298 = vadd.f32 0.0, %v3297
    %v3299 = vpop.f32.mrb[0].mxu0
    %3300 = vdwg.mxu0
    %v3301 = vadd.f32 %v3098, %v3283
    %v3302 = vadd.f32 %v3099, %v3288
    %v3303 = vadd.f32 %v3100, %v3293
    %v3304 = vadd.f32 %v3101, %v3298
    %3305 = vmatprep.subr.mxu0 0.0
    %3306 = vmatpush1.msra.mxu0 %v2480
    %3307 = vmatprep.subr.mxu0 0.0
    %3308 = vmatpush1.msra.mxu0 %v2481
    %3309 = vmatprep.subr.mxu0 0.0
    %3310 = vmatpush1.msra.mxu0 %v2482
    %3311 = vmatprep.subr.mxu0 0.0
    %3312 = vmatpush1.msra.mxu0 %v2483
    %3313 = vmatprep.subr.mxu0 0.0
    %3314 = vmatpush1.msra.mxu0 %v2484
    %3315 = vmatprep.subr.mxu0 0.0
    %3316 = vmatpush1.msra.mxu0 %v2485
    %3317 = vmatprep.subr.mxu0 0.0
    %3318 = vmatpush1.msra.mxu0 %v2486
    %3319 = vmatprep.subr.mxu0 0.0
    %3320 = vmatpush1.msra.mxu0 %v2487
    %3321 = vmatprep.subr.mxu0 0.0
    %3322 = vmatpush1.msra.mxu0 0.0
    %3323 = vmatprep.subr.mxu0 0.0
    %3324 = vmatpush1.msra.mxu0 0.0
    %3325 = vmatprep.subr.mxu0 0.0
    %3326 = vmatpush1.msra.mxu0 0.0
    %3327 = vmatprep.subr.mxu0 0.0
    %3328 = vmatpush1.msra.mxu0 0.0
    %3329 = vmatprep.subr.mxu0 0.0
    %3330 = vmatpush1.msra.mxu0 0.0
    %3331 = vmatprep.subr.mxu0 0.0
    %3332 = vmatpush1.msra.mxu0 0.0
    %3333 = vmatprep.subr.mxu0 0.0
    %3334 = vmatpush1.msra.mxu0 0.0
    %3335 = vmatprep.subr.mxu0 0.0
    %3336 = vmatpush1.msra.mxu0 0.0
    %3337 = vmatprep.subr.mxu0 0.0
    %3338 = vmatpush1.msra.mxu0 0.0
    %3339 = vmatprep.subr.mxu0 0.0
    %3340 = vmatpush1.msra.mxu0 0.0
    %3341 = vmatprep.subr.mxu0 0.0
    %3342 = vmatpush1.msra.mxu0 0.0
    %3343 = vmatprep.subr.mxu0 0.0
    %3344 = vmatpush1.msra.mxu0 0.0
    %3345 = vmatprep.subr.mxu0 0.0
    %3346 = vmatpush1.msra.mxu0 0.0
    %3347 = vmatprep.subr.mxu0 0.0
    %3348 = vmatpush1.msra.mxu0 0.0
    %3349 = vmatprep.subr.mxu0 0.0
    %3350 = vmatpush1.msra.mxu0 0.0
    %3351 = vmatprep.subr.mxu0 0.0
    %3352 = vmatpush1.msra.mxu0 0.0
    %3353 = vmatprep.subr.mxu0 0.0
    %3354 = vmatpush1.msra.mxu0 0.0
    %3355 = vmatprep.subr.mxu0 0.0
    %3356 = vmatpush1.msra.mxu0 0.0
    %3357 = vmatprep.subr.mxu0 0.0
    %3358 = vmatpush1.msra.mxu0 0.0
    %3359 = vmatprep.subr.mxu0 0.0
    %3360 = vmatpush1.msra.mxu0 0.0
    %3361 = vmatprep.subr.mxu0 0.0
    %3362 = vmatpush1.msra.mxu0 0.0
    %3363 = vmatprep.subr.mxu0 0.0
    %3364 = vmatpush1.msra.mxu0 0.0
    %3365 = vmatprep.subr.mxu0 0.0
    %3366 = vmatpush1.msra.mxu0 0.0
    %3367 = vmatprep.subr.mxu0 0.0
    %3368 = vmatpush1.msra.mxu0 0.0
    %3369 = vmatprep.mubr.f32.mxu0 0.0
    %3370 = vmatmul.mubr.f32.gmra.mrb[0].mxu0 %v2507
    %v3371 = vpop.f32.mrb[0].mxu0
    %v3372 = vadd.f32 0.0, %v3371
    %v3373 = vpop.f32.mrb[0].mxu0
    %3374 = vmatprep.mubr.f32.mxu0 0.0
    %3375 = vmatmul.mubr.f32.gmra.mrb[0].mxu0 %v2510
    %v3376 = vpop.f32.mrb[0].mxu0
    %v3377 = vadd.f32 0.0, %v3376
    %v3378 = vpop.f32.mrb[0].mxu0
    %3379 = vmatprep.mubr.f32.mxu0 0.0
    %3380 = vmatmul.mubr.f32.gmra.mrb[0].mxu0 %v2513
    %v3381 = vpop.f32.mrb[0].mxu0
    %v3382 = vadd.f32 0.0, %v3381
    %v3383 = vpop.f32.mrb[0].mxu0
    %3384 = vmatprep.mubr.f32.mxu0 0.0
    %3385 = vmatmul.mubr.f32.gmra.mrb[0].mxu0 %v2516
    %v3386 = vpop.f32.mrb[0].mxu0
    %v3387 = vadd.f32 0.0, %v3386
    %v3388 = vpop.f32.mrb[0].mxu0
    %3389 = vdwg.mxu0
    %3390 = vmatprep.subr.mxu0 0.0
    %3391 = vmatpush1.msra.mxu0 %v2480
    %3392 = vmatprep.subr.mxu0 0.0
    %3393 = vmatpush1.msra.mxu0 %v2481
    %3394 = vmatprep.subr.mxu0 0.0
    %3395 = vmatpush1.msra.mxu0 %v2482
    %3396 = vmatprep.subr.mxu0 0.0
    %3397 = vmatpush1.msra.mxu0 %v2483
    %3398 = vmatprep.subr.mxu0 0.0
    %3399 = vmatpush1.msra.mxu0 %v2484
    %3400 = vmatprep.subr.mxu0 0.0
    %3401 = vmatpush1.msra.mxu0 %v2485
    %3402 = vmatprep.subr.mxu0 0.0
    %3403 = vmatpush1.msra.mxu0 %v2486
    %3404 = vmatprep.subr.mxu0 0.0
    %3405 = vmatpush1.msra.mxu0 %v2487
    %3406 = vmatprep.subr.mxu0 0.0
    %3407 = vmatpush1.msra.mxu0 0.0
    %3408 = vmatprep.subr.mxu0 0.0
    %3409 = vmatpush1.msra.mxu0 0.0
    %3410 = vmatprep.subr.mxu0 0.0
    %3411 = vmatpush1.msra.mxu0 0.0
    %3412 = vmatprep.subr.mxu0 0.0
    %3413 = vmatpush1.msra.mxu0 0.0
    %3414 = vmatprep.subr.mxu0 0.0
    %3415 = vmatpush1.msra.mxu0 0.0
    %3416 = vmatprep.subr.mxu0 0.0
    %3417 = vmatpush1.msra.mxu0 0.0
    %3418 = vmatprep.subr.mxu0 0.0
    %3419 = vmatpush1.msra.mxu0 0.0
    %3420 = vmatprep.subr.mxu0 0.0
    %3421 = vmatpush1.msra.mxu0 0.0
    %3422 = vmatprep.subr.mxu0 0.0
    %3423 = vmatpush1.msra.mxu0 0.0
    %3424 = vmatprep.subr.mxu0 0.0
    %3425 = vmatpush1.msra.mxu0 0.0
    %3426 = vmatprep.subr.mxu0 0.0
    %3427 = vmatpush1.msra.mxu0 0.0
    %3428 = vmatprep.subr.mxu0 0.0
    %3429 = vmatpush1.msra.mxu0 0.0
    %3430 = vmatprep.subr.mxu0 0.0
    %3431 = vmatpush1.msra.mxu0 0.0
    %3432 = vmatprep.subr.mxu0 0.0
    %3433 = vmatpush1.msra.mxu0 0.0
    %3434 = vmatprep.subr.mxu0 0.0
    %3435 = vmatpush1.msra.mxu0 0.0
    %3436 = vmatprep.subr.mxu0 0.0
    %3437 = vmatpush1.msra.mxu0 0.0
    %3438 = vmatprep.subr.mxu0 0.0
    %3439 = vmatpush1.msra.mxu0 0.0
    %3440 = vmatprep.subr.mxu0 0.0
    %3441 = vmatpush1.msra.mxu0 0.0
    %3442 = vmatprep.subr.mxu0 0.0
    %3443 = vmatpush1.msra.mxu0 0.0
    %3444 = vmatprep.subr.mxu0 0.0
    %3445 = vmatpush1.msra.mxu0 0.0
    %3446 = vmatprep.subr.mxu0 0.0
    %3447 = vmatpush1.msra.mxu0 0.0
    %3448 = vmatprep.subr.mxu0 0.0
    %3449 = vmatpush1.msra.mxu0 0.0
    %3450 = vmatprep.subr.mxu0 0.0
    %3451 = vmatpush1.msra.mxu0 0.0
    %3452 = vmatprep.subr.mxu0 0.0
    %3453 = vmatpush1.msra.mxu0 0.0
    %3454 = vmatprep.mubr.f32.mxu0 0.0
    %3455 = vmatmul.mubr.f32.gmra.mrb[0].mxu0 %v2609
    %v3456 = vpop.f32.mrb[0].mxu0
    %v3457 = vadd.f32 0.0, %v3456
    %v3458 = vpop.f32.mrb[0].mxu0
    %3459 = vmatprep.mubr.f32.mxu0 0.0
    %3460 = vmatmul.mubr.f32.gmra.mrb[0].mxu0 %v2612
    %v3461 = vpop.f32.mrb[0].mxu0
    %v3462 = vadd.f32 0.0, %v3461
    %v3463 = vpop.f32.mrb[0].mxu0
    %3464 = vmatprep.mubr.f32.mxu0 0.0
    %3465 = vmatmul.mubr.f32.gmra.mrb[0].mxu0 %v2615
    %v3466 = vpop.f32.mrb[0].mxu0
    %v3467 = vadd.f32 0.0, %v3466
    %v3468 = vpop.f32.mrb[0].mxu0
    %3469 = vmatprep.mubr.f32.mxu0 0.0
    %3470 = vmatmul.mubr.f32.gmra.mrb[0].mxu0 %v2618
    %v3471 = vpop.f32.mrb[0].mxu0
    %v3472 = vadd.f32 0.0, %v3471
    %v3473 = vpop.f32.mrb[0].mxu0
    %3474 = vdwg.mxu0
    %v3476 = vsel %vm2103, %v3457, 0
    %v3479 = vsel %vm2103, %v3462, 0
    %v3482 = vsel %vm2103, %v3467, 0
    %v3485 = vsel %vm2103, %v3472, 0
    %3487 = vmatprep.subr.mxu0 0.0
    %3488 = vmatpush1.msra.mxu0 %v60
    %3489 = vmatprep.subr.mxu0 0.0
    %3490 = vmatpush1.msra.mxu0 %v2494
    %3491 = vmatprep.subr.mxu0 0.0
    %3492 = vmatpush1.msra.mxu0 0.0
    %3493 = vmatprep.subr.mxu0 0.0
    %3494 = vmatpush1.msra.mxu0 0.0
    %3495 = vmatprep.subr.mxu0 0.0
    %3496 = vmatpush1.msra.mxu0 0.0
    %3497 = vmatprep.subr.mxu0 0.0
    %3498 = vmatpush1.msra.mxu0 0.0
    %3499 = vmatprep.subr.mxu0 0.0
    %3500 = vmatpush1.msra.mxu0 0.0
    %3501 = vmatprep.subr.mxu0 0.0
    %3502 = vmatpush1.msra.mxu0 0.0
    %3503 = vmatprep.subr.mxu0 0.0
    %3504 = vmatpush1.msra.mxu0 0.0
    %3505 = vmatprep.subr.mxu0 0.0
    %3506 = vmatpush1.msra.mxu0 0.0
    %3507 = vmatprep.subr.mxu0 0.0
    %3508 = vmatpush1.msra.mxu0 0.0
    %3509 = vmatprep.subr.mxu0 0.0
    %3510 = vmatpush1.msra.mxu0 0.0
    %3511 = vmatprep.subr.mxu0 0.0
    %3512 = vmatpush1.msra.mxu0 0.0
    %3513 = vmatprep.subr.mxu0 0.0
    %3514 = vmatpush1.msra.mxu0 0.0
    %3515 = vmatprep.subr.mxu0 0.0
    %3516 = vmatpush1.msra.mxu0 0.0
    %3517 = vmatprep.subr.mxu0 0.0
    %3518 = vmatpush1.msra.mxu0 0.0
    %3519 = vmatprep.subr.mxu0 0.0
    %3520 = vmatpush1.msra.mxu0 0.0
    %3521 = vmatprep.subr.mxu0 0.0
    %3522 = vmatpush1.msra.mxu0 0.0
    %3523 = vmatprep.subr.mxu0 0.0
    %3524 = vmatpush1.msra.mxu0 0.0
    %3525 = vmatprep.subr.mxu0 0.0
    %3526 = vmatpush1.msra.mxu0 0.0
    %3527 = vmatprep.subr.mxu0 0.0
    %3528 = vmatpush1.msra.mxu0 0.0
    %3529 = vmatprep.subr.mxu0 0.0
    %3530 = vmatpush1.msra.mxu0 0.0
    %3531 = vmatprep.subr.mxu0 0.0
    %3532 = vmatpush1.msra.mxu0 0.0
    %3533 = vmatprep.subr.mxu0 0.0
    %3534 = vmatpush1.msra.mxu0 0.0
    %3535 = vmatprep.subr.mxu0 0.0
    %3536 = vmatpush1.msra.mxu0 0.0
    %3537 = vmatprep.subr.mxu0 0.0
    %3538 = vmatpush1.msra.mxu0 0.0
    %3539 = vmatprep.subr.mxu0 0.0
    %3540 = vmatpush1.msra.mxu0 0.0
    %3541 = vmatprep.subr.mxu0 0.0
    %3542 = vmatpush1.msra.mxu0 0.0
    %3543 = vmatprep.subr.mxu0 0.0
    %3544 = vmatpush1.msra.mxu0 0.0
    %3545 = vmatprep.subr.mxu0 0.0
    %3546 = vmatpush1.msra.mxu0 0.0
    %3547 = vmatprep.subr.mxu0 0.0
    %3548 = vmatpush1.msra.mxu0 0.0
    %3549 = vmatprep.subr.mxu0 0.0
    %3550 = vmatpush1.msra.mxu0 0.0
    %3551 = vmatprep.mubr.f32.mxu0 0.0
    %3552 = vmatmul.mubr.f32.gmra.mrb[0].mxu0 %v3476
    %v3553 = vpop.f32.mrb[0].mxu0
    %v3554 = vadd.f32 0.0, %v3553
    %v3555 = vpop.f32.mrb[0].mxu0
    %3556 = vmatprep.mubr.f32.mxu0 0.0
    %3557 = vmatmul.mubr.f32.gmra.mrb[0].mxu0 %v3479
    %v3558 = vpop.f32.mrb[0].mxu0
    %v3559 = vadd.f32 0.0, %v3558
    %v3560 = vpop.f32.mrb[0].mxu0
    %3561 = vmatprep.mubr.f32.mxu0 0.0
    %3562 = vmatmul.mubr.f32.gmra.mrb[0].mxu0 %v3482
    %v3563 = vpop.f32.mrb[0].mxu0
    %v3564 = vadd.f32 0.0, %v3563
    %v3565 = vpop.f32.mrb[0].mxu0
    %3566 = vmatprep.mubr.f32.mxu0 0.0
    %3567 = vmatmul.mubr.f32.gmra.mrb[0].mxu0 %v3485
    %v3568 = vpop.f32.mrb[0].mxu0
    %v3569 = vadd.f32 0.0, %v3568
    %v3570 = vpop.f32.mrb[0].mxu0
    %3571 = vdwg.mxu0
    %v3573 = vsel %vm2103, %v3372, 0
    %v3576 = vsel %vm2103, %v3377, 0
    %v3579 = vsel %vm2103, %v3382, 0
    %v3582 = vsel %vm2103, %v3387, 0
    %3584 = vmatprep.subr.mxu0 0.0
    %3585 = vmatpush1.msra.mxu0 %v58
    %3586 = vmatprep.subr.mxu0 0.0
    %3587 = vmatpush1.msra.mxu0 %v2492
    %3588 = vmatprep.subr.mxu0 0.0
    %3589 = vmatpush1.msra.mxu0 0.0
    %3590 = vmatprep.subr.mxu0 0.0
    %3591 = vmatpush1.msra.mxu0 0.0
    %3592 = vmatprep.subr.mxu0 0.0
    %3593 = vmatpush1.msra.mxu0 0.0
    %3594 = vmatprep.subr.mxu0 0.0
    %3595 = vmatpush1.msra.mxu0 0.0
    %3596 = vmatprep.subr.mxu0 0.0
    %3597 = vmatpush1.msra.mxu0 0.0
    %3598 = vmatprep.subr.mxu0 0.0
    %3599 = vmatpush1.msra.mxu0 0.0
    %3600 = vmatprep.subr.mxu0 0.0
    %3601 = vmatpush1.msra.mxu0 0.0
    %3602 = vmatprep.subr.mxu0 0.0
    %3603 = vmatpush1.msra.mxu0 0.0
    %3604 = vmatprep.subr.mxu0 0.0
    %3605 = vmatpush1.msra.mxu0 0.0
    %3606 = vmatprep.subr.mxu0 0.0
    %3607 = vmatpush1.msra.mxu0 0.0
    %3608 = vmatprep.subr.mxu0 0.0
    %3609 = vmatpush1.msra.mxu0 0.0
    %3610 = vmatprep.subr.mxu0 0.0
    %3611 = vmatpush1.msra.mxu0 0.0
    %3612 = vmatprep.subr.mxu0 0.0
    %3613 = vmatpush1.msra.mxu0 0.0
    %3614 = vmatprep.subr.mxu0 0.0
    %3615 = vmatpush1.msra.mxu0 0.0
    %3616 = vmatprep.subr.mxu0 0.0
    %3617 = vmatpush1.msra.mxu0 0.0
    %3618 = vmatprep.subr.mxu0 0.0
    %3619 = vmatpush1.msra.mxu0 0.0
    %3620 = vmatprep.subr.mxu0 0.0
    %3621 = vmatpush1.msra.mxu0 0.0
    %3622 = vmatprep.subr.mxu0 0.0
    %3623 = vmatpush1.msra.mxu0 0.0
    %3624 = vmatprep.subr.mxu0 0.0
    %3625 = vmatpush1.msra.mxu0 0.0
    %3626 = vmatprep.subr.mxu0 0.0
    %3627 = vmatpush1.msra.mxu0 0.0
    %3628 = vmatprep.subr.mxu0 0.0
    %3629 = vmatpush1.msra.mxu0 0.0
    %3630 = vmatprep.subr.mxu0 0.0
    %3631 = vmatpush1.msra.mxu0 0.0
    %3632 = vmatprep.subr.mxu0 0.0
    %3633 = vmatpush1.msra.mxu0 0.0
    %3634 = vmatprep.subr.mxu0 0.0
    %3635 = vmatpush1.msra.mxu0 0.0
    %3636 = vmatprep.subr.mxu0 0.0
    %3637 = vmatpush1.msra.mxu0 0.0
    %3638 = vmatprep.subr.mxu0 0.0
    %3639 = vmatpush1.msra.mxu0 0.0
    %3640 = vmatprep.subr.mxu0 0.0
    %3641 = vmatpush1.msra.mxu0 0.0
    %3642 = vmatprep.subr.mxu0 0.0
    %3643 = vmatpush1.msra.mxu0 0.0
    %3644 = vmatprep.subr.mxu0 0.0
    %3645 = vmatpush1.msra.mxu0 0.0
    %3646 = vmatprep.subr.mxu0 0.0
    %3647 = vmatpush1.msra.mxu0 0.0
    %3648 = vmatprep.mubr.f32.mxu0 0.0
    %3649 = vmatmul.mubr.f32.gmra.mrb[0].mxu0 %v3573
    %v3650 = vpop.f32.mrb[0].mxu0
    %v3651 = vadd.f32 %v3554, %v3650
    %v3652 = vpop.f32.mrb[0].mxu0
    %3653 = vmatprep.mubr.f32.mxu0 0.0
    %3654 = vmatmul.mubr.f32.gmra.mrb[0].mxu0 %v3576
    %v3655 = vpop.f32.mrb[0].mxu0
    %v3656 = vadd.f32 %v3559, %v3655
    %v3657 = vpop.f32.mrb[0].mxu0
    %3658 = vmatprep.mubr.f32.mxu0 0.0
    %3659 = vmatmul.mubr.f32.gmra.mrb[0].mxu0 %v3579
    %v3660 = vpop.f32.mrb[0].mxu0
    %v3661 = vadd.f32 %v3564, %v3660
    %v3662 = vpop.f32.mrb[0].mxu0
    %3663 = vmatprep.mubr.f32.mxu0 0.0
    %3664 = vmatmul.mubr.f32.gmra.mrb[0].mxu0 %v3582
    %v3665 = vpop.f32.mrb[0].mxu0
    %v3666 = vadd.f32 %v3569, %v3665
    %v3667 = vpop.f32.mrb[0].mxu0
    %3668 = vdwg.mxu0
    %3669 = vmatprep.subr.mxu0 0.0
    %3670 = vmatpush1.msra.mxu0 %v2480
    %3671 = vmatprep.subr.mxu0 0.0
    %3672 = vmatpush1.msra.mxu0 %v2481
    %3673 = vmatprep.subr.mxu0 0.0
    %3674 = vmatpush1.msra.mxu0 %v2482
    %3675 = vmatprep.subr.mxu0 0.0
    %3676 = vmatpush1.msra.mxu0 %v2483
    %3677 = vmatprep.subr.mxu0 0.0
    %3678 = vmatpush1.msra.mxu0 %v2484
    %3679 = vmatprep.subr.mxu0 0.0
    %3680 = vmatpush1.msra.mxu0 %v2485
    %3681 = vmatprep.subr.mxu0 0.0
    %3682 = vmatpush1.msra.mxu0 %v2486
    %3683 = vmatprep.subr.mxu0 0.0
    %3684 = vmatpush1.msra.mxu0 %v2487
    %3685 = vmatprep.subr.mxu0 0.0
    %3686 = vmatpush1.msra.mxu0 0.0
    %3687 = vmatprep.subr.mxu0 0.0
    %3688 = vmatpush1.msra.mxu0 0.0
    %3689 = vmatprep.subr.mxu0 0.0
    %3690 = vmatpush1.msra.mxu0 0.0
    %3691 = vmatprep.subr.mxu0 0.0
    %3692 = vmatpush1.msra.mxu0 0.0
    %3693 = vmatprep.subr.mxu0 0.0
    %3694 = vmatpush1.msra.mxu0 0.0
    %3695 = vmatprep.subr.mxu0 0.0
    %3696 = vmatpush1.msra.mxu0 0.0
    %3697 = vmatprep.subr.mxu0 0.0
    %3698 = vmatpush1.msra.mxu0 0.0
    %3699 = vmatprep.subr.mxu0 0.0
    %3700 = vmatpush1.msra.mxu0 0.0
    %3701 = vmatprep.subr.mxu0 0.0
    %3702 = vmatpush1.msra.mxu0 0.0
    %3703 = vmatprep.subr.mxu0 0.0
    %3704 = vmatpush1.msra.mxu0 0.0
    %3705 = vmatprep.subr.mxu0 0.0
    %3706 = vmatpush1.msra.mxu0 0.0
    %3707 = vmatprep.subr.mxu0 0.0
    %3708 = vmatpush1.msra.mxu0 0.0
    %3709 = vmatprep.subr.mxu0 0.0
    %3710 = vmatpush1.msra.mxu0 0.0
    %3711 = vmatprep.subr.mxu0 0.0
    %3712 = vmatpush1.msra.mxu0 0.0
    %3713 = vmatprep.subr.mxu0 0.0
    %3714 = vmatpush1.msra.mxu0 0.0
    %3715 = vmatprep.subr.mxu0 0.0
    %3716 = vmatpush1.msra.mxu0 0.0
    %3717 = vmatprep.subr.mxu0 0.0
    %3718 = vmatpush1.msra.mxu0 0.0
    %3719 = vmatprep.subr.mxu0 0.0
    %3720 = vmatpush1.msra.mxu0 0.0
    %3721 = vmatprep.subr.mxu0 0.0
    %3722 = vmatpush1.msra.mxu0 0.0
    %3723 = vmatprep.subr.mxu0 0.0
    %3724 = vmatpush1.msra.mxu0 0.0
    %3725 = vmatprep.subr.mxu0 0.0
    %3726 = vmatpush1.msra.mxu0 0.0
    %3727 = vmatprep.subr.mxu0 0.0
    %3728 = vmatpush1.msra.mxu0 0.0
    %3729 = vmatprep.subr.mxu0 0.0
    %3730 = vmatpush1.msra.mxu0 0.0
    %3731 = vmatprep.subr.mxu0 0.0
    %3732 = vmatpush1.msra.mxu0 0.0
    %3733 = vmatprep.mubr.f32.mxu0 0.0
    %3734 = vmatmul.mubr.f32.gmra.mrb[0].mxu0 %v2905
    %v3735 = vpop.f32.mrb[0].mxu0
    %v3736 = vadd.f32 0.0, %v3735
    %v3737 = vpop.f32.mrb[0].mxu0
    %3738 = vmatprep.mubr.f32.mxu0 0.0
    %3739 = vmatmul.mubr.f32.gmra.mrb[0].mxu0 %v2908
    %v3740 = vpop.f32.mrb[0].mxu0
    %v3741 = vadd.f32 0.0, %v3740
    %v3742 = vpop.f32.mrb[0].mxu0
    %3743 = vmatprep.mubr.f32.mxu0 0.0
    %3744 = vmatmul.mubr.f32.gmra.mrb[0].mxu0 %v2911
    %v3745 = vpop.f32.mrb[0].mxu0
    %v3746 = vadd.f32 0.0, %v3745
    %v3747 = vpop.f32.mrb[0].mxu0
    %3748 = vmatprep.mubr.f32.mxu0 0.0
    %3749 = vmatmul.mubr.f32.gmra.mrb[0].mxu0 %v2914
    %v3750 = vpop.f32.mrb[0].mxu0
    %v3751 = vadd.f32 0.0, %v3750
    %v3752 = vpop.f32.mrb[0].mxu0
    %3753 = vdwg.mxu0
    %v3755 = vsel %vm2103, %v3736, 0
    %v3758 = vsel %vm2103, %v3741, 0
    %v3761 = vsel %vm2103, %v3746, 0
    %v3764 = vsel %vm2103, %v3751, 0
    %3766 = vmatprep.subr.mxu0 0.0
    %3767 = vmatpush1.msra.mxu0 %v63
    %3768 = vmatprep.subr.mxu0 0.0
    %3769 = vmatpush1.msra.mxu0 %v2497
    %3770 = vmatprep.subr.mxu0 0.0
    %3771 = vmatpush1.msra.mxu0 0.0
    %3772 = vmatprep.subr.mxu0 0.0
    %3773 = vmatpush1.msra.mxu0 0.0
    %3774 = vmatprep.subr.mxu0 0.0
    %3775 = vmatpush1.msra.mxu0 0.0
    %3776 = vmatprep.subr.mxu0 0.0
    %3777 = vmatpush1.msra.mxu0 0.0
    %3778 = vmatprep.subr.mxu0 0.0
    %3779 = vmatpush1.msra.mxu0 0.0
    %3780 = vmatprep.subr.mxu0 0.0
    %3781 = vmatpush1.msra.mxu0 0.0
    %3782 = vmatprep.subr.mxu0 0.0
    %3783 = vmatpush1.msra.mxu0 0.0
    %3784 = vmatprep.subr.mxu0 0.0
    %3785 = vmatpush1.msra.mxu0 0.0
    %3786 = vmatprep.subr.mxu0 0.0
    %3787 = vmatpush1.msra.mxu0 0.0
    %3788 = vmatprep.subr.mxu0 0.0
    %3789 = vmatpush1.msra.mxu0 0.0
    %3790 = vmatprep.subr.mxu0 0.0
    %3791 = vmatpush1.msra.mxu0 0.0
    %3792 = vmatprep.subr.mxu0 0.0
    %3793 = vmatpush1.msra.mxu0 0.0
    %3794 = vmatprep.subr.mxu0 0.0
    %3795 = vmatpush1.msra.mxu0 0.0
    %3796 = vmatprep.subr.mxu0 0.0
    %3797 = vmatpush1.msra.mxu0 0.0
    %3798 = vmatprep.subr.mxu0 0.0
    %3799 = vmatpush1.msra.mxu0 0.0
    %3800 = vmatprep.subr.mxu0 0.0
    %3801 = vmatpush1.msra.mxu0 0.0
    %3802 = vmatprep.subr.mxu0 0.0
    %3803 = vmatpush1.msra.mxu0 0.0
    %3804 = vmatprep.subr.mxu0 0.0
    %3805 = vmatpush1.msra.mxu0 0.0
    %3806 = vmatprep.subr.mxu0 0.0
    %3807 = vmatpush1.msra.mxu0 0.0
    %3808 = vmatprep.subr.mxu0 0.0
    %3809 = vmatpush1.msra.mxu0 0.0
    %3810 = vmatprep.subr.mxu0 0.0
    %3811 = vmatpush1.msra.mxu0 0.0
    %3812 = vmatprep.subr.mxu0 0.0
    %3813 = vmatpush1.msra.mxu0 0.0
    %3814 = vmatprep.subr.mxu0 0.0
    %3815 = vmatpush1.msra.mxu0 0.0
    %3816 = vmatprep.subr.mxu0 0.0
    %3817 = vmatpush1.msra.mxu0 0.0
    %3818 = vmatprep.subr.mxu0 0.0
    %3819 = vmatpush1.msra.mxu0 0.0
    %3820 = vmatprep.subr.mxu0 0.0
    %3821 = vmatpush1.msra.mxu0 0.0
    %3822 = vmatprep.subr.mxu0 0.0
    %3823 = vmatpush1.msra.mxu0 0.0
    %3824 = vmatprep.subr.mxu0 0.0
    %3825 = vmatpush1.msra.mxu0 0.0
    %3826 = vmatprep.subr.mxu0 0.0
    %3827 = vmatpush1.msra.mxu0 0.0
    %3828 = vmatprep.subr.mxu0 0.0
    %3829 = vmatpush1.msra.mxu0 0.0
    %3830 = vmatprep.mubr.f32.mxu0 0.0
    %3831 = vmatmul.mubr.f32.gmra.mrb[0].mxu0 %v3755
    %v3832 = vpop.f32.mrb[0].mxu0
    %v3833 = vadd.f32 0.0, %v3832
    %v3834 = vpop.f32.mrb[0].mxu0
    %3835 = vmatprep.mubr.f32.mxu0 0.0
    %3836 = vmatmul.mubr.f32.gmra.mrb[0].mxu0 %v3758
    %v3837 = vpop.f32.mrb[0].mxu0
    %v3838 = vadd.f32 0.0, %v3837
    %v3839 = vpop.f32.mrb[0].mxu0
    %3840 = vmatprep.mubr.f32.mxu0 0.0
    %3841 = vmatmul.mubr.f32.gmra.mrb[0].mxu0 %v3761
    %v3842 = vpop.f32.mrb[0].mxu0
    %v3843 = vadd.f32 0.0, %v3842
    %v3844 = vpop.f32.mrb[0].mxu0
    %3845 = vmatprep.mubr.f32.mxu0 0.0
    %3846 = vmatmul.mubr.f32.gmra.mrb[0].mxu0 %v3764
    %v3847 = vpop.f32.mrb[0].mxu0
    %v3848 = vadd.f32 0.0, %v3847
    %v3849 = vpop.f32.mrb[0].mxu0
    %3850 = vdwg.mxu0
    %v3851 = vadd.f32 %v3651, %v3833
    %v3852 = vadd.f32 %v3656, %v3838
    %v3853 = vadd.f32 %v3661, %v3843
    %v3854 = vadd.f32 %v3666, %v3848
    %3855 = vmatprep.subr.mxu0 0.0
    %3856 = vmatpush1.msra.mxu0 %v2480
    %3857 = vmatprep.subr.mxu0 0.0
    %3858 = vmatpush1.msra.mxu0 %v2481
    %3859 = vmatprep.subr.mxu0 0.0
    %3860 = vmatpush1.msra.mxu0 %v2482
    %3861 = vmatprep.subr.mxu0 0.0
    %3862 = vmatpush1.msra.mxu0 %v2483
    %3863 = vmatprep.subr.mxu0 0.0
    %3864 = vmatpush1.msra.mxu0 %v2484
    %3865 = vmatprep.subr.mxu0 0.0
    %3866 = vmatpush1.msra.mxu0 %v2485
    %3867 = vmatprep.subr.mxu0 0.0
    %3868 = vmatpush1.msra.mxu0 %v2486
    %3869 = vmatprep.subr.mxu0 0.0
    %3870 = vmatpush1.msra.mxu0 %v2487
    %3871 = vmatprep.subr.mxu0 0.0
    %3872 = vmatpush1.msra.mxu0 0.0
    %3873 = vmatprep.subr.mxu0 0.0
    %3874 = vmatpush1.msra.mxu0 0.0
    %3875 = vmatprep.subr.mxu0 0.0
    %3876 = vmatpush1.msra.mxu0 0.0
    %3877 = vmatprep.subr.mxu0 0.0
    %3878 = vmatpush1.msra.mxu0 0.0
    %3879 = vmatprep.subr.mxu0 0.0
    %3880 = vmatpush1.msra.mxu0 0.0
    %3881 = vmatprep.subr.mxu0 0.0
    %3882 = vmatpush1.msra.mxu0 0.0
    %3883 = vmatprep.subr.mxu0 0.0
    %3884 = vmatpush1.msra.mxu0 0.0
    %3885 = vmatprep.subr.mxu0 0.0
    %3886 = vmatpush1.msra.mxu0 0.0
    %3887 = vmatprep.subr.mxu0 0.0
    %3888 = vmatpush1.msra.mxu0 0.0
    %3889 = vmatprep.subr.mxu0 0.0
    %3890 = vmatpush1.msra.mxu0 0.0
    %3891 = vmatprep.subr.mxu0 0.0
    %3892 = vmatpush1.msra.mxu0 0.0
    %3893 = vmatprep.subr.mxu0 0.0
    %3894 = vmatpush1.msra.mxu0 0.0
    %3895 = vmatprep.subr.mxu0 0.0
    %3896 = vmatpush1.msra.mxu0 0.0
    %3897 = vmatprep.subr.mxu0 0.0
    %3898 = vmatpush1.msra.mxu0 0.0
    %3899 = vmatprep.subr.mxu0 0.0
    %3900 = vmatpush1.msra.mxu0 0.0
    %3901 = vmatprep.subr.mxu0 0.0
    %3902 = vmatpush1.msra.mxu0 0.0
    %3903 = vmatprep.subr.mxu0 0.0
    %3904 = vmatpush1.msra.mxu0 0.0
    %3905 = vmatprep.subr.mxu0 0.0
    %3906 = vmatpush1.msra.mxu0 0.0
    %3907 = vmatprep.subr.mxu0 0.0
    %3908 = vmatpush1.msra.mxu0 0.0
    %3909 = vmatprep.subr.mxu0 0.0
    %3910 = vmatpush1.msra.mxu0 0.0
    %3911 = vmatprep.subr.mxu0 0.0
    %3912 = vmatpush1.msra.mxu0 0.0
    %3913 = vmatprep.subr.mxu0 0.0
    %3914 = vmatpush1.msra.mxu0 0.0
    %3915 = vmatprep.subr.mxu0 0.0
    %3916 = vmatpush1.msra.mxu0 0.0
    %3917 = vmatprep.subr.mxu0 0.0
    %3918 = vmatpush1.msra.mxu0 0.0
    %3919 = vmatprep.mubr.f32.mxu0 0.0
    %3920 = vmatmul.mubr.f32.gmra.mrb[0].mxu0 %v3108
    %v3921 = vpop.f32.mrb[0].mxu0
    %v3922 = vadd.f32 0.0, %v3921
    %v3923 = vpop.f32.mrb[0].mxu0
    %3924 = vmatprep.mubr.f32.mxu0 0.0
    %3925 = vmatmul.mubr.f32.gmra.mrb[0].mxu0 %v3111
    %v3926 = vpop.f32.mrb[0].mxu0
    %v3927 = vadd.f32 0.0, %v3926
    %v3928 = vpop.f32.mrb[0].mxu0
    %3929 = vmatprep.mubr.f32.mxu0 0.0
    %3930 = vmatmul.mubr.f32.gmra.mrb[0].mxu0 %v3114
    %v3931 = vpop.f32.mrb[0].mxu0
    %v3932 = vadd.f32 0.0, %v3931
    %v3933 = vpop.f32.mrb[0].mxu0
    %3934 = vmatprep.mubr.f32.mxu0 0.0
    %3935 = vmatmul.mubr.f32.gmra.mrb[0].mxu0 %v3117
    %v3936 = vpop.f32.mrb[0].mxu0
    %v3937 = vadd.f32 0.0, %v3936
    %v3938 = vpop.f32.mrb[0].mxu0
    %3939 = vdwg.mxu0
    %v3941 = vsel %vm2103, %v3922, 0
    %v3944 = vsel %vm2103, %v3927, 0
    %v3947 = vsel %vm2103, %v3932, 0
    %v3950 = vsel %vm2103, %v3937, 0
    %3952 = vmatprep.subr.mxu0 0.0
    %3953 = vmatpush1.msra.mxu0 %v66
    %3954 = vmatprep.subr.mxu0 0.0
    %3955 = vmatpush1.msra.mxu0 %v2500
    %3956 = vmatprep.subr.mxu0 0.0
    %3957 = vmatpush1.msra.mxu0 0.0
    %3958 = vmatprep.subr.mxu0 0.0
    %3959 = vmatpush1.msra.mxu0 0.0
    %3960 = vmatprep.subr.mxu0 0.0
    %3961 = vmatpush1.msra.mxu0 0.0
    %3962 = vmatprep.subr.mxu0 0.0
    %3963 = vmatpush1.msra.mxu0 0.0
    %3964 = vmatprep.subr.mxu0 0.0
    %3965 = vmatpush1.msra.mxu0 0.0
    %3966 = vmatprep.subr.mxu0 0.0
    %3967 = vmatpush1.msra.mxu0 0.0
    %3968 = vmatprep.subr.mxu0 0.0
    %3969 = vmatpush1.msra.mxu0 0.0
    %3970 = vmatprep.subr.mxu0 0.0
    %3971 = vmatpush1.msra.mxu0 0.0
    %3972 = vmatprep.subr.mxu0 0.0
    %3973 = vmatpush1.msra.mxu0 0.0
    %3974 = vmatprep.subr.mxu0 0.0
    %3975 = vmatpush1.msra.mxu0 0.0
    %3976 = vmatprep.subr.mxu0 0.0
    %3977 = vmatpush1.msra.mxu0 0.0
    %3978 = vmatprep.subr.mxu0 0.0
    %3979 = vmatpush1.msra.mxu0 0.0
    %3980 = vmatprep.subr.mxu0 0.0
    %3981 = vmatpush1.msra.mxu0 0.0
    %3982 = vmatprep.subr.mxu0 0.0
    %3983 = vmatpush1.msra.mxu0 0.0
    %3984 = vmatprep.subr.mxu0 0.0
    %3985 = vmatpush1.msra.mxu0 0.0
    %3986 = vmatprep.subr.mxu0 0.0
    %3987 = vmatpush1.msra.mxu0 0.0
    %3988 = vmatprep.subr.mxu0 0.0
    %3989 = vmatpush1.msra.mxu0 0.0
    %3990 = vmatprep.subr.mxu0 0.0
    %3991 = vmatpush1.msra.mxu0 0.0
    %3992 = vmatprep.subr.mxu0 0.0
    %3993 = vmatpush1.msra.mxu0 0.0
    %3994 = vmatprep.subr.mxu0 0.0
    %3995 = vmatpush1.msra.mxu0 0.0
    %3996 = vmatprep.subr.mxu0 0.0
    %3997 = vmatpush1.msra.mxu0 0.0
    %3998 = vmatprep.subr.mxu0 0.0
    %3999 = vmatpush1.msra.mxu0 0.0
    %4000 = vmatprep.subr.mxu0 0.0
    %4001 = vmatpush1.msra.mxu0 0.0
    %4002 = vmatprep.subr.mxu0 0.0
    %4003 = vmatpush1.msra.mxu0 0.0
    %4004 = vmatprep.subr.mxu0 0.0
    %4005 = vmatpush1.msra.mxu0 0.0
    %4006 = vmatprep.subr.mxu0 0.0
    %4007 = vmatpush1.msra.mxu0 0.0
    %4008 = vmatprep.subr.mxu0 0.0
    %4009 = vmatpush1.msra.mxu0 0.0
    %4010 = vmatprep.subr.mxu0 0.0
    %4011 = vmatpush1.msra.mxu0 0.0
    %4012 = vmatprep.subr.mxu0 0.0
    %4013 = vmatpush1.msra.mxu0 0.0
    %4014 = vmatprep.subr.mxu0 0.0
    %4015 = vmatpush1.msra.mxu0 0.0
    %4016 = vmatprep.mubr.f32.mxu0 0.0
    %4017 = vmatmul.mubr.f32.gmra.mrb[0].mxu0 %v3941
    %v4018 = vpop.f32.mrb[0].mxu0
    %v4019 = vadd.f32 0.0, %v4018
    %v4020 = vpop.f32.mrb[0].mxu0
    %4021 = vmatprep.mubr.f32.mxu0 0.0
    %4022 = vmatmul.mubr.f32.gmra.mrb[0].mxu0 %v3944
    %v4023 = vpop.f32.mrb[0].mxu0
    %v4024 = vadd.f32 0.0, %v4023
    %v4025 = vpop.f32.mrb[0].mxu0
    %4026 = vmatprep.mubr.f32.mxu0 0.0
    %4027 = vmatmul.mubr.f32.gmra.mrb[0].mxu0 %v3947
    %v4028 = vpop.f32.mrb[0].mxu0
    %v4029 = vadd.f32 0.0, %v4028
    %v4030 = vpop.f32.mrb[0].mxu0
    %4031 = vmatprep.mubr.f32.mxu0 0.0
    %4032 = vmatmul.mubr.f32.gmra.mrb[0].mxu0 %v3950
    %v4033 = vpop.f32.mrb[0].mxu0
    %v4034 = vadd.f32 0.0, %v4033
    %v4035 = vpop.f32.mrb[0].mxu0
    %4036 = vdwg.mxu0
    %v4037 = vadd.f32 %v3851, %v4019
    %v4038 = vadd.f32 %v3852, %v4024
    %v4039 = vadd.f32 %v3853, %v4029
    %v4040 = vadd.f32 %v3854, %v4034
    %vm4041 = vcmask 269312
    %v4042 = vsel %vm4041, %v3301, 0.0
    %4043 = vadd.xlane.f32.xlu0 %v4042
    %v4044 = vpop.xlane.xlu0 %4043
    %v4045 = vsel %vm4041, %v3302, 0.0
    %4046 = vadd.xlane.f32.xlu0 %v4045
    %v4047 = vpop.xlane.xlu0 %4046
    %v4048 = vsel %vm4041, %v3303, 0.0
    %4049 = vadd.xlane.f32.xlu0 %v4048
    %v4050 = vpop.xlane.xlu0 %4049
    %v4051 = vsel %vm4041, %v3304, 0.0
    %4052 = vadd.xlane.f32.xlu0 %v4051
    %v4053 = vpop.xlane.xlu0 %4052
    %v4054 = vmul.f32 %v3301, %v3301
    %v4055 = vmul.f32 %v3302, %v3302
    %v4056 = vmul.f32 %v3303, %v3303
    %v4057 = vmul.f32 %v3304, %v3304
    %v4058 = vsel %vm4041, %v4054, 0.0
    %4059 = vadd.xlane.f32.xlu0 %v4058
    %v4060 = vpop.xlane.xlu0 %4059
    %v4061 = vsel %vm4041, %v4055, 0.0
    %4062 = vadd.xlane.f32.xlu0 %v4061
    %v4063 = vpop.xlane.xlu0 %4062
    %v4064 = vsel %vm4041, %v4056, 0.0
    %4065 = vadd.xlane.f32.xlu0 %v4064
    %v4066 = vpop.xlane.xlu0 %4065
    %v4067 = vsel %vm4041, %v4057, 0.0
    %4068 = vadd.xlane.f32.xlu0 %v4067
    %v4069 = vpop.xlane.xlu0 %4068
    %v4070 = vsel %vm4041, %v4037, 0.0
    %4071 = vadd.xlane.f32.xlu0 %v4070
    %v4072 = vpop.xlane.xlu0 %4071
    %v4073 = vsel %vm4041, %v4038, 0.0
    %4074 = vadd.xlane.f32.xlu0 %v4073
    %v4075 = vpop.xlane.xlu0 %4074
    %v4076 = vsel %vm4041, %v4039, 0.0
    %4077 = vadd.xlane.f32.xlu0 %v4076
    %v4078 = vpop.xlane.xlu0 %4077
    %v4079 = vsel %vm4041, %v4040, 0.0
    %4080 = vadd.xlane.f32.xlu0 %v4079
    %v4081 = vpop.xlane.xlu0 %4080
    %v4082 = vadd.f32 %v4044, %v4072
    %v4083 = vadd.f32 %v4047, %v4075
    %v4084 = vadd.f32 %v4050, %v4078
    %v4085 = vadd.f32 %v4053, %v4081
    %v4086 = vmul.f32 %v4037, %v4037
    %v4087 = vmul.f32 %v4038, %v4038
    %v4088 = vmul.f32 %v4039, %v4039
    %v4089 = vmul.f32 %v4040, %v4040
    %v4090 = vsel %vm4041, %v4086, 0.0
    %4091 = vadd.xlane.f32.xlu0 %v4090
    %v4092 = vpop.xlane.xlu0 %4091
    %v4093 = vsel %vm4041, %v4087, 0.0
    %4094 = vadd.xlane.f32.xlu0 %v4093
    %v4095 = vpop.xlane.xlu0 %4094
    %v4096 = vsel %vm4041, %v4088, 0.0
    %4097 = vadd.xlane.f32.xlu0 %v4096
    %v4098 = vpop.xlane.xlu0 %4097
    %v4099 = vsel %vm4041, %v4089, 0.0
    %4100 = vadd.xlane.f32.xlu0 %v4099
    %v4101 = vpop.xlane.xlu0 %4100
    %v4102 = vadd.f32 %v4060, %v4092
    %v4103 = vadd.f32 %v4063, %v4095
    %v4104 = vadd.f32 %v4066, %v4098
    %v4105 = vadd.f32 %v4069, %v4101
    %v4106 = vmul.f32 %v4082, 0.015151516
    %v4107 = vmul.f32 %v4083, 0.015151516
    %v4108 = vmul.f32 %v4084, 0.015151516
    %v4109 = vmul.f32 %v4085, 0.015151516
    %v4110 = vmul.f32 %v4102, 0.015151516
    %v4111 = vmul.f32 %v4103, 0.015151516
    %v4112 = vmul.f32 %v4104, 0.015151516
    %v4113 = vmul.f32 %v4105, 0.015151516
    %v4114 = vmul.f32 %v4106, %v4106
    %v4115 = vmul.f32 %v4107, %v4107
    %v4116 = vmul.f32 %v4108, %v4108
    %v4117 = vmul.f32 %v4109, %v4109
    %v4118 = vsub.f32 %v4110, %v4114
    %v4119 = vsub.f32 %v4111, %v4115
    %v4120 = vsub.f32 %v4112, %v4116
    %v4121 = vsub.f32 %v4113, %v4117
    %v4122 = vmax.f32 %v4118, 0.0
    %v4123 = vmax.f32 %v4119, 0.0
    %v4124 = vmax.f32 %v4120, 0.0
    %v4125 = vmax.f32 %v4121, 0.0
    %v4126 = vld [vmem:[%s5] sm:$0xff]
    %v4127 = vld [vmem:[%s5 + $0x8] sm:$0xff]
    %v4128 = vld [vmem:[%s5 + $0x10] sm:$0xff]
    %v4129 = vld [vmem:[%s5 + $0x18] sm:$0xff]
    %v4130 = vadd.f32 %v4122, 1e-05
    %v4131 = vadd.f32 %v4123, 1e-05
    %v4132 = vadd.f32 %v4124, 1e-05
    %v4133 = vadd.f32 %v4125, 1e-05
    %v4134 = vrsqrt.pop %v4130
    %v4135 = vrsqrt.pop %v4131
    %v4136 = vrsqrt.pop %v4132
    %v4137 = vrsqrt.pop %v4133
    %v4138 = vmul.f32 %v4126, %v4134
    %v4139 = vmul.f32 %v4127, %v4135
    %v4140 = vmul.f32 %v4128, %v4136
    %v4141 = vmul.f32 %v4129, %v4137
    %v4142 = vld [vmem:[%s6] sm:$0xff]
    %v4143 = vld [vmem:[%s6 + $0x8] sm:$0xff]
    %v4144 = vld [vmem:[%s6 + $0x10] sm:$0xff]
    %v4145 = vld [vmem:[%s6 + $0x18] sm:$0xff]
    %v4146 = vmul.f32 %v4106, %v4138
    %v4147 = vmul.f32 %v4107, %v4139
    %v4148 = vmul.f32 %v4108, %v4140
    %v4149 = vmul.f32 %v4109, %v4141
    %v4150 = vsub.f32 %v4142, %v4146
    %v4151 = vsub.f32 %v4143, %v4147
    %v4152 = vsub.f32 %v4144, %v4148
    %v4153 = vsub.f32 %v4145, %v4149
    %4155 = vset.pattern.permute.xlu0 0
    %4156 = vperm.xlu0 %4155, %v4138
    %v4157 = vpop.permute.xlu0 %4156
    %4160 = vset.pattern.permute.xlu0 0
    %4161 = vperm.xlu0 %4160, %v4139
    %v4162 = vpop.permute.xlu0 %4161
    %4165 = vset.pattern.permute.xlu0 0
    %4166 = vperm.xlu0 %4165, %v4140
    %v4167 = vpop.permute.xlu0 %4166
    %4170 = vset.pattern.permute.xlu0 0
    %4171 = vperm.xlu0 %4170, %v4141
    %v4172 = vpop.permute.xlu0 %4171
    %v4174 = vmul.f32 %v3301, %v4157
    %v4175 = vmul.f32 %v3302, %v4162
    %v4176 = vmul.f32 %v3303, %v4167
    %v4177 = vmul.f32 %v3304, %v4172
    %4179 = vset.pattern.permute.xlu0 0
    %4180 = vperm.xlu0 %4179, %v4150
    %v4181 = vpop.permute.xlu0 %4180
    %4184 = vset.pattern.permute.xlu0 0
    %4185 = vperm.xlu0 %4184, %v4151
    %v4186 = vpop.permute.xlu0 %4185
    %4189 = vset.pattern.permute.xlu0 0
    %4190 = vperm.xlu0 %4189, %v4152
    %v4191 = vpop.permute.xlu0 %4190
    %4194 = vset.pattern.permute.xlu0 0
    %4195 = vperm.xlu0 %4194, %v4153
    %v4196 = vpop.permute.xlu0 %4195
    %v4198 = vadd.f32 %v4174, %v4181
    %v4199 = vadd.f32 %v4175, %v4186
    %v4200 = vadd.f32 %v4176, %v4191
    %v4201 = vadd.f32 %v4177, %v4196
    %vm4202 = vcmp.ge.f32.partialorder %v4198, 0.0
    %vm4203 = vcmp.ge.f32.partialorder %v4199, 0.0
    %vm4204 = vcmp.ge.f32.partialorder %v4200, 0.0
    %vm4205 = vcmp.ge.f32.partialorder %v4201, 0.0
    %v4206 = vmul.f32 %v4198, 0.2
    %v4207 = vmul.f32 %v4199, 0.2
    %v4208 = vmul.f32 %v4200, 0.2
    %v4209 = vmul.f32 %v4201, 0.2
    %v4210 = vsel %vm4202, %v4198, %v4206
    %v4211 = vsel %vm4203, %v4199, %v4207
    %v4212 = vsel %vm4204, %v4200, %v4208
    %v4213 = vsel %vm4205, %v4201, %v4209
    %v4214 = vmul.f32 %v4037, %v4157
    %v4215 = vmul.f32 %v4038, %v4162
    %v4216 = vmul.f32 %v4039, %v4167
    %v4217 = vmul.f32 %v4040, %v4172
    %v4218 = vadd.f32 %v4214, %v4181
    %v4219 = vadd.f32 %v4215, %v4186
    %v4220 = vadd.f32 %v4216, %v4191
    %v4221 = vadd.f32 %v4217, %v4196
    %vm4222 = vcmp.ge.f32.partialorder %v4218, 0.0
    %vm4223 = vcmp.ge.f32.partialorder %v4219, 0.0
    %vm4224 = vcmp.ge.f32.partialorder %v4220, 0.0
    %vm4225 = vcmp.ge.f32.partialorder %v4221, 0.0
    %v4226 = vmul.f32 %v4218, 0.2
    %v4227 = vmul.f32 %v4219, 0.2
    %v4228 = vmul.f32 %v4220, 0.2
    %v4229 = vmul.f32 %v4221, 0.2
    %v4230 = vsel %vm4222, %v4218, %v4226
    %v4231 = vsel %vm4223, %v4219, %v4227
    %v4232 = vsel %vm4224, %v4220, %v4228
    %v4233 = vsel %vm4225, %v4221, %v4229
    %v4234 = vadd.s32 %v52, 16
    %v4235 = vadd.s32 %v52, 24
    %v4236 = vadd.s32 %v52, 32
    %v4237 = vmul.u32 %v4234, 2
    %v4238 = vmul.u32 %v4235, 2
    %v4239 = vmul.u32 %v4236, 2
    %v4240 = vsub.s32 %v4237, 1
    %v4241 = vsub.s32 %v4238, 1
    %v4242 = vsub.s32 %v4239, 1
    %vm4243 = vcmp.eq.s32.totalorder %v54, %v4240
    %vm4244 = vcmp.eq.s32.totalorder %v54, %v4241
    %vm4245 = vcmp.eq.s32.totalorder %v54, %v4242
    %v4246 = vsel %vm4243, 1.0, 0.0
    %v4247 = vsel %vm4244, 1.0, 0.0
    %v4248 = vsel %vm4245, 1.0, 0.0
    %vm4249 = vcmp.eq.s32.totalorder %v54, %v4237
    %vm4250 = vcmp.eq.s32.totalorder %v54, %v4238
    %vm4251 = vcmp.eq.s32.totalorder %v54, %v4239
    %v4252 = vsel %vm4249, 1.0, 0.0
    %v4253 = vsel %vm4250, 1.0, 0.0
    %v4254 = vsel %vm4251, 1.0, 0.0
    %v4255 = vadd.s32 %v4240, 2
    %v4256 = vadd.s32 %v4241, 2
    %v4257 = vadd.s32 %v4242, 2
    %vm4258 = vcmp.eq.s32.totalorder %v54, %v4255
    %vm4259 = vcmp.eq.s32.totalorder %v54, %v4256
    %vm4260 = vcmp.eq.s32.totalorder %v54, %v4257
    %v4261 = vsel %vm4258, 1.0, 0.0
    %v4262 = vsel %vm4259, 1.0, 0.0
    %v4263 = vsel %vm4260, 1.0, 0.0
    %v4264 = vadd.s32 %v4240, 3
    %v4265 = vadd.s32 %v4241, 3
    %v4266 = vadd.s32 %v4242, 3
    %vm4267 = vcmp.eq.s32.totalorder %v54, %v4264
    %vm4268 = vcmp.eq.s32.totalorder %v54, %v4265
    %vm4269 = vcmp.eq.s32.totalorder %v54, %v4266
    %v4270 = vsel %vm4267, 1.0, 0.0
    %v4271 = vsel %vm4268, 1.0, 0.0
    %v4272 = vsel %vm4269, 1.0, 0.0
    %v4273 = vld [vmem:[%s7] sm:$0xff]
    %v4274 = vld [vmem:[%s7 + $0x8] sm:$0xff]
    %vm4275 = vcmask 261120
    %v4277 = vsel %vm4275, %v4273, 0
    %v4280 = vsel %vm4275, %v4274, 0
    %4282 = vmatprep.subr.mxu0 0.0
    %4283 = vmatpush1.msra.mxu0 %v4210
    %4284 = vmatprep.subr.mxu0 0.0
    %4285 = vmatpush1.msra.mxu0 %v4211
    %4286 = vmatprep.subr.mxu0 0.0
    %4287 = vmatpush1.msra.mxu0 %v4212
    %4288 = vmatprep.subr.mxu0 0.0
    %4289 = vmatpush1.msra.mxu0 %v4213
    %4290 = vmatprep.subr.mxu0 0.0
    %4291 = vmatpush1.msra.mxu0 0.0
    %4292 = vmatprep.subr.mxu0 0.0
    %4293 = vmatpush1.msra.mxu0 0.0
    %4294 = vmatprep.subr.mxu0 0.0
    %4295 = vmatpush1.msra.mxu0 0.0
    %4296 = vmatprep.subr.mxu0 0.0
    %4297 = vmatpush1.msra.mxu0 0.0
    %4298 = vmatprep.subr.mxu0 0.0
    %4299 = vmatpush1.msra.mxu0 0.0
    %4300 = vmatprep.subr.mxu0 0.0
    %4301 = vmatpush1.msra.mxu0 0.0
    %4302 = vmatprep.subr.mxu0 0.0
    %4303 = vmatpush1.msra.mxu0 0.0
    %4304 = vmatprep.subr.mxu0 0.0
    %4305 = vmatpush1.msra.mxu0 0.0
    %4306 = vmatprep.subr.mxu0 0.0
    %4307 = vmatpush1.msra.mxu0 0.0
    %4308 = vmatprep.subr.mxu0 0.0
    %4309 = vmatpush1.msra.mxu0 0.0
    %4310 = vmatprep.subr.mxu0 0.0
    %4311 = vmatpush1.msra.mxu0 0.0
    %4312 = vmatprep.subr.mxu0 0.0
    %4313 = vmatpush1.msra.mxu0 0.0
    %4314 = vmatprep.subr.mxu0 0.0
    %4315 = vmatpush1.msra.mxu0 0.0
    %4316 = vmatprep.subr.mxu0 0.0
    %4317 = vmatpush1.msra.mxu0 0.0
    %4318 = vmatprep.subr.mxu0 0.0
    %4319 = vmatpush1.msra.mxu0 0.0
    %4320 = vmatprep.subr.mxu0 0.0
    %4321 = vmatpush1.msra.mxu0 0.0
    %4322 = vmatprep.subr.mxu0 0.0
    %4323 = vmatpush1.msra.mxu0 0.0
    %4324 = vmatprep.subr.mxu0 0.0
    %4325 = vmatpush1.msra.mxu0 0.0
    %4326 = vmatprep.subr.mxu0 0.0
    %4327 = vmatpush1.msra.mxu0 0.0
    %4328 = vmatprep.subr.mxu0 0.0
    %4329 = vmatpush1.msra.mxu0 0.0
    %4330 = vmatprep.subr.mxu0 0.0
    %4331 = vmatpush1.msra.mxu0 0.0
    %4332 = vmatprep.subr.mxu0 0.0
    %4333 = vmatpush1.msra.mxu0 0.0
    %4334 = vmatprep.subr.mxu0 0.0
    %4335 = vmatpush1.msra.mxu0 0.0
    %4336 = vmatprep.subr.mxu0 0.0
    %4337 = vmatpush1.msra.mxu0 0.0
    %4338 = vmatprep.subr.mxu0 0.0
    %4339 = vmatpush1.msra.mxu0 0.0
    %4340 = vmatprep.subr.mxu0 0.0
    %4341 = vmatpush1.msra.mxu0 0.0
    %4342 = vmatprep.subr.mxu0 0.0
    %4343 = vmatpush1.msra.mxu0 0.0
    %4344 = vmatprep.subr.mxu0 0.0
    %4345 = vmatpush1.msra.mxu0 0.0
    %4346 = vmatprep.mubr.f32.mxu0 0.0
    %4347 = vmatmul.mubr.f32.gmra.mrb[0].mxu0 %v4277
    %v4348 = vpop.f32.mrb[0].mxu0
    %v4349 = vadd.f32 0.0, %v4348
    %v4350 = vpop.f32.mrb[0].mxu0
    %4351 = vmatprep.mubr.f32.mxu0 0.0
    %4352 = vmatmul.mubr.f32.gmra.mrb[0].mxu0 %v4280
    %v4353 = vpop.f32.mrb[0].mxu0
    %v4354 = vadd.f32 0.0, %v4353
    %v4355 = vpop.f32.mrb[0].mxu0
    %4356 = vdwg.mxu0
    %s4357 = scalar_lea.vmem %s7, 16
    %v4358 = vld [vmem:[%s4357] sm:$0xff]
    %v4359 = vld [vmem:[%s4357 + $0x8] sm:$0xff]
    %v4361 = vsel %vm4275, %v4358, 0
    %v4364 = vsel %vm4275, %v4359, 0
    %4366 = vmatprep.subr.mxu0 0.0
    %4367 = vmatpush1.msra.mxu0 %v4210
    %4368 = vmatprep.subr.mxu0 0.0
    %4369 = vmatpush1.msra.mxu0 %v4211
    %4370 = vmatprep.subr.mxu0 0.0
    %4371 = vmatpush1.msra.mxu0 %v4212
    %4372 = vmatprep.subr.mxu0 0.0
    %4373 = vmatpush1.msra.mxu0 %v4213
    %4374 = vmatprep.subr.mxu0 0.0
    %4375 = vmatpush1.msra.mxu0 0.0
    %4376 = vmatprep.subr.mxu0 0.0
    %4377 = vmatpush1.msra.mxu0 0.0
    %4378 = vmatprep.subr.mxu0 0.0
    %4379 = vmatpush1.msra.mxu0 0.0
    %4380 = vmatprep.subr.mxu0 0.0
    %4381 = vmatpush1.msra.mxu0 0.0
    %4382 = vmatprep.subr.mxu0 0.0
    %4383 = vmatpush1.msra.mxu0 0.0
    %4384 = vmatprep.subr.mxu0 0.0
    %4385 = vmatpush1.msra.mxu0 0.0
    %4386 = vmatprep.subr.mxu0 0.0
    %4387 = vmatpush1.msra.mxu0 0.0
    %4388 = vmatprep.subr.mxu0 0.0
    %4389 = vmatpush1.msra.mxu0 0.0
    %4390 = vmatprep.subr.mxu0 0.0
    %4391 = vmatpush1.msra.mxu0 0.0
    %4392 = vmatprep.subr.mxu0 0.0
    %4393 = vmatpush1.msra.mxu0 0.0
    %4394 = vmatprep.subr.mxu0 0.0
    %4395 = vmatpush1.msra.mxu0 0.0
    %4396 = vmatprep.subr.mxu0 0.0
    %4397 = vmatpush1.msra.mxu0 0.0
    %4398 = vmatprep.subr.mxu0 0.0
    %4399 = vmatpush1.msra.mxu0 0.0
    %4400 = vmatprep.subr.mxu0 0.0
    %4401 = vmatpush1.msra.mxu0 0.0
    %4402 = vmatprep.subr.mxu0 0.0
    %4403 = vmatpush1.msra.mxu0 0.0
    %4404 = vmatprep.subr.mxu0 0.0
    %4405 = vmatpush1.msra.mxu0 0.0
    %4406 = vmatprep.subr.mxu0 0.0
    %4407 = vmatpush1.msra.mxu0 0.0
    %4408 = vmatprep.subr.mxu0 0.0
    %4409 = vmatpush1.msra.mxu0 0.0
    %4410 = vmatprep.subr.mxu0 0.0
    %4411 = vmatpush1.msra.mxu0 0.0
    %4412 = vmatprep.subr.mxu0 0.0
    %4413 = vmatpush1.msra.mxu0 0.0
    %4414 = vmatprep.subr.mxu0 0.0
    %4415 = vmatpush1.msra.mxu0 0.0
    %4416 = vmatprep.subr.mxu0 0.0
    %4417 = vmatpush1.msra.mxu0 0.0
    %4418 = vmatprep.subr.mxu0 0.0
    %4419 = vmatpush1.msra.mxu0 0.0
    %4420 = vmatprep.subr.mxu0 0.0
    %4421 = vmatpush1.msra.mxu0 0.0
    %4422 = vmatprep.subr.mxu0 0.0
    %4423 = vmatpush1.msra.mxu0 0.0
    %4424 = vmatprep.subr.mxu0 0.0
    %4425 = vmatpush1.msra.mxu0 0.0
    %4426 = vmatprep.subr.mxu0 0.0
    %4427 = vmatpush1.msra.mxu0 0.0
    %4428 = vmatprep.subr.mxu0 0.0
    %4429 = vmatpush1.msra.mxu0 0.0
    %4430 = vmatprep.mubr.f32.mxu0 0.0
    %4431 = vmatmul.mubr.f32.gmra.mrb[0].mxu0 %v4361
    %v4432 = vpop.f32.mrb[0].mxu0
    %v4433 = vadd.f32 0.0, %v4432
    %v4434 = vpop.f32.mrb[0].mxu0
    %4435 = vmatprep.mubr.f32.mxu0 0.0
    %4436 = vmatmul.mubr.f32.gmra.mrb[0].mxu0 %v4364
    %v4437 = vpop.f32.mrb[0].mxu0
    %v4438 = vadd.f32 0.0, %v4437
    %v4439 = vpop.f32.mrb[0].mxu0
    %4440 = vdwg.mxu0
    %v4442 = vsel %vm4041, %v4433, 0
    %v4445 = vsel %vm4041, %v4438, 0
    %vm4447 = vcmask 1040384
    %v4449 = vsel %vm4447, %v4254, 0
    %4451 = vmatprep.subr.mxu0 0.0
    %4452 = vmatpush1.msra.mxu0 %v60
    %4453 = vmatprep.subr.mxu0 0.0
    %4454 = vmatpush1.msra.mxu0 %v2494
    %4455 = vmatprep.subr.mxu0 0.0
    %4456 = vmatpush1.msra.mxu0 %v4252
    %4457 = vmatprep.subr.mxu0 0.0
    %4458 = vmatpush1.msra.mxu0 %v4253
    %4459 = vmatprep.subr.mxu0 0.0
    %4460 = vmatpush1.msra.mxu0 %v4449
    %4461 = vmatprep.subr.mxu0 0.0
    %4462 = vmatpush1.msra.mxu0 0.0
    %4463 = vmatprep.subr.mxu0 0.0
    %4464 = vmatpush1.msra.mxu0 0.0
    %4465 = vmatprep.subr.mxu0 0.0
    %4466 = vmatpush1.msra.mxu0 0.0
    %4467 = vmatprep.subr.mxu0 0.0
    %4468 = vmatpush1.msra.mxu0 0.0
    %4469 = vmatprep.subr.mxu0 0.0
    %4470 = vmatpush1.msra.mxu0 0.0
    %4471 = vmatprep.subr.mxu0 0.0
    %4472 = vmatpush1.msra.mxu0 0.0
    %4473 = vmatprep.subr.mxu0 0.0
    %4474 = vmatpush1.msra.mxu0 0.0
    %4475 = vmatprep.subr.mxu0 0.0
    %4476 = vmatpush1.msra.mxu0 0.0
    %4477 = vmatprep.subr.mxu0 0.0
    %4478 = vmatpush1.msra.mxu0 0.0
    %4479 = vmatprep.subr.mxu0 0.0
    %4480 = vmatpush1.msra.mxu0 0.0
    %4481 = vmatprep.subr.mxu0 0.0
    %4482 = vmatpush1.msra.mxu0 0.0
    %4483 = vmatprep.subr.mxu0 0.0
    %4484 = vmatpush1.msra.mxu0 0.0
    %4485 = vmatprep.subr.mxu0 0.0
    %4486 = vmatpush1.msra.mxu0 0.0
    %4487 = vmatprep.subr.mxu0 0.0
    %4488 = vmatpush1.msra.mxu0 0.0
    %4489 = vmatprep.subr.mxu0 0.0
    %4490 = vmatpush1.msra.mxu0 0.0
    %4491 = vmatprep.subr.mxu0 0.0
    %4492 = vmatpush1.msra.mxu0 0.0
    %4493 = vmatprep.subr.mxu0 0.0
    %4494 = vmatpush1.msra.mxu0 0.0
    %4495 = vmatprep.subr.mxu0 0.0
    %4496 = vmatpush1.msra.mxu0 0.0
    %4497 = vmatprep.subr.mxu0 0.0
    %4498 = vmatpush1.msra.mxu0 0.0
    %4499 = vmatprep.subr.mxu0 0.0
    %4500 = vmatpush1.msra.mxu0 0.0
    %4501 = vmatprep.subr.mxu0 0.0
    %4502 = vmatpush1.msra.mxu0 0.0
    %4503 = vmatprep.subr.mxu0 0.0
    %4504 = vmatpush1.msra.mxu0 0.0
    %4505 = vmatprep.subr.mxu0 0.0
    %4506 = vmatpush1.msra.mxu0 0.0
    %4507 = vmatprep.subr.mxu0 0.0
    %4508 = vmatpush1.msra.mxu0 0.0
    %4509 = vmatprep.subr.mxu0 0.0
    %4510 = vmatpush1.msra.mxu0 0.0
    %4511 = vmatprep.subr.mxu0 0.0
    %4512 = vmatpush1.msra.mxu0 0.0
    %4513 = vmatprep.subr.mxu0 0.0
    %4514 = vmatpush1.msra.mxu0 0.0
    %4515 = vmatprep.mubr.f32.mxu0 0.0
    %4516 = vmatmul.mubr.f32.gmra.mrb[0].mxu0 %v4442
    %v4517 = vpop.f32.mrb[0].mxu0
    %v4518 = vadd.f32 0.0, %v4517
    %v4519 = vpop.f32.mrb[0].mxu0
    %4520 = vmatprep.mubr.f32.mxu0 0.0
    %4521 = vmatmul.mubr.f32.gmra.mrb[0].mxu0 %v4445
    %v4522 = vpop.f32.mrb[0].mxu0
    %v4523 = vadd.f32 0.0, %v4522
    %v4524 = vpop.f32.mrb[0].mxu0
    %4525 = vdwg.mxu0
    %v4527 = vsel %vm4041, %v4349, 0
    %v4530 = vsel %vm4041, %v4354, 0
    %v4533 = vsel %vm4447, %v4248, 0
    %4535 = vmatprep.subr.mxu0 0.0
    %4536 = vmatpush1.msra.mxu0 %v58
    %4537 = vmatprep.subr.mxu0 0.0
    %4538 = vmatpush1.msra.mxu0 %v2492
    %4539 = vmatprep.subr.mxu0 0.0
    %4540 = vmatpush1.msra.mxu0 %v4246
    %4541 = vmatprep.subr.mxu0 0.0
    %4542 = vmatpush1.msra.mxu0 %v4247
    %4543 = vmatprep.subr.mxu0 0.0
    %4544 = vmatpush1.msra.mxu0 %v4533
    %4545 = vmatprep.subr.mxu0 0.0
    %4546 = vmatpush1.msra.mxu0 0.0
    %4547 = vmatprep.subr.mxu0 0.0
    %4548 = vmatpush1.msra.mxu0 0.0
    %4549 = vmatprep.subr.mxu0 0.0
    %4550 = vmatpush1.msra.mxu0 0.0
    %4551 = vmatprep.subr.mxu0 0.0
    %4552 = vmatpush1.msra.mxu0 0.0
    %4553 = vmatprep.subr.mxu0 0.0
    %4554 = vmatpush1.msra.mxu0 0.0
    %4555 = vmatprep.subr.mxu0 0.0
    %4556 = vmatpush1.msra.mxu0 0.0
    %4557 = vmatprep.subr.mxu0 0.0
    %4558 = vmatpush1.msra.mxu0 0.0
    %4559 = vmatprep.subr.mxu0 0.0
    %4560 = vmatpush1.msra.mxu0 0.0
    %4561 = vmatprep.subr.mxu0 0.0
    %4562 = vmatpush1.msra.mxu0 0.0
    %4563 = vmatprep.subr.mxu0 0.0
    %4564 = vmatpush1.msra.mxu0 0.0
    %4565 = vmatprep.subr.mxu0 0.0
    %4566 = vmatpush1.msra.mxu0 0.0
    %4567 = vmatprep.subr.mxu0 0.0
    %4568 = vmatpush1.msra.mxu0 0.0
    %4569 = vmatprep.subr.mxu0 0.0
    %4570 = vmatpush1.msra.mxu0 0.0
    %4571 = vmatprep.subr.mxu0 0.0
    %4572 = vmatpush1.msra.mxu0 0.0
    %4573 = vmatprep.subr.mxu0 0.0
    %4574 = vmatpush1.msra.mxu0 0.0
    %4575 = vmatprep.subr.mxu0 0.0
    %4576 = vmatpush1.msra.mxu0 0.0
    %4577 = vmatprep.subr.mxu0 0.0
    %4578 = vmatpush1.msra.mxu0 0.0
    %4579 = vmatprep.subr.mxu0 0.0
    %4580 = vmatpush1.msra.mxu0 0.0
    %4581 = vmatprep.subr.mxu0 0.0
    %4582 = vmatpush1.msra.mxu0 0.0
    %4583 = vmatprep.subr.mxu0 0.0
    %4584 = vmatpush1.msra.mxu0 0.0
    %4585 = vmatprep.subr.mxu0 0.0
    %4586 = vmatpush1.msra.mxu0 0.0
    %4587 = vmatprep.subr.mxu0 0.0
    %4588 = vmatpush1.msra.mxu0 0.0
    %4589 = vmatprep.subr.mxu0 0.0
    %4590 = vmatpush1.msra.mxu0 0.0
    %4591 = vmatprep.subr.mxu0 0.0
    %4592 = vmatpush1.msra.mxu0 0.0
    %4593 = vmatprep.subr.mxu0 0.0
    %4594 = vmatpush1.msra.mxu0 0.0
    %4595 = vmatprep.subr.mxu0 0.0
    %4596 = vmatpush1.msra.mxu0 0.0
    %4597 = vmatprep.subr.mxu0 0.0
    %4598 = vmatpush1.msra.mxu0 0.0
    %4599 = vmatprep.mubr.f32.mxu0 0.0
    %4600 = vmatmul.mubr.f32.gmra.mrb[0].mxu0 %v4527
    %v4601 = vpop.f32.mrb[0].mxu0
    %v4602 = vadd.f32 %v4518, %v4601
    %v4603 = vpop.f32.mrb[0].mxu0
    %4604 = vmatprep.mubr.f32.mxu0 0.0
    %4605 = vmatmul.mubr.f32.gmra.mrb[0].mxu0 %v4530
    %v4606 = vpop.f32.mrb[0].mxu0
    %v4607 = vadd.f32 %v4523, %v4606
    %v4608 = vpop.f32.mrb[0].mxu0
    %4609 = vdwg.mxu0
    %s4610 = scalar_lea.vmem %s7, 32
    %v4611 = vld [vmem:[%s4610] sm:$0xff]
    %v4612 = vld [vmem:[%s4610 + $0x8] sm:$0xff]
    %v4614 = vsel %vm4275, %v4611, 0
    %v4617 = vsel %vm4275, %v4612, 0
    %4619 = vmatprep.subr.mxu0 0.0
    %4620 = vmatpush1.msra.mxu0 %v4210
    %4621 = vmatprep.subr.mxu0 0.0
    %4622 = vmatpush1.msra.mxu0 %v4211
    %4623 = vmatprep.subr.mxu0 0.0
    %4624 = vmatpush1.msra.mxu0 %v4212
    %4625 = vmatprep.subr.mxu0 0.0
    %4626 = vmatpush1.msra.mxu0 %v4213
    %4627 = vmatprep.subr.mxu0 0.0
    %4628 = vmatpush1.msra.mxu0 0.0
    %4629 = vmatprep.subr.mxu0 0.0
    %4630 = vmatpush1.msra.mxu0 0.0
    %4631 = vmatprep.subr.mxu0 0.0
    %4632 = vmatpush1.msra.mxu0 0.0
    %4633 = vmatprep.subr.mxu0 0.0
    %4634 = vmatpush1.msra.mxu0 0.0
    %4635 = vmatprep.subr.mxu0 0.0
    %4636 = vmatpush1.msra.mxu0 0.0
    %4637 = vmatprep.subr.mxu0 0.0
    %4638 = vmatpush1.msra.mxu0 0.0
    %4639 = vmatprep.subr.mxu0 0.0
    %4640 = vmatpush1.msra.mxu0 0.0
    %4641 = vmatprep.subr.mxu0 0.0
    %4642 = vmatpush1.msra.mxu0 0.0
    %4643 = vmatprep.subr.mxu0 0.0
    %4644 = vmatpush1.msra.mxu0 0.0
    %4645 = vmatprep.subr.mxu0 0.0
    %4646 = vmatpush1.msra.mxu0 0.0
    %4647 = vmatprep.subr.mxu0 0.0
    %4648 = vmatpush1.msra.mxu0 0.0
    %4649 = vmatprep.subr.mxu0 0.0
    %4650 = vmatpush1.msra.mxu0 0.0
    %4651 = vmatprep.subr.mxu0 0.0
    %4652 = vmatpush1.msra.mxu0 0.0
    %4653 = vmatprep.subr.mxu0 0.0
    %4654 = vmatpush1.msra.mxu0 0.0
    %4655 = vmatprep.subr.mxu0 0.0
    %4656 = vmatpush1.msra.mxu0 0.0
    %4657 = vmatprep.subr.mxu0 0.0
    %4658 = vmatpush1.msra.mxu0 0.0
    %4659 = vmatprep.subr.mxu0 0.0
    %4660 = vmatpush1.msra.mxu0 0.0
    %4661 = vmatprep.subr.mxu0 0.0
    %4662 = vmatpush1.msra.mxu0 0.0
    %4663 = vmatprep.subr.mxu0 0.0
    %4664 = vmatpush1.msra.mxu0 0.0
    %4665 = vmatprep.subr.mxu0 0.0
    %4666 = vmatpush1.msra.mxu0 0.0
    %4667 = vmatprep.subr.mxu0 0.0
    %4668 = vmatpush1.msra.mxu0 0.0
    %4669 = vmatprep.subr.mxu0 0.0
    %4670 = vmatpush1.msra.mxu0 0.0
    %4671 = vmatprep.subr.mxu0 0.0
    %4672 = vmatpush1.msra.mxu0 0.0
    %4673 = vmatprep.subr.mxu0 0.0
    %4674 = vmatpush1.msra.mxu0 0.0
    %4675 = vmatprep.subr.mxu0 0.0
    %4676 = vmatpush1.msra.mxu0 0.0
    %4677 = vmatprep.subr.mxu0 0.0
    %4678 = vmatpush1.msra.mxu0 0.0
    %4679 = vmatprep.subr.mxu0 0.0
    %4680 = vmatpush1.msra.mxu0 0.0
    %4681 = vmatprep.subr.mxu0 0.0
    %4682 = vmatpush1.msra.mxu0 0.0
    %4683 = vmatprep.mubr.f32.mxu0 0.0
    %4684 = vmatmul.mubr.f32.gmra.mrb[0].mxu0 %v4614
    %v4685 = vpop.f32.mrb[0].mxu0
    %v4686 = vadd.f32 0.0, %v4685
    %v4687 = vpop.f32.mrb[0].mxu0
    %4688 = vmatprep.mubr.f32.mxu0 0.0
    %4689 = vmatmul.mubr.f32.gmra.mrb[0].mxu0 %v4617
    %v4690 = vpop.f32.mrb[0].mxu0
    %v4691 = vadd.f32 0.0, %v4690
    %v4692 = vpop.f32.mrb[0].mxu0
    %4693 = vdwg.mxu0
    %v4695 = vsel %vm4041, %v4686, 0
    %v4698 = vsel %vm4041, %v4691, 0
    %v4701 = vsel %vm4447, %v4263, 0
    %4703 = vmatprep.subr.mxu0 0.0
    %4704 = vmatpush1.msra.mxu0 %v63
    %4705 = vmatprep.subr.mxu0 0.0
    %4706 = vmatpush1.msra.mxu0 %v2497
    %4707 = vmatprep.subr.mxu0 0.0
    %4708 = vmatpush1.msra.mxu0 %v4261
    %4709 = vmatprep.subr.mxu0 0.0
    %4710 = vmatpush1.msra.mxu0 %v4262
    %4711 = vmatprep.subr.mxu0 0.0
    %4712 = vmatpush1.msra.mxu0 %v4701
    %4713 = vmatprep.subr.mxu0 0.0
    %4714 = vmatpush1.msra.mxu0 0.0
    %4715 = vmatprep.subr.mxu0 0.0
    %4716 = vmatpush1.msra.mxu0 0.0
    %4717 = vmatprep.subr.mxu0 0.0
    %4718 = vmatpush1.msra.mxu0 0.0
    %4719 = vmatprep.subr.mxu0 0.0
    %4720 = vmatpush1.msra.mxu0 0.0
    %4721 = vmatprep.subr.mxu0 0.0
    %4722 = vmatpush1.msra.mxu0 0.0
    %4723 = vmatprep.subr.mxu0 0.0
    %4724 = vmatpush1.msra.mxu0 0.0
    %4725 = vmatprep.subr.mxu0 0.0
    %4726 = vmatpush1.msra.mxu0 0.0
    %4727 = vmatprep.subr.mxu0 0.0
    %4728 = vmatpush1.msra.mxu0 0.0
    %4729 = vmatprep.subr.mxu0 0.0
    %4730 = vmatpush1.msra.mxu0 0.0
    %4731 = vmatprep.subr.mxu0 0.0
    %4732 = vmatpush1.msra.mxu0 0.0
    %4733 = vmatprep.subr.mxu0 0.0
    %4734 = vmatpush1.msra.mxu0 0.0
    %4735 = vmatprep.subr.mxu0 0.0
    %4736 = vmatpush1.msra.mxu0 0.0
    %4737 = vmatprep.subr.mxu0 0.0
    %4738 = vmatpush1.msra.mxu0 0.0
    %4739 = vmatprep.subr.mxu0 0.0
    %4740 = vmatpush1.msra.mxu0 0.0
    %4741 = vmatprep.subr.mxu0 0.0
    %4742 = vmatpush1.msra.mxu0 0.0
    %4743 = vmatprep.subr.mxu0 0.0
    %4744 = vmatpush1.msra.mxu0 0.0
    %4745 = vmatprep.subr.mxu0 0.0
    %4746 = vmatpush1.msra.mxu0 0.0
    %4747 = vmatprep.subr.mxu0 0.0
    %4748 = vmatpush1.msra.mxu0 0.0
    %4749 = vmatprep.subr.mxu0 0.0
    %4750 = vmatpush1.msra.mxu0 0.0
    %4751 = vmatprep.subr.mxu0 0.0
    %4752 = vmatpush1.msra.mxu0 0.0
    %4753 = vmatprep.subr.mxu0 0.0
    %4754 = vmatpush1.msra.mxu0 0.0
    %4755 = vmatprep.subr.mxu0 0.0
    %4756 = vmatpush1.msra.mxu0 0.0
    %4757 = vmatprep.subr.mxu0 0.0
    %4758 = vmatpush1.msra.mxu0 0.0
    %4759 = vmatprep.subr.mxu0 0.0
    %4760 = vmatpush1.msra.mxu0 0.0
    %4761 = vmatprep.subr.mxu0 0.0
    %4762 = vmatpush1.msra.mxu0 0.0
    %4763 = vmatprep.subr.mxu0 0.0
    %4764 = vmatpush1.msra.mxu0 0.0
    %4765 = vmatprep.subr.mxu0 0.0
    %4766 = vmatpush1.msra.mxu0 0.0
    %4767 = vmatprep.mubr.f32.mxu0 0.0
    %4768 = vmatmul.mubr.f32.gmra.mrb[0].mxu0 %v4695
    %v4769 = vpop.f32.mrb[0].mxu0
    %v4770 = vadd.f32 0.0, %v4769
    %v4771 = vpop.f32.mrb[0].mxu0
    %4772 = vmatprep.mubr.f32.mxu0 0.0
    %4773 = vmatmul.mubr.f32.gmra.mrb[0].mxu0 %v4698
    %v4774 = vpop.f32.mrb[0].mxu0
    %v4775 = vadd.f32 0.0, %v4774
    %v4776 = vpop.f32.mrb[0].mxu0
    %4777 = vdwg.mxu0
    %v4778 = vadd.f32 %v4602, %v4770
    %v4779 = vadd.f32 %v4607, %v4775
    %s4780 = scalar_lea.vmem %s7, 48
    %v4781 = vld [vmem:[%s4780] sm:$0xff]
    %v4782 = vld [vmem:[%s4780 + $0x8] sm:$0xff]
    %v4784 = vsel %vm4275, %v4781, 0
    %v4787 = vsel %vm4275, %v4782, 0
    %4789 = vmatprep.subr.mxu0 0.0
    %4790 = vmatpush1.msra.mxu0 %v4210
    %4791 = vmatprep.subr.mxu0 0.0
    %4792 = vmatpush1.msra.mxu0 %v4211
    %4793 = vmatprep.subr.mxu0 0.0
    %4794 = vmatpush1.msra.mxu0 %v4212
    %4795 = vmatprep.subr.mxu0 0.0
    %4796 = vmatpush1.msra.mxu0 %v4213
    %4797 = vmatprep.subr.mxu0 0.0
    %4798 = vmatpush1.msra.mxu0 0.0
    %4799 = vmatprep.subr.mxu0 0.0
    %4800 = vmatpush1.msra.mxu0 0.0
    %4801 = vmatprep.subr.mxu0 0.0
    %4802 = vmatpush1.msra.mxu0 0.0
    %4803 = vmatprep.subr.mxu0 0.0
    %4804 = vmatpush1.msra.mxu0 0.0
    %4805 = vmatprep.subr.mxu0 0.0
    %4806 = vmatpush1.msra.mxu0 0.0
    %4807 = vmatprep.subr.mxu0 0.0
    %4808 = vmatpush1.msra.mxu0 0.0
    %4809 = vmatprep.subr.mxu0 0.0
    %4810 = vmatpush1.msra.mxu0 0.0
    %4811 = vmatprep.subr.mxu0 0.0
    %4812 = vmatpush1.msra.mxu0 0.0
    %4813 = vmatprep.subr.mxu0 0.0
    %4814 = vmatpush1.msra.mxu0 0.0
    %4815 = vmatprep.subr.mxu0 0.0
    %4816 = vmatpush1.msra.mxu0 0.0
    %4817 = vmatprep.subr.mxu0 0.0
    %4818 = vmatpush1.msra.mxu0 0.0
    %4819 = vmatprep.subr.mxu0 0.0
    %4820 = vmatpush1.msra.mxu0 0.0
    %4821 = vmatprep.subr.mxu0 0.0
    %4822 = vmatpush1.msra.mxu0 0.0
    %4823 = vmatprep.subr.mxu0 0.0
    %4824 = vmatpush1.msra.mxu0 0.0
    %4825 = vmatprep.subr.mxu0 0.0
    %4826 = vmatpush1.msra.mxu0 0.0
    %4827 = vmatprep.subr.mxu0 0.0
    %4828 = vmatpush1.msra.mxu0 0.0
    %4829 = vmatprep.subr.mxu0 0.0
    %4830 = vmatpush1.msra.mxu0 0.0
    %4831 = vmatprep.subr.mxu0 0.0
    %4832 = vmatpush1.msra.mxu0 0.0
    %4833 = vmatprep.subr.mxu0 0.0
    %4834 = vmatpush1.msra.mxu0 0.0
    %4835 = vmatprep.subr.mxu0 0.0
    %4836 = vmatpush1.msra.mxu0 0.0
    %4837 = vmatprep.subr.mxu0 0.0
    %4838 = vmatpush1.msra.mxu0 0.0
    %4839 = vmatprep.subr.mxu0 0.0
    %4840 = vmatpush1.msra.mxu0 0.0
    %4841 = vmatprep.subr.mxu0 0.0
    %4842 = vmatpush1.msra.mxu0 0.0
    %4843 = vmatprep.subr.mxu0 0.0
    %4844 = vmatpush1.msra.mxu0 0.0
    %4845 = vmatprep.subr.mxu0 0.0
    %4846 = vmatpush1.msra.mxu0 0.0
    %4847 = vmatprep.subr.mxu0 0.0
    %4848 = vmatpush1.msra.mxu0 0.0
    %4849 = vmatprep.subr.mxu0 0.0
    %4850 = vmatpush1.msra.mxu0 0.0
    %4851 = vmatprep.subr.mxu0 0.0
    %4852 = vmatpush1.msra.mxu0 0.0
    %4853 = vmatprep.mubr.f32.mxu0 0.0
    %4854 = vmatmul.mubr.f32.gmra.mrb[0].mxu0 %v4784
    %v4855 = vpop.f32.mrb[0].mxu0
    %v4856 = vadd.f32 0.0, %v4855
    %v4857 = vpop.f32.mrb[0].mxu0
    %4858 = vmatprep.mubr.f32.mxu0 0.0
    %4859 = vmatmul.mubr.f32.gmra.mrb[0].mxu0 %v4787
    %v4860 = vpop.f32.mrb[0].mxu0
    %v4861 = vadd.f32 0.0, %v4860
    %v4862 = vpop.f32.mrb[0].mxu0
    %4863 = vdwg.mxu0
    %v4865 = vsel %vm4041, %v4856, 0
    %v4868 = vsel %vm4041, %v4861, 0
    %v4871 = vsel %vm4447, %v4272, 0
    %4873 = vmatprep.subr.mxu0 0.0
    %4874 = vmatpush1.msra.mxu0 %v66
    %4875 = vmatprep.subr.mxu0 0.0
    %4876 = vmatpush1.msra.mxu0 %v2500
    %4877 = vmatprep.subr.mxu0 0.0
    %4878 = vmatpush1.msra.mxu0 %v4270
    %4879 = vmatprep.subr.mxu0 0.0
    %4880 = vmatpush1.msra.mxu0 %v4271
    %4881 = vmatprep.subr.mxu0 0.0
    %4882 = vmatpush1.msra.mxu0 %v4871
    %4883 = vmatprep.subr.mxu0 0.0
    %4884 = vmatpush1.msra.mxu0 0.0
    %4885 = vmatprep.subr.mxu0 0.0
    %4886 = vmatpush1.msra.mxu0 0.0
    %4887 = vmatprep.subr.mxu0 0.0
    %4888 = vmatpush1.msra.mxu0 0.0
    %4889 = vmatprep.subr.mxu0 0.0
    %4890 = vmatpush1.msra.mxu0 0.0
    %4891 = vmatprep.subr.mxu0 0.0
    %4892 = vmatpush1.msra.mxu0 0.0
    %4893 = vmatprep.subr.mxu0 0.0
    %4894 = vmatpush1.msra.mxu0 0.0
    %4895 = vmatprep.subr.mxu0 0.0
    %4896 = vmatpush1.msra.mxu0 0.0
    %4897 = vmatprep.subr.mxu0 0.0
    %4898 = vmatpush1.msra.mxu0 0.0
    %4899 = vmatprep.subr.mxu0 0.0
    %4900 = vmatpush1.msra.mxu0 0.0
    %4901 = vmatprep.subr.mxu0 0.0
    %4902 = vmatpush1.msra.mxu0 0.0
    %4903 = vmatprep.subr.mxu0 0.0
    %4904 = vmatpush1.msra.mxu0 0.0
    %4905 = vmatprep.subr.mxu0 0.0
    %4906 = vmatpush1.msra.mxu0 0.0
    %4907 = vmatprep.subr.mxu0 0.0
    %4908 = vmatpush1.msra.mxu0 0.0
    %4909 = vmatprep.subr.mxu0 0.0
    %4910 = vmatpush1.msra.mxu0 0.0
    %4911 = vmatprep.subr.mxu0 0.0
    %4912 = vmatpush1.msra.mxu0 0.0
    %4913 = vmatprep.subr.mxu0 0.0
    %4914 = vmatpush1.msra.mxu0 0.0
    %4915 = vmatprep.subr.mxu0 0.0
    %4916 = vmatpush1.msra.mxu0 0.0
    %4917 = vmatprep.subr.mxu0 0.0
    %4918 = vmatpush1.msra.mxu0 0.0
    %4919 = vmatprep.subr.mxu0 0.0
    %4920 = vmatpush1.msra.mxu0 0.0
    %4921 = vmatprep.subr.mxu0 0.0
    %4922 = vmatpush1.msra.mxu0 0.0
    %4923 = vmatprep.subr.mxu0 0.0
    %4924 = vmatpush1.msra.mxu0 0.0
    %4925 = vmatprep.subr.mxu0 0.0
    %4926 = vmatpush1.msra.mxu0 0.0
    %4927 = vmatprep.subr.mxu0 0.0
    %4928 = vmatpush1.msra.mxu0 0.0
    %4929 = vmatprep.subr.mxu0 0.0
    %4930 = vmatpush1.msra.mxu0 0.0
    %4931 = vmatprep.subr.mxu0 0.0
    %4932 = vmatpush1.msra.mxu0 0.0
    %4933 = vmatprep.subr.mxu0 0.0
    %4934 = vmatpush1.msra.mxu0 0.0
    %4935 = vmatprep.subr.mxu0 0.0
    %4936 = vmatpush1.msra.mxu0 0.0
    %4937 = vmatprep.mubr.f32.mxu0 0.0
    %4938 = vmatmul.mubr.f32.gmra.mrb[0].mxu0 %v4865
    %v4939 = vpop.f32.mrb[0].mxu0
    %v4940 = vadd.f32 0.0, %v4939
    %v4941 = vpop.f32.mrb[0].mxu0
    %4942 = vmatprep.mubr.f32.mxu0 0.0
    %4943 = vmatmul.mubr.f32.gmra.mrb[0].mxu0 %v4868
    %v4944 = vpop.f32.mrb[0].mxu0
    %v4945 = vadd.f32 0.0, %v4944
    %v4946 = vpop.f32.mrb[0].mxu0
    %4947 = vdwg.mxu0
    %v4948 = vadd.f32 %v4778, %v4940
    %v4949 = vadd.f32 %v4779, %v4945
    %4950 = vmatprep.subr.mxu0 0.0
    %4951 = vmatpush1.msra.mxu0 %v4230
    %4952 = vmatprep.subr.mxu0 0.0
    %4953 = vmatpush1.msra.mxu0 %v4231
    %4954 = vmatprep.subr.mxu0 0.0
    %4955 = vmatpush1.msra.mxu0 %v4232
    %4956 = vmatprep.subr.mxu0 0.0
    %4957 = vmatpush1.msra.mxu0 %v4233
    %4958 = vmatprep.subr.mxu0 0.0
    %4959 = vmatpush1.msra.mxu0 0.0
    %4960 = vmatprep.subr.mxu0 0.0
    %4961 = vmatpush1.msra.mxu0 0.0
    %4962 = vmatprep.subr.mxu0 0.0
    %4963 = vmatpush1.msra.mxu0 0.0
    %4964 = vmatprep.subr.mxu0 0.0
    %4965 = vmatpush1.msra.mxu0 0.0
    %4966 = vmatprep.subr.mxu0 0.0
    %4967 = vmatpush1.msra.mxu0 0.0
    %4968 = vmatprep.subr.mxu0 0.0
    %4969 = vmatpush1.msra.mxu0 0.0
    %4970 = vmatprep.subr.mxu0 0.0
    %4971 = vmatpush1.msra.mxu0 0.0
    %4972 = vmatprep.subr.mxu0 0.0
    %4973 = vmatpush1.msra.mxu0 0.0
    %4974 = vmatprep.subr.mxu0 0.0
    %4975 = vmatpush1.msra.mxu0 0.0
    %4976 = vmatprep.subr.mxu0 0.0
    %4977 = vmatpush1.msra.mxu0 0.0
    %4978 = vmatprep.subr.mxu0 0.0
    %4979 = vmatpush1.msra.mxu0 0.0
    %4980 = vmatprep.subr.mxu0 0.0
    %4981 = vmatpush1.msra.mxu0 0.0
    %4982 = vmatprep.subr.mxu0 0.0
    %4983 = vmatpush1.msra.mxu0 0.0
    %4984 = vmatprep.subr.mxu0 0.0
    %4985 = vmatpush1.msra.mxu0 0.0
    %4986 = vmatprep.subr.mxu0 0.0
    %4987 = vmatpush1.msra.mxu0 0.0
    %4988 = vmatprep.subr.mxu0 0.0
    %4989 = vmatpush1.msra.mxu0 0.0
    %4990 = vmatprep.subr.mxu0 0.0
    %4991 = vmatpush1.msra.mxu0 0.0
    %4992 = vmatprep.subr.mxu0 0.0
    %4993 = vmatpush1.msra.mxu0 0.0
    %4994 = vmatprep.subr.mxu0 0.0
    %4995 = vmatpush1.msra.mxu0 0.0
    %4996 = vmatprep.subr.mxu0 0.0
    %4997 = vmatpush1.msra.mxu0 0.0
    %4998 = vmatprep.subr.mxu0 0.0
    %4999 = vmatpush1.msra.mxu0 0.0
    %5000 = vmatprep.subr.mxu0 0.0
    %5001 = vmatpush1.msra.mxu0 0.0
    %5002 = vmatprep.subr.mxu0 0.0
    %5003 = vmatpush1.msra.mxu0 0.0
    %5004 = vmatprep.subr.mxu0 0.0
    %5005 = vmatpush1.msra.mxu0 0.0
    %5006 = vmatprep.subr.mxu0 0.0
    %5007 = vmatpush1.msra.mxu0 0.0
    %5008 = vmatprep.subr.mxu0 0.0
    %5009 = vmatpush1.msra.mxu0 0.0
    %5010 = vmatprep.subr.mxu0 0.0
    %5011 = vmatpush1.msra.mxu0 0.0
    %5012 = vmatprep.subr.mxu0 0.0
    %5013 = vmatpush1.msra.mxu0 0.0
    %5014 = vmatprep.mubr.f32.mxu0 0.0
    %5015 = vmatmul.mubr.f32.gmra.mrb[0].mxu0 %v4277
    %v5016 = vpop.f32.mrb[0].mxu0
    %v5017 = vadd.f32 0.0, %v5016
    %v5018 = vpop.f32.mrb[0].mxu0
    %5019 = vmatprep.mubr.f32.mxu0 0.0
    %5020 = vmatmul.mubr.f32.gmra.mrb[0].mxu0 %v4280
    %v5021 = vpop.f32.mrb[0].mxu0
    %v5022 = vadd.f32 0.0, %v5021
    %v5023 = vpop.f32.mrb[0].mxu0
    %5024 = vdwg.mxu0
    %5025 = vmatprep.subr.mxu0 0.0
    %5026 = vmatpush1.msra.mxu0 %v4230
    %5027 = vmatprep.subr.mxu0 0.0
    %5028 = vmatpush1.msra.mxu0 %v4231
    %5029 = vmatprep.subr.mxu0 0.0
    %5030 = vmatpush1.msra.mxu0 %v4232
    %5031 = vmatprep.subr.mxu0 0.0
    %5032 = vmatpush1.msra.mxu0 %v4233
    %5033 = vmatprep.subr.mxu0 0.0
    %5034 = vmatpush1.msra.mxu0 0.0
    %5035 = vmatprep.subr.mxu0 0.0
    %5036 = vmatpush1.msra.mxu0 0.0
    %5037 = vmatprep.subr.mxu0 0.0
    %5038 = vmatpush1.msra.mxu0 0.0
    %5039 = vmatprep.subr.mxu0 0.0
    %5040 = vmatpush1.msra.mxu0 0.0
    %5041 = vmatprep.subr.mxu0 0.0
    %5042 = vmatpush1.msra.mxu0 0.0
    %5043 = vmatprep.subr.mxu0 0.0
    %5044 = vmatpush1.msra.mxu0 0.0
    %5045 = vmatprep.subr.mxu0 0.0
    %5046 = vmatpush1.msra.mxu0 0.0
    %5047 = vmatprep.subr.mxu0 0.0
    %5048 = vmatpush1.msra.mxu0 0.0
    %5049 = vmatprep.subr.mxu0 0.0
    %5050 = vmatpush1.msra.mxu0 0.0
    %5051 = vmatprep.subr.mxu0 0.0
    %5052 = vmatpush1.msra.mxu0 0.0
    %5053 = vmatprep.subr.mxu0 0.0
    %5054 = vmatpush1.msra.mxu0 0.0
    %5055 = vmatprep.subr.mxu0 0.0
    %5056 = vmatpush1.msra.mxu0 0.0
    %5057 = vmatprep.subr.mxu0 0.0
    %5058 = vmatpush1.msra.mxu0 0.0
    %5059 = vmatprep.subr.mxu0 0.0
    %5060 = vmatpush1.msra.mxu0 0.0
    %5061 = vmatprep.subr.mxu0 0.0
    %5062 = vmatpush1.msra.mxu0 0.0
    %5063 = vmatprep.subr.mxu0 0.0
    %5064 = vmatpush1.msra.mxu0 0.0
    %5065 = vmatprep.subr.mxu0 0.0
    %5066 = vmatpush1.msra.mxu0 0.0
    %5067 = vmatprep.subr.mxu0 0.0
    %5068 = vmatpush1.msra.mxu0 0.0
    %5069 = vmatprep.subr.mxu0 0.0
    %5070 = vmatpush1.msra.mxu0 0.0
    %5071 = vmatprep.subr.mxu0 0.0
    %5072 = vmatpush1.msra.mxu0 0.0
    %5073 = vmatprep.subr.mxu0 0.0
    %5074 = vmatpush1.msra.mxu0 0.0
    %5075 = vmatprep.subr.mxu0 0.0
    %5076 = vmatpush1.msra.mxu0 0.0
    %5077 = vmatprep.subr.mxu0 0.0
    %5078 = vmatpush1.msra.mxu0 0.0
    %5079 = vmatprep.subr.mxu0 0.0
    %5080 = vmatpush1.msra.mxu0 0.0
    %5081 = vmatprep.subr.mxu0 0.0
    %5082 = vmatpush1.msra.mxu0 0.0
    %5083 = vmatprep.subr.mxu0 0.0
    %5084 = vmatpush1.msra.mxu0 0.0
    %5085 = vmatprep.subr.mxu0 0.0
    %5086 = vmatpush1.msra.mxu0 0.0
    %5087 = vmatprep.subr.mxu0 0.0
    %5088 = vmatpush1.msra.mxu0 0.0
    %5089 = vmatprep.mubr.f32.mxu0 0.0
    %5090 = vmatmul.mubr.f32.gmra.mrb[0].mxu0 %v4361
    %v5091 = vpop.f32.mrb[0].mxu0
    %v5092 = vadd.f32 0.0, %v5091
    %v5093 = vpop.f32.mrb[0].mxu0
    %5094 = vmatprep.mubr.f32.mxu0 0.0
    %5095 = vmatmul.mubr.f32.gmra.mrb[0].mxu0 %v4364
    %v5096 = vpop.f32.mrb[0].mxu0
    %v5097 = vadd.f32 0.0, %v5096
    %v5098 = vpop.f32.mrb[0].mxu0
    %5099 = vdwg.mxu0
    %v5101 = vsel %vm4041, %v5092, 0
    %v5104 = vsel %vm4041, %v5097, 0
    %5106 = vmatprep.subr.mxu0 0.0
    %5107 = vmatpush1.msra.mxu0 %v60
    %5108 = vmatprep.subr.mxu0 0.0
    %5109 = vmatpush1.msra.mxu0 %v2494
    %5110 = vmatprep.subr.mxu0 0.0
    %5111 = vmatpush1.msra.mxu0 %v4252
    %5112 = vmatprep.subr.mxu0 0.0
    %5113 = vmatpush1.msra.mxu0 %v4253
    %5114 = vmatprep.subr.mxu0 0.0
    %5115 = vmatpush1.msra.mxu0 %v4449
    %5116 = vmatprep.subr.mxu0 0.0
    %5117 = vmatpush1.msra.mxu0 0.0
    %5118 = vmatprep.subr.mxu0 0.0
    %5119 = vmatpush1.msra.mxu0 0.0
    %5120 = vmatprep.subr.mxu0 0.0
    %5121 = vmatpush1.msra.mxu0 0.0
    %5122 = vmatprep.subr.mxu0 0.0
    %5123 = vmatpush1.msra.mxu0 0.0
    %5124 = vmatprep.subr.mxu0 0.0
    %5125 = vmatpush1.msra.mxu0 0.0
    %5126 = vmatprep.subr.mxu0 0.0
    %5127 = vmatpush1.msra.mxu0 0.0
    %5128 = vmatprep.subr.mxu0 0.0
    %5129 = vmatpush1.msra.mxu0 0.0
    %5130 = vmatprep.subr.mxu0 0.0
    %5131 = vmatpush1.msra.mxu0 0.0
    %5132 = vmatprep.subr.mxu0 0.0
    %5133 = vmatpush1.msra.mxu0 0.0
    %5134 = vmatprep.subr.mxu0 0.0
    %5135 = vmatpush1.msra.mxu0 0.0
    %5136 = vmatprep.subr.mxu0 0.0
    %5137 = vmatpush1.msra.mxu0 0.0
    %5138 = vmatprep.subr.mxu0 0.0
    %5139 = vmatpush1.msra.mxu0 0.0
    %5140 = vmatprep.subr.mxu0 0.0
    %5141 = vmatpush1.msra.mxu0 0.0
    %5142 = vmatprep.subr.mxu0 0.0
    %5143 = vmatpush1.msra.mxu0 0.0
    %5144 = vmatprep.subr.mxu0 0.0
    %5145 = vmatpush1.msra.mxu0 0.0
    %5146 = vmatprep.subr.mxu0 0.0
    %5147 = vmatpush1.msra.mxu0 0.0
    %5148 = vmatprep.subr.mxu0 0.0
    %5149 = vmatpush1.msra.mxu0 0.0
    %5150 = vmatprep.subr.mxu0 0.0
    %5151 = vmatpush1.msra.mxu0 0.0
    %5152 = vmatprep.subr.mxu0 0.0
    %5153 = vmatpush1.msra.mxu0 0.0
    %5154 = vmatprep.subr.mxu0 0.0
    %5155 = vmatpush1.msra.mxu0 0.0
    %5156 = vmatprep.subr.mxu0 0.0
    %5157 = vmatpush1.msra.mxu0 0.0
    %5158 = vmatprep.subr.mxu0 0.0
    %5159 = vmatpush1.msra.mxu0 0.0
    %5160 = vmatprep.subr.mxu0 0.0
    %5161 = vmatpush1.msra.mxu0 0.0
    %5162 = vmatprep.subr.mxu0 0.0
    %5163 = vmatpush1.msra.mxu0 0.0
    %5164 = vmatprep.subr.mxu0 0.0
    %5165 = vmatpush1.msra.mxu0 0.0
    %5166 = vmatprep.subr.mxu0 0.0
    %5167 = vmatpush1.msra.mxu0 0.0
    %5168 = vmatprep.subr.mxu0 0.0
    %5169 = vmatpush1.msra.mxu0 0.0
    %5170 = vmatprep.mubr.f32.mxu0 0.0
    %5171 = vmatmul.mubr.f32.gmra.mrb[0].mxu0 %v5101
    %v5172 = vpop.f32.mrb[0].mxu0
    %v5173 = vadd.f32 0.0, %v5172
    %v5174 = vpop.f32.mrb[0].mxu0
    %5175 = vmatprep.mubr.f32.mxu0 0.0
    %5176 = vmatmul.mubr.f32.gmra.mrb[0].mxu0 %v5104
    %v5177 = vpop.f32.mrb[0].mxu0
    %v5178 = vadd.f32 0.0, %v5177
    %v5179 = vpop.f32.mrb[0].mxu0
    %5180 = vdwg.mxu0
    %v5182 = vsel %vm4041, %v5017, 0
    %v5185 = vsel %vm4041, %v5022, 0
    %5187 = vmatprep.subr.mxu0 0.0
    %5188 = vmatpush1.msra.mxu0 %v58
    %5189 = vmatprep.subr.mxu0 0.0
    %5190 = vmatpush1.msra.mxu0 %v2492
    %5191 = vmatprep.subr.mxu0 0.0
    %5192 = vmatpush1.msra.mxu0 %v4246
    %5193 = vmatprep.subr.mxu0 0.0
    %5194 = vmatpush1.msra.mxu0 %v4247
    %5195 = vmatprep.subr.mxu0 0.0
    %5196 = vmatpush1.msra.mxu0 %v4533
    %5197 = vmatprep.subr.mxu0 0.0
    %5198 = vmatpush1.msra.mxu0 0.0
    %5199 = vmatprep.subr.mxu0 0.0
    %5200 = vmatpush1.msra.mxu0 0.0
    %5201 = vmatprep.subr.mxu0 0.0
    %5202 = vmatpush1.msra.mxu0 0.0
    %5203 = vmatprep.subr.mxu0 0.0
    %5204 = vmatpush1.msra.mxu0 0.0
    %5205 = vmatprep.subr.mxu0 0.0
    %5206 = vmatpush1.msra.mxu0 0.0
    %5207 = vmatprep.subr.mxu0 0.0
    %5208 = vmatpush1.msra.mxu0 0.0
    %5209 = vmatprep.subr.mxu0 0.0
    %5210 = vmatpush1.msra.mxu0 0.0
    %5211 = vmatprep.subr.mxu0 0.0
    %5212 = vmatpush1.msra.mxu0 0.0
    %5213 = vmatprep.subr.mxu0 0.0
    %5214 = vmatpush1.msra.mxu0 0.0
    %5215 = vmatprep.subr.mxu0 0.0
    %5216 = vmatpush1.msra.mxu0 0.0
    %5217 = vmatprep.subr.mxu0 0.0
    %5218 = vmatpush1.msra.mxu0 0.0
    %5219 = vmatprep.subr.mxu0 0.0
    %5220 = vmatpush1.msra.mxu0 0.0
    %5221 = vmatprep.subr.mxu0 0.0
    %5222 = vmatpush1.msra.mxu0 0.0
    %5223 = vmatprep.subr.mxu0 0.0
    %5224 = vmatpush1.msra.mxu0 0.0
    %5225 = vmatprep.subr.mxu0 0.0
    %5226 = vmatpush1.msra.mxu0 0.0
    %5227 = vmatprep.subr.mxu0 0.0
    %5228 = vmatpush1.msra.mxu0 0.0
    %5229 = vmatprep.subr.mxu0 0.0
    %5230 = vmatpush1.msra.mxu0 0.0
    %5231 = vmatprep.subr.mxu0 0.0
    %5232 = vmatpush1.msra.mxu0 0.0
    %5233 = vmatprep.subr.mxu0 0.0
    %5234 = vmatpush1.msra.mxu0 0.0
    %5235 = vmatprep.subr.mxu0 0.0
    %5236 = vmatpush1.msra.mxu0 0.0
    %5237 = vmatprep.subr.mxu0 0.0
    %5238 = vmatpush1.msra.mxu0 0.0
    %5239 = vmatprep.subr.mxu0 0.0
    %5240 = vmatpush1.msra.mxu0 0.0
    %5241 = vmatprep.subr.mxu0 0.0
    %5242 = vmatpush1.msra.mxu0 0.0
    %5243 = vmatprep.subr.mxu0 0.0
    %5244 = vmatpush1.msra.mxu0 0.0
    %5245 = vmatprep.subr.mxu0 0.0
    %5246 = vmatpush1.msra.mxu0 0.0
    %5247 = vmatprep.subr.mxu0 0.0
    %5248 = vmatpush1.msra.mxu0 0.0
    %5249 = vmatprep.subr.mxu0 0.0
    %5250 = vmatpush1.msra.mxu0 0.0
    %5251 = vmatprep.mubr.f32.mxu0 0.0
    %5252 = vmatmul.mubr.f32.gmra.mrb[0].mxu0 %v5182
    %v5253 = vpop.f32.mrb[0].mxu0
    %v5254 = vadd.f32 %v5173, %v5253
    %v5255 = vpop.f32.mrb[0].mxu0
    %5256 = vmatprep.mubr.f32.mxu0 0.0
    %5257 = vmatmul.mubr.f32.gmra.mrb[0].mxu0 %v5185
    %v5258 = vpop.f32.mrb[0].mxu0
    %v5259 = vadd.f32 %v5178, %v5258
    %v5260 = vpop.f32.mrb[0].mxu0
    %5261 = vdwg.mxu0
    %5262 = vmatprep.subr.mxu0 0.0
    %5263 = vmatpush1.msra.mxu0 %v4230
    %5264 = vmatprep.subr.mxu0 0.0
    %5265 = vmatpush1.msra.mxu0 %v4231
    %5266 = vmatprep.subr.mxu0 0.0
    %5267 = vmatpush1.msra.mxu0 %v4232
    %5268 = vmatprep.subr.mxu0 0.0
    %5269 = vmatpush1.msra.mxu0 %v4233
    %5270 = vmatprep.subr.mxu0 0.0
    %5271 = vmatpush1.msra.mxu0 0.0
    %5272 = vmatprep.subr.mxu0 0.0
    %5273 = vmatpush1.msra.mxu0 0.0
    %5274 = vmatprep.subr.mxu0 0.0
    %5275 = vmatpush1.msra.mxu0 0.0
    %5276 = vmatprep.subr.mxu0 0.0
    %5277 = vmatpush1.msra.mxu0 0.0
    %5278 = vmatprep.subr.mxu0 0.0
    %5279 = vmatpush1.msra.mxu0 0.0
    %5280 = vmatprep.subr.mxu0 0.0
    %5281 = vmatpush1.msra.mxu0 0.0
    %5282 = vmatprep.subr.mxu0 0.0
    %5283 = vmatpush1.msra.mxu0 0.0
    %5284 = vmatprep.subr.mxu0 0.0
    %5285 = vmatpush1.msra.mxu0 0.0
    %5286 = vmatprep.subr.mxu0 0.0
    %5287 = vmatpush1.msra.mxu0 0.0
    %5288 = vmatprep.subr.mxu0 0.0
    %5289 = vmatpush1.msra.mxu0 0.0
    %5290 = vmatprep.subr.mxu0 0.0
    %5291 = vmatpush1.msra.mxu0 0.0
    %5292 = vmatprep.subr.mxu0 0.0
    %5293 = vmatpush1.msra.mxu0 0.0
    %5294 = vmatprep.subr.mxu0 0.0
    %5295 = vmatpush1.msra.mxu0 0.0
    %5296 = vmatprep.subr.mxu0 0.0
    %5297 = vmatpush1.msra.mxu0 0.0
    %5298 = vmatprep.subr.mxu0 0.0
    %5299 = vmatpush1.msra.mxu0 0.0
    %5300 = vmatprep.subr.mxu0 0.0
    %5301 = vmatpush1.msra.mxu0 0.0
    %5302 = vmatprep.subr.mxu0 0.0
    %5303 = vmatpush1.msra.mxu0 0.0
    %5304 = vmatprep.subr.mxu0 0.0
    %5305 = vmatpush1.msra.mxu0 0.0
    %5306 = vmatprep.subr.mxu0 0.0
    %5307 = vmatpush1.msra.mxu0 0.0
    %5308 = vmatprep.subr.mxu0 0.0
    %5309 = vmatpush1.msra.mxu0 0.0
    %5310 = vmatprep.subr.mxu0 0.0
    %5311 = vmatpush1.msra.mxu0 0.0
    %5312 = vmatprep.subr.mxu0 0.0
    %5313 = vmatpush1.msra.mxu0 0.0
    %5314 = vmatprep.subr.mxu0 0.0
    %5315 = vmatpush1.msra.mxu0 0.0
    %5316 = vmatprep.subr.mxu0 0.0
    %5317 = vmatpush1.msra.mxu0 0.0
    %5318 = vmatprep.subr.mxu0 0.0
    %5319 = vmatpush1.msra.mxu0 0.0
    %5320 = vmatprep.subr.mxu0 0.0
    %5321 = vmatpush1.msra.mxu0 0.0
    %5322 = vmatprep.subr.mxu0 0.0
    %5323 = vmatpush1.msra.mxu0 0.0
    %5324 = vmatprep.subr.mxu0 0.0
    %5325 = vmatpush1.msra.mxu0 0.0
    %5326 = vmatprep.mubr.f32.mxu0 0.0
    %5327 = vmatmul.mubr.f32.gmra.mrb[0].mxu0 %v4614
    %v5328 = vpop.f32.mrb[0].mxu0
    %v5329 = vadd.f32 0.0, %v5328
    %v5330 = vpop.f32.mrb[0].mxu0
    %5331 = vmatprep.mubr.f32.mxu0 0.0
    %5332 = vmatmul.mubr.f32.gmra.mrb[0].mxu0 %v4617
    %v5333 = vpop.f32.mrb[0].mxu0
    %v5334 = vadd.f32 0.0, %v5333
    %v5335 = vpop.f32.mrb[0].mxu0
    %5336 = vdwg.mxu0
    %v5338 = vsel %vm4041, %v5329, 0
    %v5341 = vsel %vm4041, %v5334, 0
    %5343 = vmatprep.subr.mxu0 0.0
    %5344 = vmatpush1.msra.mxu0 %v63
    %5345 = vmatprep.subr.mxu0 0.0
    %5346 = vmatpush1.msra.mxu0 %v2497
    %5347 = vmatprep.subr.mxu0 0.0
    %5348 = vmatpush1.msra.mxu0 %v4261
    %5349 = vmatprep.subr.mxu0 0.0
    %5350 = vmatpush1.msra.mxu0 %v4262
    %5351 = vmatprep.subr.mxu0 0.0
    %5352 = vmatpush1.msra.mxu0 %v4701
    %5353 = vmatprep.subr.mxu0 0.0
    %5354 = vmatpush1.msra.mxu0 0.0
    %5355 = vmatprep.subr.mxu0 0.0
    %5356 = vmatpush1.msra.mxu0 0.0
    %5357 = vmatprep.subr.mxu0 0.0
    %5358 = vmatpush1.msra.mxu0 0.0
    %5359 = vmatprep.subr.mxu0 0.0
    %5360 = vmatpush1.msra.mxu0 0.0
    %5361 = vmatprep.subr.mxu0 0.0
    %5362 = vmatpush1.msra.mxu0 0.0
    %5363 = vmatprep.subr.mxu0 0.0
    %5364 = vmatpush1.msra.mxu0 0.0
    %5365 = vmatprep.subr.mxu0 0.0
    %5366 = vmatpush1.msra.mxu0 0.0
    %5367 = vmatprep.subr.mxu0 0.0
    %5368 = vmatpush1.msra.mxu0 0.0
    %5369 = vmatprep.subr.mxu0 0.0
    %5370 = vmatpush1.msra.mxu0 0.0
    %5371 = vmatprep.subr.mxu0 0.0
    %5372 = vmatpush1.msra.mxu0 0.0
    %5373 = vmatprep.subr.mxu0 0.0
    %5374 = vmatpush1.msra.mxu0 0.0
    %5375 = vmatprep.subr.mxu0 0.0
    %5376 = vmatpush1.msra.mxu0 0.0
    %5377 = vmatprep.subr.mxu0 0.0
    %5378 = vmatpush1.msra.mxu0 0.0
    %5379 = vmatprep.subr.mxu0 0.0
    %5380 = vmatpush1.msra.mxu0 0.0
    %5381 = vmatprep.subr.mxu0 0.0
    %5382 = vmatpush1.msra.mxu0 0.0
    %5383 = vmatprep.subr.mxu0 0.0
    %5384 = vmatpush1.msra.mxu0 0.0
    %5385 = vmatprep.subr.mxu0 0.0
    %5386 = vmatpush1.msra.mxu0 0.0
    %5387 = vmatprep.subr.mxu0 0.0
    %5388 = vmatpush1.msra.mxu0 0.0
    %5389 = vmatprep.subr.mxu0 0.0
    %5390 = vmatpush1.msra.mxu0 0.0
    %5391 = vmatprep.subr.mxu0 0.0
    %5392 = vmatpush1.msra.mxu0 0.0
    %5393 = vmatprep.subr.mxu0 0.0
    %5394 = vmatpush1.msra.mxu0 0.0
    %5395 = vmatprep.subr.mxu0 0.0
    %5396 = vmatpush1.msra.mxu0 0.0
    %5397 = vmatprep.subr.mxu0 0.0
    %5398 = vmatpush1.msra.mxu0 0.0
    %5399 = vmatprep.subr.mxu0 0.0
    %5400 = vmatpush1.msra.mxu0 0.0
    %5401 = vmatprep.subr.mxu0 0.0
    %5402 = vmatpush1.msra.mxu0 0.0
    %5403 = vmatprep.subr.mxu0 0.0
    %5404 = vmatpush1.msra.mxu0 0.0
    %5405 = vmatprep.subr.mxu0 0.0
    %5406 = vmatpush1.msra.mxu0 0.0
    %5407 = vmatprep.mubr.f32.mxu0 0.0
    %5408 = vmatmul.mubr.f32.gmra.mrb[0].mxu0 %v5338
    %v5409 = vpop.f32.mrb[0].mxu0
    %v5410 = vadd.f32 0.0, %v5409
    %v5411 = vpop.f32.mrb[0].mxu0
    %5412 = vmatprep.mubr.f32.mxu0 0.0
    %5413 = vmatmul.mubr.f32.gmra.mrb[0].mxu0 %v5341
    %v5414 = vpop.f32.mrb[0].mxu0
    %v5415 = vadd.f32 0.0, %v5414
    %v5416 = vpop.f32.mrb[0].mxu0
    %5417 = vdwg.mxu0
    %v5418 = vadd.f32 %v5254, %v5410
    %v5419 = vadd.f32 %v5259, %v5415
    %5420 = vmatprep.subr.mxu0 0.0
    %5421 = vmatpush1.msra.mxu0 %v4230
    %5422 = vmatprep.subr.mxu0 0.0
    %5423 = vmatpush1.msra.mxu0 %v4231
    %5424 = vmatprep.subr.mxu0 0.0
    %5425 = vmatpush1.msra.mxu0 %v4232
    %5426 = vmatprep.subr.mxu0 0.0
    %5427 = vmatpush1.msra.mxu0 %v4233
    %5428 = vmatprep.subr.mxu0 0.0
    %5429 = vmatpush1.msra.mxu0 0.0
    %5430 = vmatprep.subr.mxu0 0.0
    %5431 = vmatpush1.msra.mxu0 0.0
    %5432 = vmatprep.subr.mxu0 0.0
    %5433 = vmatpush1.msra.mxu0 0.0
    %5434 = vmatprep.subr.mxu0 0.0
    %5435 = vmatpush1.msra.mxu0 0.0
    %5436 = vmatprep.subr.mxu0 0.0
    %5437 = vmatpush1.msra.mxu0 0.0
    %5438 = vmatprep.subr.mxu0 0.0
    %5439 = vmatpush1.msra.mxu0 0.0
    %5440 = vmatprep.subr.mxu0 0.0
    %5441 = vmatpush1.msra.mxu0 0.0
    %5442 = vmatprep.subr.mxu0 0.0
    %5443 = vmatpush1.msra.mxu0 0.0
    %5444 = vmatprep.subr.mxu0 0.0
    %5445 = vmatpush1.msra.mxu0 0.0
    %5446 = vmatprep.subr.mxu0 0.0
    %5447 = vmatpush1.msra.mxu0 0.0
    %5448 = vmatprep.subr.mxu0 0.0
    %5449 = vmatpush1.msra.mxu0 0.0
    %5450 = vmatprep.subr.mxu0 0.0
    %5451 = vmatpush1.msra.mxu0 0.0
    %5452 = vmatprep.subr.mxu0 0.0
    %5453 = vmatpush1.msra.mxu0 0.0
    %5454 = vmatprep.subr.mxu0 0.0
    %5455 = vmatpush1.msra.mxu0 0.0
    %5456 = vmatprep.subr.mxu0 0.0
    %5457 = vmatpush1.msra.mxu0 0.0
    %5458 = vmatprep.subr.mxu0 0.0
    %5459 = vmatpush1.msra.mxu0 0.0
    %5460 = vmatprep.subr.mxu0 0.0
    %5461 = vmatpush1.msra.mxu0 0.0
    %5462 = vmatprep.subr.mxu0 0.0
    %5463 = vmatpush1.msra.mxu0 0.0
    %5464 = vmatprep.subr.mxu0 0.0
    %5465 = vmatpush1.msra.mxu0 0.0
    %5466 = vmatprep.subr.mxu0 0.0
    %5467 = vmatpush1.msra.mxu0 0.0
    %5468 = vmatprep.subr.mxu0 0.0
    %5469 = vmatpush1.msra.mxu0 0.0
    %5470 = vmatprep.subr.mxu0 0.0
    %5471 = vmatpush1.msra.mxu0 0.0
    %5472 = vmatprep.subr.mxu0 0.0
    %5473 = vmatpush1.msra.mxu0 0.0
    %5474 = vmatprep.subr.mxu0 0.0
    %5475 = vmatpush1.msra.mxu0 0.0
    %5476 = vmatprep.subr.mxu0 0.0
    %5477 = vmatpush1.msra.mxu0 0.0
    %5478 = vmatprep.subr.mxu0 0.0
    %5479 = vmatpush1.msra.mxu0 0.0
    %5480 = vmatprep.subr.mxu0 0.0
    %5481 = vmatpush1.msra.mxu0 0.0
    %5482 = vmatprep.subr.mxu0 0.0
    %5483 = vmatpush1.msra.mxu0 0.0
    %5484 = vmatprep.mubr.f32.mxu0 0.0
    %5485 = vmatmul.mubr.f32.gmra.mrb[0].mxu0 %v4784
    %v5486 = vpop.f32.mrb[0].mxu0
    %v5487 = vadd.f32 0.0, %v5486
    %v5488 = vpop.f32.mrb[0].mxu0
    %5489 = vmatprep.mubr.f32.mxu0 0.0
    %5490 = vmatmul.mubr.f32.gmra.mrb[0].mxu0 %v4787
    %v5491 = vpop.f32.mrb[0].mxu0
    %v5492 = vadd.f32 0.0, %v5491
    %v5493 = vpop.f32.mrb[0].mxu0
    %5494 = vdwg.mxu0
    %v5496 = vsel %vm4041, %v5487, 0
    %v5499 = vsel %vm4041, %v5492, 0
    %5501 = vmatprep.subr.mxu0 0.0
    %5502 = vmatpush1.msra.mxu0 %v66
    %5503 = vmatprep.subr.mxu0 0.0
    %5504 = vmatpush1.msra.mxu0 %v2500
    %5505 = vmatprep.subr.mxu0 0.0
    %5506 = vmatpush1.msra.mxu0 %v4270
    %5507 = vmatprep.subr.mxu0 0.0
    %5508 = vmatpush1.msra.mxu0 %v4271
    %5509 = vmatprep.subr.mxu0 0.0
    %5510 = vmatpush1.msra.mxu0 %v4871
    %5511 = vmatprep.subr.mxu0 0.0
    %5512 = vmatpush1.msra.mxu0 0.0
    %5513 = vmatprep.subr.mxu0 0.0
    %5514 = vmatpush1.msra.mxu0 0.0
    %5515 = vmatprep.subr.mxu0 0.0
    %5516 = vmatpush1.msra.mxu0 0.0
    %5517 = vmatprep.subr.mxu0 0.0
    %5518 = vmatpush1.msra.mxu0 0.0
    %5519 = vmatprep.subr.mxu0 0.0
    %5520 = vmatpush1.msra.mxu0 0.0
    %5521 = vmatprep.subr.mxu0 0.0
    %5522 = vmatpush1.msra.mxu0 0.0
    %5523 = vmatprep.subr.mxu0 0.0
    %5524 = vmatpush1.msra.mxu0 0.0
    %5525 = vmatprep.subr.mxu0 0.0
    %5526 = vmatpush1.msra.mxu0 0.0
    %5527 = vmatprep.subr.mxu0 0.0
    %5528 = vmatpush1.msra.mxu0 0.0
    %5529 = vmatprep.subr.mxu0 0.0
    %5530 = vmatpush1.msra.mxu0 0.0
    %5531 = vmatprep.subr.mxu0 0.0
    %5532 = vmatpush1.msra.mxu0 0.0
    %5533 = vmatprep.subr.mxu0 0.0
    %5534 = vmatpush1.msra.mxu0 0.0
    %5535 = vmatprep.subr.mxu0 0.0
    %5536 = vmatpush1.msra.mxu0 0.0
    %5537 = vmatprep.subr.mxu0 0.0
    %5538 = vmatpush1.msra.mxu0 0.0
    %5539 = vmatprep.subr.mxu0 0.0
    %5540 = vmatpush1.msra.mxu0 0.0
    %5541 = vmatprep.subr.mxu0 0.0
    %5542 = vmatpush1.msra.mxu0 0.0
    %5543 = vmatprep.subr.mxu0 0.0
    %5544 = vmatpush1.msra.mxu0 0.0
    %5545 = vmatprep.subr.mxu0 0.0
    %5546 = vmatpush1.msra.mxu0 0.0
    %5547 = vmatprep.subr.mxu0 0.0
    %5548 = vmatpush1.msra.mxu0 0.0
    %5549 = vmatprep.subr.mxu0 0.0
    %5550 = vmatpush1.msra.mxu0 0.0
    %5551 = vmatprep.subr.mxu0 0.0
    %5552 = vmatpush1.msra.mxu0 0.0
    %5553 = vmatprep.subr.mxu0 0.0
    %5554 = vmatpush1.msra.mxu0 0.0
    %5555 = vmatprep.subr.mxu0 0.0
    %5556 = vmatpush1.msra.mxu0 0.0
    %5557 = vmatprep.subr.mxu0 0.0
    %5558 = vmatpush1.msra.mxu0 0.0
    %5559 = vmatprep.subr.mxu0 0.0
    %5560 = vmatpush1.msra.mxu0 0.0
    %5561 = vmatprep.subr.mxu0 0.0
    %5562 = vmatpush1.msra.mxu0 0.0
    %5563 = vmatprep.subr.mxu0 0.0
    %5564 = vmatpush1.msra.mxu0 0.0
    %5565 = vmatprep.mubr.f32.mxu0 0.0
    %5566 = vmatmul.mubr.f32.gmra.mrb[0].mxu0 %v5496
    %v5567 = vpop.f32.mrb[0].mxu0
    %v5568 = vadd.f32 0.0, %v5567
    %v5569 = vpop.f32.mrb[0].mxu0
    %5570 = vmatprep.mubr.f32.mxu0 0.0
    %5571 = vmatmul.mubr.f32.gmra.mrb[0].mxu0 %v5499
    %v5572 = vpop.f32.mrb[0].mxu0
    %v5573 = vadd.f32 0.0, %v5572
    %v5574 = vpop.f32.mrb[0].mxu0
    %5575 = vdwg.mxu0
    %v5576 = vadd.f32 %v5418, %v5568
    %v5577 = vadd.f32 %v5419, %v5573
    %vm5578 = vcmask 539648
    %v5579 = vsel %vm5578, %v4948, 0.0
    %5580 = vadd.xlane.f32.xlu0 %v5579
    %v5581 = vpop.xlane.xlu0 %5580
    %v5582 = vsel %vm5578, %v4949, 0.0
    %5583 = vadd.xlane.f32.xlu0 %v5582
    %v5584 = vpop.xlane.xlu0 %5583
    %v5585 = vmul.f32 %v4948, %v4948
    %v5586 = vmul.f32 %v4949, %v4949
    %v5587 = vsel %vm5578, %v5585, 0.0
    %5588 = vadd.xlane.f32.xlu0 %v5587
    %v5589 = vpop.xlane.xlu0 %5588
    %v5590 = vsel %vm5578, %v5586, 0.0
    %5591 = vadd.xlane.f32.xlu0 %v5590
    %v5592 = vpop.xlane.xlu0 %5591
    %v5593 = vsel %vm5578, %v5576, 0.0
    %5594 = vadd.xlane.f32.xlu0 %v5593
    %v5595 = vpop.xlane.xlu0 %5594
    %v5596 = vsel %vm5578, %v5577, 0.0
    %5597 = vadd.xlane.f32.xlu0 %v5596
    %v5598 = vpop.xlane.xlu0 %5597
    %v5599 = vadd.f32 %v5581, %v5595
    %v5600 = vadd.f32 %v5584, %v5598
    %v5601 = vmul.f32 %v5576, %v5576
    %v5602 = vmul.f32 %v5577, %v5577
    %v5603 = vsel %vm5578, %v5601, 0.0
    %5604 = vadd.xlane.f32.xlu0 %v5603
    %v5605 = vpop.xlane.xlu0 %5604
    %v5606 = vsel %vm5578, %v5602, 0.0
    %5607 = vadd.xlane.f32.xlu0 %v5606
    %v5608 = vpop.xlane.xlu0 %5607
    %v5609 = vadd.f32 %v5589, %v5605
    %v5610 = vadd.f32 %v5592, %v5608
    %v5611 = vmul.f32 %v5599, 0.007575758
    %v5612 = vmul.f32 %v5600, 0.007575758
    %v5613 = vmul.f32 %v5609, 0.007575758
    %v5614 = vmul.f32 %v5610, 0.007575758
    %v5615 = vmul.f32 %v5611, %v5611
    %v5616 = vmul.f32 %v5612, %v5612
    %v5617 = vsub.f32 %v5613, %v5615
    %v5618 = vsub.f32 %v5614, %v5616
    %v5619 = vmax.f32 %v5617, 0.0
    %v5620 = vmax.f32 %v5618, 0.0
    %v5621 = vld [vmem:[%s8] sm:$0xff]
    %v5622 = vld [vmem:[%s8 + $0x8] sm:$0xff]
    %v5623 = vadd.f32 %v5619, 1e-05
    %v5624 = vadd.f32 %v5620, 1e-05
    %v5625 = vrsqrt.pop %v5623
    %v5626 = vrsqrt.pop %v5624
    %v5627 = vmul.f32 %v5621, %v5625
    %v5628 = vmul.f32 %v5622, %v5626
    %v5629 = vld [vmem:[%s9] sm:$0xff]
    %v5630 = vld [vmem:[%s9 + $0x8] sm:$0xff]
    %v5631 = vmul.f32 %v5611, %v5627
    %v5632 = vmul.f32 %v5612, %v5628
    %v5633 = vsub.f32 %v5629, %v5631
    %v5634 = vsub.f32 %v5630, %v5632
    %5636 = vset.pattern.permute.xlu0 0
    %5637 = vperm.xlu0 %5636, %v5627
    %v5638 = vpop.permute.xlu0 %5637
    %5641 = vset.pattern.permute.xlu0 0
    %5642 = vperm.xlu0 %5641, %v5628
    %v5643 = vpop.permute.xlu0 %5642
    %v5645 = vmul.f32 %v4948, %v5638
    %v5646 = vmul.f32 %v4949, %v5643
    %5648 = vset.pattern.permute.xlu0 0
    %5649 = vperm.xlu0 %5648, %v5633
    %v5650 = vpop.permute.xlu0 %5649
    %5653 = vset.pattern.permute.xlu0 0
    %5654 = vperm.xlu0 %5653, %v5634
    %v5655 = vpop.permute.xlu0 %5654
    %v5657 = vadd.f32 %v5645, %v5650
    %v5658 = vadd.f32 %v5646, %v5655
    %vm5659 = vcmp.ge.f32.partialorder %v5657, 0.0
    %vm5660 = vcmp.ge.f32.partialorder %v5658, 0.0
    %v5661 = vmul.f32 %v5657, 0.2
    %v5662 = vmul.f32 %v5658, 0.2
    %v5663 = vsel %vm5659, %v5657, %v5661
    %v5664 = vsel %vm5660, %v5658, %v5662
    %v5665 = vmul.f32 %v5576, %v5638
    %v5666 = vmul.f32 %v5577, %v5643
    %v5667 = vadd.f32 %v5665, %v5650
    %v5668 = vadd.f32 %v5666, %v5655
    %vm5669 = vcmp.ge.f32.partialorder %v5667, 0.0
    %vm5670 = vcmp.ge.f32.partialorder %v5668, 0.0
    %v5671 = vmul.f32 %v5667, 0.2
    %v5672 = vmul.f32 %v5668, 0.2
    %v5673 = vsel %vm5669, %v5667, %v5671
    %v5674 = vsel %vm5670, %v5668, %v5672
    %v5675 = vadd.s32 %v52, 40
    %v5676 = vadd.s32 %v52, 48
    %v5677 = vadd.s32 %v52, 56
    %v5678 = vadd.s32 %v52, 64
    %v5679 = vadd.s32 %v54, 128
    %v5680 = vmul.u32 %v5675, 2
    %v5681 = vmul.u32 %v5676, 2
    %v5682 = vmul.u32 %v5677, 2
    %v5683 = vmul.u32 %v5678, 2
    %v5684 = vsub.s32 %v5680, 1
    %v5685 = vsub.s32 %v5681, 1
    %v5686 = vsub.s32 %v5682, 1
    %v5687 = vsub.s32 %v5683, 1
    %vm5688 = vcmp.eq.s32.totalorder %v5679, %v56
    %vm5689 = vcmp.eq.s32.totalorder %v5679, %v2490
    %vm5690 = vcmp.eq.s32.totalorder %v5679, %v4240
    %vm5691 = vcmp.eq.s32.totalorder %v5679, %v4241
    %vm5692 = vcmp.eq.s32.totalorder %v5679, %v4242
    %vm5693 = vcmp.eq.s32.totalorder %v54, %v5684
    %vm5694 = vcmp.eq.s32.totalorder %v5679, %v5684
    %vm5695 = vcmp.eq.s32.totalorder %v54, %v5685
    %vm5696 = vcmp.eq.s32.totalorder %v5679, %v5685
    %vm5697 = vcmp.eq.s32.totalorder %v54, %v5686
    %vm5698 = vcmp.eq.s32.totalorder %v5679, %v5686
    %vm5699 = vcmp.eq.s32.totalorder %v54, %v5687
    %vm5700 = vcmp.eq.s32.totalorder %v5679, %v5687
    %v5701 = vsel %vm5688, 1.0, 0.0
    %v5702 = vsel %vm5689, 1.0, 0.0
    %v5703 = vsel %vm5690, 1.0, 0.0
    %v5704 = vsel %vm5691, 1.0, 0.0
    %v5705 = vsel %vm5692, 1.0, 0.0
    %v5706 = vsel %vm5693, 1.0, 0.0
    %v5707 = vsel %vm5694, 1.0, 0.0
    %v5708 = vsel %vm5695, 1.0, 0.0
    %v5709 = vsel %vm5696, 1.0, 0.0
    %v5710 = vsel %vm5697, 1.0, 0.0
    %v5711 = vsel %vm5698, 1.0, 0.0
    %v5712 = vsel %vm5699, 1.0, 0.0
    %v5713 = vsel %vm5700, 1.0, 0.0
    %vm5714 = vcmp.eq.s32.totalorder %v5679, %v55
    %vm5715 = vcmp.eq.s32.totalorder %v5679, %v2489
    %vm5716 = vcmp.eq.s32.totalorder %v5679, %v4237
    %vm5717 = vcmp.eq.s32.totalorder %v5679, %v4238
    %vm5718 = vcmp.eq.s32.totalorder %v5679, %v4239
    %vm5719 = vcmp.eq.s32.totalorder %v54, %v5680
    %vm5720 = vcmp.eq.s32.totalorder %v5679, %v5680
    %vm5721 = vcmp.eq.s32.totalorder %v54, %v5681
    %vm5722 = vcmp.eq.s32.totalorder %v5679, %v5681
    %vm5723 = vcmp.eq.s32.totalorder %v54, %v5682
    %vm5724 = vcmp.eq.s32.totalorder %v5679, %v5682
    %vm5725 = vcmp.eq.s32.totalorder %v54, %v5683
    %vm5726 = vcmp.eq.s32.totalorder %v5679, %v5683
    %v5727 = vsel %vm5714, 1.0, 0.0
    %v5728 = vsel %vm5715, 1.0, 0.0
    %v5729 = vsel %vm5716, 1.0, 0.0
    %v5730 = vsel %vm5717, 1.0, 0.0
    %v5731 = vsel %vm5718, 1.0, 0.0
    %v5732 = vsel %vm5719, 1.0, 0.0
    %v5733 = vsel %vm5720, 1.0, 0.0
    %v5734 = vsel %vm5721, 1.0, 0.0
    %v5735 = vsel %vm5722, 1.0, 0.0
    %v5736 = vsel %vm5723, 1.0, 0.0
    %v5737 = vsel %vm5724, 1.0, 0.0
    %v5738 = vsel %vm5725, 1.0, 0.0
    %v5739 = vsel %vm5726, 1.0, 0.0
    %v5740 = vadd.s32 %v5684, 2
    %v5741 = vadd.s32 %v5685, 2
    %v5742 = vadd.s32 %v5686, 2
    %v5743 = vadd.s32 %v5687, 2
    %vm5744 = vcmp.eq.s32.totalorder %v5679, %v61
    %vm5745 = vcmp.eq.s32.totalorder %v5679, %v2495
    %vm5746 = vcmp.eq.s32.totalorder %v5679, %v4255
    %vm5747 = vcmp.eq.s32.totalorder %v5679, %v4256
    %vm5748 = vcmp.eq.s32.totalorder %v5679, %v4257
    %vm5749 = vcmp.eq.s32.totalorder %v54, %v5740
    %vm5750 = vcmp.eq.s32.totalorder %v5679, %v5740
    %vm5751 = vcmp.eq.s32.totalorder %v54, %v5741
    %vm5752 = vcmp.eq.s32.totalorder %v5679, %v5741
    %vm5753 = vcmp.eq.s32.totalorder %v54, %v5742
    %vm5754 = vcmp.eq.s32.totalorder %v5679, %v5742
    %vm5755 = vcmp.eq.s32.totalorder %v54, %v5743
    %vm5756 = vcmp.eq.s32.totalorder %v5679, %v5743
    %v5757 = vsel %vm5744, 1.0, 0.0
    %v5758 = vsel %vm5745, 1.0, 0.0
    %v5759 = vsel %vm5746, 1.0, 0.0
    %v5760 = vsel %vm5747, 1.0, 0.0
    %v5761 = vsel %vm5748, 1.0, 0.0
    %v5762 = vsel %vm5749, 1.0, 0.0
    %v5763 = vsel %vm5750, 1.0, 0.0
    %v5764 = vsel %vm5751, 1.0, 0.0
    %v5765 = vsel %vm5752, 1.0, 0.0
    %v5766 = vsel %vm5753, 1.0, 0.0
    %v5767 = vsel %vm5754, 1.0, 0.0
    %v5768 = vsel %vm5755, 1.0, 0.0
    %v5769 = vsel %vm5756, 1.0, 0.0
    %v5770 = vadd.s32 %v5684, 3
    %v5771 = vadd.s32 %v5685, 3
    %v5772 = vadd.s32 %v5686, 3
    %v5773 = vadd.s32 %v5687, 3
    %vm5774 = vcmp.eq.s32.totalorder %v5679, %v64
    %vm5775 = vcmp.eq.s32.totalorder %v5679, %v2498
    %vm5776 = vcmp.eq.s32.totalorder %v5679, %v4264
    %vm5777 = vcmp.eq.s32.totalorder %v5679, %v4265
    %vm5778 = vcmp.eq.s32.totalorder %v5679, %v4266
    %vm5779 = vcmp.eq.s32.totalorder %v54, %v5770
    %vm5780 = vcmp.eq.s32.totalorder %v5679, %v5770
    %vm5781 = vcmp.eq.s32.totalorder %v54, %v5771
    %vm5782 = vcmp.eq.s32.totalorder %v5679, %v5771
    %vm5783 = vcmp.eq.s32.totalorder %v54, %v5772
    %vm5784 = vcmp.eq.s32.totalorder %v5679, %v5772
    %vm5785 = vcmp.eq.s32.totalorder %v54, %v5773
    %vm5786 = vcmp.eq.s32.totalorder %v5679, %v5773
    %v5787 = vsel %vm5774, 1.0, 0.0
    %v5788 = vsel %vm5775, 1.0, 0.0
    %v5789 = vsel %vm5776, 1.0, 0.0
    %v5790 = vsel %vm5777, 1.0, 0.0
    %v5791 = vsel %vm5778, 1.0, 0.0
    %v5792 = vsel %vm5779, 1.0, 0.0
    %v5793 = vsel %vm5780, 1.0, 0.0
    %v5794 = vsel %vm5781, 1.0, 0.0
    %v5795 = vsel %vm5782, 1.0, 0.0
    %v5796 = vsel %vm5783, 1.0, 0.0
    %v5797 = vsel %vm5784, 1.0, 0.0
    %v5798 = vsel %vm5785, 1.0, 0.0
    %v5799 = vsel %vm5786, 1.0, 0.0
    %v5800 = vld [vmem:[%s10] sm:$0xff]
    %v5802 = vsel %vm2103, %v5800, 0
    %5804 = vmatprep.subr.mxu0 0.0
    %5805 = vmatpush1.msra.mxu0 %v5663
    %5806 = vmatprep.subr.mxu0 0.0
    %5807 = vmatpush1.msra.mxu0 %v5664
    %5808 = vmatprep.subr.mxu0 0.0
    %5809 = vmatpush1.msra.mxu0 0.0
    %5810 = vmatprep.subr.mxu0 0.0
    %5811 = vmatpush1.msra.mxu0 0.0
    %5812 = vmatprep.subr.mxu0 0.0
    %5813 = vmatpush1.msra.mxu0 0.0
    %5814 = vmatprep.subr.mxu0 0.0
    %5815 = vmatpush1.msra.mxu0 0.0
    %5816 = vmatprep.subr.mxu0 0.0
    %5817 = vmatpush1.msra.mxu0 0.0
    %5818 = vmatprep.subr.mxu0 0.0
    %5819 = vmatpush1.msra.mxu0 0.0
    %5820 = vmatprep.subr.mxu0 0.0
    %5821 = vmatpush1.msra.mxu0 0.0
    %5822 = vmatprep.subr.mxu0 0.0
    %5823 = vmatpush1.msra.mxu0 0.0
    %5824 = vmatprep.subr.mxu0 0.0
    %5825 = vmatpush1.msra.mxu0 0.0
    %5826 = vmatprep.subr.mxu0 0.0
    %5827 = vmatpush1.msra.mxu0 0.0
    %5828 = vmatprep.subr.mxu0 0.0
    %5829 = vmatpush1.msra.mxu0 0.0
    %5830 = vmatprep.subr.mxu0 0.0
    %5831 = vmatpush1.msra.mxu0 0.0
    %5832 = vmatprep.subr.mxu0 0.0
    %5833 = vmatpush1.msra.mxu0 0.0
    %5834 = vmatprep.subr.mxu0 0.0
    %5835 = vmatpush1.msra.mxu0 0.0
    %5836 = vmatprep.subr.mxu0 0.0
    %5837 = vmatpush1.msra.mxu0 0.0
    %5838 = vmatprep.subr.mxu0 0.0
    %5839 = vmatpush1.msra.mxu0 0.0
    %5840 = vmatprep.subr.mxu0 0.0
    %5841 = vmatpush1.msra.mxu0 0.0
    %5842 = vmatprep.subr.mxu0 0.0
    %5843 = vmatpush1.msra.mxu0 0.0
    %5844 = vmatprep.subr.mxu0 0.0
    %5845 = vmatpush1.msra.mxu0 0.0
    %5846 = vmatprep.subr.mxu0 0.0
    %5847 = vmatpush1.msra.mxu0 0.0
    %5848 = vmatprep.subr.mxu0 0.0
    %5849 = vmatpush1.msra.mxu0 0.0
    %5850 = vmatprep.subr.mxu0 0.0
    %5851 = vmatpush1.msra.mxu0 0.0
    %5852 = vmatprep.subr.mxu0 0.0
    %5853 = vmatpush1.msra.mxu0 0.0
    %5854 = vmatprep.subr.mxu0 0.0
    %5855 = vmatpush1.msra.mxu0 0.0
    %5856 = vmatprep.subr.mxu0 0.0
    %5857 = vmatpush1.msra.mxu0 0.0
    %5858 = vmatprep.subr.mxu0 0.0
    %5859 = vmatpush1.msra.mxu0 0.0
    %5860 = vmatprep.subr.mxu0 0.0
    %5861 = vmatpush1.msra.mxu0 0.0
    %5862 = vmatprep.subr.mxu0 0.0
    %5863 = vmatpush1.msra.mxu0 0.0
    %5864 = vmatprep.subr.mxu0 0.0
    %5865 = vmatpush1.msra.mxu0 0.0
    %5866 = vmatprep.subr.mxu0 0.0
    %5867 = vmatpush1.msra.mxu0 0.0
    %5868 = vmatprep.mubr.f32.mxu0 0.0
    %5869 = vmatmul.mubr.f32.gmra.mrb[0].mxu0 %v5802
    %v5870 = vpop.f32.mrb[0].mxu0
    %v5871 = vadd.f32 0.0, %v5870
    %v5872 = vpop.f32.mrb[0].mxu0
    %5873 = vdwg.mxu0
    %s5874 = scalar_lea.vmem %s10, 8
    %v5875 = vld [vmem:[%s5874] sm:$0xff]
    %v5877 = vsel %vm2103, %v5875, 0
    %5879 = vmatprep.subr.mxu0 0.0
    %5880 = vmatpush1.msra.mxu0 %v5663
    %5881 = vmatprep.subr.mxu0 0.0
    %5882 = vmatpush1.msra.mxu0 %v5664
    %5883 = vmatprep.subr.mxu0 0.0
    %5884 = vmatpush1.msra.mxu0 0.0
    %5885 = vmatprep.subr.mxu0 0.0
    %5886 = vmatpush1.msra.mxu0 0.0
    %5887 = vmatprep.subr.mxu0 0.0
    %5888 = vmatpush1.msra.mxu0 0.0
    %5889 = vmatprep.subr.mxu0 0.0
    %5890 = vmatpush1.msra.mxu0 0.0
    %5891 = vmatprep.subr.mxu0 0.0
    %5892 = vmatpush1.msra.mxu0 0.0
    %5893 = vmatprep.subr.mxu0 0.0
    %5894 = vmatpush1.msra.mxu0 0.0
    %5895 = vmatprep.subr.mxu0 0.0
    %5896 = vmatpush1.msra.mxu0 0.0
    %5897 = vmatprep.subr.mxu0 0.0
    %5898 = vmatpush1.msra.mxu0 0.0
    %5899 = vmatprep.subr.mxu0 0.0
    %5900 = vmatpush1.msra.mxu0 0.0
    %5901 = vmatprep.subr.mxu0 0.0
    %5902 = vmatpush1.msra.mxu0 0.0
    %5903 = vmatprep.subr.mxu0 0.0
    %5904 = vmatpush1.msra.mxu0 0.0
    %5905 = vmatprep.subr.mxu0 0.0
    %5906 = vmatpush1.msra.mxu0 0.0
    %5907 = vmatprep.subr.mxu0 0.0
    %5908 = vmatpush1.msra.mxu0 0.0
    %5909 = vmatprep.subr.mxu0 0.0
    %5910 = vmatpush1.msra.mxu0 0.0
    %5911 = vmatprep.subr.mxu0 0.0
    %5912 = vmatpush1.msra.mxu0 0.0
    %5913 = vmatprep.subr.mxu0 0.0
    %5914 = vmatpush1.msra.mxu0 0.0
    %5915 = vmatprep.subr.mxu0 0.0
    %5916 = vmatpush1.msra.mxu0 0.0
    %5917 = vmatprep.subr.mxu0 0.0
    %5918 = vmatpush1.msra.mxu0 0.0
    %5919 = vmatprep.subr.mxu0 0.0
    %5920 = vmatpush1.msra.mxu0 0.0
    %5921 = vmatprep.subr.mxu0 0.0
    %5922 = vmatpush1.msra.mxu0 0.0
    %5923 = vmatprep.subr.mxu0 0.0
    %5924 = vmatpush1.msra.mxu0 0.0
    %5925 = vmatprep.subr.mxu0 0.0
    %5926 = vmatpush1.msra.mxu0 0.0
    %5927 = vmatprep.subr.mxu0 0.0
    %5928 = vmatpush1.msra.mxu0 0.0
    %5929 = vmatprep.subr.mxu0 0.0
    %5930 = vmatpush1.msra.mxu0 0.0
    %5931 = vmatprep.subr.mxu0 0.0
    %5932 = vmatpush1.msra.mxu0 0.0
    %5933 = vmatprep.subr.mxu0 0.0
    %5934 = vmatpush1.msra.mxu0 0.0
    %5935 = vmatprep.subr.mxu0 0.0
    %5936 = vmatpush1.msra.mxu0 0.0
    %5937 = vmatprep.subr.mxu0 0.0
    %5938 = vmatpush1.msra.mxu0 0.0
    %5939 = vmatprep.subr.mxu0 0.0
    %5940 = vmatpush1.msra.mxu0 0.0
    %5941 = vmatprep.subr.mxu0 0.0
    %5942 = vmatpush1.msra.mxu0 0.0
    %5943 = vmatprep.mubr.f32.mxu0 0.0
    %5944 = vmatmul.mubr.f32.gmra.mrb[0].mxu0 %v5877
    %v5945 = vpop.f32.mrb[0].mxu0
    %v5946 = vadd.f32 0.0, %v5945
    %v5947 = vpop.f32.mrb[0].mxu0
    %5948 = vdwg.mxu0
    %v5950 = vsel %vm5578, %v5946, 0
    %vm5952 = vcmask 1041408
    %v5954 = vsel %vm5952, %v5738, 0
    %v5957 = vsel %vm5952, %v5739, 0
    %5959 = vmatprep.subr.mxu0 %v5727
    %5960 = vmatpush1.msra.mxu0 %v60
    %5961 = vmatprep.subr.mxu0 %v5728
    %5962 = vmatpush1.msra.mxu0 %v2494
    %5963 = vmatprep.subr.mxu0 %v5729
    %5964 = vmatpush1.msra.mxu0 %v4252
    %5965 = vmatprep.subr.mxu0 %v5730
    %5966 = vmatpush1.msra.mxu0 %v4253
    %5967 = vmatprep.subr.mxu0 %v5731
    %5968 = vmatpush1.msra.mxu0 %v4254
    %5969 = vmatprep.subr.mxu0 %v5733
    %5970 = vmatpush1.msra.mxu0 %v5732
    %5971 = vmatprep.subr.mxu0 %v5735
    %5972 = vmatpush1.msra.mxu0 %v5734
    %5973 = vmatprep.subr.mxu0 %v5737
    %5974 = vmatpush1.msra.mxu0 %v5736
    %5975 = vmatprep.subr.mxu0 %v5957
    %5976 = vmatpush1.msra.mxu0 %v5954
    %5977 = vmatprep.subr.mxu0 0.0
    %5978 = vmatpush1.msra.mxu0 0.0
    %5979 = vmatprep.subr.mxu0 0.0
    %5980 = vmatpush1.msra.mxu0 0.0
    %5981 = vmatprep.subr.mxu0 0.0
    %5982 = vmatpush1.msra.mxu0 0.0
    %5983 = vmatprep.subr.mxu0 0.0
    %5984 = vmatpush1.msra.mxu0 0.0
    %5985 = vmatprep.subr.mxu0 0.0
    %5986 = vmatpush1.msra.mxu0 0.0
    %5987 = vmatprep.subr.mxu0 0.0
    %5988 = vmatpush1.msra.mxu0 0.0
    %5989 = vmatprep.subr.mxu0 0.0
    %5990 = vmatpush1.msra.mxu0 0.0
    %5991 = vmatprep.subr.mxu0 0.0
    %5992 = vmatpush1.msra.mxu0 0.0
    %5993 = vmatprep.subr.mxu0 0.0
    %5994 = vmatpush1.msra.mxu0 0.0
    %5995 = vmatprep.subr.mxu0 0.0
    %5996 = vmatpush1.msra.mxu0 0.0
    %5997 = vmatprep.subr.mxu0 0.0
    %5998 = vmatpush1.msra.mxu0 0.0
    %5999 = vmatprep.subr.mxu0 0.0
    %6000 = vmatpush1.msra.mxu0 0.0
    %6001 = vmatprep.subr.mxu0 0.0
    %6002 = vmatpush1.msra.mxu0 0.0
    %6003 = vmatprep.subr.mxu0 0.0
    %6004 = vmatpush1.msra.mxu0 0.0
    %6005 = vmatprep.subr.mxu0 0.0
    %6006 = vmatpush1.msra.mxu0 0.0
    %6007 = vmatprep.subr.mxu0 0.0
    %6008 = vmatpush1.msra.mxu0 0.0
    %6009 = vmatprep.subr.mxu0 0.0
    %6010 = vmatpush1.msra.mxu0 0.0
    %6011 = vmatprep.subr.mxu0 0.0
    %6012 = vmatpush1.msra.mxu0 0.0
    %6013 = vmatprep.subr.mxu0 0.0
    %6014 = vmatpush1.msra.mxu0 0.0
    %6015 = vmatprep.subr.mxu0 0.0
    %6016 = vmatpush1.msra.mxu0 0.0
    %6017 = vmatprep.subr.mxu0 0.0
    %6018 = vmatpush1.msra.mxu0 0.0
    %6019 = vmatprep.subr.mxu0 0.0
    %6020 = vmatpush1.msra.mxu0 0.0
    %6021 = vmatprep.subr.mxu0 0.0
    %6022 = vmatpush1.msra.mxu0 0.0
    %6023 = vmatprep.mubr.f32.mxu0 0.0
    %6024 = vmatmul.mubr.f32.gmra.mrb[0].mxu0 %v5950
    %v6025 = vpop.f32.mrb[0].mxu0
    %v6026 = vadd.f32 0.0, %v6025
    %v6027 = vpop.f32.mrb[0].mxu0
    %v6028 = vadd.f32 0.0, %v6027
    %6029 = vdwg.mxu0
    %v6031 = vsel %vm5578, %v5871, 0
    %v6034 = vsel %vm5952, %v5712, 0
    %v6037 = vsel %vm5952, %v5713, 0
    %6039 = vmatprep.subr.mxu0 %v5701
    %6040 = vmatpush1.msra.mxu0 %v58
    %6041 = vmatprep.subr.mxu0 %v5702
    %6042 = vmatpush1.msra.mxu0 %v2492
    %6043 = vmatprep.subr.mxu0 %v5703
    %6044 = vmatpush1.msra.mxu0 %v4246
    %6045 = vmatprep.subr.mxu0 %v5704
    %6046 = vmatpush1.msra.mxu0 %v4247
    %6047 = vmatprep.subr.mxu0 %v5705
    %6048 = vmatpush1.msra.mxu0 %v4248
    %6049 = vmatprep.subr.mxu0 %v5707
    %6050 = vmatpush1.msra.mxu0 %v5706
    %6051 = vmatprep.subr.mxu0 %v5709
    %6052 = vmatpush1.msra.mxu0 %v5708
    %6053 = vmatprep.subr.mxu0 %v5711
    %6054 = vmatpush1.msra.mxu0 %v5710
    %6055 = vmatprep.subr.mxu0 %v6037
    %6056 = vmatpush1.msra.mxu0 %v6034
    %6057 = vmatprep.subr.mxu0 0.0
    %6058 = vmatpush1.msra.mxu0 0.0
    %6059 = vmatprep.subr.mxu0 0.0
    %6060 = vmatpush1.msra.mxu0 0.0
    %6061 = vmatprep.subr.mxu0 0.0
    %6062 = vmatpush1.msra.mxu0 0.0
    %6063 = vmatprep.subr.mxu0 0.0
    %6064 = vmatpush1.msra.mxu0 0.0
    %6065 = vmatprep.subr.mxu0 0.0
    %6066 = vmatpush1.msra.mxu0 0.0
    %6067 = vmatprep.subr.mxu0 0.0
    %6068 = vmatpush1.msra.mxu0 0.0
    %6069 = vmatprep.subr.mxu0 0.0
    %6070 = vmatpush1.msra.mxu0 0.0
    %6071 = vmatprep.subr.mxu0 0.0
    %6072 = vmatpush1.msra.mxu0 0.0
    %6073 = vmatprep.subr.mxu0 0.0
    %6074 = vmatpush1.msra.mxu0 0.0
    %6075 = vmatprep.subr.mxu0 0.0
    %6076 = vmatpush1.msra.mxu0 0.0
    %6077 = vmatprep.subr.mxu0 0.0
    %6078 = vmatpush1.msra.mxu0 0.0
    %6079 = vmatprep.subr.mxu0 0.0
    %6080 = vmatpush1.msra.mxu0 0.0
    %6081 = vmatprep.subr.mxu0 0.0
    %6082 = vmatpush1.msra.mxu0 0.0
    %6083 = vmatprep.subr.mxu0 0.0
    %6084 = vmatpush1.msra.mxu0 0.0
    %6085 = vmatprep.subr.mxu0 0.0
    %6086 = vmatpush1.msra.mxu0 0.0
    %6087 = vmatprep.subr.mxu0 0.0
    %6088 = vmatpush1.msra.mxu0 0.0
    %6089 = vmatprep.subr.mxu0 0.0
    %6090 = vmatpush1.msra.mxu0 0.0
    %6091 = vmatprep.subr.mxu0 0.0
    %6092 = vmatpush1.msra.mxu0 0.0
    %6093 = vmatprep.subr.mxu0 0.0
    %6094 = vmatpush1.msra.mxu0 0.0
    %6095 = vmatprep.subr.mxu0 0.0
    %6096 = vmatpush1.msra.mxu0 0.0
    %6097 = vmatprep.subr.mxu0 0.0
    %6098 = vmatpush1.msra.mxu0 0.0
    %6099 = vmatprep.subr.mxu0 0.0
    %6100 = vmatpush1.msra.mxu0 0.0
    %6101 = vmatprep.subr.mxu0 0.0
    %6102 = vmatpush1.msra.mxu0 0.0
    %6103 = vmatprep.mubr.f32.mxu0 0.0
    %6104 = vmatmul.mubr.f32.gmra.mrb[0].mxu0 %v6031
    %v6105 = vpop.f32.mrb[0].mxu0
    %v6106 = vadd.f32 %v6026, %v6105
    %v6107 = vpop.f32.mrb[0].mxu0
    %v6108 = vadd.f32 %v6028, %v6107
    %6109 = vdwg.mxu0
    %s6110 = scalar_lea.vmem %s10, 16
    %v6111 = vld [vmem:[%s6110] sm:$0xff]
    %v6113 = vsel %vm2103, %v6111, 0
    %6115 = vmatprep.subr.mxu0 0.0
    %6116 = vmatpush1.msra.mxu0 %v5663
    %6117 = vmatprep.subr.mxu0 0.0
    %6118 = vmatpush1.msra.mxu0 %v5664
    %6119 = vmatprep.subr.mxu0 0.0
    %6120 = vmatpush1.msra.mxu0 0.0
    %6121 = vmatprep.subr.mxu0 0.0
    %6122 = vmatpush1.msra.mxu0 0.0
    %6123 = vmatprep.subr.mxu0 0.0
    %6124 = vmatpush1.msra.mxu0 0.0
    %6125 = vmatprep.subr.mxu0 0.0
    %6126 = vmatpush1.msra.mxu0 0.0
    %6127 = vmatprep.subr.mxu0 0.0
    %6128 = vmatpush1.msra.mxu0 0.0
    %6129 = vmatprep.subr.mxu0 0.0
    %6130 = vmatpush1.msra.mxu0 0.0
    %6131 = vmatprep.subr.mxu0 0.0
    %6132 = vmatpush1.msra.mxu0 0.0
    %6133 = vmatprep.subr.mxu0 0.0
    %6134 = vmatpush1.msra.mxu0 0.0
    %6135 = vmatprep.subr.mxu0 0.0
    %6136 = vmatpush1.msra.mxu0 0.0
    %6137 = vmatprep.subr.mxu0 0.0
    %6138 = vmatpush1.msra.mxu0 0.0
    %6139 = vmatprep.subr.mxu0 0.0
    %6140 = vmatpush1.msra.mxu0 0.0
    %6141 = vmatprep.subr.mxu0 0.0
    %6142 = vmatpush1.msra.mxu0 0.0
    %6143 = vmatprep.subr.mxu0 0.0
    %6144 = vmatpush1.msra.mxu0 0.0
    %6145 = vmatprep.subr.mxu0 0.0
    %6146 = vmatpush1.msra.mxu0 0.0
    %6147 = vmatprep.subr.mxu0 0.0
    %6148 = vmatpush1.msra.mxu0 0.0
    %6149 = vmatprep.subr.mxu0 0.0
    %6150 = vmatpush1.msra.mxu0 0.0
    %6151 = vmatprep.subr.mxu0 0.0
    %6152 = vmatpush1.msra.mxu0 0.0
    %6153 = vmatprep.subr.mxu0 0.0
    %6154 = vmatpush1.msra.mxu0 0.0
    %6155 = vmatprep.subr.mxu0 0.0
    %6156 = vmatpush1.msra.mxu0 0.0
    %6157 = vmatprep.subr.mxu0 0.0
    %6158 = vmatpush1.msra.mxu0 0.0
    %6159 = vmatprep.subr.mxu0 0.0
    %6160 = vmatpush1.msra.mxu0 0.0
    %6161 = vmatprep.subr.mxu0 0.0
    %6162 = vmatpush1.msra.mxu0 0.0
    %6163 = vmatprep.subr.mxu0 0.0
    %6164 = vmatpush1.msra.mxu0 0.0
    %6165 = vmatprep.subr.mxu0 0.0
    %6166 = vmatpush1.msra.mxu0 0.0
    %6167 = vmatprep.subr.mxu0 0.0
    %6168 = vmatpush1.msra.mxu0 0.0
    %6169 = vmatprep.subr.mxu0 0.0
    %6170 = vmatpush1.msra.mxu0 0.0
    %6171 = vmatprep.subr.mxu0 0.0
    %6172 = vmatpush1.msra.mxu0 0.0
    %6173 = vmatprep.subr.mxu0 0.0
    %6174 = vmatpush1.msra.mxu0 0.0
    %6175 = vmatprep.subr.mxu0 0.0
    %6176 = vmatpush1.msra.mxu0 0.0
    %6177 = vmatprep.subr.mxu0 0.0
    %6178 = vmatpush1.msra.mxu0 0.0
    %6179 = vmatprep.mubr.f32.mxu0 0.0
    %6180 = vmatmul.mubr.f32.gmra.mrb[0].mxu0 %v6113
    %v6181 = vpop.f32.mrb[0].mxu0
    %v6182 = vadd.f32 0.0, %v6181
    %v6183 = vpop.f32.mrb[0].mxu0
    %6184 = vdwg.mxu0
    %v6186 = vsel %vm5578, %v6182, 0
    %v6189 = vsel %vm5952, %v5768, 0
    %v6192 = vsel %vm5952, %v5769, 0
    %6194 = vmatprep.subr.mxu0 %v5757
    %6195 = vmatpush1.msra.mxu0 %v63
    %6196 = vmatprep.subr.mxu0 %v5758
    %6197 = vmatpush1.msra.mxu0 %v2497
    %6198 = vmatprep.subr.mxu0 %v5759
    %6199 = vmatpush1.msra.mxu0 %v4261
    %6200 = vmatprep.subr.mxu0 %v5760
    %6201 = vmatpush1.msra.mxu0 %v4262
    %6202 = vmatprep.subr.mxu0 %v5761
    %6203 = vmatpush1.msra.mxu0 %v4263
    %6204 = vmatprep.subr.mxu0 %v5763
    %6205 = vmatpush1.msra.mxu0 %v5762
    %6206 = vmatprep.subr.mxu0 %v5765
    %6207 = vmatpush1.msra.mxu0 %v5764
    %6208 = vmatprep.subr.mxu0 %v5767
    %6209 = vmatpush1.msra.mxu0 %v5766
    %6210 = vmatprep.subr.mxu0 %v6192
    %6211 = vmatpush1.msra.mxu0 %v6189
    %6212 = vmatprep.subr.mxu0 0.0
    %6213 = vmatpush1.msra.mxu0 0.0
    %6214 = vmatprep.subr.mxu0 0.0
    %6215 = vmatpush1.msra.mxu0 0.0
    %6216 = vmatprep.subr.mxu0 0.0
    %6217 = vmatpush1.msra.mxu0 0.0
    %6218 = vmatprep.subr.mxu0 0.0
    %6219 = vmatpush1.msra.mxu0 0.0
    %6220 = vmatprep.subr.mxu0 0.0
    %6221 = vmatpush1.msra.mxu0 0.0
    %6222 = vmatprep.subr.mxu0 0.0
    %6223 = vmatpush1.msra.mxu0 0.0
    %6224 = vmatprep.subr.mxu0 0.0
    %6225 = vmatpush1.msra.mxu0 0.0
    %6226 = vmatprep.subr.mxu0 0.0
    %6227 = vmatpush1.msra.mxu0 0.0
    %6228 = vmatprep.subr.mxu0 0.0
    %6229 = vmatpush1.msra.mxu0 0.0
    %6230 = vmatprep.subr.mxu0 0.0
    %6231 = vmatpush1.msra.mxu0 0.0
    %6232 = vmatprep.subr.mxu0 0.0
    %6233 = vmatpush1.msra.mxu0 0.0
    %6234 = vmatprep.subr.mxu0 0.0
    %6235 = vmatpush1.msra.mxu0 0.0
    %6236 = vmatprep.subr.mxu0 0.0
    %6237 = vmatpush1.msra.mxu0 0.0
    %6238 = vmatprep.subr.mxu0 0.0
    %6239 = vmatpush1.msra.mxu0 0.0
    %6240 = vmatprep.subr.mxu0 0.0
    %6241 = vmatpush1.msra.mxu0 0.0
    %6242 = vmatprep.subr.mxu0 0.0
    %6243 = vmatpush1.msra.mxu0 0.0
    %6244 = vmatprep.subr.mxu0 0.0
    %6245 = vmatpush1.msra.mxu0 0.0
    %6246 = vmatprep.subr.mxu0 0.0
    %6247 = vmatpush1.msra.mxu0 0.0
    %6248 = vmatprep.subr.mxu0 0.0
    %6249 = vmatpush1.msra.mxu0 0.0
    %6250 = vmatprep.subr.mxu0 0.0
    %6251 = vmatpush1.msra.mxu0 0.0
    %6252 = vmatprep.subr.mxu0 0.0
    %6253 = vmatpush1.msra.mxu0 0.0
    %6254 = vmatprep.subr.mxu0 0.0
    %6255 = vmatpush1.msra.mxu0 0.0
    %6256 = vmatprep.subr.mxu0 0.0
    %6257 = vmatpush1.msra.mxu0 0.0
    %6258 = vmatprep.mubr.f32.mxu0 0.0
    %6259 = vmatmul.mubr.f32.gmra.mrb[0].mxu0 %v6186
    %v6260 = vpop.f32.mrb[0].mxu0
    %v6261 = vadd.f32 0.0, %v6260
    %v6262 = vpop.f32.mrb[0].mxu0
    %v6263 = vadd.f32 0.0, %v6262
    %6264 = vdwg.mxu0
    %v6265 = vadd.f32 %v6106, %v6261
    %v6266 = vadd.f32 %v6108, %v6263
    %s6267 = scalar_lea.vmem %s10, 24
    %v6268 = vld [vmem:[%s6267] sm:$0xff]
    %v6270 = vsel %vm2103, %v6268, 0
    %6272 = vmatprep.subr.mxu0 0.0
    %6273 = vmatpush1.msra.mxu0 %v5663
    %6274 = vmatprep.subr.mxu0 0.0
    %6275 = vmatpush1.msra.mxu0 %v5664
    %6276 = vmatprep.subr.mxu0 0.0
    %6277 = vmatpush1.msra.mxu0 0.0
    %6278 = vmatprep.subr.mxu0 0.0
    %6279 = vmatpush1.msra.mxu0 0.0
    %6280 = vmatprep.subr.mxu0 0.0
    %6281 = vmatpush1.msra.mxu0 0.0
    %6282 = vmatprep.subr.mxu0 0.0
    %6283 = vmatpush1.msra.mxu0 0.0
    %6284 = vmatprep.subr.mxu0 0.0
    %6285 = vmatpush1.msra.mxu0 0.0
    %6286 = vmatprep.subr.mxu0 0.0
    %6287 = vmatpush1.msra.mxu0 0.0
    %6288 = vmatprep.subr.mxu0 0.0
    %6289 = vmatpush1.msra.mxu0 0.0
    %6290 = vmatprep.subr.mxu0 0.0
    %6291 = vmatpush1.msra.mxu0 0.0
    %6292 = vmatprep.subr.mxu0 0.0
    %6293 = vmatpush1.msra.mxu0 0.0
    %6294 = vmatprep.subr.mxu0 0.0
    %6295 = vmatpush1.msra.mxu0 0.0
    %6296 = vmatprep.subr.mxu0 0.0
    %6297 = vmatpush1.msra.mxu0 0.0
    %6298 = vmatprep.subr.mxu0 0.0
    %6299 = vmatpush1.msra.mxu0 0.0
    %6300 = vmatprep.subr.mxu0 0.0
    %6301 = vmatpush1.msra.mxu0 0.0
    %6302 = vmatprep.subr.mxu0 0.0
    %6303 = vmatpush1.msra.mxu0 0.0
    %6304 = vmatprep.subr.mxu0 0.0
    %6305 = vmatpush1.msra.mxu0 0.0
    %6306 = vmatprep.subr.mxu0 0.0
    %6307 = vmatpush1.msra.mxu0 0.0
    %6308 = vmatprep.subr.mxu0 0.0
    %6309 = vmatpush1.msra.mxu0 0.0
    %6310 = vmatprep.subr.mxu0 0.0
    %6311 = vmatpush1.msra.mxu0 0.0
    %6312 = vmatprep.subr.mxu0 0.0
    %6313 = vmatpush1.msra.mxu0 0.0
    %6314 = vmatprep.subr.mxu0 0.0
    %6315 = vmatpush1.msra.mxu0 0.0
    %6316 = vmatprep.subr.mxu0 0.0
    %6317 = vmatpush1.msra.mxu0 0.0
    %6318 = vmatprep.subr.mxu0 0.0
    %6319 = vmatpush1.msra.mxu0 0.0
    %6320 = vmatprep.subr.mxu0 0.0
    %6321 = vmatpush1.msra.mxu0 0.0
    %6322 = vmatprep.subr.mxu0 0.0
    %6323 = vmatpush1.msra.mxu0 0.0
    %6324 = vmatprep.subr.mxu0 0.0
    %6325 = vmatpush1.msra.mxu0 0.0
    %6326 = vmatprep.subr.mxu0 0.0
    %6327 = vmatpush1.msra.mxu0 0.0
    %6328 = vmatprep.subr.mxu0 0.0
    %6329 = vmatpush1.msra.mxu0 0.0
    %6330 = vmatprep.subr.mxu0 0.0
    %6331 = vmatpush1.msra.mxu0 0.0
    %6332 = vmatprep.subr.mxu0 0.0
    %6333 = vmatpush1.msra.mxu0 0.0
    %6334 = vmatprep.subr.mxu0 0.0
    %6335 = vmatpush1.msra.mxu0 0.0
    %6336 = vmatprep.mubr.f32.mxu0 0.0
    %6337 = vmatmul.mubr.f32.gmra.mrb[0].mxu0 %v6270
    %v6338 = vpop.f32.mrb[0].mxu0
    %v6339 = vadd.f32 0.0, %v6338
    %v6340 = vpop.f32.mrb[0].mxu0
    %6341 = vdwg.mxu0
    %v6343 = vsel %vm5578, %v6339, 0
    %v6346 = vsel %vm5952, %v5798, 0
    %v6349 = vsel %vm5952, %v5799, 0
    %6351 = vmatprep.subr.mxu0 %v5787
    %6352 = vmatpush1.msra.mxu0 %v66
    %6353 = vmatprep.subr.mxu0 %v5788
    %6354 = vmatpush1.msra.mxu0 %v2500
    %6355 = vmatprep.subr.mxu0 %v5789
    %6356 = vmatpush1.msra.mxu0 %v4270
    %6357 = vmatprep.subr.mxu0 %v5790
    %6358 = vmatpush1.msra.mxu0 %v4271
    %6359 = vmatprep.subr.mxu0 %v5791
    %6360 = vmatpush1.msra.mxu0 %v4272
    %6361 = vmatprep.subr.mxu0 %v5793
    %6362 = vmatpush1.msra.mxu0 %v5792
    %6363 = vmatprep.subr.mxu0 %v5795
    %6364 = vmatpush1.msra.mxu0 %v5794
    %6365 = vmatprep.subr.mxu0 %v5797
    %6366 = vmatpush1.msra.mxu0 %v5796
    %6367 = vmatprep.subr.mxu0 %v6349
    %6368 = vmatpush1.msra.mxu0 %v6346
    %6369 = vmatprep.subr.mxu0 0.0
    %6370 = vmatpush1.msra.mxu0 0.0
    %6371 = vmatprep.subr.mxu0 0.0
    %6372 = vmatpush1.msra.mxu0 0.0
    %6373 = vmatprep.subr.mxu0 0.0
    %6374 = vmatpush1.msra.mxu0 0.0
    %6375 = vmatprep.subr.mxu0 0.0
    %6376 = vmatpush1.msra.mxu0 0.0
    %6377 = vmatprep.subr.mxu0 0.0
    %6378 = vmatpush1.msra.mxu0 0.0
    %6379 = vmatprep.subr.mxu0 0.0
    %6380 = vmatpush1.msra.mxu0 0.0
    %6381 = vmatprep.subr.mxu0 0.0
    %6382 = vmatpush1.msra.mxu0 0.0
    %6383 = vmatprep.subr.mxu0 0.0
    %6384 = vmatpush1.msra.mxu0 0.0
    %6385 = vmatprep.subr.mxu0 0.0
    %6386 = vmatpush1.msra.mxu0 0.0
    %6387 = vmatprep.subr.mxu0 0.0
    %6388 = vmatpush1.msra.mxu0 0.0
    %6389 = vmatprep.subr.mxu0 0.0
    %6390 = vmatpush1.msra.mxu0 0.0
    %6391 = vmatprep.subr.mxu0 0.0
    %6392 = vmatpush1.msra.mxu0 0.0
    %6393 = vmatprep.subr.mxu0 0.0
    %6394 = vmatpush1.msra.mxu0 0.0
    %6395 = vmatprep.subr.mxu0 0.0
    %6396 = vmatpush1.msra.mxu0 0.0
    %6397 = vmatprep.subr.mxu0 0.0
    %6398 = vmatpush1.msra.mxu0 0.0
    %6399 = vmatprep.subr.mxu0 0.0
    %6400 = vmatpush1.msra.mxu0 0.0
    %6401 = vmatprep.subr.mxu0 0.0
    %6402 = vmatpush1.msra.mxu0 0.0
    %6403 = vmatprep.subr.mxu0 0.0
    %6404 = vmatpush1.msra.mxu0 0.0
    %6405 = vmatprep.subr.mxu0 0.0
    %6406 = vmatpush1.msra.mxu0 0.0
    %6407 = vmatprep.subr.mxu0 0.0
    %6408 = vmatpush1.msra.mxu0 0.0
    %6409 = vmatprep.subr.mxu0 0.0
    %6410 = vmatpush1.msra.mxu0 0.0
    %6411 = vmatprep.subr.mxu0 0.0
    %6412 = vmatpush1.msra.mxu0 0.0
    %6413 = vmatprep.subr.mxu0 0.0
    %6414 = vmatpush1.msra.mxu0 0.0
    %6415 = vmatprep.mubr.f32.mxu0 0.0
    %6416 = vmatmul.mubr.f32.gmra.mrb[0].mxu0 %v6343
    %v6417 = vpop.f32.mrb[0].mxu0
    %v6418 = vadd.f32 0.0, %v6417
    %v6419 = vpop.f32.mrb[0].mxu0
    %v6420 = vadd.f32 0.0, %v6419
    %6421 = vdwg.mxu0
    %v6422 = vadd.f32 %v6265, %v6418
    %v6423 = vadd.f32 %v6266, %v6420
    %6424 = vmatprep.subr.mxu0 0.0
    %6425 = vmatpush1.msra.mxu0 %v5673
    %6426 = vmatprep.subr.mxu0 0.0
    %6427 = vmatpush1.msra.mxu0 %v5674
    %6428 = vmatprep.subr.mxu0 0.0
    %6429 = vmatpush1.msra.mxu0 0.0
    %6430 = vmatprep.subr.mxu0 0.0
    %6431 = vmatpush1.msra.mxu0 0.0
    %6432 = vmatprep.subr.mxu0 0.0
    %6433 = vmatpush1.msra.mxu0 0.0
    %6434 = vmatprep.subr.mxu0 0.0
    %6435 = vmatpush1.msra.mxu0 0.0
    %6436 = vmatprep.subr.mxu0 0.0
    %6437 = vmatpush1.msra.mxu0 0.0
    %6438 = vmatprep.subr.mxu0 0.0
    %6439 = vmatpush1.msra.mxu0 0.0
    %6440 = vmatprep.subr.mxu0 0.0
    %6441 = vmatpush1.msra.mxu0 0.0
    %6442 = vmatprep.subr.mxu0 0.0
    %6443 = vmatpush1.msra.mxu0 0.0
    %6444 = vmatprep.subr.mxu0 0.0
    %6445 = vmatpush1.msra.mxu0 0.0
    %6446 = vmatprep.subr.mxu0 0.0
    %6447 = vmatpush1.msra.mxu0 0.0
    %6448 = vmatprep.subr.mxu0 0.0
    %6449 = vmatpush1.msra.mxu0 0.0
    %6450 = vmatprep.subr.mxu0 0.0
    %6451 = vmatpush1.msra.mxu0 0.0
    %6452 = vmatprep.subr.mxu0 0.0
    %6453 = vmatpush1.msra.mxu0 0.0
    %6454 = vmatprep.subr.mxu0 0.0
    %6455 = vmatpush1.msra.mxu0 0.0
    %6456 = vmatprep.subr.mxu0 0.0
    %6457 = vmatpush1.msra.mxu0 0.0
    %6458 = vmatprep.subr.mxu0 0.0
    %6459 = vmatpush1.msra.mxu0 0.0
    %6460 = vmatprep.subr.mxu0 0.0
    %6461 = vmatpush1.msra.mxu0 0.0
    %6462 = vmatprep.subr.mxu0 0.0
    %6463 = vmatpush1.msra.mxu0 0.0
    %6464 = vmatprep.subr.mxu0 0.0
    %6465 = vmatpush1.msra.mxu0 0.0
    %6466 = vmatprep.subr.mxu0 0.0
    %6467 = vmatpush1.msra.mxu0 0.0
    %6468 = vmatprep.subr.mxu0 0.0
    %6469 = vmatpush1.msra.mxu0 0.0
    %6470 = vmatprep.subr.mxu0 0.0
    %6471 = vmatpush1.msra.mxu0 0.0
    %6472 = vmatprep.subr.mxu0 0.0
    %6473 = vmatpush1.msra.mxu0 0.0
    %6474 = vmatprep.subr.mxu0 0.0
    %6475 = vmatpush1.msra.mxu0 0.0
    %6476 = vmatprep.subr.mxu0 0.0
    %6477 = vmatpush1.msra.mxu0 0.0
    %6478 = vmatprep.subr.mxu0 0.0
    %6479 = vmatpush1.msra.mxu0 0.0
    %6480 = vmatprep.subr.mxu0 0.0
    %6481 = vmatpush1.msra.mxu0 0.0
    %6482 = vmatprep.subr.mxu0 0.0
    %6483 = vmatpush1.msra.mxu0 0.0
    %6484 = vmatprep.subr.mxu0 0.0
    %6485 = vmatpush1.msra.mxu0 0.0
    %6486 = vmatprep.subr.mxu0 0.0
    %6487 = vmatpush1.msra.mxu0 0.0
    %6488 = vmatprep.mubr.f32.mxu0 0.0
    %6489 = vmatmul.mubr.f32.gmra.mrb[0].mxu0 %v5802
    %v6490 = vpop.f32.mrb[0].mxu0
    %v6491 = vadd.f32 0.0, %v6490
    %v6492 = vpop.f32.mrb[0].mxu0
    %6493 = vdwg.mxu0
    %6494 = vmatprep.subr.mxu0 0.0
    %6495 = vmatpush1.msra.mxu0 %v5673
    %6496 = vmatprep.subr.mxu0 0.0
    %6497 = vmatpush1.msra.mxu0 %v5674
    %6498 = vmatprep.subr.mxu0 0.0
    %6499 = vmatpush1.msra.mxu0 0.0
    %6500 = vmatprep.subr.mxu0 0.0
    %6501 = vmatpush1.msra.mxu0 0.0
    %6502 = vmatprep.subr.mxu0 0.0
    %6503 = vmatpush1.msra.mxu0 0.0
    %6504 = vmatprep.subr.mxu0 0.0
    %6505 = vmatpush1.msra.mxu0 0.0
    %6506 = vmatprep.subr.mxu0 0.0
    %6507 = vmatpush1.msra.mxu0 0.0
    %6508 = vmatprep.subr.mxu0 0.0
    %6509 = vmatpush1.msra.mxu0 0.0
    %6510 = vmatprep.subr.mxu0 0.0
    %6511 = vmatpush1.msra.mxu0 0.0
    %6512 = vmatprep.subr.mxu0 0.0
    %6513 = vmatpush1.msra.mxu0 0.0
    %6514 = vmatprep.subr.mxu0 0.0
    %6515 = vmatpush1.msra.mxu0 0.0
    %6516 = vmatprep.subr.mxu0 0.0
    %6517 = vmatpush1.msra.mxu0 0.0
    %6518 = vmatprep.subr.mxu0 0.0
    %6519 = vmatpush1.msra.mxu0 0.0
    %6520 = vmatprep.subr.mxu0 0.0
    %6521 = vmatpush1.msra.mxu0 0.0
    %6522 = vmatprep.subr.mxu0 0.0
    %6523 = vmatpush1.msra.mxu0 0.0
    %6524 = vmatprep.subr.mxu0 0.0
    %6525 = vmatpush1.msra.mxu0 0.0
    %6526 = vmatprep.subr.mxu0 0.0
    %6527 = vmatpush1.msra.mxu0 0.0
    %6528 = vmatprep.subr.mxu0 0.0
    %6529 = vmatpush1.msra.mxu0 0.0
    %6530 = vmatprep.subr.mxu0 0.0
    %6531 = vmatpush1.msra.mxu0 0.0
    %6532 = vmatprep.subr.mxu0 0.0
    %6533 = vmatpush1.msra.mxu0 0.0
    %6534 = vmatprep.subr.mxu0 0.0
    %6535 = vmatpush1.msra.mxu0 0.0
    %6536 = vmatprep.subr.mxu0 0.0
    %6537 = vmatpush1.msra.mxu0 0.0
    %6538 = vmatprep.subr.mxu0 0.0
    %6539 = vmatpush1.msra.mxu0 0.0
    %6540 = vmatprep.subr.mxu0 0.0
    %6541 = vmatpush1.msra.mxu0 0.0
    %6542 = vmatprep.subr.mxu0 0.0
    %6543 = vmatpush1.msra.mxu0 0.0
    %6544 = vmatprep.subr.mxu0 0.0
    %6545 = vmatpush1.msra.mxu0 0.0
    %6546 = vmatprep.subr.mxu0 0.0
    %6547 = vmatpush1.msra.mxu0 0.0
    %6548 = vmatprep.subr.mxu0 0.0
    %6549 = vmatpush1.msra.mxu0 0.0
    %6550 = vmatprep.subr.mxu0 0.0
    %6551 = vmatpush1.msra.mxu0 0.0
    %6552 = vmatprep.subr.mxu0 0.0
    %6553 = vmatpush1.msra.mxu0 0.0
    %6554 = vmatprep.subr.mxu0 0.0
    %6555 = vmatpush1.msra.mxu0 0.0
    %6556 = vmatprep.subr.mxu0 0.0
    %6557 = vmatpush1.msra.mxu0 0.0
    %6558 = vmatprep.mubr.f32.mxu0 0.0
    %6559 = vmatmul.mubr.f32.gmra.mrb[0].mxu0 %v5877
    %v6560 = vpop.f32.mrb[0].mxu0
    %v6561 = vadd.f32 0.0, %v6560
    %v6562 = vpop.f32.mrb[0].mxu0
    %6563 = vdwg.mxu0
    %v6565 = vsel %vm5578, %v6561, 0
    %6567 = vmatprep.subr.mxu0 %v5727
    %6568 = vmatpush1.msra.mxu0 %v60
    %6569 = vmatprep.subr.mxu0 %v5728
    %6570 = vmatpush1.msra.mxu0 %v2494
    %6571 = vmatprep.subr.mxu0 %v5729
    %6572 = vmatpush1.msra.mxu0 %v4252
    %6573 = vmatprep.subr.mxu0 %v5730
    %6574 = vmatpush1.msra.mxu0 %v4253
    %6575 = vmatprep.subr.mxu0 %v5731
    %6576 = vmatpush1.msra.mxu0 %v4254
    %6577 = vmatprep.subr.mxu0 %v5733
    %6578 = vmatpush1.msra.mxu0 %v5732
    %6579 = vmatprep.subr.mxu0 %v5735
    %6580 = vmatpush1.msra.mxu0 %v5734
    %6581 = vmatprep.subr.mxu0 %v5737
    %6582 = vmatpush1.msra.mxu0 %v5736
    %6583 = vmatprep.subr.mxu0 %v5957
    %6584 = vmatpush1.msra.mxu0 %v5954
    %6585 = vmatprep.subr.mxu0 0.0
    %6586 = vmatpush1.msra.mxu0 0.0
    %6587 = vmatprep.subr.mxu0 0.0
    %6588 = vmatpush1.msra.mxu0 0.0
    %6589 = vmatprep.subr.mxu0 0.0
    %6590 = vmatpush1.msra.mxu0 0.0
    %6591 = vmatprep.subr.mxu0 0.0
    %6592 = vmatpush1.msra.mxu0 0.0
    %6593 = vmatprep.subr.mxu0 0.0
    %6594 = vmatpush1.msra.mxu0 0.0
    %6595 = vmatprep.subr.mxu0 0.0
    %6596 = vmatpush1.msra.mxu0 0.0
    %6597 = vmatprep.subr.mxu0 0.0
    %6598 = vmatpush1.msra.mxu0 0.0
    %6599 = vmatprep.subr.mxu0 0.0
    %6600 = vmatpush1.msra.mxu0 0.0
    %6601 = vmatprep.subr.mxu0 0.0
    %6602 = vmatpush1.msra.mxu0 0.0
    %6603 = vmatprep.subr.mxu0 0.0
    %6604 = vmatpush1.msra.mxu0 0.0
    %6605 = vmatprep.subr.mxu0 0.0
    %6606 = vmatpush1.msra.mxu0 0.0
    %6607 = vmatprep.subr.mxu0 0.0
    %6608 = vmatpush1.msra.mxu0 0.0
    %6609 = vmatprep.subr.mxu0 0.0
    %6610 = vmatpush1.msra.mxu0 0.0
    %6611 = vmatprep.subr.mxu0 0.0
    %6612 = vmatpush1.msra.mxu0 0.0
    %6613 = vmatprep.subr.mxu0 0.0
    %6614 = vmatpush1.msra.mxu0 0.0
    %6615 = vmatprep.subr.mxu0 0.0
    %6616 = vmatpush1.msra.mxu0 0.0
    %6617 = vmatprep.subr.mxu0 0.0
    %6618 = vmatpush1.msra.mxu0 0.0
    %6619 = vmatprep.subr.mxu0 0.0
    %6620 = vmatpush1.msra.mxu0 0.0
    %6621 = vmatprep.subr.mxu0 0.0
    %6622 = vmatpush1.msra.mxu0 0.0
    %6623 = vmatprep.subr.mxu0 0.0
    %6624 = vmatpush1.msra.mxu0 0.0
    %6625 = vmatprep.subr.mxu0 0.0
    %6626 = vmatpush1.msra.mxu0 0.0
    %6627 = vmatprep.subr.mxu0 0.0
    %6628 = vmatpush1.msra.mxu0 0.0
    %6629 = vmatprep.subr.mxu0 0.0
    %6630 = vmatpush1.msra.mxu0 0.0
    %6631 = vmatprep.mubr.f32.mxu0 0.0
    %6632 = vmatmul.mubr.f32.gmra.mrb[0].mxu0 %v6565
    %v6633 = vpop.f32.mrb[0].mxu0
    %v6634 = vadd.f32 0.0, %v6633
    %v6635 = vpop.f32.mrb[0].mxu0
    %v6636 = vadd.f32 0.0, %v6635
    %6637 = vdwg.mxu0
    %v6639 = vsel %vm5578, %v6491, 0
    %6641 = vmatprep.subr.mxu0 %v5701
    %6642 = vmatpush1.msra.mxu0 %v58
    %6643 = vmatprep.subr.mxu0 %v5702
    %6644 = vmatpush1.msra.mxu0 %v2492
    %6645 = vmatprep.subr.mxu0 %v5703
    %6646 = vmatpush1.msra.mxu0 %v4246
    %6647 = vmatprep.subr.mxu0 %v5704
    %6648 = vmatpush1.msra.mxu0 %v4247
    %6649 = vmatprep.subr.mxu0 %v5705
    %6650 = vmatpush1.msra.mxu0 %v4248
    %6651 = vmatprep.subr.mxu0 %v5707
    %6652 = vmatpush1.msra.mxu0 %v5706
    %6653 = vmatprep.subr.mxu0 %v5709
    %6654 = vmatpush1.msra.mxu0 %v5708
    %6655 = vmatprep.subr.mxu0 %v5711
    %6656 = vmatpush1.msra.mxu0 %v5710
    %6657 = vmatprep.subr.mxu0 %v6037
    %6658 = vmatpush1.msra.mxu0 %v6034
    %6659 = vmatprep.subr.mxu0 0.0
    %6660 = vmatpush1.msra.mxu0 0.0
    %6661 = vmatprep.subr.mxu0 0.0
    %6662 = vmatpush1.msra.mxu0 0.0
    %6663 = vmatprep.subr.mxu0 0.0
    %6664 = vmatpush1.msra.mxu0 0.0
    %6665 = vmatprep.subr.mxu0 0.0
    %6666 = vmatpush1.msra.mxu0 0.0
    %6667 = vmatprep.subr.mxu0 0.0
    %6668 = vmatpush1.msra.mxu0 0.0
    %6669 = vmatprep.subr.mxu0 0.0
    %6670 = vmatpush1.msra.mxu0 0.0
    %6671 = vmatprep.subr.mxu0 0.0
    %6672 = vmatpush1.msra.mxu0 0.0
    %6673 = vmatprep.subr.mxu0 0.0
    %6674 = vmatpush1.msra.mxu0 0.0
    %6675 = vmatprep.subr.mxu0 0.0
    %6676 = vmatpush1.msra.mxu0 0.0
    %6677 = vmatprep.subr.mxu0 0.0
    %6678 = vmatpush1.msra.mxu0 0.0
    %6679 = vmatprep.subr.mxu0 0.0
    %6680 = vmatpush1.msra.mxu0 0.0
    %6681 = vmatprep.subr.mxu0 0.0
    %6682 = vmatpush1.msra.mxu0 0.0
    %6683 = vmatprep.subr.mxu0 0.0
    %6684 = vmatpush1.msra.mxu0 0.0
    %6685 = vmatprep.subr.mxu0 0.0
    %6686 = vmatpush1.msra.mxu0 0.0
    %6687 = vmatprep.subr.mxu0 0.0
    %6688 = vmatpush1.msra.mxu0 0.0
    %6689 = vmatprep.subr.mxu0 0.0
    %6690 = vmatpush1.msra.mxu0 0.0
    %6691 = vmatprep.subr.mxu0 0.0
    %6692 = vmatpush1.msra.mxu0 0.0
    %6693 = vmatprep.subr.mxu0 0.0
    %6694 = vmatpush1.msra.mxu0 0.0
    %6695 = vmatprep.subr.mxu0 0.0
    %6696 = vmatpush1.msra.mxu0 0.0
    %6697 = vmatprep.subr.mxu0 0.0
    %6698 = vmatpush1.msra.mxu0 0.0
    %6699 = vmatprep.subr.mxu0 0.0
    %6700 = vmatpush1.msra.mxu0 0.0
    %6701 = vmatprep.subr.mxu0 0.0
    %6702 = vmatpush1.msra.mxu0 0.0
    %6703 = vmatprep.subr.mxu0 0.0
    %6704 = vmatpush1.msra.mxu0 0.0
    %6705 = vmatprep.mubr.f32.mxu0 0.0
    %6706 = vmatmul.mubr.f32.gmra.mrb[0].mxu0 %v6639
    %v6707 = vpop.f32.mrb[0].mxu0
    %v6708 = vadd.f32 %v6634, %v6707
    %v6709 = vpop.f32.mrb[0].mxu0
    %v6710 = vadd.f32 %v6636, %v6709
    %6711 = vdwg.mxu0
    %6712 = vmatprep.subr.mxu0 0.0
    %6713 = vmatpush1.msra.mxu0 %v5673
    %6714 = vmatprep.subr.mxu0 0.0
    %6715 = vmatpush1.msra.mxu0 %v5674
    %6716 = vmatprep.subr.mxu0 0.0
    %6717 = vmatpush1.msra.mxu0 0.0
    %6718 = vmatprep.subr.mxu0 0.0
    %6719 = vmatpush1.msra.mxu0 0.0
    %6720 = vmatprep.subr.mxu0 0.0
    %6721 = vmatpush1.msra.mxu0 0.0
    %6722 = vmatprep.subr.mxu0 0.0
    %6723 = vmatpush1.msra.mxu0 0.0
    %6724 = vmatprep.subr.mxu0 0.0
    %6725 = vmatpush1.msra.mxu0 0.0
    %6726 = vmatprep.subr.mxu0 0.0
    %6727 = vmatpush1.msra.mxu0 0.0
    %6728 = vmatprep.subr.mxu0 0.0
    %6729 = vmatpush1.msra.mxu0 0.0
    %6730 = vmatprep.subr.mxu0 0.0
    %6731 = vmatpush1.msra.mxu0 0.0
    %6732 = vmatprep.subr.mxu0 0.0
    %6733 = vmatpush1.msra.mxu0 0.0
    %6734 = vmatprep.subr.mxu0 0.0
    %6735 = vmatpush1.msra.mxu0 0.0
    %6736 = vmatprep.subr.mxu0 0.0
    %6737 = vmatpush1.msra.mxu0 0.0
    %6738 = vmatprep.subr.mxu0 0.0
    %6739 = vmatpush1.msra.mxu0 0.0
    %6740 = vmatprep.subr.mxu0 0.0
    %6741 = vmatpush1.msra.mxu0 0.0
    %6742 = vmatprep.subr.mxu0 0.0
    %6743 = vmatpush1.msra.mxu0 0.0
    %6744 = vmatprep.subr.mxu0 0.0
    %6745 = vmatpush1.msra.mxu0 0.0
    %6746 = vmatprep.subr.mxu0 0.0
    %6747 = vmatpush1.msra.mxu0 0.0
    %6748 = vmatprep.subr.mxu0 0.0
    %6749 = vmatpush1.msra.mxu0 0.0
    %6750 = vmatprep.subr.mxu0 0.0
    %6751 = vmatpush1.msra.mxu0 0.0
    %6752 = vmatprep.subr.mxu0 0.0
    %6753 = vmatpush1.msra.mxu0 0.0
    %6754 = vmatprep.subr.mxu0 0.0
    %6755 = vmatpush1.msra.mxu0 0.0
    %6756 = vmatprep.subr.mxu0 0.0
    %6757 = vmatpush1.msra.mxu0 0.0
    %6758 = vmatprep.subr.mxu0 0.0
    %6759 = vmatpush1.msra.mxu0 0.0
    %6760 = vmatprep.subr.mxu0 0.0
    %6761 = vmatpush1.msra.mxu0 0.0
    %6762 = vmatprep.subr.mxu0 0.0
    %6763 = vmatpush1.msra.mxu0 0.0
    %6764 = vmatprep.subr.mxu0 0.0
    %6765 = vmatpush1.msra.mxu0 0.0
    %6766 = vmatprep.subr.mxu0 0.0
    %6767 = vmatpush1.msra.mxu0 0.0
    %6768 = vmatprep.subr.mxu0 0.0
    %6769 = vmatpush1.msra.mxu0 0.0
    %6770 = vmatprep.subr.mxu0 0.0
    %6771 = vmatpush1.msra.mxu0 0.0
    %6772 = vmatprep.subr.mxu0 0.0
    %6773 = vmatpush1.msra.mxu0 0.0
    %6774 = vmatprep.subr.mxu0 0.0
    %6775 = vmatpush1.msra.mxu0 0.0
    %6776 = vmatprep.mubr.f32.mxu0 0.0
    %6777 = vmatmul.mubr.f32.gmra.mrb[0].mxu0 %v6113
    %v6778 = vpop.f32.mrb[0].mxu0
    %v6779 = vadd.f32 0.0, %v6778
    %v6780 = vpop.f32.mrb[0].mxu0
    %6781 = vdwg.mxu0
    %v6783 = vsel %vm5578, %v6779, 0
    %6785 = vmatprep.subr.mxu0 %v5757
    %6786 = vmatpush1.msra.mxu0 %v63
    %6787 = vmatprep.subr.mxu0 %v5758
    %6788 = vmatpush1.msra.mxu0 %v2497
    %6789 = vmatprep.subr.mxu0 %v5759
    %6790 = vmatpush1.msra.mxu0 %v4261
    %6791 = vmatprep.subr.mxu0 %v5760
    %6792 = vmatpush1.msra.mxu0 %v4262
    %6793 = vmatprep.subr.mxu0 %v5761
    %6794 = vmatpush1.msra.mxu0 %v4263
    %6795 = vmatprep.subr.mxu0 %v5763
    %6796 = vmatpush1.msra.mxu0 %v5762
    %6797 = vmatprep.subr.mxu0 %v5765
    %6798 = vmatpush1.msra.mxu0 %v5764
    %6799 = vmatprep.subr.mxu0 %v5767
    %6800 = vmatpush1.msra.mxu0 %v5766
    %6801 = vmatprep.subr.mxu0 %v6192
    %6802 = vmatpush1.msra.mxu0 %v6189
    %6803 = vmatprep.subr.mxu0 0.0
    %6804 = vmatpush1.msra.mxu0 0.0
    %6805 = vmatprep.subr.mxu0 0.0
    %6806 = vmatpush1.msra.mxu0 0.0
    %6807 = vmatprep.subr.mxu0 0.0
    %6808 = vmatpush1.msra.mxu0 0.0
    %6809 = vmatprep.subr.mxu0 0.0
    %6810 = vmatpush1.msra.mxu0 0.0
    %6811 = vmatprep.subr.mxu0 0.0
    %6812 = vmatpush1.msra.mxu0 0.0
    %6813 = vmatprep.subr.mxu0 0.0
    %6814 = vmatpush1.msra.mxu0 0.0
    %6815 = vmatprep.subr.mxu0 0.0
    %6816 = vmatpush1.msra.mxu0 0.0
    %6817 = vmatprep.subr.mxu0 0.0
    %6818 = vmatpush1.msra.mxu0 0.0
    %6819 = vmatprep.subr.mxu0 0.0
    %6820 = vmatpush1.msra.mxu0 0.0
    %6821 = vmatprep.subr.mxu0 0.0
    %6822 = vmatpush1.msra.mxu0 0.0
    %6823 = vmatprep.subr.mxu0 0.0
    %6824 = vmatpush1.msra.mxu0 0.0
    %6825 = vmatprep.subr.mxu0 0.0
    %6826 = vmatpush1.msra.mxu0 0.0
    %6827 = vmatprep.subr.mxu0 0.0
    %6828 = vmatpush1.msra.mxu0 0.0
    %6829 = vmatprep.subr.mxu0 0.0
    %6830 = vmatpush1.msra.mxu0 0.0
    %6831 = vmatprep.subr.mxu0 0.0
    %6832 = vmatpush1.msra.mxu0 0.0
    %6833 = vmatprep.subr.mxu0 0.0
    %6834 = vmatpush1.msra.mxu0 0.0
    %6835 = vmatprep.subr.mxu0 0.0
    %6836 = vmatpush1.msra.mxu0 0.0
    %6837 = vmatprep.subr.mxu0 0.0
    %6838 = vmatpush1.msra.mxu0 0.0
    %6839 = vmatprep.subr.mxu0 0.0
    %6840 = vmatpush1.msra.mxu0 0.0
    %6841 = vmatprep.subr.mxu0 0.0
    %6842 = vmatpush1.msra.mxu0 0.0
    %6843 = vmatprep.subr.mxu0 0.0
    %6844 = vmatpush1.msra.mxu0 0.0
    %6845 = vmatprep.subr.mxu0 0.0
    %6846 = vmatpush1.msra.mxu0 0.0
    %6847 = vmatprep.subr.mxu0 0.0
    %6848 = vmatpush1.msra.mxu0 0.0
    %6849 = vmatprep.mubr.f32.mxu0 0.0
    %6850 = vmatmul.mubr.f32.gmra.mrb[0].mxu0 %v6783
    %v6851 = vpop.f32.mrb[0].mxu0
    %v6852 = vadd.f32 0.0, %v6851
    %v6853 = vpop.f32.mrb[0].mxu0
    %v6854 = vadd.f32 0.0, %v6853
    %6855 = vdwg.mxu0
    %v6856 = vadd.f32 %v6708, %v6852
    %v6857 = vadd.f32 %v6710, %v6854
    %6858 = vmatprep.subr.mxu0 0.0
    %6859 = vmatpush1.msra.mxu0 %v5673
    %6860 = vmatprep.subr.mxu0 0.0
    %6861 = vmatpush1.msra.mxu0 %v5674
    %6862 = vmatprep.subr.mxu0 0.0
    %6863 = vmatpush1.msra.mxu0 0.0
    %6864 = vmatprep.subr.mxu0 0.0
    %6865 = vmatpush1.msra.mxu0 0.0
    %6866 = vmatprep.subr.mxu0 0.0
    %6867 = vmatpush1.msra.mxu0 0.0
    %6868 = vmatprep.subr.mxu0 0.0
    %6869 = vmatpush1.msra.mxu0 0.0
    %6870 = vmatprep.subr.mxu0 0.0
    %6871 = vmatpush1.msra.mxu0 0.0
    %6872 = vmatprep.subr.mxu0 0.0
    %6873 = vmatpush1.msra.mxu0 0.0
    %6874 = vmatprep.subr.mxu0 0.0
    %6875 = vmatpush1.msra.mxu0 0.0
    %6876 = vmatprep.subr.mxu0 0.0
    %6877 = vmatpush1.msra.mxu0 0.0
    %6878 = vmatprep.subr.mxu0 0.0
    %6879 = vmatpush1.msra.mxu0 0.0
    %6880 = vmatprep.subr.mxu0 0.0
    %6881 = vmatpush1.msra.mxu0 0.0
    %6882 = vmatprep.subr.mxu0 0.0
    %6883 = vmatpush1.msra.mxu0 0.0
    %6884 = vmatprep.subr.mxu0 0.0
    %6885 = vmatpush1.msra.mxu0 0.0
    %6886 = vmatprep.subr.mxu0 0.0
    %6887 = vmatpush1.msra.mxu0 0.0
    %6888 = vmatprep.subr.mxu0 0.0
    %6889 = vmatpush1.msra.mxu0 0.0
    %6890 = vmatprep.subr.mxu0 0.0
    %6891 = vmatpush1.msra.mxu0 0.0
    %6892 = vmatprep.subr.mxu0 0.0
    %6893 = vmatpush1.msra.mxu0 0.0
    %6894 = vmatprep.subr.mxu0 0.0
    %6895 = vmatpush1.msra.mxu0 0.0
    %6896 = vmatprep.subr.mxu0 0.0
    %6897 = vmatpush1.msra.mxu0 0.0
    %6898 = vmatprep.subr.mxu0 0.0
    %6899 = vmatpush1.msra.mxu0 0.0
    %6900 = vmatprep.subr.mxu0 0.0
    %6901 = vmatpush1.msra.mxu0 0.0
    %6902 = vmatprep.subr.mxu0 0.0
    %6903 = vmatpush1.msra.mxu0 0.0
    %6904 = vmatprep.subr.mxu0 0.0
    %6905 = vmatpush1.msra.mxu0 0.0
    %6906 = vmatprep.subr.mxu0 0.0
    %6907 = vmatpush1.msra.mxu0 0.0
    %6908 = vmatprep.subr.mxu0 0.0
    %6909 = vmatpush1.msra.mxu0 0.0
    %6910 = vmatprep.subr.mxu0 0.0
    %6911 = vmatpush1.msra.mxu0 0.0
    %6912 = vmatprep.subr.mxu0 0.0
    %6913 = vmatpush1.msra.mxu0 0.0
    %6914 = vmatprep.subr.mxu0 0.0
    %6915 = vmatpush1.msra.mxu0 0.0
    %6916 = vmatprep.subr.mxu0 0.0
    %6917 = vmatpush1.msra.mxu0 0.0
    %6918 = vmatprep.subr.mxu0 0.0
    %6919 = vmatpush1.msra.mxu0 0.0
    %6920 = vmatprep.subr.mxu0 0.0
    %6921 = vmatpush1.msra.mxu0 0.0
    %6922 = vmatprep.mubr.f32.mxu0 0.0
    %6923 = vmatmul.mubr.f32.gmra.mrb[0].mxu0 %v6270
    %v6924 = vpop.f32.mrb[0].mxu0
    %v6925 = vadd.f32 0.0, %v6924
    %v6926 = vpop.f32.mrb[0].mxu0
    %6927 = vdwg.mxu0
    %v6929 = vsel %vm5578, %v6925, 0
    %6931 = vmatprep.subr.mxu0 %v5787
    %6932 = vmatpush1.msra.mxu0 %v66
    %6933 = vmatprep.subr.mxu0 %v5788
    %6934 = vmatpush1.msra.mxu0 %v2500
    %6935 = vmatprep.subr.mxu0 %v5789
    %6936 = vmatpush1.msra.mxu0 %v4270
    %6937 = vmatprep.subr.mxu0 %v5790
    %6938 = vmatpush1.msra.mxu0 %v4271
    %6939 = vmatprep.subr.mxu0 %v5791
    %6940 = vmatpush1.msra.mxu0 %v4272
    %6941 = vmatprep.subr.mxu0 %v5793
    %6942 = vmatpush1.msra.mxu0 %v5792
    %6943 = vmatprep.subr.mxu0 %v5795
    %6944 = vmatpush1.msra.mxu0 %v5794
    %6945 = vmatprep.subr.mxu0 %v5797
    %6946 = vmatpush1.msra.mxu0 %v5796
    %6947 = vmatprep.subr.mxu0 %v6349
    %6948 = vmatpush1.msra.mxu0 %v6346
    %6949 = vmatprep.subr.mxu0 0.0
    %6950 = vmatpush1.msra.mxu0 0.0
    %6951 = vmatprep.subr.mxu0 0.0
    %6952 = vmatpush1.msra.mxu0 0.0
    %6953 = vmatprep.subr.mxu0 0.0
    %6954 = vmatpush1.msra.mxu0 0.0
    %6955 = vmatprep.subr.mxu0 0.0
    %6956 = vmatpush1.msra.mxu0 0.0
    %6957 = vmatprep.subr.mxu0 0.0
    %6958 = vmatpush1.msra.mxu0 0.0
    %6959 = vmatprep.subr.mxu0 0.0
    %6960 = vmatpush1.msra.mxu0 0.0
    %6961 = vmatprep.subr.mxu0 0.0
    %6962 = vmatpush1.msra.mxu0 0.0
    %6963 = vmatprep.subr.mxu0 0.0
    %6964 = vmatpush1.msra.mxu0 0.0
    %6965 = vmatprep.subr.mxu0 0.0
    %6966 = vmatpush1.msra.mxu0 0.0
    %6967 = vmatprep.subr.mxu0 0.0
    %6968 = vmatpush1.msra.mxu0 0.0
    %6969 = vmatprep.subr.mxu0 0.0
    %6970 = vmatpush1.msra.mxu0 0.0
    %6971 = vmatprep.subr.mxu0 0.0
    %6972 = vmatpush1.msra.mxu0 0.0
    %6973 = vmatprep.subr.mxu0 0.0
    %6974 = vmatpush1.msra.mxu0 0.0
    %6975 = vmatprep.subr.mxu0 0.0
    %6976 = vmatpush1.msra.mxu0 0.0
    %6977 = vmatprep.subr.mxu0 0.0
    %6978 = vmatpush1.msra.mxu0 0.0
    %6979 = vmatprep.subr.mxu0 0.0
    %6980 = vmatpush1.msra.mxu0 0.0
    %6981 = vmatprep.subr.mxu0 0.0
    %6982 = vmatpush1.msra.mxu0 0.0
    %6983 = vmatprep.subr.mxu0 0.0
    %6984 = vmatpush1.msra.mxu0 0.0
    %6985 = vmatprep.subr.mxu0 0.0
    %6986 = vmatpush1.msra.mxu0 0.0
    %6987 = vmatprep.subr.mxu0 0.0
    %6988 = vmatpush1.msra.mxu0 0.0
    %6989 = vmatprep.subr.mxu0 0.0
    %6990 = vmatpush1.msra.mxu0 0.0
    %6991 = vmatprep.subr.mxu0 0.0
    %6992 = vmatpush1.msra.mxu0 0.0
    %6993 = vmatprep.subr.mxu0 0.0
    %6994 = vmatpush1.msra.mxu0 0.0
    %6995 = vmatprep.mubr.f32.mxu0 0.0
    %6996 = vmatmul.mubr.f32.gmra.mrb[0].mxu0 %v6929
    %v6997 = vpop.f32.mrb[0].mxu0
    %v6998 = vadd.f32 0.0, %v6997
    %v6999 = vpop.f32.mrb[0].mxu0
    %v7000 = vadd.f32 0.0, %v6999
    %7001 = vdwg.mxu0
    %v7002 = vadd.f32 %v6856, %v6998
    %v7003 = vadd.f32 %v6857, %v7000
    %vm7004 = vcmask 31744
    %v7005 = vsel %vm7004, %v6423, 0.0
    %v7006 = vadd.f32 %v6422, %v7005
    %7007 = vadd.xlane.f32.xlu0 %v7006
    %v7008 = vpop.xlane.xlu0 %7007
    %v7009 = vmul.f32 %v6422, %v6422
    %v7010 = vmul.f32 %v6423, %v6423
    %v7011 = vsel %vm7004, %v7010, 0.0
    %v7012 = vadd.f32 %v7009, %v7011
    %7013 = vadd.xlane.f32.xlu0 %v7012
    %v7014 = vpop.xlane.xlu0 %7013
    %v7015 = vsel %vm7004, %v7003, 0.0
    %v7016 = vadd.f32 %v7002, %v7015
    %7017 = vadd.xlane.f32.xlu0 %v7016
    %v7018 = vpop.xlane.xlu0 %7017
    %v7019 = vadd.f32 %v7008, %v7018
    %v7020 = vmul.f32 %v7002, %v7002
    %v7021 = vmul.f32 %v7003, %v7003
    %v7022 = vsel %vm7004, %v7021, 0.0
    %v7023 = vadd.f32 %v7020, %v7022
    %7024 = vadd.xlane.f32.xlu0 %v7023
    %v7025 = vpop.xlane.xlu0 %7024
    %v7026 = vadd.f32 %v7014, %v7025
    %v7027 = vmul.f32 %v7019, 0.003787879
    %v7028 = vmul.f32 %v7026, 0.003787879
    %v7029 = vmul.f32 %v7027, %v7027
    %v7030 = vsub.f32 %v7028, %v7029
    %v7031 = vmax.f32 %v7030, 0.0
    %v7032 = vld [vmem:[%s11] sm:$0xff]
    %v7033 = vadd.f32 %v7031, 1e-05
    %v7034 = vrsqrt.pop %v7033
    %v7035 = vmul.f32 %v7032, %v7034
    %v7036 = vld [vmem:[%s12] sm:$0xff]
    %v7037 = vmul.f32 %v7027, %v7035
    %v7038 = vsub.f32 %v7036, %v7037
    %7040 = vset.pattern.permute.xlu0 0
    %7041 = vperm.xlu0 %7040, %v7035
    %v7042 = vpop.permute.xlu0 %7041
    %v7044 = vmul.f32 %v6422, %v7042
    %v7045 = vmul.f32 %v6423, %v7042
    %7047 = vset.pattern.permute.xlu0 0
    %7048 = vperm.xlu0 %7047, %v7038
    %v7049 = vpop.permute.xlu0 %7048
    %v7051 = vadd.f32 %v7044, %v7049
    %v7052 = vadd.f32 %v7045, %v7049
    %vm7053 = vcmp.ge.f32.partialorder %v7051, 0.0
    %vm7054 = vcmp.ge.f32.partialorder %v7052, 0.0
    %v7055 = vmul.f32 %v7051, 0.2
    %v7056 = vmul.f32 %v7052, 0.2
    %v7057 = vsel %vm7053, %v7051, %v7055
    %v7058 = vsel %vm7054, %v7052, %v7056
    %v7059 = vmul.f32 %v7002, %v7042
    %v7060 = vmul.f32 %v7003, %v7042
    %v7061 = vadd.f32 %v7059, %v7049
    %v7062 = vadd.f32 %v7060, %v7049
    %vm7063 = vcmp.ge.f32.partialorder %v7061, 0.0
    %vm7064 = vcmp.ge.f32.partialorder %v7062, 0.0
    %v7065 = vmul.f32 %v7061, 0.2
    %v7066 = vmul.f32 %v7062, 0.2
    %v7067 = vsel %vm7063, %v7061, %v7065
    %v7068 = vsel %vm7064, %v7062, %v7066
    %v7069 = vadd.s32 %v52, 72
    %v7070 = vadd.s32 %v52, 80
    %v7071 = vadd.s32 %v52, 88
    %v7072 = vadd.s32 %v52, 96
    %v7073 = vadd.s32 %v52, 104
    %v7074 = vadd.s32 %v52, 112
    %v7075 = vadd.s32 %v52, 120
    %v7076 = vadd.s32 %v52, 128
    %v7077 = vadd.s32 %v54, 256
    %v7078 = vmul.u32 %v7069, 2
    %v7079 = vmul.u32 %v7070, 2
    %v7080 = vmul.u32 %v7071, 2
    %v7081 = vmul.u32 %v7072, 2
    %v7082 = vmul.u32 %v7073, 2
    %v7083 = vmul.u32 %v7074, 2
    %v7084 = vmul.u32 %v7075, 2
    %v7085 = vmul.u32 %v7076, 2
    %v7086 = vsub.s32 %v7078, 1
    %v7087 = vsub.s32 %v7079, 1
    %v7088 = vsub.s32 %v7080, 1
    %v7089 = vsub.s32 %v7081, 1
    %v7090 = vsub.s32 %v7082, 1
    %v7091 = vsub.s32 %v7083, 1
    %v7092 = vsub.s32 %v7084, 1
    %v7093 = vsub.s32 %v7085, 1
    %vm7094 = vcmp.eq.s32.totalorder %v7077, %v56
    %vm7095 = vcmp.eq.s32.totalorder %v7077, %v2490
    %vm7096 = vcmp.eq.s32.totalorder %v7077, %v4240
    %vm7097 = vcmp.eq.s32.totalorder %v7077, %v4241
    %vm7098 = vcmp.eq.s32.totalorder %v7077, %v4242
    %vm7099 = vcmp.eq.s32.totalorder %v7077, %v5684
    %vm7100 = vcmp.eq.s32.totalorder %v7077, %v5685
    %vm7101 = vcmp.eq.s32.totalorder %v7077, %v5686
    %vm7102 = vcmp.eq.s32.totalorder %v7077, %v5687
    %vm7103 = vcmp.eq.s32.totalorder %v54, %v7086
    %vm7104 = vcmp.eq.s32.totalorder %v5679, %v7086
    %vm7105 = vcmp.eq.s32.totalorder %v7077, %v7086
    %vm7106 = vcmp.eq.s32.totalorder %v54, %v7087
    %vm7107 = vcmp.eq.s32.totalorder %v5679, %v7087
    %vm7108 = vcmp.eq.s32.totalorder %v7077, %v7087
    %vm7109 = vcmp.eq.s32.totalorder %v54, %v7088
    %vm7110 = vcmp.eq.s32.totalorder %v5679, %v7088
    %vm7111 = vcmp.eq.s32.totalorder %v7077, %v7088
    %vm7112 = vcmp.eq.s32.totalorder %v54, %v7089
    %vm7113 = vcmp.eq.s32.totalorder %v5679, %v7089
    %vm7114 = vcmp.eq.s32.totalorder %v7077, %v7089
    %vm7115 = vcmp.eq.s32.totalorder %v54, %v7090
    %vm7116 = vcmp.eq.s32.totalorder %v5679, %v7090
    %vm7117 = vcmp.eq.s32.totalorder %v7077, %v7090
    %vm7118 = vcmp.eq.s32.totalorder %v54, %v7091
    %vm7119 = vcmp.eq.s32.totalorder %v5679, %v7091
    %vm7120 = vcmp.eq.s32.totalorder %v7077, %v7091
    %vm7121 = vcmp.eq.s32.totalorder %v54, %v7092
    %vm7122 = vcmp.eq.s32.totalorder %v5679, %v7092
    %vm7123 = vcmp.eq.s32.totalorder %v7077, %v7092
    %vm7124 = vcmp.eq.s32.totalorder %v54, %v7093
    %vm7125 = vcmp.eq.s32.totalorder %v5679, %v7093
    %vm7126 = vcmp.eq.s32.totalorder %v7077, %v7093
    %v7127 = vsel %vm7094, 1.0, 0.0
    %v7128 = vsel %vm7095, 1.0, 0.0
    %v7129 = vsel %vm7096, 1.0, 0.0
    %v7130 = vsel %vm7097, 1.0, 0.0
    %v7131 = vsel %vm7098, 1.0, 0.0
    %v7132 = vsel %vm7099, 1.0, 0.0
    %v7133 = vsel %vm7100, 1.0, 0.0
    %v7134 = vsel %vm7101, 1.0, 0.0
    %v7135 = vsel %vm7102, 1.0, 0.0
    %v7136 = vsel %vm7103, 1.0, 0.0
    %v7137 = vsel %vm7104, 1.0, 0.0
    %v7138 = vsel %vm7105, 1.0, 0.0
    %v7139 = vsel %vm7106, 1.0, 0.0
    %v7140 = vsel %vm7107, 1.0, 0.0
    %v7141 = vsel %vm7108, 1.0, 0.0
    %v7142 = vsel %vm7109, 1.0, 0.0
    %v7143 = vsel %vm7110, 1.0, 0.0
    %v7144 = vsel %vm7111, 1.0, 0.0
    %v7145 = vsel %vm7112, 1.0, 0.0
    %v7146 = vsel %vm7113, 1.0, 0.0
    %v7147 = vsel %vm7114, 1.0, 0.0
    %v7148 = vsel %vm7115, 1.0, 0.0
    %v7149 = vsel %vm7116, 1.0, 0.0
    %v7150 = vsel %vm7117, 1.0, 0.0
    %v7151 = vsel %vm7118, 1.0, 0.0
    %v7152 = vsel %vm7119, 1.0, 0.0
    %v7153 = vsel %vm7120, 1.0, 0.0
    %v7154 = vsel %vm7121, 1.0, 0.0
    %v7155 = vsel %vm7122, 1.0, 0.0
    %v7156 = vsel %vm7123, 1.0, 0.0
    %v7157 = vsel %vm7124, 1.0, 0.0
    %v7158 = vsel %vm7125, 1.0, 0.0
    %v7159 = vsel %vm7126, 1.0, 0.0
    %vm7160 = vcmp.eq.s32.totalorder %v7077, %v55
    %vm7161 = vcmp.eq.s32.totalorder %v7077, %v2489
    %vm7162 = vcmp.eq.s32.totalorder %v7077, %v4237
    %vm7163 = vcmp.eq.s32.totalorder %v7077, %v4238
    %vm7164 = vcmp.eq.s32.totalorder %v7077, %v4239
    %vm7165 = vcmp.eq.s32.totalorder %v7077, %v5680
    %vm7166 = vcmp.eq.s32.totalorder %v7077, %v5681
    %vm7167 = vcmp.eq.s32.totalorder %v7077, %v5682
    %vm7168 = vcmp.eq.s32.totalorder %v7077, %v5683
    %vm7169 = vcmp.eq.s32.totalorder %v54, %v7078
    %vm7170 = vcmp.eq.s32.totalorder %v5679, %v7078
    %vm7171 = vcmp.eq.s32.totalorder %v7077, %v7078
    %vm7172 = vcmp.eq.s32.totalorder %v54, %v7079
    %vm7173 = vcmp.eq.s32.totalorder %v5679, %v7079
    %vm7174 = vcmp.eq.s32.totalorder %v7077, %v7079
    %vm7175 = vcmp.eq.s32.totalorder %v54, %v7080
    %vm7176 = vcmp.eq.s32.totalorder %v5679, %v7080
    %vm7177 = vcmp.eq.s32.totalorder %v7077, %v7080
    %vm7178 = vcmp.eq.s32.totalorder %v54, %v7081
    %vm7179 = vcmp.eq.s32.totalorder %v5679, %v7081
    %vm7180 = vcmp.eq.s32.totalorder %v7077, %v7081
    %vm7181 = vcmp.eq.s32.totalorder %v54, %v7082
    %vm7182 = vcmp.eq.s32.totalorder %v5679, %v7082
    %vm7183 = vcmp.eq.s32.totalorder %v7077, %v7082
    %vm7184 = vcmp.eq.s32.totalorder %v54, %v7083
    %vm7185 = vcmp.eq.s32.totalorder %v5679, %v7083
    %vm7186 = vcmp.eq.s32.totalorder %v7077, %v7083
    %vm7187 = vcmp.eq.s32.totalorder %v54, %v7084
    %vm7188 = vcmp.eq.s32.totalorder %v5679, %v7084
    %vm7189 = vcmp.eq.s32.totalorder %v7077, %v7084
    %vm7190 = vcmp.eq.s32.totalorder %v54, %v7085
    %vm7191 = vcmp.eq.s32.totalorder %v5679, %v7085
    %vm7192 = vcmp.eq.s32.totalorder %v7077, %v7085
    %v7193 = vsel %vm7160, 1.0, 0.0
    %v7194 = vsel %vm7161, 1.0, 0.0
    %v7195 = vsel %vm7162, 1.0, 0.0
    %v7196 = vsel %vm7163, 1.0, 0.0
    %v7197 = vsel %vm7164, 1.0, 0.0
    %v7198 = vsel %vm7165, 1.0, 0.0
    %v7199 = vsel %vm7166, 1.0, 0.0
    %v7200 = vsel %vm7167, 1.0, 0.0
    %v7201 = vsel %vm7168, 1.0, 0.0
    %v7202 = vsel %vm7169, 1.0, 0.0
    %v7203 = vsel %vm7170, 1.0, 0.0
    %v7204 = vsel %vm7171, 1.0, 0.0
    %v7205 = vsel %vm7172, 1.0, 0.0
    %v7206 = vsel %vm7173, 1.0, 0.0
    %v7207 = vsel %vm7174, 1.0, 0.0
    %v7208 = vsel %vm7175, 1.0, 0.0
    %v7209 = vsel %vm7176, 1.0, 0.0
    %v7210 = vsel %vm7177, 1.0, 0.0
    %v7211 = vsel %vm7178, 1.0, 0.0
    %v7212 = vsel %vm7179, 1.0, 0.0
    %v7213 = vsel %vm7180, 1.0, 0.0
    %v7214 = vsel %vm7181, 1.0, 0.0
    %v7215 = vsel %vm7182, 1.0, 0.0
    %v7216 = vsel %vm7183, 1.0, 0.0
    %v7217 = vsel %vm7184, 1.0, 0.0
    %v7218 = vsel %vm7185, 1.0, 0.0
    %v7219 = vsel %vm7186, 1.0, 0.0
    %v7220 = vsel %vm7187, 1.0, 0.0
    %v7221 = vsel %vm7188, 1.0, 0.0
    %v7222 = vsel %vm7189, 1.0, 0.0
    %v7223 = vsel %vm7190, 1.0, 0.0
    %v7224 = vsel %vm7191, 1.0, 0.0
    %v7225 = vsel %vm7192, 1.0, 0.0
    %v7226 = vadd.s32 %v7086, 2
    %v7227 = vadd.s32 %v7087, 2
    %v7228 = vadd.s32 %v7088, 2
    %v7229 = vadd.s32 %v7089, 2
    %v7230 = vadd.s32 %v7090, 2
    %v7231 = vadd.s32 %v7091, 2
    %v7232 = vadd.s32 %v7092, 2
    %v7233 = vadd.s32 %v7093, 2
    %vm7234 = vcmp.eq.s32.totalorder %v7077, %v61
    %vm7235 = vcmp.eq.s32.totalorder %v7077, %v2495
    %vm7236 = vcmp.eq.s32.totalorder %v7077, %v4255
    %vm7237 = vcmp.eq.s32.totalorder %v7077, %v4256
    %vm7238 = vcmp.eq.s32.totalorder %v7077, %v4257
    %vm7239 = vcmp.eq.s32.totalorder %v7077, %v5740
    %vm7240 = vcmp.eq.s32.totalorder %v7077, %v5741
    %vm7241 = vcmp.eq.s32.totalorder %v7077, %v5742
    %vm7242 = vcmp.eq.s32.totalorder %v7077, %v5743
    %vm7243 = vcmp.eq.s32.totalorder %v54, %v7226
    %vm7244 = vcmp.eq.s32.totalorder %v5679, %v7226
    %vm7245 = vcmp.eq.s32.totalorder %v7077, %v7226
    %vm7246 = vcmp.eq.s32.totalorder %v54, %v7227
    %vm7247 = vcmp.eq.s32.totalorder %v5679, %v7227
    %vm7248 = vcmp.eq.s32.totalorder %v7077, %v7227
    %vm7249 = vcmp.eq.s32.totalorder %v54, %v7228
    %vm7250 = vcmp.eq.s32.totalorder %v5679, %v7228
    %vm7251 = vcmp.eq.s32.totalorder %v7077, %v7228
    %vm7252 = vcmp.eq.s32.totalorder %v54, %v7229
    %vm7253 = vcmp.eq.s32.totalorder %v5679, %v7229
    %vm7254 = vcmp.eq.s32.totalorder %v7077, %v7229
    %vm7255 = vcmp.eq.s32.totalorder %v54, %v7230
    %vm7256 = vcmp.eq.s32.totalorder %v5679, %v7230
    %vm7257 = vcmp.eq.s32.totalorder %v7077, %v7230
    %vm7258 = vcmp.eq.s32.totalorder %v54, %v7231
    %vm7259 = vcmp.eq.s32.totalorder %v5679, %v7231
    %vm7260 = vcmp.eq.s32.totalorder %v7077, %v7231
    %vm7261 = vcmp.eq.s32.totalorder %v54, %v7232
    %vm7262 = vcmp.eq.s32.totalorder %v5679, %v7232
    %vm7263 = vcmp.eq.s32.totalorder %v7077, %v7232
    %vm7264 = vcmp.eq.s32.totalorder %v54, %v7233
    %vm7265 = vcmp.eq.s32.totalorder %v5679, %v7233
    %vm7266 = vcmp.eq.s32.totalorder %v7077, %v7233
    %v7267 = vsel %vm7234, 1.0, 0.0
    %v7268 = vsel %vm7235, 1.0, 0.0
    %v7269 = vsel %vm7236, 1.0, 0.0
    %v7270 = vsel %vm7237, 1.0, 0.0
    %v7271 = vsel %vm7238, 1.0, 0.0
    %v7272 = vsel %vm7239, 1.0, 0.0
    %v7273 = vsel %vm7240, 1.0, 0.0
    %v7274 = vsel %vm7241, 1.0, 0.0
    %v7275 = vsel %vm7242, 1.0, 0.0
    %v7276 = vsel %vm7243, 1.0, 0.0
    %v7277 = vsel %vm7244, 1.0, 0.0
    %v7278 = vsel %vm7245, 1.0, 0.0
    %v7279 = vsel %vm7246, 1.0, 0.0
    %v7280 = vsel %vm7247, 1.0, 0.0
    %v7281 = vsel %vm7248, 1.0, 0.0
    %v7282 = vsel %vm7249, 1.0, 0.0
    %v7283 = vsel %vm7250, 1.0, 0.0
    %v7284 = vsel %vm7251, 1.0, 0.0
    %v7285 = vsel %vm7252, 1.0, 0.0
    %v7286 = vsel %vm7253, 1.0, 0.0
    %v7287 = vsel %vm7254, 1.0, 0.0
    %v7288 = vsel %vm7255, 1.0, 0.0
    %v7289 = vsel %vm7256, 1.0, 0.0
    %v7290 = vsel %vm7257, 1.0, 0.0
    %v7291 = vsel %vm7258, 1.0, 0.0
    %v7292 = vsel %vm7259, 1.0, 0.0
    %v7293 = vsel %vm7260, 1.0, 0.0
    %v7294 = vsel %vm7261, 1.0, 0.0
    %v7295 = vsel %vm7262, 1.0, 0.0
    %v7296 = vsel %vm7263, 1.0, 0.0
    %v7297 = vsel %vm7264, 1.0, 0.0
    %v7298 = vsel %vm7265, 1.0, 0.0
    %v7299 = vsel %vm7266, 1.0, 0.0
    %v7300 = vadd.s32 %v7086, 3
    %v7301 = vadd.s32 %v7087, 3
    %v7302 = vadd.s32 %v7088, 3
    %v7303 = vadd.s32 %v7089, 3
    %v7304 = vadd.s32 %v7090, 3
    %v7305 = vadd.s32 %v7091, 3
    %v7306 = vadd.s32 %v7092, 3
    %v7307 = vadd.s32 %v7093, 3
    %vm7308 = vcmp.eq.s32.totalorder %v7077, %v64
    %vm7309 = vcmp.eq.s32.totalorder %v7077, %v2498
    %vm7310 = vcmp.eq.s32.totalorder %v7077, %v4264
    %vm7311 = vcmp.eq.s32.totalorder %v7077, %v4265
    %vm7312 = vcmp.eq.s32.totalorder %v7077, %v4266
    %vm7313 = vcmp.eq.s32.totalorder %v7077, %v5770
    %vm7314 = vcmp.eq.s32.totalorder %v7077, %v5771
    %vm7315 = vcmp.eq.s32.totalorder %v7077, %v5772
    %vm7316 = vcmp.eq.s32.totalorder %v7077, %v5773
    %vm7317 = vcmp.eq.s32.totalorder %v54, %v7300
    %vm7318 = vcmp.eq.s32.totalorder %v5679, %v7300
    %vm7319 = vcmp.eq.s32.totalorder %v7077, %v7300
    %vm7320 = vcmp.eq.s32.totalorder %v54, %v7301
    %vm7321 = vcmp.eq.s32.totalorder %v5679, %v7301
    %vm7322 = vcmp.eq.s32.totalorder %v7077, %v7301
    %vm7323 = vcmp.eq.s32.totalorder %v54, %v7302
    %vm7324 = vcmp.eq.s32.totalorder %v5679, %v7302
    %vm7325 = vcmp.eq.s32.totalorder %v7077, %v7302
    %vm7326 = vcmp.eq.s32.totalorder %v54, %v7303
    %vm7327 = vcmp.eq.s32.totalorder %v5679, %v7303
    %vm7328 = vcmp.eq.s32.totalorder %v7077, %v7303
    %vm7329 = vcmp.eq.s32.totalorder %v54, %v7304
    %vm7330 = vcmp.eq.s32.totalorder %v5679, %v7304
    %vm7331 = vcmp.eq.s32.totalorder %v7077, %v7304
    %vm7332 = vcmp.eq.s32.totalorder %v54, %v7305
    %vm7333 = vcmp.eq.s32.totalorder %v5679, %v7305
    %vm7334 = vcmp.eq.s32.totalorder %v7077, %v7305
    %vm7335 = vcmp.eq.s32.totalorder %v54, %v7306
    %vm7336 = vcmp.eq.s32.totalorder %v5679, %v7306
    %vm7337 = vcmp.eq.s32.totalorder %v7077, %v7306
    %vm7338 = vcmp.eq.s32.totalorder %v54, %v7307
    %vm7339 = vcmp.eq.s32.totalorder %v5679, %v7307
    %vm7340 = vcmp.eq.s32.totalorder %v7077, %v7307
    %v7341 = vsel %vm7308, 1.0, 0.0
    %v7342 = vsel %vm7309, 1.0, 0.0
    %v7343 = vsel %vm7310, 1.0, 0.0
    %v7344 = vsel %vm7311, 1.0, 0.0
    %v7345 = vsel %vm7312, 1.0, 0.0
    %v7346 = vsel %vm7313, 1.0, 0.0
    %v7347 = vsel %vm7314, 1.0, 0.0
    %v7348 = vsel %vm7315, 1.0, 0.0
    %v7349 = vsel %vm7316, 1.0, 0.0
    %v7350 = vsel %vm7317, 1.0, 0.0
    %v7351 = vsel %vm7318, 1.0, 0.0
    %v7352 = vsel %vm7319, 1.0, 0.0
    %v7353 = vsel %vm7320, 1.0, 0.0
    %v7354 = vsel %vm7321, 1.0, 0.0
    %v7355 = vsel %vm7322, 1.0, 0.0
    %v7356 = vsel %vm7323, 1.0, 0.0
    %v7357 = vsel %vm7324, 1.0, 0.0
    %v7358 = vsel %vm7325, 1.0, 0.0
    %v7359 = vsel %vm7326, 1.0, 0.0
    %v7360 = vsel %vm7327, 1.0, 0.0
    %v7361 = vsel %vm7328, 1.0, 0.0
    %v7362 = vsel %vm7329, 1.0, 0.0
    %v7363 = vsel %vm7330, 1.0, 0.0
    %v7364 = vsel %vm7331, 1.0, 0.0
    %v7365 = vsel %vm7332, 1.0, 0.0
    %v7366 = vsel %vm7333, 1.0, 0.0
    %v7367 = vsel %vm7334, 1.0, 0.0
    %v7368 = vsel %vm7335, 1.0, 0.0
    %v7369 = vsel %vm7336, 1.0, 0.0
    %v7370 = vsel %vm7337, 1.0, 0.0
    %v7371 = vsel %vm7338, 1.0, 0.0
    %v7372 = vsel %vm7339, 1.0, 0.0
    %v7373 = vsel %vm7340, 1.0, 0.0
    %v7374 = vld [vmem:[%s13] sm:$0x3]
    %v7376 = vsel %vm75, %v7374, 0
    %7378 = vmatprep.subr.mxu0 %v7058
    %7379 = vmatpush1.msra.mxu0 %v7057
    %7380 = vmatprep.subr.mxu0 0.0
    %7381 = vmatpush1.msra.mxu0 0.0
    %7382 = vmatprep.subr.mxu0 0.0
    %7383 = vmatpush1.msra.mxu0 0.0
    %7384 = vmatprep.subr.mxu0 0.0
    %7385 = vmatpush1.msra.mxu0 0.0
    %7386 = vmatprep.subr.mxu0 0.0
    %7387 = vmatpush1.msra.mxu0 0.0
    %7388 = vmatprep.subr.mxu0 0.0
    %7389 = vmatpush1.msra.mxu0 0.0
    %7390 = vmatprep.subr.mxu0 0.0
    %7391 = vmatpush1.msra.mxu0 0.0
    %7392 = vmatprep.subr.mxu0 0.0
    %7393 = vmatpush1.msra.mxu0 0.0
    %7394 = vmatprep.subr.mxu0 0.0
    %7395 = vmatpush1.msra.mxu0 0.0
    %7396 = vmatprep.subr.mxu0 0.0
    %7397 = vmatpush1.msra.mxu0 0.0
    %7398 = vmatprep.subr.mxu0 0.0
    %7399 = vmatpush1.msra.mxu0 0.0
    %7400 = vmatprep.subr.mxu0 0.0
    %7401 = vmatpush1.msra.mxu0 0.0
    %7402 = vmatprep.subr.mxu0 0.0
    %7403 = vmatpush1.msra.mxu0 0.0
    %7404 = vmatprep.subr.mxu0 0.0
    %7405 = vmatpush1.msra.mxu0 0.0
    %7406 = vmatprep.subr.mxu0 0.0
    %7407 = vmatpush1.msra.mxu0 0.0
    %7408 = vmatprep.subr.mxu0 0.0
    %7409 = vmatpush1.msra.mxu0 0.0
    %7410 = vmatprep.subr.mxu0 0.0
    %7411 = vmatpush1.msra.mxu0 0.0
    %7412 = vmatprep.subr.mxu0 0.0
    %7413 = vmatpush1.msra.mxu0 0.0
    %7414 = vmatprep.subr.mxu0 0.0
    %7415 = vmatpush1.msra.mxu0 0.0
    %7416 = vmatprep.subr.mxu0 0.0
    %7417 = vmatpush1.msra.mxu0 0.0
    %7418 = vmatprep.subr.mxu0 0.0
    %7419 = vmatpush1.msra.mxu0 0.0
    %7420 = vmatprep.subr.mxu0 0.0
    %7421 = vmatpush1.msra.mxu0 0.0
    %7422 = vmatprep.subr.mxu0 0.0
    %7423 = vmatpush1.msra.mxu0 0.0
    %7424 = vmatprep.subr.mxu0 0.0
    %7425 = vmatpush1.msra.mxu0 0.0
    %7426 = vmatprep.subr.mxu0 0.0
    %7427 = vmatpush1.msra.mxu0 0.0
    %7428 = vmatprep.subr.mxu0 0.0
    %7429 = vmatpush1.msra.mxu0 0.0
    %7430 = vmatprep.subr.mxu0 0.0
    %7431 = vmatpush1.msra.mxu0 0.0
    %7432 = vmatprep.subr.mxu0 0.0
    %7433 = vmatpush1.msra.mxu0 0.0
    %7434 = vmatprep.subr.mxu0 0.0
    %7435 = vmatpush1.msra.mxu0 0.0
    %7436 = vmatprep.subr.mxu0 0.0
    %7437 = vmatpush1.msra.mxu0 0.0
    %7438 = vmatprep.subr.mxu0 0.0
    %7439 = vmatpush1.msra.mxu0 0.0
    %7440 = vmatprep.subr.mxu0 0.0
    %7441 = vmatpush1.msra.mxu0 0.0
    %7442 = vmatprep.mubr.f32.mxu0 0.0
    %7443 = vmatmul.mubr.f32.gmra.mrb[0].mxu0 %v7376
    %v7444 = vpop.f32.mrb[0].mxu0
    %v7445 = vadd.f32 0.0, %v7444
    %v7446 = vpop.f32.mrb[0].mxu0
    %v7447 = vadd.f32 0.0, %v7446
    %7448 = vdwg.mxu0
    %s7449 = scalar_lea.vmem %s13, 2
    %v7450 = vld [vmem:[%s7449] sm:$0x3]
    %v7452 = vsel %vm75, %v7450, 0
    %7454 = vmatprep.subr.mxu0 %v7058
    %7455 = vmatpush1.msra.mxu0 %v7057
    %7456 = vmatprep.subr.mxu0 0.0
    %7457 = vmatpush1.msra.mxu0 0.0
    %7458 = vmatprep.subr.mxu0 0.0
    %7459 = vmatpush1.msra.mxu0 0.0
    %7460 = vmatprep.subr.mxu0 0.0
    %7461 = vmatpush1.msra.mxu0 0.0
    %7462 = vmatprep.subr.mxu0 0.0
    %7463 = vmatpush1.msra.mxu0 0.0
    %7464 = vmatprep.subr.mxu0 0.0
    %7465 = vmatpush1.msra.mxu0 0.0
    %7466 = vmatprep.subr.mxu0 0.0
    %7467 = vmatpush1.msra.mxu0 0.0
    %7468 = vmatprep.subr.mxu0 0.0
    %7469 = vmatpush1.msra.mxu0 0.0
    %7470 = vmatprep.subr.mxu0 0.0
    %7471 = vmatpush1.msra.mxu0 0.0
    %7472 = vmatprep.subr.mxu0 0.0
    %7473 = vmatpush1.msra.mxu0 0.0
    %7474 = vmatprep.subr.mxu0 0.0
    %7475 = vmatpush1.msra.mxu0 0.0
    %7476 = vmatprep.subr.mxu0 0.0
    %7477 = vmatpush1.msra.mxu0 0.0
    %7478 = vmatprep.subr.mxu0 0.0
    %7479 = vmatpush1.msra.mxu0 0.0
    %7480 = vmatprep.subr.mxu0 0.0
    %7481 = vmatpush1.msra.mxu0 0.0
    %7482 = vmatprep.subr.mxu0 0.0
    %7483 = vmatpush1.msra.mxu0 0.0
    %7484 = vmatprep.subr.mxu0 0.0
    %7485 = vmatpush1.msra.mxu0 0.0
    %7486 = vmatprep.subr.mxu0 0.0
    %7487 = vmatpush1.msra.mxu0 0.0
    %7488 = vmatprep.subr.mxu0 0.0
    %7489 = vmatpush1.msra.mxu0 0.0
    %7490 = vmatprep.subr.mxu0 0.0
    %7491 = vmatpush1.msra.mxu0 0.0
    %7492 = vmatprep.subr.mxu0 0.0
    %7493 = vmatpush1.msra.mxu0 0.0
    %7494 = vmatprep.subr.mxu0 0.0
    %7495 = vmatpush1.msra.mxu0 0.0
    %7496 = vmatprep.subr.mxu0 0.0
    %7497 = vmatpush1.msra.mxu0 0.0
    %7498 = vmatprep.subr.mxu0 0.0
    %7499 = vmatpush1.msra.mxu0 0.0
    %7500 = vmatprep.subr.mxu0 0.0
    %7501 = vmatpush1.msra.mxu0 0.0
    %7502 = vmatprep.subr.mxu0 0.0
    %7503 = vmatpush1.msra.mxu0 0.0
    %7504 = vmatprep.subr.mxu0 0.0
    %7505 = vmatpush1.msra.mxu0 0.0
    %7506 = vmatprep.subr.mxu0 0.0
    %7507 = vmatpush1.msra.mxu0 0.0
    %7508 = vmatprep.subr.mxu0 0.0
    %7509 = vmatpush1.msra.mxu0 0.0
    %7510 = vmatprep.subr.mxu0 0.0
    %7511 = vmatpush1.msra.mxu0 0.0
    %7512 = vmatprep.subr.mxu0 0.0
    %7513 = vmatpush1.msra.mxu0 0.0
    %7514 = vmatprep.subr.mxu0 0.0
    %7515 = vmatpush1.msra.mxu0 0.0
    %7516 = vmatprep.subr.mxu0 0.0
    %7517 = vmatpush1.msra.mxu0 0.0
    %7518 = vmatprep.mubr.f32.mxu0 0.0
    %7519 = vmatmul.mubr.f32.gmra.mrb[0].mxu0 %v7452
    %v7520 = vpop.f32.mrb[0].mxu0
    %v7521 = vadd.f32 0.0, %v7520
    %v7522 = vpop.f32.mrb[0].mxu0
    %v7523 = vadd.f32 0.0, %v7522
    %7524 = vdwg.mxu0
    %v7526 = vsel %vm7004, %v7523, 0
    %vm7528 = vcmask 1043456
    %v7530 = vsel %vm7528, %v7223, 0
    %v7533 = vsel %vm7528, %v7224, 0
    %v7536 = vsel %vm7528, %v7225, 0
    %7538 = vmatprep.subr.mxu0 %v5727
    %7539 = vmatpush1.msra.mxu0 %v60
    %7540 = vmatprep.subr.mxu0 %v5728
    %7541 = vmatpush1.msra.mxu0 %v2494
    %7542 = vmatprep.subr.mxu0 %v5729
    %7543 = vmatpush1.msra.mxu0 %v4252
    %7544 = vmatprep.subr.mxu0 %v5730
    %7545 = vmatpush1.msra.mxu0 %v4253
    %7546 = vmatprep.subr.mxu0 %v5731
    %7547 = vmatpush1.msra.mxu0 %v4254
    %7548 = vmatprep.subr.mxu0 %v5733
    %7549 = vmatpush1.msra.mxu0 %v5732
    %7550 = vmatprep.subr.mxu0 %v5735
    %7551 = vmatpush1.msra.mxu0 %v5734
    %7552 = vmatprep.subr.mxu0 %v5737
    %7553 = vmatpush1.msra.mxu0 %v5736
    %7554 = vmatprep.subr.mxu0 %v5739
    %7555 = vmatpush1.msra.mxu0 %v5738
    %7556 = vmatprep.subr.mxu0 %v7203
    %7557 = vmatpush1.msra.mxu0 %v7202
    %7558 = vmatprep.subr.mxu0 %v7206
    %7559 = vmatpush1.msra.mxu0 %v7205
    %7560 = vmatprep.subr.mxu0 %v7209
    %7561 = vmatpush1.msra.mxu0 %v7208
    %7562 = vmatprep.subr.mxu0 %v7212
    %7563 = vmatpush1.msra.mxu0 %v7211
    %7564 = vmatprep.subr.mxu0 %v7215
    %7565 = vmatpush1.msra.mxu0 %v7214
    %7566 = vmatprep.subr.mxu0 %v7218
    %7567 = vmatpush1.msra.mxu0 %v7217
    %7568 = vmatprep.subr.mxu0 %v7221
    %7569 = vmatpush1.msra.mxu0 %v7220
    %7570 = vmatprep.subr.mxu0 %v7533
    %7571 = vmatpush1.msra.mxu0 %v7530
    %7572 = vmatprep.subr.mxu0 0.0
    %7573 = vmatpush1.msra.mxu0 0.0
    %7574 = vmatprep.subr.mxu0 0.0
    %7575 = vmatpush1.msra.mxu0 0.0
    %7576 = vmatprep.subr.mxu0 0.0
    %7577 = vmatpush1.msra.mxu0 0.0
    %7578 = vmatprep.subr.mxu0 0.0
    %7579 = vmatpush1.msra.mxu0 0.0
    %7580 = vmatprep.subr.mxu0 0.0
    %7581 = vmatpush1.msra.mxu0 0.0
    %7582 = vmatprep.subr.mxu0 0.0
    %7583 = vmatpush1.msra.mxu0 0.0
    %7584 = vmatprep.subr.mxu0 0.0
    %7585 = vmatpush1.msra.mxu0 0.0
    %7586 = vmatprep.subr.mxu0 0.0
    %7587 = vmatpush1.msra.mxu0 0.0
    %7588 = vmatprep.subr.mxu0 0.0
    %7589 = vmatpush1.msra.mxu0 0.0
    %7590 = vmatprep.subr.mxu0 0.0
    %7591 = vmatpush1.msra.mxu0 0.0
    %7592 = vmatprep.subr.mxu0 0.0
    %7593 = vmatpush1.msra.mxu0 0.0
    %7594 = vmatprep.subr.mxu0 0.0
    %7595 = vmatpush1.msra.mxu0 0.0
    %7596 = vmatprep.subr.mxu0 0.0
    %7597 = vmatpush1.msra.mxu0 0.0
    %7598 = vmatprep.subr.mxu0 0.0
    %7599 = vmatpush1.msra.mxu0 0.0
    %7600 = vmatprep.subr.mxu0 0.0
    %7601 = vmatpush1.msra.mxu0 0.0
    %7602 = vmatprep.mubr.f32.mxu0 %v7526
    %7603 = vmatmul.mubr.f32.gmra.mrb[0].mxu0 %v7521
    %v7604 = vpop.f32.mrb[0].mxu0
    %v7605 = vadd.f32 0.0, %v7604
    %v7606 = vpop.f32.mrb[0].mxu0
    %v7607 = vadd.f32 0.0, %v7606
    %7608 = vdwg.mxu0
    %7609 = vmatprep.subr.mxu0 0.0
    %7610 = vmatpush1.msra.mxu0 %v7193
    %7611 = vmatprep.subr.mxu0 0.0
    %7612 = vmatpush1.msra.mxu0 %v7194
    %7613 = vmatprep.subr.mxu0 0.0
    %7614 = vmatpush1.msra.mxu0 %v7195
    %7615 = vmatprep.subr.mxu0 0.0
    %7616 = vmatpush1.msra.mxu0 %v7196
    %7617 = vmatprep.subr.mxu0 0.0
    %7618 = vmatpush1.msra.mxu0 %v7197
    %7619 = vmatprep.subr.mxu0 0.0
    %7620 = vmatpush1.msra.mxu0 %v7198
    %7621 = vmatprep.subr.mxu0 0.0
    %7622 = vmatpush1.msra.mxu0 %v7199
    %7623 = vmatprep.subr.mxu0 0.0
    %7624 = vmatpush1.msra.mxu0 %v7200
    %7625 = vmatprep.subr.mxu0 0.0
    %7626 = vmatpush1.msra.mxu0 %v7201
    %7627 = vmatprep.subr.mxu0 0.0
    %7628 = vmatpush1.msra.mxu0 %v7204
    %7629 = vmatprep.subr.mxu0 0.0
    %7630 = vmatpush1.msra.mxu0 %v7207
    %7631 = vmatprep.subr.mxu0 0.0
    %7632 = vmatpush1.msra.mxu0 %v7210
    %7633 = vmatprep.subr.mxu0 0.0
    %7634 = vmatpush1.msra.mxu0 %v7213
    %7635 = vmatprep.subr.mxu0 0.0
    %7636 = vmatpush1.msra.mxu0 %v7216
    %7637 = vmatprep.subr.mxu0 0.0
    %7638 = vmatpush1.msra.mxu0 %v7219
    %7639 = vmatprep.subr.mxu0 0.0
    %7640 = vmatpush1.msra.mxu0 %v7222
    %7641 = vmatprep.subr.mxu0 0.0
    %7642 = vmatpush1.msra.mxu0 %v7536
    %7643 = vmatprep.subr.mxu0 0.0
    %7644 = vmatpush1.msra.mxu0 0.0
    %7645 = vmatprep.subr.mxu0 0.0
    %7646 = vmatpush1.msra.mxu0 0.0
    %7647 = vmatprep.subr.mxu0 0.0
    %7648 = vmatpush1.msra.mxu0 0.0
    %7649 = vmatprep.subr.mxu0 0.0
    %7650 = vmatpush1.msra.mxu0 0.0
    %7651 = vmatprep.subr.mxu0 0.0
    %7652 = vmatpush1.msra.mxu0 0.0
    %7653 = vmatprep.subr.mxu0 0.0
    %7654 = vmatpush1.msra.mxu0 0.0
    %7655 = vmatprep.subr.mxu0 0.0
    %7656 = vmatpush1.msra.mxu0 0.0
    %7657 = vmatprep.subr.mxu0 0.0
    %7658 = vmatpush1.msra.mxu0 0.0
    %7659 = vmatprep.subr.mxu0 0.0
    %7660 = vmatpush1.msra.mxu0 0.0
    %7661 = vmatprep.subr.mxu0 0.0
    %7662 = vmatpush1.msra.mxu0 0.0
    %7663 = vmatprep.subr.mxu0 0.0
    %7664 = vmatpush1.msra.mxu0 0.0
    %7665 = vmatprep.subr.mxu0 0.0
    %7666 = vmatpush1.msra.mxu0 0.0
    %7667 = vmatprep.subr.mxu0 0.0
    %7668 = vmatpush1.msra.mxu0 0.0
    %7669 = vmatprep.subr.mxu0 0.0
    %7670 = vmatpush1.msra.mxu0 0.0
    %7671 = vmatprep.subr.mxu0 0.0
    %7672 = vmatpush1.msra.mxu0 0.0
    %7673 = vmatprep.mubr.f32.mxu0 %v7526
    %7674 = vmatmul.mubr.f32.gmra.mrb[0].mxu0 %v7521
    %v7675 = vpop.f32.mrb[0].mxu0
    %v7676 = vadd.f32 0.0, %v7675
    %v7677 = vpop.f32.mrb[0].mxu0
    %7678 = vdwg.mxu0
    %v7680 = vsel %vm7004, %v7447, 0
    %v7683 = vsel %vm7528, %v7157, 0
    %v7686 = vsel %vm7528, %v7158, 0
    %v7689 = vsel %vm7528, %v7159, 0
    %7691 = vmatprep.subr.mxu0 %v5701
    %7692 = vmatpush1.msra.mxu0 %v58
    %7693 = vmatprep.subr.mxu0 %v5702
    %7694 = vmatpush1.msra.mxu0 %v2492
    %7695 = vmatprep.subr.mxu0 %v5703
    %7696 = vmatpush1.msra.mxu0 %v4246
    %7697 = vmatprep.subr.mxu0 %v5704
    %7698 = vmatpush1.msra.mxu0 %v4247
    %7699 = vmatprep.subr.mxu0 %v5705
    %7700 = vmatpush1.msra.mxu0 %v4248
    %7701 = vmatprep.subr.mxu0 %v5707
    %7702 = vmatpush1.msra.mxu0 %v5706
    %7703 = vmatprep.subr.mxu0 %v5709
    %7704 = vmatpush1.msra.mxu0 %v5708
    %7705 = vmatprep.subr.mxu0 %v5711
    %7706 = vmatpush1.msra.mxu0 %v5710
    %7707 = vmatprep.subr.mxu0 %v5713
    %7708 = vmatpush1.msra.mxu0 %v5712
    %7709 = vmatprep.subr.mxu0 %v7137
    %7710 = vmatpush1.msra.mxu0 %v7136
    %7711 = vmatprep.subr.mxu0 %v7140
    %7712 = vmatpush1.msra.mxu0 %v7139
    %7713 = vmatprep.subr.mxu0 %v7143
    %7714 = vmatpush1.msra.mxu0 %v7142
    %7715 = vmatprep.subr.mxu0 %v7146
    %7716 = vmatpush1.msra.mxu0 %v7145
    %7717 = vmatprep.subr.mxu0 %v7149
    %7718 = vmatpush1.msra.mxu0 %v7148
    %7719 = vmatprep.subr.mxu0 %v7152
    %7720 = vmatpush1.msra.mxu0 %v7151
    %7721 = vmatprep.subr.mxu0 %v7155
    %7722 = vmatpush1.msra.mxu0 %v7154
    %7723 = vmatprep.subr.mxu0 %v7686
    %7724 = vmatpush1.msra.mxu0 %v7683
    %7725 = vmatprep.subr.mxu0 0.0
    %7726 = vmatpush1.msra.mxu0 0.0
    %7727 = vmatprep.subr.mxu0 0.0
    %7728 = vmatpush1.msra.mxu0 0.0
    %7729 = vmatprep.subr.mxu0 0.0
    %7730 = vmatpush1.msra.mxu0 0.0
    %7731 = vmatprep.subr.mxu0 0.0
    %7732 = vmatpush1.msra.mxu0 0.0
    %7733 = vmatprep.subr.mxu0 0.0
    %7734 = vmatpush1.msra.mxu0 0.0
    %7735 = vmatprep.subr.mxu0 0.0
    %7736 = vmatpush1.msra.mxu0 0.0
    %7737 = vmatprep.subr.mxu0 0.0
    %7738 = vmatpush1.msra.mxu0 0.0
    %7739 = vmatprep.subr.mxu0 0.0
    %7740 = vmatpush1.msra.mxu0 0.0
    %7741 = vmatprep.subr.mxu0 0.0
    %7742 = vmatpush1.msra.mxu0 0.0
    %7743 = vmatprep.subr.mxu0 0.0
    %7744 = vmatpush1.msra.mxu0 0.0
    %7745 = vmatprep.subr.mxu0 0.0
    %7746 = vmatpush1.msra.mxu0 0.0
    %7747 = vmatprep.subr.mxu0 0.0
    %7748 = vmatpush1.msra.mxu0 0.0
    %7749 = vmatprep.subr.mxu0 0.0
    %7750 = vmatpush1.msra.mxu0 0.0
    %7751 = vmatprep.subr.mxu0 0.0
    %7752 = vmatpush1.msra.mxu0 0.0
    %7753 = vmatprep.subr.mxu0 0.0
    %7754 = vmatpush1.msra.mxu0 0.0
    %7755 = vmatprep.mubr.f32.mxu0 %v7680
    %7756 = vmatmul.mubr.f32.gmra.mrb[0].mxu0 %v7445
    %v7757 = vpop.f32.mrb[0].mxu0
    %v7758 = vadd.f32 %v7605, %v7757
    %v7759 = vpop.f32.mrb[0].mxu0
    %v7760 = vadd.f32 %v7607, %v7759
    %7761 = vdwg.mxu0
    %7762 = vmatprep.subr.mxu0 0.0
    %7763 = vmatpush1.msra.mxu0 %v7127
    %7764 = vmatprep.subr.mxu0 0.0
    %7765 = vmatpush1.msra.mxu0 %v7128
    %7766 = vmatprep.subr.mxu0 0.0
    %7767 = vmatpush1.msra.mxu0 %v7129
    %7768 = vmatprep.subr.mxu0 0.0
    %7769 = vmatpush1.msra.mxu0 %v7130
    %7770 = vmatprep.subr.mxu0 0.0
    %7771 = vmatpush1.msra.mxu0 %v7131
    %7772 = vmatprep.subr.mxu0 0.0
    %7773 = vmatpush1.msra.mxu0 %v7132
    %7774 = vmatprep.subr.mxu0 0.0
    %7775 = vmatpush1.msra.mxu0 %v7133
    %7776 = vmatprep.subr.mxu0 0.0
    %7777 = vmatpush1.msra.mxu0 %v7134
    %7778 = vmatprep.subr.mxu0 0.0
    %7779 = vmatpush1.msra.mxu0 %v7135
    %7780 = vmatprep.subr.mxu0 0.0
    %7781 = vmatpush1.msra.mxu0 %v7138
    %7782 = vmatprep.subr.mxu0 0.0
    %7783 = vmatpush1.msra.mxu0 %v7141
    %7784 = vmatprep.subr.mxu0 0.0
    %7785 = vmatpush1.msra.mxu0 %v7144
    %7786 = vmatprep.subr.mxu0 0.0
    %7787 = vmatpush1.msra.mxu0 %v7147
    %7788 = vmatprep.subr.mxu0 0.0
    %7789 = vmatpush1.msra.mxu0 %v7150
    %7790 = vmatprep.subr.mxu0 0.0
    %7791 = vmatpush1.msra.mxu0 %v7153
    %7792 = vmatprep.subr.mxu0 0.0
    %7793 = vmatpush1.msra.mxu0 %v7156
    %7794 = vmatprep.subr.mxu0 0.0
    %7795 = vmatpush1.msra.mxu0 %v7689
    %7796 = vmatprep.subr.mxu0 0.0
    %7797 = vmatpush1.msra.mxu0 0.0
    %7798 = vmatprep.subr.mxu0 0.0
    %7799 = vmatpush1.msra.mxu0 0.0
    %7800 = vmatprep.subr.mxu0 0.0
    %7801 = vmatpush1.msra.mxu0 0.0
    %7802 = vmatprep.subr.mxu0 0.0
    %7803 = vmatpush1.msra.mxu0 0.0
    %7804 = vmatprep.subr.mxu0 0.0
    %7805 = vmatpush1.msra.mxu0 0.0
    %7806 = vmatprep.subr.mxu0 0.0
    %7807 = vmatpush1.msra.mxu0 0.0
    %7808 = vmatprep.subr.mxu0 0.0
    %7809 = vmatpush1.msra.mxu0 0.0
    %7810 = vmatprep.subr.mxu0 0.0
    %7811 = vmatpush1.msra.mxu0 0.0
    %7812 = vmatprep.subr.mxu0 0.0
    %7813 = vmatpush1.msra.mxu0 0.0
    %7814 = vmatprep.subr.mxu0 0.0
    %7815 = vmatpush1.msra.mxu0 0.0
    %7816 = vmatprep.subr.mxu0 0.0
    %7817 = vmatpush1.msra.mxu0 0.0
    %7818 = vmatprep.subr.mxu0 0.0
    %7819 = vmatpush1.msra.mxu0 0.0
    %7820 = vmatprep.subr.mxu0 0.0
    %7821 = vmatpush1.msra.mxu0 0.0
    %7822 = vmatprep.subr.mxu0 0.0
    %7823 = vmatpush1.msra.mxu0 0.0
    %7824 = vmatprep.subr.mxu0 0.0
    %7825 = vmatpush1.msra.mxu0 0.0
    %7826 = vmatprep.mubr.f32.mxu0 %v7680
    %7827 = vmatmul.mubr.f32.gmra.mrb[0].mxu0 %v7445
    %v7828 = vpop.f32.mrb[0].mxu0
    %v7829 = vadd.f32 %v7676, %v7828
    %v7830 = vpop.f32.mrb[0].mxu0
    %7831 = vdwg.mxu0
    %s7832 = scalar_lea.vmem %s13, 4
    %v7833 = vld [vmem:[%s7832] sm:$0x3]
    %v7835 = vsel %vm75, %v7833, 0
    %7837 = vmatprep.subr.mxu0 %v7058
    %7838 = vmatpush1.msra.mxu0 %v7057
    %7839 = vmatprep.subr.mxu0 0.0
    %7840 = vmatpush1.msra.mxu0 0.0
    %7841 = vmatprep.subr.mxu0 0.0
    %7842 = vmatpush1.msra.mxu0 0.0
    %7843 = vmatprep.subr.mxu0 0.0
    %7844 = vmatpush1.msra.mxu0 0.0
    %7845 = vmatprep.subr.mxu0 0.0
    %7846 = vmatpush1.msra.mxu0 0.0
    %7847 = vmatprep.subr.mxu0 0.0
    %7848 = vmatpush1.msra.mxu0 0.0
    %7849 = vmatprep.subr.mxu0 0.0
    %7850 = vmatpush1.msra.mxu0 0.0
    %7851 = vmatprep.subr.mxu0 0.0
    %7852 = vmatpush1.msra.mxu0 0.0
    %7853 = vmatprep.subr.mxu0 0.0
    %7854 = vmatpush1.msra.mxu0 0.0
    %7855 = vmatprep.subr.mxu0 0.0
    %7856 = vmatpush1.msra.mxu0 0.0
    %7857 = vmatprep.subr.mxu0 0.0
    %7858 = vmatpush1.msra.mxu0 0.0
    %7859 = vmatprep.subr.mxu0 0.0
    %7860 = vmatpush1.msra.mxu0 0.0
    %7861 = vmatprep.subr.mxu0 0.0
    %7862 = vmatpush1.msra.mxu0 0.0
    %7863 = vmatprep.subr.mxu0 0.0
    %7864 = vmatpush1.msra.mxu0 0.0
    %7865 = vmatprep.subr.mxu0 0.0
    %7866 = vmatpush1.msra.mxu0 0.0
    %7867 = vmatprep.subr.mxu0 0.0
    %7868 = vmatpush1.msra.mxu0 0.0
    %7869 = vmatprep.subr.mxu0 0.0
    %7870 = vmatpush1.msra.mxu0 0.0
    %7871 = vmatprep.subr.mxu0 0.0
    %7872 = vmatpush1.msra.mxu0 0.0
    %7873 = vmatprep.subr.mxu0 0.0
    %7874 = vmatpush1.msra.mxu0 0.0
    %7875 = vmatprep.subr.mxu0 0.0
    %7876 = vmatpush1.msra.mxu0 0.0
    %7877 = vmatprep.subr.mxu0 0.0
    %7878 = vmatpush1.msra.mxu0 0.0
    %7879 = vmatprep.subr.mxu0 0.0
    %7880 = vmatpush1.msra.mxu0 0.0
    %7881 = vmatprep.subr.mxu0 0.0
    %7882 = vmatpush1.msra.mxu0 0.0
    %7883 = vmatprep.subr.mxu0 0.0
    %7884 = vmatpush1.msra.mxu0 0.0
    %7885 = vmatprep.subr.mxu0 0.0
    %7886 = vmatpush1.msra.mxu0 0.0
    %7887 = vmatprep.subr.mxu0 0.0
    %7888 = vmatpush1.msra.mxu0 0.0
    %7889 = vmatprep.subr.mxu0 0.0
    %7890 = vmatpush1.msra.mxu0 0.0
    %7891 = vmatprep.subr.mxu0 0.0
    %7892 = vmatpush1.msra.mxu0 0.0
    %7893 = vmatprep.subr.mxu0 0.0
    %7894 = vmatpush1.msra.mxu0 0.0
    %7895 = vmatprep.subr.mxu0 0.0
    %7896 = vmatpush1.msra.mxu0 0.0
    %7897 = vmatprep.subr.mxu0 0.0
    %7898 = vmatpush1.msra.mxu0 0.0
    %7899 = vmatprep.subr.mxu0 0.0
    %7900 = vmatpush1.msra.mxu0 0.0
    %7901 = vmatprep.mubr.f32.mxu0 0.0
    %7902 = vmatmul.mubr.f32.gmra.mrb[0].mxu0 %v7835
    %v7903 = vpop.f32.mrb[0].mxu0
    %v7904 = vadd.f32 0.0, %v7903
    %v7905 = vpop.f32.mrb[0].mxu0
    %v7906 = vadd.f32 0.0, %v7905
    %7907 = vdwg.mxu0
    %v7909 = vsel %vm7004, %v7906, 0
    %v7912 = vsel %vm7528, %v7297, 0
    %v7915 = vsel %vm7528, %v7298, 0
    %v7918 = vsel %vm7528, %v7299, 0
    %7920 = vmatprep.subr.mxu0 %v5757
    %7921 = vmatpush1.msra.mxu0 %v63
    %7922 = vmatprep.subr.mxu0 %v5758
    %7923 = vmatpush1.msra.mxu0 %v2497
    %7924 = vmatprep.subr.mxu0 %v5759
    %7925 = vmatpush1.msra.mxu0 %v4261
    %7926 = vmatprep.subr.mxu0 %v5760
    %7927 = vmatpush1.msra.mxu0 %v4262
    %7928 = vmatprep.subr.mxu0 %v5761
    %7929 = vmatpush1.msra.mxu0 %v4263
    %7930 = vmatprep.subr.mxu0 %v5763
    %7931 = vmatpush1.msra.mxu0 %v5762
    %7932 = vmatprep.subr.mxu0 %v5765
    %7933 = vmatpush1.msra.mxu0 %v5764
    %7934 = vmatprep.subr.mxu0 %v5767
    %7935 = vmatpush1.msra.mxu0 %v5766
    %7936 = vmatprep.subr.mxu0 %v5769
    %7937 = vmatpush1.msra.mxu0 %v5768
    %7938 = vmatprep.subr.mxu0 %v7277
    %7939 = vmatpush1.msra.mxu0 %v7276
    %7940 = vmatprep.subr.mxu0 %v7280
    %7941 = vmatpush1.msra.mxu0 %v7279
    %7942 = vmatprep.subr.mxu0 %v7283
    %7943 = vmatpush1.msra.mxu0 %v7282
    %7944 = vmatprep.subr.mxu0 %v7286
    %7945 = vmatpush1.msra.mxu0 %v7285
    %7946 = vmatprep.subr.mxu0 %v7289
    %7947 = vmatpush1.msra.mxu0 %v7288
    %7948 = vmatprep.subr.mxu0 %v7292
    %7949 = vmatpush1.msra.mxu0 %v7291
    %7950 = vmatprep.subr.mxu0 %v7295
    %7951 = vmatpush1.msra.mxu0 %v7294
    %7952 = vmatprep.subr.mxu0 %v7915
    %7953 = vmatpush1.msra.mxu0 %v7912
    %7954 = vmatprep.subr.mxu0 0.0
    %7955 = vmatpush1.msra.mxu0 0.0
    %7956 = vmatprep.subr.mxu0 0.0
    %7957 = vmatpush1.msra.mxu0 0.0
    %7958 = vmatprep.subr.mxu0 0.0
    %7959 = vmatpush1.msra.mxu0 0.0
    %7960 = vmatprep.subr.mxu0 0.0
    %7961 = vmatpush1.msra.mxu0 0.0
    %7962 = vmatprep.subr.mxu0 0.0
    %7963 = vmatpush1.msra.mxu0 0.0
    %7964 = vmatprep.subr.mxu0 0.0
    %7965 = vmatpush1.msra.mxu0 0.0
    %7966 = vmatprep.subr.mxu0 0.0
    %7967 = vmatpush1.msra.mxu0 0.0
    %7968 = vmatprep.subr.mxu0 0.0
    %7969 = vmatpush1.msra.mxu0 0.0
    %7970 = vmatprep.subr.mxu0 0.0
    %7971 = vmatpush1.msra.mxu0 0.0
    %7972 = vmatprep.subr.mxu0 0.0
    %7973 = vmatpush1.msra.mxu0 0.0
    %7974 = vmatprep.subr.mxu0 0.0
    %7975 = vmatpush1.msra.mxu0 0.0
    %7976 = vmatprep.subr.mxu0 0.0
    %7977 = vmatpush1.msra.mxu0 0.0
    %7978 = vmatprep.subr.mxu0 0.0
    %7979 = vmatpush1.msra.mxu0 0.0
    %7980 = vmatprep.subr.mxu0 0.0
    %7981 = vmatpush1.msra.mxu0 0.0
    %7982 = vmatprep.subr.mxu0 0.0
    %7983 = vmatpush1.msra.mxu0 0.0
    %7984 = vmatprep.mubr.f32.mxu0 %v7909
    %7985 = vmatmul.mubr.f32.gmra.mrb[0].mxu0 %v7904
    %v7986 = vpop.f32.mrb[0].mxu0
    %v7987 = vadd.f32 0.0, %v7986
    %v7988 = vpop.f32.mrb[0].mxu0
    %v7989 = vadd.f32 0.0, %v7988
    %7990 = vdwg.mxu0
    %7991 = vmatprep.subr.mxu0 0.0
    %7992 = vmatpush1.msra.mxu0 %v7267
    %7993 = vmatprep.subr.mxu0 0.0
    %7994 = vmatpush1.msra.mxu0 %v7268
    %7995 = vmatprep.subr.mxu0 0.0
    %7996 = vmatpush1.msra.mxu0 %v7269
    %7997 = vmatprep.subr.mxu0 0.0
    %7998 = vmatpush1.msra.mxu0 %v7270
    %7999 = vmatprep.subr.mxu0 0.0
    %8000 = vmatpush1.msra.mxu0 %v7271
    %8001 = vmatprep.subr.mxu0 0.0
    %8002 = vmatpush1.msra.mxu0 %v7272
    %8003 = vmatprep.subr.mxu0 0.0
    %8004 = vmatpush1.msra.mxu0 %v7273
    %8005 = vmatprep.subr.mxu0 0.0
    %8006 = vmatpush1.msra.mxu0 %v7274
    %8007 = vmatprep.subr.mxu0 0.0
    %8008 = vmatpush1.msra.mxu0 %v7275
    %8009 = vmatprep.subr.mxu0 0.0
    %8010 = vmatpush1.msra.mxu0 %v7278
    %8011 = vmatprep.subr.mxu0 0.0
    %8012 = vmatpush1.msra.mxu0 %v7281
    %8013 = vmatprep.subr.mxu0 0.0
    %8014 = vmatpush1.msra.mxu0 %v7284
    %8015 = vmatprep.subr.mxu0 0.0
    %8016 = vmatpush1.msra.mxu0 %v7287
    %8017 = vmatprep.subr.mxu0 0.0
    %8018 = vmatpush1.msra.mxu0 %v7290
    %8019 = vmatprep.subr.mxu0 0.0
    %8020 = vmatpush1.msra.mxu0 %v7293
    %8021 = vmatprep.subr.mxu0 0.0
    %8022 = vmatpush1.msra.mxu0 %v7296
    %8023 = vmatprep.subr.mxu0 0.0
    %8024 = vmatpush1.msra.mxu0 %v7918
    %8025 = vmatprep.subr.mxu0 0.0
    %8026 = vmatpush1.msra.mxu0 0.0
    %8027 = vmatprep.subr.mxu0 0.0
    %8028 = vmatpush1.msra.mxu0 0.0
    %8029 = vmatprep.subr.mxu0 0.0
    %8030 = vmatpush1.msra.mxu0 0.0
    %8031 = vmatprep.subr.mxu0 0.0
    %8032 = vmatpush1.msra.mxu0 0.0
    %8033 = vmatprep.subr.mxu0 0.0
    %8034 = vmatpush1.msra.mxu0 0.0
    %8035 = vmatprep.subr.mxu0 0.0
    %8036 = vmatpush1.msra.mxu0 0.0
    %8037 = vmatprep.subr.mxu0 0.0
    %8038 = vmatpush1.msra.mxu0 0.0
    %8039 = vmatprep.subr.mxu0 0.0
    %8040 = vmatpush1.msra.mxu0 0.0
    %8041 = vmatprep.subr.mxu0 0.0
    %8042 = vmatpush1.msra.mxu0 0.0
    %8043 = vmatprep.subr.mxu0 0.0
    %8044 = vmatpush1.msra.mxu0 0.0
    %8045 = vmatprep.subr.mxu0 0.0
    %8046 = vmatpush1.msra.mxu0 0.0
    %8047 = vmatprep.subr.mxu0 0.0
    %8048 = vmatpush1.msra.mxu0 0.0
    %8049 = vmatprep.subr.mxu0 0.0
    %8050 = vmatpush1.msra.mxu0 0.0
    %8051 = vmatprep.subr.mxu0 0.0
    %8052 = vmatpush1.msra.mxu0 0.0
    %8053 = vmatprep.subr.mxu0 0.0
    %8054 = vmatpush1.msra.mxu0 0.0
    %8055 = vmatprep.mubr.f32.mxu0 %v7909
    %8056 = vmatmul.mubr.f32.gmra.mrb[0].mxu0 %v7904
    %v8057 = vpop.f32.mrb[0].mxu0
    %v8058 = vadd.f32 0.0, %v8057
    %v8059 = vpop.f32.mrb[0].mxu0
    %8060 = vdwg.mxu0
    %v8061 = vadd.f32 %v7758, %v7987
    %v8062 = vadd.f32 %v7760, %v7989
    %v8063 = vadd.f32 %v7829, %v8058
    %s8064 = scalar_lea.vmem %s13, 6
    %v8065 = vld [vmem:[%s8064] sm:$0x3]
    %v8067 = vsel %vm75, %v8065, 0
    %8069 = vmatprep.subr.mxu0 %v7058
    %8070 = vmatpush1.msra.mxu0 %v7057
    %8071 = vmatprep.subr.mxu0 0.0
    %8072 = vmatpush1.msra.mxu0 0.0
    %8073 = vmatprep.subr.mxu0 0.0
    %8074 = vmatpush1.msra.mxu0 0.0
    %8075 = vmatprep.subr.mxu0 0.0
    %8076 = vmatpush1.msra.mxu0 0.0
    %8077 = vmatprep.subr.mxu0 0.0
    %8078 = vmatpush1.msra.mxu0 0.0
    %8079 = vmatprep.subr.mxu0 0.0
    %8080 = vmatpush1.msra.mxu0 0.0
    %8081 = vmatprep.subr.mxu0 0.0
    %8082 = vmatpush1.msra.mxu0 0.0
    %8083 = vmatprep.subr.mxu0 0.0
    %8084 = vmatpush1.msra.mxu0 0.0
    %8085 = vmatprep.subr.mxu0 0.0
    %8086 = vmatpush1.msra.mxu0 0.0
    %8087 = vmatprep.subr.mxu0 0.0
    %8088 = vmatpush1.msra.mxu0 0.0
    %8089 = vmatprep.subr.mxu0 0.0
    %8090 = vmatpush1.msra.mxu0 0.0
    %8091 = vmatprep.subr.mxu0 0.0
    %8092 = vmatpush1.msra.mxu0 0.0
    %8093 = vmatprep.subr.mxu0 0.0
    %8094 = vmatpush1.msra.mxu0 0.0
    %8095 = vmatprep.subr.mxu0 0.0
    %8096 = vmatpush1.msra.mxu0 0.0
    %8097 = vmatprep.subr.mxu0 0.0
    %8098 = vmatpush1.msra.mxu0 0.0
    %8099 = vmatprep.subr.mxu0 0.0
    %8100 = vmatpush1.msra.mxu0 0.0
    %8101 = vmatprep.subr.mxu0 0.0
    %8102 = vmatpush1.msra.mxu0 0.0
    %8103 = vmatprep.subr.mxu0 0.0
    %8104 = vmatpush1.msra.mxu0 0.0
    %8105 = vmatprep.subr.mxu0 0.0
    %8106 = vmatpush1.msra.mxu0 0.0
    %8107 = vmatprep.subr.mxu0 0.0
    %8108 = vmatpush1.msra.mxu0 0.0
    %8109 = vmatprep.subr.mxu0 0.0
    %8110 = vmatpush1.msra.mxu0 0.0
    %8111 = vmatprep.subr.mxu0 0.0
    %8112 = vmatpush1.msra.mxu0 0.0
    %8113 = vmatprep.subr.mxu0 0.0
    %8114 = vmatpush1.msra.mxu0 0.0
    %8115 = vmatprep.subr.mxu0 0.0
    %8116 = vmatpush1.msra.mxu0 0.0
    %8117 = vmatprep.subr.mxu0 0.0
    %8118 = vmatpush1.msra.mxu0 0.0
    %8119 = vmatprep.subr.mxu0 0.0
    %8120 = vmatpush1.msra.mxu0 0.0
    %8121 = vmatprep.subr.mxu0 0.0
    %8122 = vmatpush1.msra.mxu0 0.0
    %8123 = vmatprep.subr.mxu0 0.0
    %8124 = vmatpush1.msra.mxu0 0.0
    %8125 = vmatprep.subr.mxu0 0.0
    %8126 = vmatpush1.msra.mxu0 0.0
    %8127 = vmatprep.subr.mxu0 0.0
    %8128 = vmatpush1.msra.mxu0 0.0
    %8129 = vmatprep.subr.mxu0 0.0
    %8130 = vmatpush1.msra.mxu0 0.0
    %8131 = vmatprep.subr.mxu0 0.0
    %8132 = vmatpush1.msra.mxu0 0.0
    %8133 = vmatprep.mubr.f32.mxu0 0.0
    %8134 = vmatmul.mubr.f32.gmra.mrb[0].mxu0 %v8067
    %v8135 = vpop.f32.mrb[0].mxu0
    %v8136 = vadd.f32 0.0, %v8135
    %v8137 = vpop.f32.mrb[0].mxu0
    %v8138 = vadd.f32 0.0, %v8137
    %8139 = vdwg.mxu0
    %v8141 = vsel %vm7004, %v8138, 0
    %v8144 = vsel %vm7528, %v7371, 0
    %v8147 = vsel %vm7528, %v7372, 0
    %v8150 = vsel %vm7528, %v7373, 0
    %8152 = vmatprep.subr.mxu0 %v5787
    %8153 = vmatpush1.msra.mxu0 %v66
    %8154 = vmatprep.subr.mxu0 %v5788
    %8155 = vmatpush1.msra.mxu0 %v2500
    %8156 = vmatprep.subr.mxu0 %v5789
    %8157 = vmatpush1.msra.mxu0 %v4270
    %8158 = vmatprep.subr.mxu0 %v5790
    %8159 = vmatpush1.msra.mxu0 %v4271
    %8160 = vmatprep.subr.mxu0 %v5791
    %8161 = vmatpush1.msra.mxu0 %v4272
    %8162 = vmatprep.subr.mxu0 %v5793
    %8163 = vmatpush1.msra.mxu0 %v5792
    %8164 = vmatprep.subr.mxu0 %v5795
    %8165 = vmatpush1.msra.mxu0 %v5794
    %8166 = vmatprep.subr.mxu0 %v5797
    %8167 = vmatpush1.msra.mxu0 %v5796
    %8168 = vmatprep.subr.mxu0 %v5799
    %8169 = vmatpush1.msra.mxu0 %v5798
    %8170 = vmatprep.subr.mxu0 %v7351
    %8171 = vmatpush1.msra.mxu0 %v7350
    %8172 = vmatprep.subr.mxu0 %v7354
    %8173 = vmatpush1.msra.mxu0 %v7353
    %8174 = vmatprep.subr.mxu0 %v7357
    %8175 = vmatpush1.msra.mxu0 %v7356
    %8176 = vmatprep.subr.mxu0 %v7360
    %8177 = vmatpush1.msra.mxu0 %v7359
    %8178 = vmatprep.subr.mxu0 %v7363
    %8179 = vmatpush1.msra.mxu0 %v7362
    %8180 = vmatprep.subr.mxu0 %v7366
    %8181 = vmatpush1.msra.mxu0 %v7365
    %8182 = vmatprep.subr.mxu0 %v7369
    %8183 = vmatpush1.msra.mxu0 %v7368
    %8184 = vmatprep.subr.mxu0 %v8147
    %8185 = vmatpush1.msra.mxu0 %v8144
    %8186 = vmatprep.subr.mxu0 0.0
    %8187 = vmatpush1.msra.mxu0 0.0
    %8188 = vmatprep.subr.mxu0 0.0
    %8189 = vmatpush1.msra.mxu0 0.0
    %8190 = vmatprep.subr.mxu0 0.0
    %8191 = vmatpush1.msra.mxu0 0.0
    %8192 = vmatprep.subr.mxu0 0.0
    %8193 = vmatpush1.msra.mxu0 0.0
    %8194 = vmatprep.subr.mxu0 0.0
    %8195 = vmatpush1.msra.mxu0 0.0
    %8196 = vmatprep.subr.mxu0 0.0
    %8197 = vmatpush1.msra.mxu0 0.0
    %8198 = vmatprep.subr.mxu0 0.0
    %8199 = vmatpush1.msra.mxu0 0.0
    %8200 = vmatprep.subr.mxu0 0.0
    %8201 = vmatpush1.msra.mxu0 0.0
    %8202 = vmatprep.subr.mxu0 0.0
    %8203 = vmatpush1.msra.mxu0 0.0
    %8204 = vmatprep.subr.mxu0 0.0
    %8205 = vmatpush1.msra.mxu0 0.0
    %8206 = vmatprep.subr.mxu0 0.0
    %8207 = vmatpush1.msra.mxu0 0.0
    %8208 = vmatprep.subr.mxu0 0.0
    %8209 = vmatpush1.msra.mxu0 0.0
    %8210 = vmatprep.subr.mxu0 0.0
    %8211 = vmatpush1.msra.mxu0 0.0
    %8212 = vmatprep.subr.mxu0 0.0
    %8213 = vmatpush1.msra.mxu0 0.0
    %8214 = vmatprep.subr.mxu0 0.0
    %8215 = vmatpush1.msra.mxu0 0.0
    %8216 = vmatprep.mubr.f32.mxu0 %v8141
    %8217 = vmatmul.mubr.f32.gmra.mrb[0].mxu0 %v8136
    %v8218 = vpop.f32.mrb[0].mxu0
    %v8219 = vadd.f32 0.0, %v8218
    %v8220 = vpop.f32.mrb[0].mxu0
    %v8221 = vadd.f32 0.0, %v8220
    %8222 = vdwg.mxu0
    %8223 = vmatprep.subr.mxu0 0.0
    %8224 = vmatpush1.msra.mxu0 %v7341
    %8225 = vmatprep.subr.mxu0 0.0
    %8226 = vmatpush1.msra.mxu0 %v7342
    %8227 = vmatprep.subr.mxu0 0.0
    %8228 = vmatpush1.msra.mxu0 %v7343
    %8229 = vmatprep.subr.mxu0 0.0
    %8230 = vmatpush1.msra.mxu0 %v7344
    %8231 = vmatprep.subr.mxu0 0.0
    %8232 = vmatpush1.msra.mxu0 %v7345
    %8233 = vmatprep.subr.mxu0 0.0
    %8234 = vmatpush1.msra.mxu0 %v7346
    %8235 = vmatprep.subr.mxu0 0.0
    %8236 = vmatpush1.msra.mxu0 %v7347
    %8237 = vmatprep.subr.mxu0 0.0
    %8238 = vmatpush1.msra.mxu0 %v7348
    %8239 = vmatprep.subr.mxu0 0.0
    %8240 = vmatpush1.msra.mxu0 %v7349
    %8241 = vmatprep.subr.mxu0 0.0
    %8242 = vmatpush1.msra.mxu0 %v7352
    %8243 = vmatprep.subr.mxu0 0.0
    %8244 = vmatpush1.msra.mxu0 %v7355
    %8245 = vmatprep.subr.mxu0 0.0
    %8246 = vmatpush1.msra.mxu0 %v7358
    %8247 = vmatprep.subr.mxu0 0.0
    %8248 = vmatpush1.msra.mxu0 %v7361
    %8249 = vmatprep.subr.mxu0 0.0
    %8250 = vmatpush1.msra.mxu0 %v7364
    %8251 = vmatprep.subr.mxu0 0.0
    %8252 = vmatpush1.msra.mxu0 %v7367
    %8253 = vmatprep.subr.mxu0 0.0
    %8254 = vmatpush1.msra.mxu0 %v7370
    %8255 = vmatprep.subr.mxu0 0.0
    %8256 = vmatpush1.msra.mxu0 %v8150
    %8257 = vmatprep.subr.mxu0 0.0
    %8258 = vmatpush1.msra.mxu0 0.0
    %8259 = vmatprep.subr.mxu0 0.0
    %8260 = vmatpush1.msra.mxu0 0.0
    %8261 = vmatprep.subr.mxu0 0.0
    %8262 = vmatpush1.msra.mxu0 0.0
    %8263 = vmatprep.subr.mxu0 0.0
    %8264 = vmatpush1.msra.mxu0 0.0
    %8265 = vmatprep.subr.mxu0 0.0
    %8266 = vmatpush1.msra.mxu0 0.0
    %8267 = vmatprep.subr.mxu0 0.0
    %8268 = vmatpush1.msra.mxu0 0.0
    %8269 = vmatprep.subr.mxu0 0.0
    %8270 = vmatpush1.msra.mxu0 0.0
    %8271 = vmatprep.subr.mxu0 0.0
    %8272 = vmatpush1.msra.mxu0 0.0
    %8273 = vmatprep.subr.mxu0 0.0
    %8274 = vmatpush1.msra.mxu0 0.0
    %8275 = vmatprep.subr.mxu0 0.0
    %8276 = vmatpush1.msra.mxu0 0.0
    %8277 = vmatprep.subr.mxu0 0.0
    %8278 = vmatpush1.msra.mxu0 0.0
    %8279 = vmatprep.subr.mxu0 0.0
    %8280 = vmatpush1.msra.mxu0 0.0
    %8281 = vmatprep.subr.mxu0 0.0
    %8282 = vmatpush1.msra.mxu0 0.0
    %8283 = vmatprep.subr.mxu0 0.0
    %8284 = vmatpush1.msra.mxu0 0.0
    %8285 = vmatprep.subr.mxu0 0.0
    %8286 = vmatpush1.msra.mxu0 0.0
    %8287 = vmatprep.mubr.f32.mxu0 %v8141
    %8288 = vmatmul.mubr.f32.gmra.mrb[0].mxu0 %v8136
    %v8289 = vpop.f32.mrb[0].mxu0
    %v8290 = vadd.f32 0.0, %v8289
    %v8291 = vpop.f32.mrb[0].mxu0
    %8292 = vdwg.mxu0
    %v8293 = vadd.f32 %v8061, %v8219
    %v8294 = vadd.f32 %v8062, %v8221
    %v8295 = vadd.f32 %v8063, %v8290
    %8296 = vmatprep.subr.mxu0 %v7068
    %8297 = vmatpush1.msra.mxu0 %v7067
    %8298 = vmatprep.subr.mxu0 0.0
    %8299 = vmatpush1.msra.mxu0 0.0
    %8300 = vmatprep.subr.mxu0 0.0
    %8301 = vmatpush1.msra.mxu0 0.0
    %8302 = vmatprep.subr.mxu0 0.0
    %8303 = vmatpush1.msra.mxu0 0.0
    %8304 = vmatprep.subr.mxu0 0.0
    %8305 = vmatpush1.msra.mxu0 0.0
    %8306 = vmatprep.subr.mxu0 0.0
    %8307 = vmatpush1.msra.mxu0 0.0
    %8308 = vmatprep.subr.mxu0 0.0
    %8309 = vmatpush1.msra.mxu0 0.0
    %8310 = vmatprep.subr.mxu0 0.0
    %8311 = vmatpush1.msra.mxu0 0.0
    %8312 = vmatprep.subr.mxu0 0.0
    %8313 = vmatpush1.msra.mxu0 0.0
    %8314 = vmatprep.subr.mxu0 0.0
    %8315 = vmatpush1.msra.mxu0 0.0
    %8316 = vmatprep.subr.mxu0 0.0
    %8317 = vmatpush1.msra.mxu0 0.0
    %8318 = vmatprep.subr.mxu0 0.0
    %8319 = vmatpush1.msra.mxu0 0.0
    %8320 = vmatprep.subr.mxu0 0.0
    %8321 = vmatpush1.msra.mxu0 0.0
    %8322 = vmatprep.subr.mxu0 0.0
    %8323 = vmatpush1.msra.mxu0 0.0
    %8324 = vmatprep.subr.mxu0 0.0
    %8325 = vmatpush1.msra.mxu0 0.0
    %8326 = vmatprep.subr.mxu0 0.0
    %8327 = vmatpush1.msra.mxu0 0.0
    %8328 = vmatprep.subr.mxu0 0.0
    %8329 = vmatpush1.msra.mxu0 0.0
    %8330 = vmatprep.subr.mxu0 0.0
    %8331 = vmatpush1.msra.mxu0 0.0
    %8332 = vmatprep.subr.mxu0 0.0
    %8333 = vmatpush1.msra.mxu0 0.0
    %8334 = vmatprep.subr.mxu0 0.0
    %8335 = vmatpush1.msra.mxu0 0.0
    %8336 = vmatprep.subr.mxu0 0.0
    %8337 = vmatpush1.msra.mxu0 0.0
    %8338 = vmatprep.subr.mxu0 0.0
    %8339 = vmatpush1.msra.mxu0 0.0
    %8340 = vmatprep.subr.mxu0 0.0
    %8341 = vmatpush1.msra.mxu0 0.0
    %8342 = vmatprep.subr.mxu0 0.0
    %8343 = vmatpush1.msra.mxu0 0.0
    %8344 = vmatprep.subr.mxu0 0.0
    %8345 = vmatpush1.msra.mxu0 0.0
    %8346 = vmatprep.subr.mxu0 0.0
    %8347 = vmatpush1.msra.mxu0 0.0
    %8348 = vmatprep.subr.mxu0 0.0
    %8349 = vmatpush1.msra.mxu0 0.0
    %8350 = vmatprep.subr.mxu0 0.0
    %8351 = vmatpush1.msra.mxu0 0.0
    %8352 = vmatprep.subr.mxu0 0.0
    %8353 = vmatpush1.msra.mxu0 0.0
    %8354 = vmatprep.subr.mxu0 0.0
    %8355 = vmatpush1.msra.mxu0 0.0
    %8356 = vmatprep.subr.mxu0 0.0
    %8357 = vmatpush1.msra.mxu0 0.0
    %8358 = vmatprep.subr.mxu0 0.0
    %8359 = vmatpush1.msra.mxu0 0.0
    %8360 = vmatprep.mubr.f32.mxu0 0.0
    %8361 = vmatmul.mubr.f32.gmra.mrb[0].mxu0 %v7376
    %v8362 = vpop.f32.mrb[0].mxu0
    %v8363 = vadd.f32 0.0, %v8362
    %v8364 = vpop.f32.mrb[0].mxu0
    %v8365 = vadd.f32 0.0, %v8364
    %8366 = vdwg.mxu0
    %8367 = vmatprep.subr.mxu0 %v7068
    %8368 = vmatpush1.msra.mxu0 %v7067
    %8369 = vmatprep.subr.mxu0 0.0
    %8370 = vmatpush1.msra.mxu0 0.0
    %8371 = vmatprep.subr.mxu0 0.0
    %8372 = vmatpush1.msra.mxu0 0.0
    %8373 = vmatprep.subr.mxu0 0.0
    %8374 = vmatpush1.msra.mxu0 0.0
    %8375 = vmatprep.subr.mxu0 0.0
    %8376 = vmatpush1.msra.mxu0 0.0
    %8377 = vmatprep.subr.mxu0 0.0
    %8378 = vmatpush1.msra.mxu0 0.0
    %8379 = vmatprep.subr.mxu0 0.0
    %8380 = vmatpush1.msra.mxu0 0.0
    %8381 = vmatprep.subr.mxu0 0.0
    %8382 = vmatpush1.msra.mxu0 0.0
    %8383 = vmatprep.subr.mxu0 0.0
    %8384 = vmatpush1.msra.mxu0 0.0
    %8385 = vmatprep.subr.mxu0 0.0
    %8386 = vmatpush1.msra.mxu0 0.0
    %8387 = vmatprep.subr.mxu0 0.0
    %8388 = vmatpush1.msra.mxu0 0.0
    %8389 = vmatprep.subr.mxu0 0.0
    %8390 = vmatpush1.msra.mxu0 0.0
    %8391 = vmatprep.subr.mxu0 0.0
    %8392 = vmatpush1.msra.mxu0 0.0
    %8393 = vmatprep.subr.mxu0 0.0
    %8394 = vmatpush1.msra.mxu0 0.0
    %8395 = vmatprep.subr.mxu0 0.0
    %8396 = vmatpush1.msra.mxu0 0.0
    %8397 = vmatprep.subr.mxu0 0.0
    %8398 = vmatpush1.msra.mxu0 0.0
    %8399 = vmatprep.subr.mxu0 0.0
    %8400 = vmatpush1.msra.mxu0 0.0
    %8401 = vmatprep.subr.mxu0 0.0
    %8402 = vmatpush1.msra.mxu0 0.0
    %8403 = vmatprep.subr.mxu0 0.0
    %8404 = vmatpush1.msra.mxu0 0.0
    %8405 = vmatprep.subr.mxu0 0.0
    %8406 = vmatpush1.msra.mxu0 0.0
    %8407 = vmatprep.subr.mxu0 0.0
    %8408 = vmatpush1.msra.mxu0 0.0
    %8409 = vmatprep.subr.mxu0 0.0
    %8410 = vmatpush1.msra.mxu0 0.0
    %8411 = vmatprep.subr.mxu0 0.0
    %8412 = vmatpush1.msra.mxu0 0.0
    %8413 = vmatprep.subr.mxu0 0.0
    %8414 = vmatpush1.msra.mxu0 0.0
    %8415 = vmatprep.subr.mxu0 0.0
    %8416 = vmatpush1.msra.mxu0 0.0
    %8417 = vmatprep.subr.mxu0 0.0
    %8418 = vmatpush1.msra.mxu0 0.0
    %8419 = vmatprep.subr.mxu0 0.0
    %8420 = vmatpush1.msra.mxu0 0.0
    %8421 = vmatprep.subr.mxu0 0.0
    %8422 = vmatpush1.msra.mxu0 0.0
    %8423 = vmatprep.subr.mxu0 0.0
    %8424 = vmatpush1.msra.mxu0 0.0
    %8425 = vmatprep.subr.mxu0 0.0
    %8426 = vmatpush1.msra.mxu0 0.0
    %8427 = vmatprep.subr.mxu0 0.0
    %8428 = vmatpush1.msra.mxu0 0.0
    %8429 = vmatprep.subr.mxu0 0.0
    %8430 = vmatpush1.msra.mxu0 0.0
    %8431 = vmatprep.mubr.f32.mxu0 0.0
    %8432 = vmatmul.mubr.f32.gmra.mrb[0].mxu0 %v7452
    %v8433 = vpop.f32.mrb[0].mxu0
    %v8434 = vadd.f32 0.0, %v8433
    %v8435 = vpop.f32.mrb[0].mxu0
    %v8436 = vadd.f32 0.0, %v8435
    %8437 = vdwg.mxu0
    %v8439 = vsel %vm7004, %v8436, 0
    %8441 = vmatprep.subr.mxu0 %v5727
    %8442 = vmatpush1.msra.mxu0 %v60
    %8443 = vmatprep.subr.mxu0 %v5728
    %8444 = vmatpush1.msra.mxu0 %v2494
    %8445 = vmatprep.subr.mxu0 %v5729
    %8446 = vmatpush1.msra.mxu0 %v4252
    %8447 = vmatprep.subr.mxu0 %v5730
    %8448 = vmatpush1.msra.mxu0 %v4253
    %8449 = vmatprep.subr.mxu0 %v5731
    %8450 = vmatpush1.msra.mxu0 %v4254
    %8451 = vmatprep.subr.mxu0 %v5733
    %8452 = vmatpush1.msra.mxu0 %v5732
    %8453 = vmatprep.subr.mxu0 %v5735
    %8454 = vmatpush1.msra.mxu0 %v5734
    %8455 = vmatprep.subr.mxu0 %v5737
    %8456 = vmatpush1.msra.mxu0 %v5736
    %8457 = vmatprep.subr.mxu0 %v5739
    %8458 = vmatpush1.msra.mxu0 %v5738
    %8459 = vmatprep.subr.mxu0 %v7203
    %8460 = vmatpush1.msra.mxu0 %v7202
    %8461 = vmatprep.subr.mxu0 %v7206
    %8462 = vmatpush1.msra.mxu0 %v7205
    %8463 = vmatprep.subr.mxu0 %v7209
    %8464 = vmatpush1.msra.mxu0 %v7208
    %8465 = vmatprep.subr.mxu0 %v7212
    %8466 = vmatpush1.msra.mxu0 %v7211
    %8467 = vmatprep.subr.mxu0 %v7215
    %8468 = vmatpush1.msra.mxu0 %v7214
    %8469 = vmatprep.subr.mxu0 %v7218
    %8470 = vmatpush1.msra.mxu0 %v7217
    %8471 = vmatprep.subr.mxu0 %v7221
    %8472 = vmatpush1.msra.mxu0 %v7220
    %8473 = vmatprep.subr.mxu0 %v7533
    %8474 = vmatpush1.msra.mxu0 %v7530
    %8475 = vmatprep.subr.mxu0 0.0
    %8476 = vmatpush1.msra.mxu0 0.0
    %8477 = vmatprep.subr.mxu0 0.0
    %8478 = vmatpush1.msra.mxu0 0.0
    %8479 = vmatprep.subr.mxu0 0.0
    %8480 = vmatpush1.msra.mxu0 0.0
    %8481 = vmatprep.subr.mxu0 0.0
    %8482 = vmatpush1.msra.mxu0 0.0
    %8483 = vmatprep.subr.mxu0 0.0
    %8484 = vmatpush1.msra.mxu0 0.0
    %8485 = vmatprep.subr.mxu0 0.0
    %8486 = vmatpush1.msra.mxu0 0.0
    %8487 = vmatprep.subr.mxu0 0.0
    %8488 = vmatpush1.msra.mxu0 0.0
    %8489 = vmatprep.subr.mxu0 0.0
    %8490 = vmatpush1.msra.mxu0 0.0
    %8491 = vmatprep.subr.mxu0 0.0
    %8492 = vmatpush1.msra.mxu0 0.0
    %8493 = vmatprep.subr.mxu0 0.0
    %8494 = vmatpush1.msra.mxu0 0.0
    %8495 = vmatprep.subr.mxu0 0.0
    %8496 = vmatpush1.msra.mxu0 0.0
    %8497 = vmatprep.subr.mxu0 0.0
    %8498 = vmatpush1.msra.mxu0 0.0
    %8499 = vmatprep.subr.mxu0 0.0
    %8500 = vmatpush1.msra.mxu0 0.0
    %8501 = vmatprep.subr.mxu0 0.0
    %8502 = vmatpush1.msra.mxu0 0.0
    %8503 = vmatprep.subr.mxu0 0.0
    %8504 = vmatpush1.msra.mxu0 0.0
    %8505 = vmatprep.mubr.f32.mxu0 %v8439
    %8506 = vmatmul.mubr.f32.gmra.mrb[0].mxu0 %v8434
    %v8507 = vpop.f32.mrb[0].mxu0
    %v8508 = vadd.f32 0.0, %v8507
    %v8509 = vpop.f32.mrb[0].mxu0
    %v8510 = vadd.f32 0.0, %v8509
    %8511 = vdwg.mxu0
    %8512 = vmatprep.subr.mxu0 0.0
    %8513 = vmatpush1.msra.mxu0 %v7193
    %8514 = vmatprep.subr.mxu0 0.0
    %8515 = vmatpush1.msra.mxu0 %v7194
    %8516 = vmatprep.subr.mxu0 0.0
    %8517 = vmatpush1.msra.mxu0 %v7195
    %8518 = vmatprep.subr.mxu0 0.0
    %8519 = vmatpush1.msra.mxu0 %v7196
    %8520 = vmatprep.subr.mxu0 0.0
    %8521 = vmatpush1.msra.mxu0 %v7197
    %8522 = vmatprep.subr.mxu0 0.0
    %8523 = vmatpush1.msra.mxu0 %v7198
    %8524 = vmatprep.subr.mxu0 0.0
    %8525 = vmatpush1.msra.mxu0 %v7199
    %8526 = vmatprep.subr.mxu0 0.0
    %8527 = vmatpush1.msra.mxu0 %v7200
    %8528 = vmatprep.subr.mxu0 0.0
    %8529 = vmatpush1.msra.mxu0 %v7201
    %8530 = vmatprep.subr.mxu0 0.0
    %8531 = vmatpush1.msra.mxu0 %v7204
    %8532 = vmatprep.subr.mxu0 0.0
    %8533 = vmatpush1.msra.mxu0 %v7207
    %8534 = vmatprep.subr.mxu0 0.0
    %8535 = vmatpush1.msra.mxu0 %v7210
    %8536 = vmatprep.subr.mxu0 0.0
    %8537 = vmatpush1.msra.mxu0 %v7213
    %8538 = vmatprep.subr.mxu0 0.0
    %8539 = vmatpush1.msra.mxu0 %v7216
    %8540 = vmatprep.subr.mxu0 0.0
    %8541 = vmatpush1.msra.mxu0 %v7219
    %8542 = vmatprep.subr.mxu0 0.0
    %8543 = vmatpush1.msra.mxu0 %v7222
    %8544 = vmatprep.subr.mxu0 0.0
    %8545 = vmatpush1.msra.mxu0 %v7536
    %8546 = vmatprep.subr.mxu0 0.0
    %8547 = vmatpush1.msra.mxu0 0.0
    %8548 = vmatprep.subr.mxu0 0.0
    %8549 = vmatpush1.msra.mxu0 0.0
    %8550 = vmatprep.subr.mxu0 0.0
    %8551 = vmatpush1.msra.mxu0 0.0
    %8552 = vmatprep.subr.mxu0 0.0
    %8553 = vmatpush1.msra.mxu0 0.0
    %8554 = vmatprep.subr.mxu0 0.0
    %8555 = vmatpush1.msra.mxu0 0.0
    %8556 = vmatprep.subr.mxu0 0.0
    %8557 = vmatpush1.msra.mxu0 0.0
    %8558 = vmatprep.subr.mxu0 0.0
    %8559 = vmatpush1.msra.mxu0 0.0
    %8560 = vmatprep.subr.mxu0 0.0
    %8561 = vmatpush1.msra.mxu0 0.0
    %8562 = vmatprep.subr.mxu0 0.0
    %8563 = vmatpush1.msra.mxu0 0.0
    %8564 = vmatprep.subr.mxu0 0.0
    %8565 = vmatpush1.msra.mxu0 0.0
    %8566 = vmatprep.subr.mxu0 0.0
    %8567 = vmatpush1.msra.mxu0 0.0
    %8568 = vmatprep.subr.mxu0 0.0
    %8569 = vmatpush1.msra.mxu0 0.0
    %8570 = vmatprep.subr.mxu0 0.0
    %8571 = vmatpush1.msra.mxu0 0.0
    %8572 = vmatprep.subr.mxu0 0.0
    %8573 = vmatpush1.msra.mxu0 0.0
    %8574 = vmatprep.subr.mxu0 0.0
    %8575 = vmatpush1.msra.mxu0 0.0
    %8576 = vmatprep.mubr.f32.mxu0 %v8439
    %8577 = vmatmul.mubr.f32.gmra.mrb[0].mxu0 %v8434
    %v8578 = vpop.f32.mrb[0].mxu0
    %v8579 = vadd.f32 0.0, %v8578
    %v8580 = vpop.f32.mrb[0].mxu0
    %8581 = vdwg.mxu0
    %v8583 = vsel %vm7004, %v8365, 0
    %8585 = vmatprep.subr.mxu0 %v5701
    %8586 = vmatpush1.msra.mxu0 %v58
    %8587 = vmatprep.subr.mxu0 %v5702
    %8588 = vmatpush1.msra.mxu0 %v2492
    %8589 = vmatprep.subr.mxu0 %v5703
    %8590 = vmatpush1.msra.mxu0 %v4246
    %8591 = vmatprep.subr.mxu0 %v5704
    %8592 = vmatpush1.msra.mxu0 %v4247
    %8593 = vmatprep.subr.mxu0 %v5705
    %8594 = vmatpush1.msra.mxu0 %v4248
    %8595 = vmatprep.subr.mxu0 %v5707
    %8596 = vmatpush1.msra.mxu0 %v5706
    %8597 = vmatprep.subr.mxu0 %v5709
    %8598 = vmatpush1.msra.mxu0 %v5708
    %8599 = vmatprep.subr.mxu0 %v5711
    %8600 = vmatpush1.msra.mxu0 %v5710
    %8601 = vmatprep.subr.mxu0 %v5713
    %8602 = vmatpush1.msra.mxu0 %v5712
    %8603 = vmatprep.subr.mxu0 %v7137
    %8604 = vmatpush1.msra.mxu0 %v7136
    %8605 = vmatprep.subr.mxu0 %v7140
    %8606 = vmatpush1.msra.mxu0 %v7139
    %8607 = vmatprep.subr.mxu0 %v7143
    %8608 = vmatpush1.msra.mxu0 %v7142
    %8609 = vmatprep.subr.mxu0 %v7146
    %8610 = vmatpush1.msra.mxu0 %v7145
    %8611 = vmatprep.subr.mxu0 %v7149
    %8612 = vmatpush1.msra.mxu0 %v7148
    %8613 = vmatprep.subr.mxu0 %v7152
    %8614 = vmatpush1.msra.mxu0 %v7151
    %8615 = vmatprep.subr.mxu0 %v7155
    %8616 = vmatpush1.msra.mxu0 %v7154
    %8617 = vmatprep.subr.mxu0 %v7686
    %8618 = vmatpush1.msra.mxu0 %v7683
    %8619 = vmatprep.subr.mxu0 0.0
    %8620 = vmatpush1.msra.mxu0 0.0
    %8621 = vmatprep.subr.mxu0 0.0
    %8622 = vmatpush1.msra.mxu0 0.0
    %8623 = vmatprep.subr.mxu0 0.0
    %8624 = vmatpush1.msra.mxu0 0.0
    %8625 = vmatprep.subr.mxu0 0.0
    %8626 = vmatpush1.msra.mxu0 0.0
    %8627 = vmatprep.subr.mxu0 0.0
    %8628 = vmatpush1.msra.mxu0 0.0
    %8629 = vmatprep.subr.mxu0 0.0
    %8630 = vmatpush1.msra.mxu0 0.0
    %8631 = vmatprep.subr.mxu0 0.0
    %8632 = vmatpush1.msra.mxu0 0.0
    %8633 = vmatprep.subr.mxu0 0.0
    %8634 = vmatpush1.msra.mxu0 0.0
    %8635 = vmatprep.subr.mxu0 0.0
    %8636 = vmatpush1.msra.mxu0 0.0
    %8637 = vmatprep.subr.mxu0 0.0
    %8638 = vmatpush1.msra.mxu0 0.0
    %8639 = vmatprep.subr.mxu0 0.0
    %8640 = vmatpush1.msra.mxu0 0.0
    %8641 = vmatprep.subr.mxu0 0.0
    %8642 = vmatpush1.msra.mxu0 0.0
    %8643 = vmatprep.subr.mxu0 0.0
    %8644 = vmatpush1.msra.mxu0 0.0
    %8645 = vmatprep.subr.mxu0 0.0
    %8646 = vmatpush1.msra.mxu0 0.0
    %8647 = vmatprep.subr.mxu0 0.0
    %8648 = vmatpush1.msra.mxu0 0.0
    %8649 = vmatprep.mubr.f32.mxu0 %v8583
    %8650 = vmatmul.mubr.f32.gmra.mrb[0].mxu0 %v8363
    %v8651 = vpop.f32.mrb[0].mxu0
    %v8652 = vadd.f32 %v8508, %v8651
    %v8653 = vpop.f32.mrb[0].mxu0
    %v8654 = vadd.f32 %v8510, %v8653
    %8655 = vdwg.mxu0
    %8656 = vmatprep.subr.mxu0 0.0
    %8657 = vmatpush1.msra.mxu0 %v7127
    %8658 = vmatprep.subr.mxu0 0.0
    %8659 = vmatpush1.msra.mxu0 %v7128
    %8660 = vmatprep.subr.mxu0 0.0
    %8661 = vmatpush1.msra.mxu0 %v7129
    %8662 = vmatprep.subr.mxu0 0.0
    %8663 = vmatpush1.msra.mxu0 %v7130
    %8664 = vmatprep.subr.mxu0 0.0
    %8665 = vmatpush1.msra.mxu0 %v7131
    %8666 = vmatprep.subr.mxu0 0.0
    %8667 = vmatpush1.msra.mxu0 %v7132
    %8668 = vmatprep.subr.mxu0 0.0
    %8669 = vmatpush1.msra.mxu0 %v7133
    %8670 = vmatprep.subr.mxu0 0.0
    %8671 = vmatpush1.msra.mxu0 %v7134
    %8672 = vmatprep.subr.mxu0 0.0
    %8673 = vmatpush1.msra.mxu0 %v7135
    %8674 = vmatprep.subr.mxu0 0.0
    %8675 = vmatpush1.msra.mxu0 %v7138
    %8676 = vmatprep.subr.mxu0 0.0
    %8677 = vmatpush1.msra.mxu0 %v7141
    %8678 = vmatprep.subr.mxu0 0.0
    %8679 = vmatpush1.msra.mxu0 %v7144
    %8680 = vmatprep.subr.mxu0 0.0
    %8681 = vmatpush1.msra.mxu0 %v7147
    %8682 = vmatprep.subr.mxu0 0.0
    %8683 = vmatpush1.msra.mxu0 %v7150
    %8684 = vmatprep.subr.mxu0 0.0
    %8685 = vmatpush1.msra.mxu0 %v7153
    %8686 = vmatprep.subr.mxu0 0.0
    %8687 = vmatpush1.msra.mxu0 %v7156
    %8688 = vmatprep.subr.mxu0 0.0
    %8689 = vmatpush1.msra.mxu0 %v7689
    %8690 = vmatprep.subr.mxu0 0.0
    %8691 = vmatpush1.msra.mxu0 0.0
    %8692 = vmatprep.subr.mxu0 0.0
    %8693 = vmatpush1.msra.mxu0 0.0
    %8694 = vmatprep.subr.mxu0 0.0
    %8695 = vmatpush1.msra.mxu0 0.0
    %8696 = vmatprep.subr.mxu0 0.0
    %8697 = vmatpush1.msra.mxu0 0.0
    %8698 = vmatprep.subr.mxu0 0.0
    %8699 = vmatpush1.msra.mxu0 0.0
    %8700 = vmatprep.subr.mxu0 0.0
    %8701 = vmatpush1.msra.mxu0 0.0
    %8702 = vmatprep.subr.mxu0 0.0
    %8703 = vmatpush1.msra.mxu0 0.0
    %8704 = vmatprep.subr.mxu0 0.0
    %8705 = vmatpush1.msra.mxu0 0.0
    %8706 = vmatprep.subr.mxu0 0.0
    %8707 = vmatpush1.msra.mxu0 0.0
    %8708 = vmatprep.subr.mxu0 0.0
    %8709 = vmatpush1.msra.mxu0 0.0
    %8710 = vmatprep.subr.mxu0 0.0
    %8711 = vmatpush1.msra.mxu0 0.0
    %8712 = vmatprep.subr.mxu0 0.0
    %8713 = vmatpush1.msra.mxu0 0.0
    %8714 = vmatprep.subr.mxu0 0.0
    %8715 = vmatpush1.msra.mxu0 0.0
    %8716 = vmatprep.subr.mxu0 0.0
    %8717 = vmatpush1.msra.mxu0 0.0
    %8718 = vmatprep.subr.mxu0 0.0
    %8719 = vmatpush1.msra.mxu0 0.0
    %8720 = vmatprep.mubr.f32.mxu0 %v8583
    %8721 = vmatmul.mubr.f32.gmra.mrb[0].mxu0 %v8363
    %v8722 = vpop.f32.mrb[0].mxu0
    %v8723 = vadd.f32 %v8579, %v8722
    %v8724 = vpop.f32.mrb[0].mxu0
    %8725 = vdwg.mxu0
    %8726 = vmatprep.subr.mxu0 %v7068
    %8727 = vmatpush1.msra.mxu0 %v7067
    %8728 = vmatprep.subr.mxu0 0.0
    %8729 = vmatpush1.msra.mxu0 0.0
    %8730 = vmatprep.subr.mxu0 0.0
    %8731 = vmatpush1.msra.mxu0 0.0
    %8732 = vmatprep.subr.mxu0 0.0
    %8733 = vmatpush1.msra.mxu0 0.0
    %8734 = vmatprep.subr.mxu0 0.0
    %8735 = vmatpush1.msra.mxu0 0.0
    %8736 = vmatprep.subr.mxu0 0.0
    %8737 = vmatpush1.msra.mxu0 0.0
    %8738 = vmatprep.subr.mxu0 0.0
    %8739 = vmatpush1.msra.mxu0 0.0
    %8740 = vmatprep.subr.mxu0 0.0
    %8741 = vmatpush1.msra.mxu0 0.0
    %8742 = vmatprep.subr.mxu0 0.0
    %8743 = vmatpush1.msra.mxu0 0.0
    %8744 = vmatprep.subr.mxu0 0.0
    %8745 = vmatpush1.msra.mxu0 0.0
    %8746 = vmatprep.subr.mxu0 0.0
    %8747 = vmatpush1.msra.mxu0 0.0
    %8748 = vmatprep.subr.mxu0 0.0
    %8749 = vmatpush1.msra.mxu0 0.0
    %8750 = vmatprep.subr.mxu0 0.0
    %8751 = vmatpush1.msra.mxu0 0.0
    %8752 = vmatprep.subr.mxu0 0.0
    %8753 = vmatpush1.msra.mxu0 0.0
    %8754 = vmatprep.subr.mxu0 0.0
    %8755 = vmatpush1.msra.mxu0 0.0
    %8756 = vmatprep.subr.mxu0 0.0
    %8757 = vmatpush1.msra.mxu0 0.0
    %8758 = vmatprep.subr.mxu0 0.0
    %8759 = vmatpush1.msra.mxu0 0.0
    %8760 = vmatprep.subr.mxu0 0.0
    %8761 = vmatpush1.msra.mxu0 0.0
    %8762 = vmatprep.subr.mxu0 0.0
    %8763 = vmatpush1.msra.mxu0 0.0
    %8764 = vmatprep.subr.mxu0 0.0
    %8765 = vmatpush1.msra.mxu0 0.0
    %8766 = vmatprep.subr.mxu0 0.0
    %8767 = vmatpush1.msra.mxu0 0.0
    %8768 = vmatprep.subr.mxu0 0.0
    %8769 = vmatpush1.msra.mxu0 0.0
    %8770 = vmatprep.subr.mxu0 0.0
    %8771 = vmatpush1.msra.mxu0 0.0
    %8772 = vmatprep.subr.mxu0 0.0
    %8773 = vmatpush1.msra.mxu0 0.0
    %8774 = vmatprep.subr.mxu0 0.0
    %8775 = vmatpush1.msra.mxu0 0.0
    %8776 = vmatprep.subr.mxu0 0.0
    %8777 = vmatpush1.msra.mxu0 0.0
    %8778 = vmatprep.subr.mxu0 0.0
    %8779 = vmatpush1.msra.mxu0 0.0
    %8780 = vmatprep.subr.mxu0 0.0
    %8781 = vmatpush1.msra.mxu0 0.0
    %8782 = vmatprep.subr.mxu0 0.0
    %8783 = vmatpush1.msra.mxu0 0.0
    %8784 = vmatprep.subr.mxu0 0.0
    %8785 = vmatpush1.msra.mxu0 0.0
    %8786 = vmatprep.subr.mxu0 0.0
    %8787 = vmatpush1.msra.mxu0 0.0
    %8788 = vmatprep.subr.mxu0 0.0
    %8789 = vmatpush1.msra.mxu0 0.0
    %8790 = vmatprep.mubr.f32.mxu0 0.0
    %8791 = vmatmul.mubr.f32.gmra.mrb[0].mxu0 %v7835
    %v8792 = vpop.f32.mrb[0].mxu0
    %v8793 = vadd.f32 0.0, %v8792
    %v8794 = vpop.f32.mrb[0].mxu0
    %v8795 = vadd.f32 0.0, %v8794
    %8796 = vdwg.mxu0
    %v8798 = vsel %vm7004, %v8795, 0
    %8800 = vmatprep.subr.mxu0 %v5757
    %8801 = vmatpush1.msra.mxu0 %v63
    %8802 = vmatprep.subr.mxu0 %v5758
    %8803 = vmatpush1.msra.mxu0 %v2497
    %8804 = vmatprep.subr.mxu0 %v5759
    %8805 = vmatpush1.msra.mxu0 %v4261
    %8806 = vmatprep.subr.mxu0 %v5760
    %8807 = vmatpush1.msra.mxu0 %v4262
    %8808 = vmatprep.subr.mxu0 %v5761
    %8809 = vmatpush1.msra.mxu0 %v4263
    %8810 = vmatprep.subr.mxu0 %v5763
    %8811 = vmatpush1.msra.mxu0 %v5762
    %8812 = vmatprep.subr.mxu0 %v5765
    %8813 = vmatpush1.msra.mxu0 %v5764
    %8814 = vmatprep.subr.mxu0 %v5767
    %8815 = vmatpush1.msra.mxu0 %v5766
    %8816 = vmatprep.subr.mxu0 %v5769
    %8817 = vmatpush1.msra.mxu0 %v5768
    %8818 = vmatprep.subr.mxu0 %v7277
    %8819 = vmatpush1.msra.mxu0 %v7276
    %8820 = vmatprep.subr.mxu0 %v7280
    %8821 = vmatpush1.msra.mxu0 %v7279
    %8822 = vmatprep.subr.mxu0 %v7283
    %8823 = vmatpush1.msra.mxu0 %v7282
    %8824 = vmatprep.subr.mxu0 %v7286
    %8825 = vmatpush1.msra.mxu0 %v7285
    %8826 = vmatprep.subr.mxu0 %v7289
    %8827 = vmatpush1.msra.mxu0 %v7288
    %8828 = vmatprep.subr.mxu0 %v7292
    %8829 = vmatpush1.msra.mxu0 %v7291
    %8830 = vmatprep.subr.mxu0 %v7295
    %8831 = vmatpush1.msra.mxu0 %v7294
    %8832 = vmatprep.subr.mxu0 %v7915
    %8833 = vmatpush1.msra.mxu0 %v7912
    %8834 = vmatprep.subr.mxu0 0.0
    %8835 = vmatpush1.msra.mxu0 0.0
    %8836 = vmatprep.subr.mxu0 0.0
    %8837 = vmatpush1.msra.mxu0 0.0
    %8838 = vmatprep.subr.mxu0 0.0
    %8839 = vmatpush1.msra.mxu0 0.0
    %8840 = vmatprep.subr.mxu0 0.0
    %8841 = vmatpush1.msra.mxu0 0.0
    %8842 = vmatprep.subr.mxu0 0.0
    %8843 = vmatpush1.msra.mxu0 0.0
    %8844 = vmatprep.subr.mxu0 0.0
    %8845 = vmatpush1.msra.mxu0 0.0
    %8846 = vmatprep.subr.mxu0 0.0
    %8847 = vmatpush1.msra.mxu0 0.0
    %8848 = vmatprep.subr.mxu0 0.0
    %8849 = vmatpush1.msra.mxu0 0.0
    %8850 = vmatprep.subr.mxu0 0.0
    %8851 = vmatpush1.msra.mxu0 0.0
    %8852 = vmatprep.subr.mxu0 0.0
    %8853 = vmatpush1.msra.mxu0 0.0
    %8854 = vmatprep.subr.mxu0 0.0
    %8855 = vmatpush1.msra.mxu0 0.0
    %8856 = vmatprep.subr.mxu0 0.0
    %8857 = vmatpush1.msra.mxu0 0.0
    %8858 = vmatprep.subr.mxu0 0.0
    %8859 = vmatpush1.msra.mxu0 0.0
    %8860 = vmatprep.subr.mxu0 0.0
    %8861 = vmatpush1.msra.mxu0 0.0
    %8862 = vmatprep.subr.mxu0 0.0
    %8863 = vmatpush1.msra.mxu0 0.0
    %8864 = vmatprep.mubr.f32.mxu0 %v8798
    %8865 = vmatmul.mubr.f32.gmra.mrb[0].mxu0 %v8793
    %v8866 = vpop.f32.mrb[0].mxu0
    %v8867 = vadd.f32 0.0, %v8866
    %v8868 = vpop.f32.mrb[0].mxu0
    %v8869 = vadd.f32 0.0, %v8868
    %8870 = vdwg.mxu0
    %8871 = vmatprep.subr.mxu0 0.0
    %8872 = vmatpush1.msra.mxu0 %v7267
    %8873 = vmatprep.subr.mxu0 0.0
    %8874 = vmatpush1.msra.mxu0 %v7268
    %8875 = vmatprep.subr.mxu0 0.0
    %8876 = vmatpush1.msra.mxu0 %v7269
    %8877 = vmatprep.subr.mxu0 0.0
    %8878 = vmatpush1.msra.mxu0 %v7270
    %8879 = vmatprep.subr.mxu0 0.0
    %8880 = vmatpush1.msra.mxu0 %v7271
    %8881 = vmatprep.subr.mxu0 0.0
    %8882 = vmatpush1.msra.mxu0 %v7272
    %8883 = vmatprep.subr.mxu0 0.0
    %8884 = vmatpush1.msra.mxu0 %v7273
    %8885 = vmatprep.subr.mxu0 0.0
    %8886 = vmatpush1.msra.mxu0 %v7274
    %8887 = vmatprep.subr.mxu0 0.0
    %8888 = vmatpush1.msra.mxu0 %v7275
    %8889 = vmatprep.subr.mxu0 0.0
    %8890 = vmatpush1.msra.mxu0 %v7278
    %8891 = vmatprep.subr.mxu0 0.0
    %8892 = vmatpush1.msra.mxu0 %v7281
    %8893 = vmatprep.subr.mxu0 0.0
    %8894 = vmatpush1.msra.mxu0 %v7284
    %8895 = vmatprep.subr.mxu0 0.0
    %8896 = vmatpush1.msra.mxu0 %v7287
    %8897 = vmatprep.subr.mxu0 0.0
    %8898 = vmatpush1.msra.mxu0 %v7290
    %8899 = vmatprep.subr.mxu0 0.0
    %8900 = vmatpush1.msra.mxu0 %v7293
    %8901 = vmatprep.subr.mxu0 0.0
    %8902 = vmatpush1.msra.mxu0 %v7296
    %8903 = vmatprep.subr.mxu0 0.0
    %8904 = vmatpush1.msra.mxu0 %v7918
    %8905 = vmatprep.subr.mxu0 0.0
    %8906 = vmatpush1.msra.mxu0 0.0
    %8907 = vmatprep.subr.mxu0 0.0
    %8908 = vmatpush1.msra.mxu0 0.0
    %8909 = vmatprep.subr.mxu0 0.0
    %8910 = vmatpush1.msra.mxu0 0.0
    %8911 = vmatprep.subr.mxu0 0.0
    %8912 = vmatpush1.msra.mxu0 0.0
    %8913 = vmatprep.subr.mxu0 0.0
    %8914 = vmatpush1.msra.mxu0 0.0
    %8915 = vmatprep.subr.mxu0 0.0
    %8916 = vmatpush1.msra.mxu0 0.0
    %8917 = vmatprep.subr.mxu0 0.0
    %8918 = vmatpush1.msra.mxu0 0.0
    %8919 = vmatprep.subr.mxu0 0.0
    %8920 = vmatpush1.msra.mxu0 0.0
    %8921 = vmatprep.subr.mxu0 0.0
    %8922 = vmatpush1.msra.mxu0 0.0
    %8923 = vmatprep.subr.mxu0 0.0
    %8924 = vmatpush1.msra.mxu0 0.0
    %8925 = vmatprep.subr.mxu0 0.0
    %8926 = vmatpush1.msra.mxu0 0.0
    %8927 = vmatprep.subr.mxu0 0.0
    %8928 = vmatpush1.msra.mxu0 0.0
    %8929 = vmatprep.subr.mxu0 0.0
    %8930 = vmatpush1.msra.mxu0 0.0
    %8931 = vmatprep.subr.mxu0 0.0
    %8932 = vmatpush1.msra.mxu0 0.0
    %8933 = vmatprep.subr.mxu0 0.0
    %8934 = vmatpush1.msra.mxu0 0.0
    %8935 = vmatprep.mubr.f32.mxu0 %v8798
    %8936 = vmatmul.mubr.f32.gmra.mrb[0].mxu0 %v8793
    %v8937 = vpop.f32.mrb[0].mxu0
    %v8938 = vadd.f32 0.0, %v8937
    %v8939 = vpop.f32.mrb[0].mxu0
    %8940 = vdwg.mxu0
    %v8941 = vadd.f32 %v8652, %v8867
    %v8942 = vadd.f32 %v8654, %v8869
    %v8943 = vadd.f32 %v8723, %v8938
    %8944 = vmatprep.subr.mxu0 %v7068
    %8945 = vmatpush1.msra.mxu0 %v7067
    %8946 = vmatprep.subr.mxu0 0.0
    %8947 = vmatpush1.msra.mxu0 0.0
    %8948 = vmatprep.subr.mxu0 0.0
    %8949 = vmatpush1.msra.mxu0 0.0
    %8950 = vmatprep.subr.mxu0 0.0
    %8951 = vmatpush1.msra.mxu0 0.0
    %8952 = vmatprep.subr.mxu0 0.0
    %8953 = vmatpush1.msra.mxu0 0.0
    %8954 = vmatprep.subr.mxu0 0.0
    %8955 = vmatpush1.msra.mxu0 0.0
    %8956 = vmatprep.subr.mxu0 0.0
    %8957 = vmatpush1.msra.mxu0 0.0
    %8958 = vmatprep.subr.mxu0 0.0
    %8959 = vmatpush1.msra.mxu0 0.0
    %8960 = vmatprep.subr.mxu0 0.0
    %8961 = vmatpush1.msra.mxu0 0.0
    %8962 = vmatprep.subr.mxu0 0.0
    %8963 = vmatpush1.msra.mxu0 0.0
    %8964 = vmatprep.subr.mxu0 0.0
    %8965 = vmatpush1.msra.mxu0 0.0
    %8966 = vmatprep.subr.mxu0 0.0
    %8967 = vmatpush1.msra.mxu0 0.0
    %8968 = vmatprep.subr.mxu0 0.0
    %8969 = vmatpush1.msra.mxu0 0.0
    %8970 = vmatprep.subr.mxu0 0.0
    %8971 = vmatpush1.msra.mxu0 0.0
    %8972 = vmatprep.subr.mxu0 0.0
    %8973 = vmatpush1.msra.mxu0 0.0
    %8974 = vmatprep.subr.mxu0 0.0
    %8975 = vmatpush1.msra.mxu0 0.0
    %8976 = vmatprep.subr.mxu0 0.0
    %8977 = vmatpush1.msra.mxu0 0.0
    %8978 = vmatprep.subr.mxu0 0.0
    %8979 = vmatpush1.msra.mxu0 0.0
    %8980 = vmatprep.subr.mxu0 0.0
    %8981 = vmatpush1.msra.mxu0 0.0
    %8982 = vmatprep.subr.mxu0 0.0
    %8983 = vmatpush1.msra.mxu0 0.0
    %8984 = vmatprep.subr.mxu0 0.0
    %8985 = vmatpush1.msra.mxu0 0.0
    %8986 = vmatprep.subr.mxu0 0.0
    %8987 = vmatpush1.msra.mxu0 0.0
    %8988 = vmatprep.subr.mxu0 0.0
    %8989 = vmatpush1.msra.mxu0 0.0
    %8990 = vmatprep.subr.mxu0 0.0
    %8991 = vmatpush1.msra.mxu0 0.0
    %8992 = vmatprep.subr.mxu0 0.0
    %8993 = vmatpush1.msra.mxu0 0.0
    %8994 = vmatprep.subr.mxu0 0.0
    %8995 = vmatpush1.msra.mxu0 0.0
    %8996 = vmatprep.subr.mxu0 0.0
    %8997 = vmatpush1.msra.mxu0 0.0
    %8998 = vmatprep.subr.mxu0 0.0
    %8999 = vmatpush1.msra.mxu0 0.0
    %9000 = vmatprep.subr.mxu0 0.0
    %9001 = vmatpush1.msra.mxu0 0.0
    %9002 = vmatprep.subr.mxu0 0.0
    %9003 = vmatpush1.msra.mxu0 0.0
    %9004 = vmatprep.subr.mxu0 0.0
    %9005 = vmatpush1.msra.mxu0 0.0
    %9006 = vmatprep.subr.mxu0 0.0
    %9007 = vmatpush1.msra.mxu0 0.0
    %9008 = vmatprep.mubr.f32.mxu0 0.0
    %9009 = vmatmul.mubr.f32.gmra.mrb[0].mxu0 %v8067
    %v9010 = vpop.f32.mrb[0].mxu0
    %v9011 = vadd.f32 0.0, %v9010
    %v9012 = vpop.f32.mrb[0].mxu0
    %v9013 = vadd.f32 0.0, %v9012
    %9014 = vdwg.mxu0
    %v9016 = vsel %vm7004, %v9013, 0
    %9018 = vmatprep.subr.mxu0 %v5787
    %9019 = vmatpush1.msra.mxu0 %v66
    %9020 = vmatprep.subr.mxu0 %v5788
    %9021 = vmatpush1.msra.mxu0 %v2500
    %9022 = vmatprep.subr.mxu0 %v5789
    %9023 = vmatpush1.msra.mxu0 %v4270
    %9024 = vmatprep.subr.mxu0 %v5790
    %9025 = vmatpush1.msra.mxu0 %v4271
    %9026 = vmatprep.subr.mxu0 %v5791
    %9027 = vmatpush1.msra.mxu0 %v4272
    %9028 = vmatprep.subr.mxu0 %v5793
    %9029 = vmatpush1.msra.mxu0 %v5792
    %9030 = vmatprep.subr.mxu0 %v5795
    %9031 = vmatpush1.msra.mxu0 %v5794
    %9032 = vmatprep.subr.mxu0 %v5797
    %9033 = vmatpush1.msra.mxu0 %v5796
    %9034 = vmatprep.subr.mxu0 %v5799
    %9035 = vmatpush1.msra.mxu0 %v5798
    %9036 = vmatprep.subr.mxu0 %v7351
    %9037 = vmatpush1.msra.mxu0 %v7350
    %9038 = vmatprep.subr.mxu0 %v7354
    %9039 = vmatpush1.msra.mxu0 %v7353
    %9040 = vmatprep.subr.mxu0 %v7357
    %9041 = vmatpush1.msra.mxu0 %v7356
    %9042 = vmatprep.subr.mxu0 %v7360
    %9043 = vmatpush1.msra.mxu0 %v7359
    %9044 = vmatprep.subr.mxu0 %v7363
    %9045 = vmatpush1.msra.mxu0 %v7362
    %9046 = vmatprep.subr.mxu0 %v7366
    %9047 = vmatpush1.msra.mxu0 %v7365
    %9048 = vmatprep.subr.mxu0 %v7369
    %9049 = vmatpush1.msra.mxu0 %v7368
    %9050 = vmatprep.subr.mxu0 %v8147
    %9051 = vmatpush1.msra.mxu0 %v8144
    %9052 = vmatprep.subr.mxu0 0.0
    %9053 = vmatpush1.msra.mxu0 0.0
    %9054 = vmatprep.subr.mxu0 0.0
    %9055 = vmatpush1.msra.mxu0 0.0
    %9056 = vmatprep.subr.mxu0 0.0
    %9057 = vmatpush1.msra.mxu0 0.0
    %9058 = vmatprep.subr.mxu0 0.0
    %9059 = vmatpush1.msra.mxu0 0.0
    %9060 = vmatprep.subr.mxu0 0.0
    %9061 = vmatpush1.msra.mxu0 0.0
    %9062 = vmatprep.subr.mxu0 0.0
    %9063 = vmatpush1.msra.mxu0 0.0
    %9064 = vmatprep.subr.mxu0 0.0
    %9065 = vmatpush1.msra.mxu0 0.0
    %9066 = vmatprep.subr.mxu0 0.0
    %9067 = vmatpush1.msra.mxu0 0.0
    %9068 = vmatprep.subr.mxu0 0.0
    %9069 = vmatpush1.msra.mxu0 0.0
    %9070 = vmatprep.subr.mxu0 0.0
    %9071 = vmatpush1.msra.mxu0 0.0
    %9072 = vmatprep.subr.mxu0 0.0
    %9073 = vmatpush1.msra.mxu0 0.0
    %9074 = vmatprep.subr.mxu0 0.0
    %9075 = vmatpush1.msra.mxu0 0.0
    %9076 = vmatprep.subr.mxu0 0.0
    %9077 = vmatpush1.msra.mxu0 0.0
    %9078 = vmatprep.subr.mxu0 0.0
    %9079 = vmatpush1.msra.mxu0 0.0
    %9080 = vmatprep.subr.mxu0 0.0
    %9081 = vmatpush1.msra.mxu0 0.0
    %9082 = vmatprep.mubr.f32.mxu0 %v9016
    %9083 = vmatmul.mubr.f32.gmra.mrb[0].mxu0 %v9011
    %v9084 = vpop.f32.mrb[0].mxu0
    %v9085 = vadd.f32 0.0, %v9084
    %v9086 = vpop.f32.mrb[0].mxu0
    %v9087 = vadd.f32 0.0, %v9086
    %9088 = vdwg.mxu0
    %9089 = vmatprep.subr.mxu0 0.0
    %9090 = vmatpush1.msra.mxu0 %v7341
    %9091 = vmatprep.subr.mxu0 0.0
    %9092 = vmatpush1.msra.mxu0 %v7342
    %9093 = vmatprep.subr.mxu0 0.0
    %9094 = vmatpush1.msra.mxu0 %v7343
    %9095 = vmatprep.subr.mxu0 0.0
    %9096 = vmatpush1.msra.mxu0 %v7344
    %9097 = vmatprep.subr.mxu0 0.0
    %9098 = vmatpush1.msra.mxu0 %v7345
    %9099 = vmatprep.subr.mxu0 0.0
    %9100 = vmatpush1.msra.mxu0 %v7346
    %9101 = vmatprep.subr.mxu0 0.0
    %9102 = vmatpush1.msra.mxu0 %v7347
    %9103 = vmatprep.subr.mxu0 0.0
    %9104 = vmatpush1.msra.mxu0 %v7348
    %9105 = vmatprep.subr.mxu0 0.0
    %9106 = vmatpush1.msra.mxu0 %v7349
    %9107 = vmatprep.subr.mxu0 0.0
    %9108 = vmatpush1.msra.mxu0 %v7352
    %9109 = vmatprep.subr.mxu0 0.0
    %9110 = vmatpush1.msra.mxu0 %v7355
    %9111 = vmatprep.subr.mxu0 0.0
    %9112 = vmatpush1.msra.mxu0 %v7358
    %9113 = vmatprep.subr.mxu0 0.0
    %9114 = vmatpush1.msra.mxu0 %v7361
    %9115 = vmatprep.subr.mxu0 0.0
    %9116 = vmatpush1.msra.mxu0 %v7364
    %9117 = vmatprep.subr.mxu0 0.0
    %9118 = vmatpush1.msra.mxu0 %v7367
    %9119 = vmatprep.subr.mxu0 0.0
    %9120 = vmatpush1.msra.mxu0 %v7370
    %9121 = vmatprep.subr.mxu0 0.0
    %9122 = vmatpush1.msra.mxu0 %v8150
    %9123 = vmatprep.subr.mxu0 0.0
    %9124 = vmatpush1.msra.mxu0 0.0
    %9125 = vmatprep.subr.mxu0 0.0
    %9126 = vmatpush1.msra.mxu0 0.0
    %9127 = vmatprep.subr.mxu0 0.0
    %9128 = vmatpush1.msra.mxu0 0.0
    %9129 = vmatprep.subr.mxu0 0.0
    %9130 = vmatpush1.msra.mxu0 0.0
    %9131 = vmatprep.subr.mxu0 0.0
    %9132 = vmatpush1.msra.mxu0 0.0
    %9133 = vmatprep.subr.mxu0 0.0
    %9134 = vmatpush1.msra.mxu0 0.0
    %9135 = vmatprep.subr.mxu0 0.0
    %9136 = vmatpush1.msra.mxu0 0.0
    %9137 = vmatprep.subr.mxu0 0.0
    %9138 = vmatpush1.msra.mxu0 0.0
    %9139 = vmatprep.subr.mxu0 0.0
    %9140 = vmatpush1.msra.mxu0 0.0
    %9141 = vmatprep.subr.mxu0 0.0
    %9142 = vmatpush1.msra.mxu0 0.0
    %9143 = vmatprep.subr.mxu0 0.0
    %9144 = vmatpush1.msra.mxu0 0.0
    %9145 = vmatprep.subr.mxu0 0.0
    %9146 = vmatpush1.msra.mxu0 0.0
    %9147 = vmatprep.subr.mxu0 0.0
    %9148 = vmatpush1.msra.mxu0 0.0
    %9149 = vmatprep.subr.mxu0 0.0
    %9150 = vmatpush1.msra.mxu0 0.0
    %9151 = vmatprep.subr.mxu0 0.0
    %9152 = vmatpush1.msra.mxu0 0.0
    %9153 = vmatprep.mubr.f32.mxu0 %v9016
    %9154 = vmatmul.mubr.f32.gmra.mrb[0].mxu0 %v9011
    %v9155 = vpop.f32.mrb[0].mxu0
    %v9156 = vadd.f32 0.0, %v9155
    %v9157 = vpop.f32.mrb[0].mxu0
    %9158 = vdwg.mxu0
    %v9159 = vadd.f32 %v8941, %v9085
    %v9160 = vadd.f32 %v8942, %v9087
    %v9161 = vadd.f32 %v8943, %v9156
    %v9162 = vtanh.pop %v8293
    %v9163 = vtanh.pop %v8294
    %v9164 = vtanh.pop %v8295
    %v9168 = vcombine.low %v9162, %v9163
    %v9170 = vunpack.c.l.s4 1983009808
    %v9171 = vunpack.c.0.s8 %v9170
    %v9172 = vlaneseq
    %v9173 = vshrl.u32 %v9172, 7
    %v9174 = vsub.s32 %v9171, %v9173
    %v9175 = vrot.slane %v9168, %v9174
    %v9177 = vunpack.c.l.s4 1983009808
    %v9178 = vunpack.c.0.s8 %v9177
    %v9179 = vlaneseq
    %v9180 = vshrl.u32 %v9179, 7
    %v9181 = vsub.s32 %v9178, %v9180
    %v9182 = vrot.slane %v9164, %v9181
    %v9183 = vcombine.low %v9175, %v9182
    %vm9185 = vcmask 1043458
    %vm9186 = vmor %vm9185, %vm5952
    %vm9187 = vcmask 62468
    %vm9188 = vmor %vm9187, %vm9186
    %9189 = vst.msk [vmem:[#allocation2] sm:$0x3f] %vm9188, %v9183
    %v9190 = vtanh.pop %v9159
    %v9191 = vtanh.pop %v9160
    %v9192 = vtanh.pop %v9161
    %v9196 = vcombine.low %v9190, %v9191
    %v9198 = vunpack.c.l.s4 1983009808
    %v9199 = vunpack.c.0.s8 %v9198
    %v9200 = vlaneseq
    %v9201 = vshrl.u32 %v9200, 7
    %v9202 = vsub.s32 %v9199, %v9201
    %v9203 = vrot.slane %v9196, %v9202
    %v9205 = vunpack.c.l.s4 1983009808
    %v9206 = vunpack.c.0.s8 %v9205
    %v9207 = vlaneseq
    %v9208 = vshrl.u32 %v9207, 7
    %v9209 = vsub.s32 %v9206, %v9208
    %v9210 = vrot.slane %v9192, %v9209
    %v9211 = vcombine.low %v9203, %v9210
    %s9213 = scalar_lea.vmem [#allocation2], 6
    %9214 = vst.msk [vmem:[%s9213] sm:$0x3f] %vm9188, %v9211
    // Predicated region
    $region58: #{generator_forward.1} parent=1 // pred_check
      _
    $region59: #{generator_forward.1} parent=1 // pred_check_branch
      %9216 = sbr.rel (0) target = $region61
    $region60: #{generator_forward.1} parent=1 // pred_region
      %s9218 = ssub.s32 192, 192
      %9219 = vsyncadd [#allocation3], %s9218
      %s9220 = sshll.u32 [#allocation2], 4
      %s9221 = int_to_ptr.vmem [resolvable:$true] %s9220
      %9226 = dma.vmem_to_hbm [thread:$0]  %s9221, 192, %s14, [#allocation3], 96, 96, 6
    $region61: #{generator_forward.1} parent=1 // pred_fallthru
      _
    // Predicated region
    $region62: #{generator_forward.1} parent=1 // pred_check
      _
    $region63: #{generator_forward.1} parent=1 // pred_check_branch
      %9228 = sbr.rel (0) target = $region65
    $region64: #{generator_forward.1} parent=1 // pred_region
      %9229 = dma.done [#allocation3], 192
    $region65: #{generator_forward.1} parent=1 // pred_fallthru
      _
    %9230 = vsyncpa [#allocation3], 1

</llo_original>
